<compile_context>
chip_gen: v7x
topology: tpu7x:2x2x1
jax: 0.10.0
libtpu: 0.0.40
codegen_flags: <defaults>
</compile_context>

<pallas_src>
import functools

import jax
import jax.numpy as jnp
import numpy as np
from jax.experimental import pallas as pl
from jax.experimental.pallas import tpu as pltpu

_VMEM = pl.BlockSpec(memory_space=pltpu.MemorySpace.VMEM)


# ---------------------------------------------------------------------------
# Fused forward kernel
# ---------------------------------------------------------------------------
def _pv_kernel(x_ref, wpre_ref, spre_ref, rw_ref, rs_ref,
               whead_ref, shead_ref, wpfc0_ref, wpfc1_ref, bpfc_ref,
               wvfc1_ref, bvfc1_ref, wvfc2_ref, bvfc2_ref,
               probs_ref, value_ref,
               pad_ref, col_ref,
               *, B, H, W, F, NR):
    """Full PVModel forward.

    x_ref      : (B, H, W, F)   NHWC input, channels zero-padded Cin -> F
    wpre_ref   : (9F, F)        conv_pre weights (BN folded, chan-padded)
    spre_ref   : (1, F)         conv_pre folded shift
    rw_ref     : (2*NR, 9F, F)  residual-tower conv weights (BN folded)
    rs_ref     : (2*NR, 1, F)   residual-tower folded shifts
    whead_ref  : (3, F)         rows: [policy ch0, policy ch1, value ch] 1x1 conv
    shead_ref  : (3, 1)         folded shifts of the head convs
    wpfc0/1    : (H*W, A)       policy FC weight rows for conv channel 0 / 1
    bpfc_ref   : (1, A)
    wvfc1_ref  : (H*W, F), bvfc1_ref (1, F), wvfc2_ref (F, 1), bvfc2_ref (1, 1)
    probs_ref  : (B, A) out     softmaxed policy
    value_ref  : (B, 1) out     tanh value
    pad_ref    : (B, H+2, W+2, F) VMEM scratch (zero-padded activation)
    col_ref    : (B*H*W, 9F)      VMEM scratch (im2col patch matrix)
    """
    BHW = B * H * W
    HW = H * W

    def conv3x3(w, shift):
        # pad_ref already holds the zero-padded input (borders are zero).
        for k in range(9):
            dy, dx = divmod(k, 3)
            col_ref[:, k * F:(k + 1) * F] = (
                pad_ref[:, dy:dy + H, dx:dx + W, :].reshape(BHW, F))
        return jnp.dot(col_ref[...], w,
                       preferred_element_type=jnp.float32) + shift

    # ---- conv_pre --------------------------------------------------------
    # Zero the padded scratch once; the border stays zero for the whole tower.
    pad_ref[...] = jnp.zeros_like(pad_ref)
    pad_ref[:, 1:H + 1, 1:W + 1, :] = x_ref[...]
    x = jnp.maximum(conv3x3(wpre_ref[...], spre_ref[...]), 0.0)        # (BHW, F)

    # ---- residual tower ---------------------------------------------------
    for i in range(NR):
        pad_ref[:, 1:H + 1, 1:W + 1, :] = x.reshape(B, H, W, F)
        y = jnp.maximum(conv3x3(rw_ref[2 * i], rs_ref[2 * i]), 0.0)
        pad_ref[:, 1:H + 1, 1:W + 1, :] = y.reshape(B, H, W, F)
        x = jnp.maximum(conv3x3(rw_ref[2 * i + 1], rs_ref[2 * i + 1]) + x, 0.0)

    # ---- heads: 1x1 convs as VPU weighted-sum reductions -------------------
    x3 = x.reshape(B, HW, F)

    def head_channel(c):
        w = whead_ref[c:c + 1, :].reshape(1, 1, F)
        s = shead_ref[c:c + 1, 0:1]                                   # (1, 1)
        return jnp.maximum(jnp.sum(x3 * w, axis=-1) + s, 0.0)         # (B, HW)

    p0 = head_channel(0)      # policy conv channel 0
    p1 = head_channel(1)      # policy conv channel 1
    vm = head_channel(2)      # value conv channel

    # policy FC + softmax (FC weight pre-split per channel -> no transpose)
    logits = (jnp.dot(p0, wpfc0_ref[...], preferred_element_type=jnp.float32)
              + jnp.dot(p1, wpfc1_ref[...], preferred_element_type=jnp.float32)
              + bpfc_ref[...])
    m = jnp.max(logits, axis=1, keepdims=True)
    e = jnp.exp(logits - m)
    probs_ref[...] = e / jnp.sum(e, axis=1, keepdims=True)

    # value FC -> ReLU -> FC -> tanh
    h = jnp.maximum(
        jnp.dot(vm, wvfc1_ref[...], preferred_element_type=jnp.float32)
        + bvfc1_ref[...], 0.0)
    v = (jnp.dot(h, wvfc2_ref[...], preferred_element_type=jnp.float32)
         + bvfc2_ref[...])
    value_ref[...] = jnp.tanh(v)


# ---------------------------------------------------------------------------
# Wrapper: one pallas_call for the whole network
# ---------------------------------------------------------------------------
def pv_model_forward(x_nchw, kp, cfg):
    B = x_nchw.shape[0]
    N, Cin = cfg["board_size"], cfg["in_channels"]
    F, NR = cfg["filters"], cfg["num_res_blocks"]
    A = 4 * cfg["max_steps"]
    H = W = N

    # One-time tiny layout ops: NCHW -> NHWC, zero-pad channels Cin -> F so the
    # in-kernel padded scratch has a uniform (..., F) lane width everywhere.
    x = jnp.transpose(x_nchw, (0, 2, 3, 1)).astype(jnp.float32)
    x = jnp.pad(x, ((0, 0), (0, 0), (0, 0), (0, F - Cin)))

    kern = functools.partial(_pv_kernel, B=B, H=H, W=W, F=F, NR=NR)
    probs, value = pl.pallas_call(
        kern,
        out_shape=(jax.ShapeDtypeStruct((B, A), jnp.float32),
                   jax.ShapeDtypeStruct((B, 1), jnp.float32)),
        in_specs=[_VMEM] * 14,
        out_specs=(_VMEM, _VMEM),
        scratch_shapes=[
            pltpu.VMEM((B, H + 2, W + 2, F), jnp.float32),   # padded activation
            pltpu.VMEM((B * H * W, 9 * F), jnp.float32),     # im2col matrix
        ],
    )(x, kp["wpre"], kp["spre"], kp["rw"], kp["rs"],
      kp["whead"], kp["shead"], kp["wpfc0"], kp["wpfc1"], kp["bpfc"],
      kp["wvfc1"], kp["bvfc1"], kp["wvfc2"], kp["bvfc2"])
    return probs, value[:, 0]


# ---------------------------------------------------------------------------
# Host-side packing: fold BN, pad channels, split / reshape weights
# ---------------------------------------------------------------------------
def pack_params(p, cfg):
    Cin, F, N = cfg["in_channels"], cfg["filters"], cfg["board_size"]
    HW = N * N

    def fold(w, b, s, t):
        # y = (conv_w(x) + b) * s + t == conv_{w*s}(x) + (b*s + t)
        return w * s, b * s + t

    kp = {}
    w, sh = fold(p["pre_w"], p["pre_b"], p["pre_s"], p["pre_t"])      # (3,3,Cin,F)
    wpre = jnp.zeros((3, 3, F, F), jnp.float32).at[:, :, :Cin, :].set(w)
    kp["wpre"] = wpre.reshape(9 * F, F)
    kp["spre"] = sh.reshape(1, F)

    rws, rss = [], []
    for blk in p["res"]:
        for j in (1, 2):
            w, sh = fold(blk[f"w{j}"], blk[f"b{j}"], blk[f"s{j}"], blk[f"t{j}"])
            rws.append(w.reshape(9 * F, F))
            rss.append(sh.reshape(1, F))
    kp["rw"] = jnp.stack(rws)                                          # (2NR,9F,F)
    kp["rs"] = jnp.stack(rss)                                          # (2NR,1,F)

    wp, sp = fold(p["pol_w"], p["pol_b"], p["pol_s"], p["pol_t"])      # (F,2),(2,)
    wv, sv = fold(p["val_w"], p["val_b"], p["val_s"], p["val_t"])      # (F,1),(1,)
    kp["whead"] = jnp.concatenate([wp, wv], axis=1).T                  # (3, F)
    kp["shead"] = jnp.concatenate([sp, sv]).reshape(3, 1)

    # Policy FC weight rows are in torch (c, h, w) flatten order -> split per c.
    kp["wpfc0"] = p["pfc_w"][:HW]                                      # (HW, A)
    kp["wpfc1"] = p["pfc_w"][HW:]                                      # (HW, A)
    kp["bpfc"] = p["pfc_b"].reshape(1, -1)

    kp["wvfc1"] = p["vfc1_w"]                                          # (HW, F)
    kp["bvfc1"] = p["vfc1_b"].reshape(1, F)
    kp["wvfc2"] = p["vfc2_w"]                                          # (F, 1)
    kp["bvfc2"] = p["vfc2_b"].reshape(1, 1)
    return kp


# ---------------------------------------------------------------------------
# Deterministic synthetic parameters (shapes follow the PyTorch module)
# ---------------------------------------------------------------------------
def init_params(key, in_channels, filters, board_size, num_res_blocks, max_steps):
    keys = iter(jax.random.split(key, 64))

    def nrm(shape, scale=0.05):
        return scale * jax.random.normal(next(keys), shape, jnp.float32)

    def bn(c):
        gamma = 1.0 + 0.1 * jax.random.normal(next(keys), (c,), jnp.float32)
        beta = 0.05 * jax.random.normal(next(keys), (c,), jnp.float32)
        # inference-mode BN: running_mean=0, running_var=1, eps=1e-5
        return gamma / jnp.sqrt(1.0 + 1e-5), beta

    p = {}
    p["pre_w"] = nrm((3, 3, in_channels, filters))       # HWIO
    p["pre_b"] = nrm((filters,))
    p["pre_s"], p["pre_t"] = bn(filters)

    p["res"] = []
    for _ in range(num_res_blocks):
        blk = {}
        blk["w1"] = nrm((3, 3, filters, filters)); blk["b1"] = nrm((filters,))
        blk["s1"], blk["t1"] = bn(filters)
        blk["w2"] = nrm((3, 3, filters, filters)); blk["b2"] = nrm((filters,))
        blk["s2"], blk["t2"] = bn(filters)
        p["res"].append(blk)

    A = 4 * max_steps
    NN = board_size * board_size
    p["pol_w"] = nrm((filters, 2)); p["pol_b"] = nrm((2,))
    p["pol_s"], p["pol_t"] = bn(2)
    p["pfc_w"] = nrm((2 * NN, A))    # (in, out); rows in torch (c,h,w) order
    p["pfc_b"] = nrm((A,))

    p["val_w"] = nrm((filters, 1)); p["val_b"] = nrm((1,))
    p["val_s"], p["val_t"] = bn(1)
    p["vfc1_w"] = nrm((NN, filters)); p["vfc1_b"] = nrm((filters,))
    p["vfc2_w"] = nrm((filters, 1)); p["vfc2_b"] = nrm((1,))
    return p


# ---------------------------------------------------------------------------
# Pure-JAX reference (mirrors the PyTorch module, eval-mode BN)
# ---------------------------------------------------------------------------
def ref_forward(x_nchw, p):
    hp = jax.lax.Precision.HIGHEST
    x = jnp.transpose(x_nchw, (0, 2, 3, 1)).astype(jnp.float32)

    def c3(x, w, b, s, t, res=None, relu=True):
        y = jax.lax.conv_general_dilated(
            x, w, (1, 1), "SAME",
            dimension_numbers=("NHWC", "HWIO", "NHWC"), precision=hp) + b
        y = y * s + t
        if res is not None:
            y = y + res
        return jnp.maximum(y, 0.0) if relu else y

    x = c3(x, p["pre_w"], p["pre_b"], p["pre_s"], p["pre_t"])
    for blk in p["res"]:
        y = c3(x, blk["w1"], blk["b1"], blk["s1"], blk["t1"])
        x = c3(y, blk["w2"], blk["b2"], blk["s2"], blk["t2"], res=x)

    B = x.shape[0]
    pm = jnp.einsum("bhwf,fc->bhwc", x, p["pol_w"], precision=hp) + p["pol_b"]
    pm = jnp.maximum(pm * p["pol_s"] + p["pol_t"], 0.0)
    pm = pm.transpose(0, 3, 1, 2).reshape(B, -1)                 # (c, h, w) order
    logits = jnp.dot(pm, p["pfc_w"], precision=hp) + p["pfc_b"]
    probs = jax.nn.softmax(logits, axis=1)

    vm = jnp.einsum("bhwf,fc->bhwc", x, p["val_w"], precision=hp) + p["val_b"]
    vm = jnp.maximum(vm * p["val_s"] + p["val_t"], 0.0).reshape(B, -1)
    h = jnp.maximum(jnp.dot(vm, p["vfc1_w"], precision=hp) + p["vfc1_b"], 0.0)
    v = jnp.tanh(jnp.dot(h, p["vfc2_w"], precision=hp) + p["vfc2_b"])
    return probs, v[:, 0]


# ---------------------------------------------------------------------------
if __name__ == "__main__":
    cfg = dict(board_size=8, in_channels=5, num_res_blocks=2,
               filters=32, max_steps=8)
    B = 2

    key = jax.random.PRNGKey(0)
    pkey, xkey = jax.random.split(key)
    params = init_params(pkey, cfg["in_channels"], cfg["filters"],
                         cfg["board_size"], cfg["num_res_blocks"],
                         cfg["max_steps"])
    kparams = pack_params(params, cfg)
    x = jax.random.normal(
        xkey, (B, cfg["in_channels"], cfg["board_size"], cfg["board_size"]),
        jnp.float32)

    fwd = jax.jit(functools.partial(pv_model_forward, cfg=cfg))
    probs, value = fwd(x, kparams)
    jax.block_until_ready((probs, value))

    assert probs.shape == (B, 4 * cfg["max_steps"])
    assert value.shape == (B,)

    ref_p, ref_v = ref_forward(x, params)
    np.testing.assert_allclose(np.asarray(probs), np.asarray(ref_p),
                               rtol=1e-3, atol=1e-3)
    np.testing.assert_allclose(np.asarray(value), np.asarray(ref_v),
                               rtol=1e-3, atol=1e-3)

    print("KERNEL_OK")
</pallas_src>

<mosaic_0001>
module attributes {stable_mosaic.version = 11 : i64} {
  func.func @_pv_kernel(%arg0: memref<2x8x8x32xf32, #tpu.memory_space<vmem>>, %arg1: memref<288x32xf32, #tpu.memory_space<vmem>>, %arg2: memref<1x32xf32, #tpu.memory_space<vmem>>, %arg3: memref<4x288x32xf32, #tpu.memory_space<vmem>>, %arg4: memref<4x1x32xf32, #tpu.memory_space<vmem>>, %arg5: memref<3x32xf32, #tpu.memory_space<vmem>>, %arg6: memref<3x1xf32, #tpu.memory_space<vmem>>, %arg7: memref<64x32xf32, #tpu.memory_space<vmem>>, %arg8: memref<64x32xf32, #tpu.memory_space<vmem>>, %arg9: memref<1x32xf32, #tpu.memory_space<vmem>>, %arg10: memref<64x32xf32, #tpu.memory_space<vmem>>, %arg11: memref<1x32xf32, #tpu.memory_space<vmem>>, %arg12: memref<32x1xf32, #tpu.memory_space<vmem>>, %arg13: memref<1x1xf32, #tpu.memory_space<vmem>>, %arg14: memref<2x32xf32, #tpu.memory_space<vmem>>, %arg15: memref<2x1xf32, #tpu.memory_space<vmem>>, %arg16: memref<2x10x10x32xf32, #tpu.memory_space<vmem>>, %arg17: memref<128x288xf32, #tpu.memory_space<vmem>>) attributes {dimension_semantics = [], scalar_prefetch = 0 : i64, scratch_operands = 2 : i64, tpu.core_type = #tpu.core_type<tc>} {
    %cst = arith.constant 0.000000e+00 : f32
    %0 = vector.broadcast %cst : f32 to vector<2x10x10x32xf32>
    %c0 = arith.constant 0 : index
    %c0_0 = arith.constant 0 : index
    %c0_1 = arith.constant 0 : index
    %c0_2 = arith.constant 0 : index
    %1 = vector.load %arg16[%c0, %c0_0, %c0_1, %c0_2] : memref<2x10x10x32xf32, #tpu.memory_space<vmem>>, vector<2x10x10x32xf32>
    tpu.vector_store %arg16[%c0, %c0_0, %c0_1, %c0_2], %0 {strides = array<i32>} : memref<2x10x10x32xf32, #tpu.memory_space<vmem>>, vector<2x10x10x32xf32>,
    %c0_3 = arith.constant 0 : index
    %c0_4 = arith.constant 0 : index
    %c0_5 = arith.constant 0 : index
    %c0_6 = arith.constant 0 : index
    %2 = vector.load %arg0[%c0_3, %c0_4, %c0_5, %c0_6] : memref<2x8x8x32xf32, #tpu.memory_space<vmem>>, vector<2x8x8x32xf32>
    %c0_7 = arith.constant 0 : index
    %c1 = arith.constant 1 : index
    %c1_8 = arith.constant 1 : index
    %c0_9 = arith.constant 0 : index
    %3 = vector.load %arg16[%c0_7, %c1, %c1_8, %c0_9] : memref<2x10x10x32xf32, #tpu.memory_space<vmem>>, vector<2x8x8x32xf32>
    tpu.vector_store %arg16[%c0_7, %c1, %c1_8, %c0_9], %2 {strides = array<i32>} : memref<2x10x10x32xf32, #tpu.memory_space<vmem>>, vector<2x8x8x32xf32>,
    %c0_10 = arith.constant 0 : index
    %c0_11 = arith.constant 0 : index
    %4 = vector.load %arg1[%c0_10, %c0_11] : memref<288x32xf32, #tpu.memory_space<vmem>>, vector<288x32xf32>
    %c0_12 = arith.constant 0 : index
    %c0_13 = arith.constant 0 : index
    %5 = vector.load %arg2[%c0_12, %c0_13] : memref<1x32xf32, #tpu.memory_space<vmem>>, vector<1x32xf32>
    %c0_14 = arith.constant 0 : index
    %c0_15 = arith.constant 0 : index
    %c0_16 = arith.constant 0 : index
    %c0_17 = arith.constant 0 : index
    %6 = vector.load %arg16[%c0_14, %c0_15, %c0_16, %c0_17] : memref<2x10x10x32xf32, #tpu.memory_space<vmem>>, vector<2x8x8x32xf32>
    %7 = vector.shape_cast %6 : vector<2x8x8x32xf32> to vector<128x32xf32>
    %c0_18 = arith.constant 0 : index
    %c0_19 = arith.constant 0 : index
    %8 = vector.load %arg17[%c0_18, %c0_19] : memref<128x288xf32, #tpu.memory_space<vmem>>, vector<128x32xf32>
    tpu.vector_store %arg17[%c0_18, %c0_19], %7 {strides = array<i32>} : memref<128x288xf32, #tpu.memory_space<vmem>>, vector<128x32xf32>,
    %c0_20 = arith.constant 0 : index
    %c0_21 = arith.constant 0 : index
    %c1_22 = arith.constant 1 : index
    %c0_23 = arith.constant 0 : index
    %9 = vector.load %arg16[%c0_20, %c0_21, %c1_22, %c0_23] : memref<2x10x10x32xf32, #tpu.memory_space<vmem>>, vector<2x8x8x32xf32>
    %10 = vector.shape_cast %9 : vector<2x8x8x32xf32> to vector<128x32xf32>
    %c0_24 = arith.constant 0 : index
    %c32 = arith.constant 32 : index
    %11 = vector.load %arg17[%c0_24, %c32] : memref<128x288xf32, #tpu.memory_space<vmem>>, vector<128x32xf32>
    tpu.vector_store %arg17[%c0_24, %c32], %10 {strides = array<i32>} : memref<128x288xf32, #tpu.memory_space<vmem>>, vector<128x32xf32>,
    %c0_25 = arith.constant 0 : index
    %c0_26 = arith.constant 0 : index
    %c2 = arith.constant 2 : index
    %c0_27 = arith.constant 0 : index
    %12 = vector.load %arg16[%c0_25, %c0_26, %c2, %c0_27] : memref<2x10x10x32xf32, #tpu.memory_space<vmem>>, vector<2x8x8x32xf32>
    %13 = vector.shape_cast %12 : vector<2x8x8x32xf32> to vector<128x32xf32>
    %c0_28 = arith.constant 0 : index
    %c64 = arith.constant 64 : index
    %14 = vector.load %arg17[%c0_28, %c64] : memref<128x288xf32, #tpu.memory_space<vmem>>, vector<128x32xf32>
    tpu.vector_store %arg17[%c0_28, %c64], %13 {strides = array<i32>} : memref<128x288xf32, #tpu.memory_space<vmem>>, vector<128x32xf32>,
    %c0_29 = arith.constant 0 : index
    %c1_30 = arith.constant 1 : index
    %c0_31 = arith.constant 0 : index
    %c0_32 = arith.constant 0 : index
    %15 = vector.load %arg16[%c0_29, %c1_30, %c0_31, %c0_32] : memref<2x10x10x32xf32, #tpu.memory_space<vmem>>, vector<2x8x8x32xf32>
    %16 = vector.shape_cast %15 : vector<2x8x8x32xf32> to vector<128x32xf32>
    %c0_33 = arith.constant 0 : index
    %c96 = arith.constant 96 : index
    %17 = vector.load %arg17[%c0_33, %c96] : memref<128x288xf32, #tpu.memory_space<vmem>>, vector<128x32xf32>
    tpu.vector_store %arg17[%c0_33, %c96], %16 {strides = array<i32>} : memref<128x288xf32, #tpu.memory_space<vmem>>, vector<128x32xf32>,
    %c0_34 = arith.constant 0 : index
    %c1_35 = arith.constant 1 : index
    %c1_36 = arith.constant 1 : index
    %c0_37 = arith.constant 0 : index
    %18 = vector.load %arg16[%c0_34, %c1_35, %c1_36, %c0_37] : memref<2x10x10x32xf32, #tpu.memory_space<vmem>>, vector<2x8x8x32xf32>
    %19 = vector.shape_cast %18 : vector<2x8x8x32xf32> to vector<128x32xf32>
    %c0_38 = arith.constant 0 : index
    %c128 = arith.constant 128 : index
    %20 = vector.load %arg17[%c0_38, %c128] : memref<128x288xf32, #tpu.memory_space<vmem>>, vector<128x32xf32>
    tpu.vector_store %arg17[%c0_38, %c128], %19 {strides = array<i32>} : memref<128x288xf32, #tpu.memory_space<vmem>>, vector<128x32xf32>,
    %c0_39 = arith.constant 0 : index
    %c1_40 = arith.constant 1 : index
    %c2_41 = arith.constant 2 : index
    %c0_42 = arith.constant 0 : index
    %21 = vector.load %arg16[%c0_39, %c1_40, %c2_41, %c0_42] : memref<2x10x10x32xf32, #tpu.memory_space<vmem>>, vector<2x8x8x32xf32>
    %22 = vector.shape_cast %21 : vector<2x8x8x32xf32> to vector<128x32xf32>
    %c0_43 = arith.constant 0 : index
    %c160 = arith.constant 160 : index
    %23 = vector.load %arg17[%c0_43, %c160] : memref<128x288xf32, #tpu.memory_space<vmem>>, vector<128x32xf32>
    tpu.vector_store %arg17[%c0_43, %c160], %22 {strides = array<i32>} : memref<128x288xf32, #tpu.memory_space<vmem>>, vector<128x32xf32>,
    %c0_44 = arith.constant 0 : index
    %c2_45 = arith.constant 2 : index
    %c0_46 = arith.constant 0 : index
    %c0_47 = arith.constant 0 : index
    %24 = vector.load %arg16[%c0_44, %c2_45, %c0_46, %c0_47] : memref<2x10x10x32xf32, #tpu.memory_space<vmem>>, vector<2x8x8x32xf32>
    %25 = vector.shape_cast %24 : vector<2x8x8x32xf32> to vector<128x32xf32>
    %c0_48 = arith.constant 0 : index
    %c192 = arith.constant 192 : index
    %26 = vector.load %arg17[%c0_48, %c192] : memref<128x288xf32, #tpu.memory_space<vmem>>, vector<128x32xf32>
    tpu.vector_store %arg17[%c0_48, %c192], %25 {strides = array<i32>} : memref<128x288xf32, #tpu.memory_space<vmem>>, vector<128x32xf32>,
    %c0_49 = arith.constant 0 : index
    %c2_50 = arith.constant 2 : index
    %c1_51 = arith.constant 1 : index
    %c0_52 = arith.constant 0 : index
    %27 = vector.load %arg16[%c0_49, %c2_50, %c1_51, %c0_52] : memref<2x10x10x32xf32, #tpu.memory_space<vmem>>, vector<2x8x8x32xf32>
    %28 = vector.shape_cast %27 : vector<2x8x8x32xf32> to vector<128x32xf32>
    %c0_53 = arith.constant 0 : index
    %c224 = arith.constant 224 : index
    %29 = vector.load %arg17[%c0_53, %c224] : memref<128x288xf32, #tpu.memory_space<vmem>>, vector<128x32xf32>
    tpu.vector_store %arg17[%c0_53, %c224], %28 {strides = array<i32>} : memref<128x288xf32, #tpu.memory_space<vmem>>, vector<128x32xf32>,
    %c0_54 = arith.constant 0 : index
    %c2_55 = arith.constant 2 : index
    %c2_56 = arith.constant 2 : index
    %c0_57 = arith.constant 0 : index
    %30 = vector.load %arg16[%c0_54, %c2_55, %c2_56, %c0_57] : memref<2x10x10x32xf32, #tpu.memory_space<vmem>>, vector<2x8x8x32xf32>
    %31 = vector.shape_cast %30 : vector<2x8x8x32xf32> to vector<128x32xf32>
    %c0_58 = arith.constant 0 : index
    %c256 = arith.constant 256 : index
    %32 = vector.load %arg17[%c0_58, %c256] : memref<128x288xf32, #tpu.memory_space<vmem>>, vector<128x32xf32>
    tpu.vector_store %arg17[%c0_58, %c256], %31 {strides = array<i32>} : memref<128x288xf32, #tpu.memory_space<vmem>>, vector<128x32xf32>,
    %c0_59 = arith.constant 0 : index
    %c0_60 = arith.constant 0 : index
    %33 = vector.load %arg17[%c0_59, %c0_60] : memref<128x288xf32, #tpu.memory_space<vmem>>, vector<128x288xf32>
    %cst_61 = arith.constant dense<0.000000e+00> : vector<128x32xf32>
    %34 = tpu.matmul %33, %4, %cst_61 {dimension_numbers = #tpu.dot_dimension_numbers<[1], [0], [0], [1], [0, 0, 1, 1], [], []>} : vector<128x288xf32>, vector<288x32xf32>, vector<128x32xf32> -> vector<128x32xf32>
    %35 = vector.broadcast %5 : vector<1x32xf32> to vector<128x32xf32>
    %36 = arith.addf %34, %35 : vector<128x32xf32>
    %cst_62 = arith.constant 0.000000e+00 : f32
    %37 = vector.broadcast %cst_62 : f32 to vector<128x32xf32>
    %38 = arith.maximumf %36, %37 : vector<128x32xf32>
    %39 = vector.shape_cast %38 : vector<128x32xf32> to vector<2x8x8x32xf32>
    %c0_63 = arith.constant 0 : index
    %c1_64 = arith.constant 1 : index
    %c1_65 = arith.constant 1 : index
    %c0_66 = arith.constant 0 : index
    %40 = vector.load %arg16[%c0_63, %c1_64, %c1_65, %c0_66] : memref<2x10x10x32xf32, #tpu.memory_space<vmem>>, vector<2x8x8x32xf32>
    tpu.vector_store %arg16[%c0_63, %c1_64, %c1_65, %c0_66], %39 {strides = array<i32>} : memref<2x10x10x32xf32, #tpu.memory_space<vmem>>, vector<2x8x8x32xf32>,
    %c0_67 = arith.constant 0 : index
    %c0_68 = arith.constant 0 : index
    %c0_69 = arith.constant 0 : index
    %41 = vector.load %arg3[%c0_67, %c0_68, %c0_69] : memref<4x288x32xf32, #tpu.memory_space<vmem>>, vector<1x288x32xf32>
    %42 = vector.shape_cast %41 : vector<1x288x32xf32> to vector<288x32xf32>
    %c0_70 = arith.constant 0 : index
    %c0_71 = arith.constant 0 : index
    %c0_72 = arith.constant 0 : index
    %43 = vector.load %arg4[%c0_70, %c0_71, %c0_72] : memref<4x1x32xf32, #tpu.memory_space<vmem>>, vector<1x1x32xf32>
    %44 = vector.shape_cast %43 : vector<1x1x32xf32> to vector<1x32xf32>
    %c0_73 = arith.constant 0 : index
    %c0_74 = arith.constant 0 : index
    %c0_75 = arith.constant 0 : index
    %c0_76 = arith.constant 0 : index
    %45 = vector.load %arg16[%c0_73, %c0_74, %c0_75, %c0_76] : memref<2x10x10x32xf32, #tpu.memory_space<vmem>>, vector<2x8x8x32xf32>
    %46 = vector.shape_cast %45 : vector<2x8x8x32xf32> to vector<128x32xf32>
    %c0_77 = arith.constant 0 : index
    %c0_78 = arith.constant 0 : index
    %47 = vector.load %arg17[%c0_77, %c0_78] : memref<128x288xf32, #tpu.memory_space<vmem>>, vector<128x32xf32>
    tpu.vector_store %arg17[%c0_77, %c0_78], %46 {strides = array<i32>} : memref<128x288xf32, #tpu.memory_space<vmem>>, vector<128x32xf32>,
    %c0_79 = arith.constant 0 : index
    %c0_80 = arith.constant 0 : index
    %c1_81 = arith.constant 1 : index
    %c0_82 = arith.constant 0 : index
    %48 = vector.load %arg16[%c0_79, %c0_80, %c1_81, %c0_82] : memref<2x10x10x32xf32, #tpu.memory_space<vmem>>, vector<2x8x8x32xf32>
    %49 = vector.shape_cast %48 : vector<2x8x8x32xf32> to vector<128x32xf32>
    %c0_83 = arith.constant 0 : index
    %c32_84 = arith.constant 32 : index
    %50 = vector.load %arg17[%c0_83, %c32_84] : memref<128x288xf32, #tpu.memory_space<vmem>>, vector<128x32xf32>
    tpu.vector_store %arg17[%c0_83, %c32_84], %49 {strides = array<i32>} : memref<128x288xf32, #tpu.memory_space<vmem>>, vector<128x32xf32>,
    %c0_85 = arith.constant 0 : index
    %c0_86 = arith.constant 0 : index
    %c2_87 = arith.constant 2 : index
    %c0_88 = arith.constant 0 : index
    %51 = vector.load %arg16[%c0_85, %c0_86, %c2_87, %c0_88] : memref<2x10x10x32xf32, #tpu.memory_space<vmem>>, vector<2x8x8x32xf32>
    %52 = vector.shape_cast %51 : vector<2x8x8x32xf32> to vector<128x32xf32>
    %c0_89 = arith.constant 0 : index
    %c64_90 = arith.constant 64 : index
    %53 = vector.load %arg17[%c0_89, %c64_90] : memref<128x288xf32, #tpu.memory_space<vmem>>, vector<128x32xf32>
    tpu.vector_store %arg17[%c0_89, %c64_90], %52 {strides = array<i32>} : memref<128x288xf32, #tpu.memory_space<vmem>>, vector<128x32xf32>,
    %c0_91 = arith.constant 0 : index
    %c1_92 = arith.constant 1 : index
    %c0_93 = arith.constant 0 : index
    %c0_94 = arith.constant 0 : index
    %54 = vector.load %arg16[%c0_91, %c1_92, %c0_93, %c0_94] : memref<2x10x10x32xf32, #tpu.memory_space<vmem>>, vector<2x8x8x32xf32>
    %55 = vector.shape_cast %54 : vector<2x8x8x32xf32> to vector<128x32xf32>
    %c0_95 = arith.constant 0 : index
    %c96_96 = arith.constant 96 : index
    %56 = vector.load %arg17[%c0_95, %c96_96] : memref<128x288xf32, #tpu.memory_space<vmem>>, vector<128x32xf32>
    tpu.vector_store %arg17[%c0_95, %c96_96], %55 {strides = array<i32>} : memref<128x288xf32, #tpu.memory_space<vmem>>, vector<128x32xf32>,
    %c0_97 = arith.constant 0 : index
    %c1_98 = arith.constant 1 : index
    %c1_99 = arith.constant 1 : index
    %c0_100 = arith.constant 0 : index
    %57 = vector.load %arg16[%c0_97, %c1_98, %c1_99, %c0_100] : memref<2x10x10x32xf32, #tpu.memory_space<vmem>>, vector<2x8x8x32xf32>
    %58 = vector.shape_cast %57 : vector<2x8x8x32xf32> to vector<128x32xf32>
    %c0_101 = arith.constant 0 : index
    %c128_102 = arith.constant 128 : index
    %59 = vector.load %arg17[%c0_101, %c128_102] : memref<128x288xf32, #tpu.memory_space<vmem>>, vector<128x32xf32>
    tpu.vector_store %arg17[%c0_101, %c128_102], %58 {strides = array<i32>} : memref<128x288xf32, #tpu.memory_space<vmem>>, vector<128x32xf32>,
    %c0_103 = arith.constant 0 : index
    %c1_104 = arith.constant 1 : index
    %c2_105 = arith.constant 2 : index
    %c0_106 = arith.constant 0 : index
    %60 = vector.load %arg16[%c0_103, %c1_104, %c2_105, %c0_106] : memref<2x10x10x32xf32, #tpu.memory_space<vmem>>, vector<2x8x8x32xf32>
    %61 = vector.shape_cast %60 : vector<2x8x8x32xf32> to vector<128x32xf32>
    %c0_107 = arith.constant 0 : index
    %c160_108 = arith.constant 160 : index
    %62 = vector.load %arg17[%c0_107, %c160_108] : memref<128x288xf32, #tpu.memory_space<vmem>>, vector<128x32xf32>
    tpu.vector_store %arg17[%c0_107, %c160_108], %61 {strides = array<i32>} : memref<128x288xf32, #tpu.memory_space<vmem>>, vector<128x32xf32>,
    %c0_109 = arith.constant 0 : index
    %c2_110 = arith.constant 2 : index
    %c0_111 = arith.constant 0 : index
    %c0_112 = arith.constant 0 : index
    %63 = vector.load %arg16[%c0_109, %c2_110, %c0_111, %c0_112] : memref<2x10x10x32xf32, #tpu.memory_space<vmem>>, vector<2x8x8x32xf32>
    %64 = vector.shape_cast %63 : vector<2x8x8x32xf32> to vector<128x32xf32>
    %c0_113 = arith.constant 0 : index
    %c192_114 = arith.constant 192 : index
    %65 = vector.load %arg17[%c0_113, %c192_114] : memref<128x288xf32, #tpu.memory_space<vmem>>, vector<128x32xf32>
    tpu.vector_store %arg17[%c0_113, %c192_114], %64 {strides = array<i32>} : memref<128x288xf32, #tpu.memory_space<vmem>>, vector<128x32xf32>,
    %c0_115 = arith.constant 0 : index
    %c2_116 = arith.constant 2 : index
    %c1_117 = arith.constant 1 : index
    %c0_118 = arith.constant 0 : index
    %66 = vector.load %arg16[%c0_115, %c2_116, %c1_117, %c0_118] : memref<2x10x10x32xf32, #tpu.memory_space<vmem>>, vector<2x8x8x32xf32>
    %67 = vector.shape_cast %66 : vector<2x8x8x32xf32> to vector<128x32xf32>
    %c0_119 = arith.constant 0 : index
    %c224_120 = arith.constant 224 : index
    %68 = vector.load %arg17[%c0_119, %c224_120] : memref<128x288xf32, #tpu.memory_space<vmem>>, vector<128x32xf32>
    tpu.vector_store %arg17[%c0_119, %c224_120], %67 {strides = array<i32>} : memref<128x288xf32, #tpu.memory_space<vmem>>, vector<128x32xf32>,
    %c0_121 = arith.constant 0 : index
    %c2_122 = arith.constant 2 : index
    %c2_123 = arith.constant 2 : index
    %c0_124 = arith.constant 0 : index
    %69 = vector.load %arg16[%c0_121, %c2_122, %c2_123, %c0_124] : memref<2x10x10x32xf32, #tpu.memory_space<vmem>>, vector<2x8x8x32xf32>
    %70 = vector.shape_cast %69 : vector<2x8x8x32xf32> to vector<128x32xf32>
    %c0_125 = arith.constant 0 : index
    %c256_126 = arith.constant 256 : index
    %71 = vector.load %arg17[%c0_125, %c256_126] : memref<128x288xf32, #tpu.memory_space<vmem>>, vector<128x32xf32>
    tpu.vector_store %arg17[%c0_125, %c256_126], %70 {strides = array<i32>} : memref<128x288xf32, #tpu.memory_space<vmem>>, vector<128x32xf32>,
    %c0_127 = arith.constant 0 : index
    %c0_128 = arith.constant 0 : index
    %72 = vector.load %arg17[%c0_127, %c0_128] : memref<128x288xf32, #tpu.memory_space<vmem>>, vector<128x288xf32>
    %cst_129 = arith.constant dense<0.000000e+00> : vector<128x32xf32>
    %73 = tpu.matmul %72, %42, %cst_129 {dimension_numbers = #tpu.dot_dimension_numbers<[1], [0], [0], [1], [0, 0, 1, 1], [], []>} : vector<128x288xf32>, vector<288x32xf32>, vector<128x32xf32> -> vector<128x32xf32>
    %74 = vector.broadcast %44 : vector<1x32xf32> to vector<128x32xf32>
    %75 = arith.addf %73, %74 : vector<128x32xf32>
    %cst_130 = arith.constant 0.000000e+00 : f32
    %76 = vector.broadcast %cst_130 : f32 to vector<128x32xf32>
    %77 = arith.maximumf %75, %76 : vector<128x32xf32>
    %78 = vector.shape_cast %77 : vector<128x32xf32> to vector<2x8x8x32xf32>
    %c0_131 = arith.constant 0 : index
    %c1_132 = arith.constant 1 : index
    %c1_133 = arith.constant 1 : index
    %c0_134 = arith.constant 0 : index
    %79 = vector.load %arg16[%c0_131, %c1_132, %c1_133, %c0_134] : memref<2x10x10x32xf32, #tpu.memory_space<vmem>>, vector<2x8x8x32xf32>
    tpu.vector_store %arg16[%c0_131, %c1_132, %c1_133, %c0_134], %78 {strides = array<i32>} : memref<2x10x10x32xf32, #tpu.memory_space<vmem>>, vector<2x8x8x32xf32>,
    %c1_135 = arith.constant 1 : index
    %c0_136 = arith.constant 0 : index
    %c0_137 = arith.constant 0 : index
    %80 = vector.load %arg3[%c1_135, %c0_136, %c0_137] : memref<4x288x32xf32, #tpu.memory_space<vmem>>, vector<1x288x32xf32>
    %81 = vector.shape_cast %80 : vector<1x288x32xf32> to vector<288x32xf32>
    %c1_138 = arith.constant 1 : index
    %c0_139 = arith.constant 0 : index
    %c0_140 = arith.constant 0 : index
    %82 = vector.load %arg4[%c1_138, %c0_139, %c0_140] : memref<4x1x32xf32, #tpu.memory_space<vmem>>, vector<1x1x32xf32>
    %83 = vector.shape_cast %82 : vector<1x1x32xf32> to vector<1x32xf32>
    %c0_141 = arith.constant 0 : index
    %c0_142 = arith.constant 0 : index
    %c0_143 = arith.constant 0 : index
    %c0_144 = arith.constant 0 : index
    %84 = vector.load %arg16[%c0_141, %c0_142, %c0_143, %c0_144] : memref<2x10x10x32xf32, #tpu.memory_space<vmem>>, vector<2x8x8x32xf32>
    %85 = vector.shape_cast %84 : vector<2x8x8x32xf32> to vector<128x32xf32>
    %c0_145 = arith.constant 0 : index
    %c0_146 = arith.constant 0 : index
    %86 = vector.load %arg17[%c0_145, %c0_146] : memref<128x288xf32, #tpu.memory_space<vmem>>, vector<128x32xf32>
    tpu.vector_store %arg17[%c0_145, %c0_146], %85 {strides = array<i32>} : memref<128x288xf32, #tpu.memory_space<vmem>>, vector<128x32xf32>,
    %c0_147 = arith.constant 0 : index
    %c0_148 = arith.constant 0 : index
    %c1_149 = arith.constant 1 : index
    %c0_150 = arith.constant 0 : index
    %87 = vector.load %arg16[%c0_147, %c0_148, %c1_149, %c0_150] : memref<2x10x10x32xf32, #tpu.memory_space<vmem>>, vector<2x8x8x32xf32>
    %88 = vector.shape_cast %87 : vector<2x8x8x32xf32> to vector<128x32xf32>
    %c0_151 = arith.constant 0 : index
    %c32_152 = arith.constant 32 : index
    %89 = vector.load %arg17[%c0_151, %c32_152] : memref<128x288xf32, #tpu.memory_space<vmem>>, vector<128x32xf32>
    tpu.vector_store %arg17[%c0_151, %c32_152], %88 {strides = array<i32>} : memref<128x288xf32, #tpu.memory_space<vmem>>, vector<128x32xf32>,
    %c0_153 = arith.constant 0 : index
    %c0_154 = arith.constant 0 : index
    %c2_155 = arith.constant 2 : index
    %c0_156 = arith.constant 0 : index
    %90 = vector.load %arg16[%c0_153, %c0_154, %c2_155, %c0_156] : memref<2x10x10x32xf32, #tpu.memory_space<vmem>>, vector<2x8x8x32xf32>
    %91 = vector.shape_cast %90 : vector<2x8x8x32xf32> to vector<128x32xf32>
    %c0_157 = arith.constant 0 : index
    %c64_158 = arith.constant 64 : index
    %92 = vector.load %arg17[%c0_157, %c64_158] : memref<128x288xf32, #tpu.memory_space<vmem>>, vector<128x32xf32>
    tpu.vector_store %arg17[%c0_157, %c64_158], %91 {strides = array<i32>} : memref<128x288xf32, #tpu.memory_space<vmem>>, vector<128x32xf32>,
    %c0_159 = arith.constant 0 : index
    %c1_160 = arith.constant 1 : index
    %c0_161 = arith.constant 0 : index
    %c0_162 = arith.constant 0 : index
    %93 = vector.load %arg16[%c0_159, %c1_160, %c0_161, %c0_162] : memref<2x10x10x32xf32, #tpu.memory_space<vmem>>, vector<2x8x8x32xf32>
    %94 = vector.shape_cast %93 : vector<2x8x8x32xf32> to vector<128x32xf32>
    %c0_163 = arith.constant 0 : index
    %c96_164 = arith.constant 96 : index
    %95 = vector.load %arg17[%c0_163, %c96_164] : memref<128x288xf32, #tpu.memory_space<vmem>>, vector<128x32xf32>
    tpu.vector_store %arg17[%c0_163, %c96_164], %94 {strides = array<i32>} : memref<128x288xf32, #tpu.memory_space<vmem>>, vector<128x32xf32>,
    %c0_165 = arith.constant 0 : index
    %c1_166 = arith.constant 1 : index
    %c1_167 = arith.constant 1 : index
    %c0_168 = arith.constant 0 : index
    %96 = vector.load %arg16[%c0_165, %c1_166, %c1_167, %c0_168] : memref<2x10x10x32xf32, #tpu.memory_space<vmem>>, vector<2x8x8x32xf32>
    %97 = vector.shape_cast %96 : vector<2x8x8x32xf32> to vector<128x32xf32>
    %c0_169 = arith.constant 0 : index
    %c128_170 = arith.constant 128 : index
    %98 = vector.load %arg17[%c0_169, %c128_170] : memref<128x288xf32, #tpu.memory_space<vmem>>, vector<128x32xf32>
    tpu.vector_store %arg17[%c0_169, %c128_170], %97 {strides = array<i32>} : memref<128x288xf32, #tpu.memory_space<vmem>>, vector<128x32xf32>,
    %c0_171 = arith.constant 0 : index
    %c1_172 = arith.constant 1 : index
    %c2_173 = arith.constant 2 : index
    %c0_174 = arith.constant 0 : index
    %99 = vector.load %arg16[%c0_171, %c1_172, %c2_173, %c0_174] : memref<2x10x10x32xf32, #tpu.memory_space<vmem>>, vector<2x8x8x32xf32>
    %100 = vector.shape_cast %99 : vector<2x8x8x32xf32> to vector<128x32xf32>
    %c0_175 = arith.constant 0 : index
    %c160_176 = arith.constant 160 : index
    %101 = vector.load %arg17[%c0_175, %c160_176] : memref<128x288xf32, #tpu.memory_space<vmem>>, vector<128x32xf32>
    tpu.vector_store %arg17[%c0_175, %c160_176], %100 {strides = array<i32>} : memref<128x288xf32, #tpu.memory_space<vmem>>, vector<128x32xf32>,
    %c0_177 = arith.constant 0 : index
    %c2_178 = arith.constant 2 : index
    %c0_179 = arith.constant 0 : index
    %c0_180 = arith.constant 0 : index
    %102 = vector.load %arg16[%c0_177, %c2_178, %c0_179, %c0_180] : memref<2x10x10x32xf32, #tpu.memory_space<vmem>>, vector<2x8x8x32xf32>
    %103 = vector.shape_cast %102 : vector<2x8x8x32xf32> to vector<128x32xf32>
    %c0_181 = arith.constant 0 : index
    %c192_182 = arith.constant 192 : index
    %104 = vector.load %arg17[%c0_181, %c192_182] : memref<128x288xf32, #tpu.memory_space<vmem>>, vector<128x32xf32>
    tpu.vector_store %arg17[%c0_181, %c192_182], %103 {strides = array<i32>} : memref<128x288xf32, #tpu.memory_space<vmem>>, vector<128x32xf32>,
    %c0_183 = arith.constant 0 : index
    %c2_184 = arith.constant 2 : index
    %c1_185 = arith.constant 1 : index
    %c0_186 = arith.constant 0 : index
    %105 = vector.load %arg16[%c0_183, %c2_184, %c1_185, %c0_186] : memref<2x10x10x32xf32, #tpu.memory_space<vmem>>, vector<2x8x8x32xf32>
    %106 = vector.shape_cast %105 : vector<2x8x8x32xf32> to vector<128x32xf32>
    %c0_187 = arith.constant 0 : index
    %c224_188 = arith.constant 224 : index
    %107 = vector.load %arg17[%c0_187, %c224_188] : memref<128x288xf32, #tpu.memory_space<vmem>>, vector<128x32xf32>
    tpu.vector_store %arg17[%c0_187, %c224_188], %106 {strides = array<i32>} : memref<128x288xf32, #tpu.memory_space<vmem>>, vector<128x32xf32>,
    %c0_189 = arith.constant 0 : index
    %c2_190 = arith.constant 2 : index
    %c2_191 = arith.constant 2 : index
    %c0_192 = arith.constant 0 : index
    %108 = vector.load %arg16[%c0_189, %c2_190, %c2_191, %c0_192] : memref<2x10x10x32xf32, #tpu.memory_space<vmem>>, vector<2x8x8x32xf32>
    %109 = vector.shape_cast %108 : vector<2x8x8x32xf32> to vector<128x32xf32>
    %c0_193 = arith.constant 0 : index
    %c256_194 = arith.constant 256 : index
    %110 = vector.load %arg17[%c0_193, %c256_194] : memref<128x288xf32, #tpu.memory_space<vmem>>, vector<128x32xf32>
    tpu.vector_store %arg17[%c0_193, %c256_194], %109 {strides = array<i32>} : memref<128x288xf32, #tpu.memory_space<vmem>>, vector<128x32xf32>,
    %c0_195 = arith.constant 0 : index
    %c0_196 = arith.constant 0 : index
    %111 = vector.load %arg17[%c0_195, %c0_196] : memref<128x288xf32, #tpu.memory_space<vmem>>, vector<128x288xf32>
    %cst_197 = arith.constant dense<0.000000e+00> : vector<128x32xf32>
    %112 = tpu.matmul %111, %81, %cst_197 {dimension_numbers = #tpu.dot_dimension_numbers<[1], [0], [0], [1], [0, 0, 1, 1], [], []>} : vector<128x288xf32>, vector<288x32xf32>, vector<128x32xf32> -> vector<128x32xf32>
    %113 = vector.broadcast %83 : vector<1x32xf32> to vector<128x32xf32>
    %114 = arith.addf %112, %113 : vector<128x32xf32>
    %115 = arith.addf %114, %38 : vector<128x32xf32>
    %cst_198 = arith.constant 0.000000e+00 : f32
    %116 = vector.broadcast %cst_198 : f32 to vector<128x32xf32>
    %117 = arith.maximumf %115, %116 : vector<128x32xf32>
    %118 = vector.shape_cast %117 : vector<128x32xf32> to vector<2x8x8x32xf32>
    %c0_199 = arith.constant 0 : index
    %c1_200 = arith.constant 1 : index
    %c1_201 = arith.constant 1 : index
    %c0_202 = arith.constant 0 : index
    %119 = vector.load %arg16[%c0_199, %c1_200, %c1_201, %c0_202] : memref<2x10x10x32xf32, #tpu.memory_space<vmem>>, vector<2x8x8x32xf32>
    tpu.vector_store %arg16[%c0_199, %c1_200, %c1_201, %c0_202], %118 {strides = array<i32>} : memref<2x10x10x32xf32, #tpu.memory_space<vmem>>, vector<2x8x8x32xf32>,
    %c2_203 = arith.constant 2 : index
    %c0_204 = arith.constant 0 : index
    %c0_205 = arith.constant 0 : index
    %120 = vector.load %arg3[%c2_203, %c0_204, %c0_205] : memref<4x288x32xf32, #tpu.memory_space<vmem>>, vector<1x288x32xf32>
    %121 = vector.shape_cast %120 : vector<1x288x32xf32> to vector<288x32xf32>
    %c2_206 = arith.constant 2 : index
    %c0_207 = arith.constant 0 : index
    %c0_208 = arith.constant 0 : index
    %122 = vector.load %arg4[%c2_206, %c0_207, %c0_208] : memref<4x1x32xf32, #tpu.memory_space<vmem>>, vector<1x1x32xf32>
    %123 = vector.shape_cast %122 : vector<1x1x32xf32> to vector<1x32xf32>
    %c0_209 = arith.constant 0 : index
    %c0_210 = arith.constant 0 : index
    %c0_211 = arith.constant 0 : index
    %c0_212 = arith.constant 0 : index
    %124 = vector.load %arg16[%c0_209, %c0_210, %c0_211, %c0_212] : memref<2x10x10x32xf32, #tpu.memory_space<vmem>>, vector<2x8x8x32xf32>
    %125 = vector.shape_cast %124 : vector<2x8x8x32xf32> to vector<128x32xf32>
    %c0_213 = arith.constant 0 : index
    %c0_214 = arith.constant 0 : index
    %126 = vector.load %arg17[%c0_213, %c0_214] : memref<128x288xf32, #tpu.memory_space<vmem>>, vector<128x32xf32>
    tpu.vector_store %arg17[%c0_213, %c0_214], %125 {strides = array<i32>} : memref<128x288xf32, #tpu.memory_space<vmem>>, vector<128x32xf32>,
    %c0_215 = arith.constant 0 : index
    %c0_216 = arith.constant 0 : index
    %c1_217 = arith.constant 1 : index
    %c0_218 = arith.constant 0 : index
    %127 = vector.load %arg16[%c0_215, %c0_216, %c1_217, %c0_218] : memref<2x10x10x32xf32, #tpu.memory_space<vmem>>, vector<2x8x8x32xf32>
    %128 = vector.shape_cast %127 : vector<2x8x8x32xf32> to vector<128x32xf32>
    %c0_219 = arith.constant 0 : index
    %c32_220 = arith.constant 32 : index
    %129 = vector.load %arg17[%c0_219, %c32_220] : memref<128x288xf32, #tpu.memory_space<vmem>>, vector<128x32xf32>
    tpu.vector_store %arg17[%c0_219, %c32_220], %128 {strides = array<i32>} : memref<128x288xf32, #tpu.memory_space<vmem>>, vector<128x32xf32>,
    %c0_221 = arith.constant 0 : index
    %c0_222 = arith.constant 0 : index
    %c2_223 = arith.constant 2 : index
    %c0_224 = arith.constant 0 : index
    %130 = vector.load %arg16[%c0_221, %c0_222, %c2_223, %c0_224] : memref<2x10x10x32xf32, #tpu.memory_space<vmem>>, vector<2x8x8x32xf32>
    %131 = vector.shape_cast %130 : vector<2x8x8x32xf32> to vector<128x32xf32>
    %c0_225 = arith.constant 0 : index
    %c64_226 = arith.constant 64 : index
    %132 = vector.load %arg17[%c0_225, %c64_226] : memref<128x288xf32, #tpu.memory_space<vmem>>, vector<128x32xf32>
    tpu.vector_store %arg17[%c0_225, %c64_226], %131 {strides = array<i32>} : memref<128x288xf32, #tpu.memory_space<vmem>>, vector<128x32xf32>,
    %c0_227 = arith.constant 0 : index
    %c1_228 = arith.constant 1 : index
    %c0_229 = arith.constant 0 : index
    %c0_230 = arith.constant 0 : index
    %133 = vector.load %arg16[%c0_227, %c1_228, %c0_229, %c0_230] : memref<2x10x10x32xf32, #tpu.memory_space<vmem>>, vector<2x8x8x32xf32>
    %134 = vector.shape_cast %133 : vector<2x8x8x32xf32> to vector<128x32xf32>
    %c0_231 = arith.constant 0 : index
    %c96_232 = arith.constant 96 : index
    %135 = vector.load %arg17[%c0_231, %c96_232] : memref<128x288xf32, #tpu.memory_space<vmem>>, vector<128x32xf32>
    tpu.vector_store %arg17[%c0_231, %c96_232], %134 {strides = array<i32>} : memref<128x288xf32, #tpu.memory_space<vmem>>, vector<128x32xf32>,
    %c0_233 = arith.constant 0 : index
    %c1_234 = arith.constant 1 : index
    %c1_235 = arith.constant 1 : index
    %c0_236 = arith.constant 0 : index
    %136 = vector.load %arg16[%c0_233, %c1_234, %c1_235, %c0_236] : memref<2x10x10x32xf32, #tpu.memory_space<vmem>>, vector<2x8x8x32xf32>
    %137 = vector.shape_cast %136 : vector<2x8x8x32xf32> to vector<128x32xf32>
    %c0_237 = arith.constant 0 : index
    %c128_238 = arith.constant 128 : index
    %138 = vector.load %arg17[%c0_237, %c128_238] : memref<128x288xf32, #tpu.memory_space<vmem>>, vector<128x32xf32>
    tpu.vector_store %arg17[%c0_237, %c128_238], %137 {strides = array<i32>} : memref<128x288xf32, #tpu.memory_space<vmem>>, vector<128x32xf32>,
    %c0_239 = arith.constant 0 : index
    %c1_240 = arith.constant 1 : index
    %c2_241 = arith.constant 2 : index
    %c0_242 = arith.constant 0 : index
    %139 = vector.load %arg16[%c0_239, %c1_240, %c2_241, %c0_242] : memref<2x10x10x32xf32, #tpu.memory_space<vmem>>, vector<2x8x8x32xf32>
    %140 = vector.shape_cast %139 : vector<2x8x8x32xf32> to vector<128x32xf32>
    %c0_243 = arith.constant 0 : index
    %c160_244 = arith.constant 160 : index
    %141 = vector.load %arg17[%c0_243, %c160_244] : memref<128x288xf32, #tpu.memory_space<vmem>>, vector<128x32xf32>
    tpu.vector_store %arg17[%c0_243, %c160_244], %140 {strides = array<i32>} : memref<128x288xf32, #tpu.memory_space<vmem>>, vector<128x32xf32>,
    %c0_245 = arith.constant 0 : index
    %c2_246 = arith.constant 2 : index
    %c0_247 = arith.constant 0 : index
    %c0_248 = arith.constant 0 : index
    %142 = vector.load %arg16[%c0_245, %c2_246, %c0_247, %c0_248] : memref<2x10x10x32xf32, #tpu.memory_space<vmem>>, vector<2x8x8x32xf32>
    %143 = vector.shape_cast %142 : vector<2x8x8x32xf32> to vector<128x32xf32>
    %c0_249 = arith.constant 0 : index
    %c192_250 = arith.constant 192 : index
    %144 = vector.load %arg17[%c0_249, %c192_250] : memref<128x288xf32, #tpu.memory_space<vmem>>, vector<128x32xf32>
    tpu.vector_store %arg17[%c0_249, %c192_250], %143 {strides = array<i32>} : memref<128x288xf32, #tpu.memory_space<vmem>>, vector<128x32xf32>,
    %c0_251 = arith.constant 0 : index
    %c2_252 = arith.constant 2 : index
    %c1_253 = arith.constant 1 : index
    %c0_254 = arith.constant 0 : index
    %145 = vector.load %arg16[%c0_251, %c2_252, %c1_253, %c0_254] : memref<2x10x10x32xf32, #tpu.memory_space<vmem>>, vector<2x8x8x32xf32>
    %146 = vector.shape_cast %145 : vector<2x8x8x32xf32> to vector<128x32xf32>
    %c0_255 = arith.constant 0 : index
    %c224_256 = arith.constant 224 : index
    %147 = vector.load %arg17[%c0_255, %c224_256] : memref<128x288xf32, #tpu.memory_space<vmem>>, vector<128x32xf32>
    tpu.vector_store %arg17[%c0_255, %c224_256], %146 {strides = array<i32>} : memref<128x288xf32, #tpu.memory_space<vmem>>, vector<128x32xf32>,
    %c0_257 = arith.constant 0 : index
    %c2_258 = arith.constant 2 : index
    %c2_259 = arith.constant 2 : index
    %c0_260 = arith.constant 0 : index
    %148 = vector.load %arg16[%c0_257, %c2_258, %c2_259, %c0_260] : memref<2x10x10x32xf32, #tpu.memory_space<vmem>>, vector<2x8x8x32xf32>
    %149 = vector.shape_cast %148 : vector<2x8x8x32xf32> to vector<128x32xf32>
    %c0_261 = arith.constant 0 : index
    %c256_262 = arith.constant 256 : index
    %150 = vector.load %arg17[%c0_261, %c256_262] : memref<128x288xf32, #tpu.memory_space<vmem>>, vector<128x32xf32>
    tpu.vector_store %arg17[%c0_261, %c256_262], %149 {strides = array<i32>} : memref<128x288xf32, #tpu.memory_space<vmem>>, vector<128x32xf32>,
    %c0_263 = arith.constant 0 : index
    %c0_264 = arith.constant 0 : index
    %151 = vector.load %arg17[%c0_263, %c0_264] : memref<128x288xf32, #tpu.memory_space<vmem>>, vector<128x288xf32>
    %cst_265 = arith.constant dense<0.000000e+00> : vector<128x32xf32>
    %152 = tpu.matmul %151, %121, %cst_265 {dimension_numbers = #tpu.dot_dimension_numbers<[1], [0], [0], [1], [0, 0, 1, 1], [], []>} : vector<128x288xf32>, vector<288x32xf32>, vector<128x32xf32> -> vector<128x32xf32>
    %153 = vector.broadcast %123 : vector<1x32xf32> to vector<128x32xf32>
    %154 = arith.addf %152, %153 : vector<128x32xf32>
    %cst_266 = arith.constant 0.000000e+00 : f32
    %155 = vector.broadcast %cst_266 : f32 to vector<128x32xf32>
    %156 = arith.maximumf %154, %155 : vector<128x32xf32>
    %157 = vector.shape_cast %156 : vector<128x32xf32> to vector<2x8x8x32xf32>
    %c0_267 = arith.constant 0 : index
    %c1_268 = arith.constant 1 : index
    %c1_269 = arith.constant 1 : index
    %c0_270 = arith.constant 0 : index
    %158 = vector.load %arg16[%c0_267, %c1_268, %c1_269, %c0_270] : memref<2x10x10x32xf32, #tpu.memory_space<vmem>>, vector<2x8x8x32xf32>
    tpu.vector_store %arg16[%c0_267, %c1_268, %c1_269, %c0_270], %157 {strides = array<i32>} : memref<2x10x10x32xf32, #tpu.memory_space<vmem>>, vector<2x8x8x32xf32>,
    %c3 = arith.constant 3 : index
    %c0_271 = arith.constant 0 : index
    %c0_272 = arith.constant 0 : index
    %159 = vector.load %arg3[%c3, %c0_271, %c0_272] : memref<4x288x32xf32, #tpu.memory_space<vmem>>, vector<1x288x32xf32>
    %160 = vector.shape_cast %159 : vector<1x288x32xf32> to vector<288x32xf32>
    %c3_273 = arith.constant 3 : index
    %c0_274 = arith.constant 0 : index
    %c0_275 = arith.constant 0 : index
    %161 = vector.load %arg4[%c3_273, %c0_274, %c0_275] : memref<4x1x32xf32, #tpu.memory_space<vmem>>, vector<1x1x32xf32>
    %162 = vector.shape_cast %161 : vector<1x1x32xf32> to vector<1x32xf32>
    %c0_276 = arith.constant 0 : index
    %c0_277 = arith.constant 0 : index
    %c0_278 = arith.constant 0 : index
    %c0_279 = arith.constant 0 : index
    %163 = vector.load %arg16[%c0_276, %c0_277, %c0_278, %c0_279] : memref<2x10x10x32xf32, #tpu.memory_space<vmem>>, vector<2x8x8x32xf32>
    %164 = vector.shape_cast %163 : vector<2x8x8x32xf32> to vector<128x32xf32>
    %c0_280 = arith.constant 0 : index
    %c0_281 = arith.constant 0 : index
    %165 = vector.load %arg17[%c0_280, %c0_281] : memref<128x288xf32, #tpu.memory_space<vmem>>, vector<128x32xf32>
    tpu.vector_store %arg17[%c0_280, %c0_281], %164 {strides = array<i32>} : memref<128x288xf32, #tpu.memory_space<vmem>>, vector<128x32xf32>,
    %c0_282 = arith.constant 0 : index
    %c0_283 = arith.constant 0 : index
    %c1_284 = arith.constant 1 : index
    %c0_285 = arith.constant 0 : index
    %166 = vector.load %arg16[%c0_282, %c0_283, %c1_284, %c0_285] : memref<2x10x10x32xf32, #tpu.memory_space<vmem>>, vector<2x8x8x32xf32>
    %167 = vector.shape_cast %166 : vector<2x8x8x32xf32> to vector<128x32xf32>
    %c0_286 = arith.constant 0 : index
    %c32_287 = arith.constant 32 : index
    %168 = vector.load %arg17[%c0_286, %c32_287] : memref<128x288xf32, #tpu.memory_space<vmem>>, vector<128x32xf32>
    tpu.vector_store %arg17[%c0_286, %c32_287], %167 {strides = array<i32>} : memref<128x288xf32, #tpu.memory_space<vmem>>, vector<128x32xf32>,
    %c0_288 = arith.constant 0 : index
    %c0_289 = arith.constant 0 : index
    %c2_290 = arith.constant 2 : index
    %c0_291 = arith.constant 0 : index
    %169 = vector.load %arg16[%c0_288, %c0_289, %c2_290, %c0_291] : memref<2x10x10x32xf32, #tpu.memory_space<vmem>>, vector<2x8x8x32xf32>
    %170 = vector.shape_cast %169 : vector<2x8x8x32xf32> to vector<128x32xf32>
    %c0_292 = arith.constant 0 : index
    %c64_293 = arith.constant 64 : index
    %171 = vector.load %arg17[%c0_292, %c64_293] : memref<128x288xf32, #tpu.memory_space<vmem>>, vector<128x32xf32>
    tpu.vector_store %arg17[%c0_292, %c64_293], %170 {strides = array<i32>} : memref<128x288xf32, #tpu.memory_space<vmem>>, vector<128x32xf32>,
    %c0_294 = arith.constant 0 : index
    %c1_295 = arith.constant 1 : index
    %c0_296 = arith.constant 0 : index
    %c0_297 = arith.constant 0 : index
    %172 = vector.load %arg16[%c0_294, %c1_295, %c0_296, %c0_297] : memref<2x10x10x32xf32, #tpu.memory_space<vmem>>, vector<2x8x8x32xf32>
    %173 = vector.shape_cast %172 : vector<2x8x8x32xf32> to vector<128x32xf32>
    %c0_298 = arith.constant 0 : index
    %c96_299 = arith.constant 96 : index
    %174 = vector.load %arg17[%c0_298, %c96_299] : memref<128x288xf32, #tpu.memory_space<vmem>>, vector<128x32xf32>
    tpu.vector_store %arg17[%c0_298, %c96_299], %173 {strides = array<i32>} : memref<128x288xf32, #tpu.memory_space<vmem>>, vector<128x32xf32>,
    %c0_300 = arith.constant 0 : index
    %c1_301 = arith.constant 1 : index
    %c1_302 = arith.constant 1 : index
    %c0_303 = arith.constant 0 : index
    %175 = vector.load %arg16[%c0_300, %c1_301, %c1_302, %c0_303] : memref<2x10x10x32xf32, #tpu.memory_space<vmem>>, vector<2x8x8x32xf32>
    %176 = vector.shape_cast %175 : vector<2x8x8x32xf32> to vector<128x32xf32>
    %c0_304 = arith.constant 0 : index
    %c128_305 = arith.constant 128 : index
    %177 = vector.load %arg17[%c0_304, %c128_305] : memref<128x288xf32, #tpu.memory_space<vmem>>, vector<128x32xf32>
    tpu.vector_store %arg17[%c0_304, %c128_305], %176 {strides = array<i32>} : memref<128x288xf32, #tpu.memory_space<vmem>>, vector<128x32xf32>,
    %c0_306 = arith.constant 0 : index
    %c1_307 = arith.constant 1 : index
    %c2_308 = arith.constant 2 : index
    %c0_309 = arith.constant 0 : index
    %178 = vector.load %arg16[%c0_306, %c1_307, %c2_308, %c0_309] : memref<2x10x10x32xf32, #tpu.memory_space<vmem>>, vector<2x8x8x32xf32>
    %179 = vector.shape_cast %178 : vector<2x8x8x32xf32> to vector<128x32xf32>
    %c0_310 = arith.constant 0 : index
    %c160_311 = arith.constant 160 : index
    %180 = vector.load %arg17[%c0_310, %c160_311] : memref<128x288xf32, #tpu.memory_space<vmem>>, vector<128x32xf32>
    tpu.vector_store %arg17[%c0_310, %c160_311], %179 {strides = array<i32>} : memref<128x288xf32, #tpu.memory_space<vmem>>, vector<128x32xf32>,
    %c0_312 = arith.constant 0 : index
    %c2_313 = arith.constant 2 : index
    %c0_314 = arith.constant 0 : index
    %c0_315 = arith.constant 0 : index
    %181 = vector.load %arg16[%c0_312, %c2_313, %c0_314, %c0_315] : memref<2x10x10x32xf32, #tpu.memory_space<vmem>>, vector<2x8x8x32xf32>
    %182 = vector.shape_cast %181 : vector<2x8x8x32xf32> to vector<128x32xf32>
    %c0_316 = arith.constant 0 : index
    %c192_317 = arith.constant 192 : index
    %183 = vector.load %arg17[%c0_316, %c192_317] : memref<128x288xf32, #tpu.memory_space<vmem>>, vector<128x32xf32>
    tpu.vector_store %arg17[%c0_316, %c192_317], %182 {strides = array<i32>} : memref<128x288xf32, #tpu.memory_space<vmem>>, vector<128x32xf32>,
    %c0_318 = arith.constant 0 : index
    %c2_319 = arith.constant 2 : index
    %c1_320 = arith.constant 1 : index
    %c0_321 = arith.constant 0 : index
    %184 = vector.load %arg16[%c0_318, %c2_319, %c1_320, %c0_321] : memref<2x10x10x32xf32, #tpu.memory_space<vmem>>, vector<2x8x8x32xf32>
    %185 = vector.shape_cast %184 : vector<2x8x8x32xf32> to vector<128x32xf32>
    %c0_322 = arith.constant 0 : index
    %c224_323 = arith.constant 224 : index
    %186 = vector.load %arg17[%c0_322, %c224_323] : memref<128x288xf32, #tpu.memory_space<vmem>>, vector<128x32xf32>
    tpu.vector_store %arg17[%c0_322, %c224_323], %185 {strides = array<i32>} : memref<128x288xf32, #tpu.memory_space<vmem>>, vector<128x32xf32>,
    %c0_324 = arith.constant 0 : index
    %c2_325 = arith.constant 2 : index
    %c2_326 = arith.constant 2 : index
    %c0_327 = arith.constant 0 : index
    %187 = vector.load %arg16[%c0_324, %c2_325, %c2_326, %c0_327] : memref<2x10x10x32xf32, #tpu.memory_space<vmem>>, vector<2x8x8x32xf32>
    %188 = vector.shape_cast %187 : vector<2x8x8x32xf32> to vector<128x32xf32>
    %c0_328 = arith.constant 0 : index
    %c256_329 = arith.constant 256 : index
    %189 = vector.load %arg17[%c0_328, %c256_329] : memref<128x288xf32, #tpu.memory_space<vmem>>, vector<128x32xf32>
    tpu.vector_store %arg17[%c0_328, %c256_329], %188 {strides = array<i32>} : memref<128x288xf32, #tpu.memory_space<vmem>>, vector<128x32xf32>,
    %c0_330 = arith.constant 0 : index
    %c0_331 = arith.constant 0 : index
    %190 = vector.load %arg17[%c0_330, %c0_331] : memref<128x288xf32, #tpu.memory_space<vmem>>, vector<128x288xf32>
    %cst_332 = arith.constant dense<0.000000e+00> : vector<128x32xf32>
    %191 = tpu.matmul %190, %160, %cst_332 {dimension_numbers = #tpu.dot_dimension_numbers<[1], [0], [0], [1], [0, 0, 1, 1], [], []>} : vector<128x288xf32>, vector<288x32xf32>, vector<128x32xf32> -> vector<128x32xf32>
    %192 = vector.broadcast %162 : vector<1x32xf32> to vector<128x32xf32>
    %193 = arith.addf %191, %192 : vector<128x32xf32>
    %194 = arith.addf %193, %117 : vector<128x32xf32>
    %cst_333 = arith.constant 0.000000e+00 : f32
    %195 = vector.broadcast %cst_333 : f32 to vector<128x32xf32>
    %196 = arith.maximumf %194, %195 : vector<128x32xf32>
    %197 = vector.shape_cast %196 : vector<128x32xf32> to vector<2x64x32xf32>
    %c0_334 = arith.constant 0 : index
    %c0_335 = arith.constant 0 : index
    %198 = vector.load %arg5[%c0_334, %c0_335] : memref<3x32xf32, #tpu.memory_space<vmem>>, vector<1x32xf32>
    %199 = vector.shape_cast %198 : vector<1x32xf32> to vector<1x1x32xf32>
    %c0_336 = arith.constant 0 : index
    %c0_337 = arith.constant 0 : index
    %200 = vector.load %arg6[%c0_336, %c0_337] : memref<3x1xf32, #tpu.memory_space<vmem>>, vector<1x1xf32>
    %201 = vector.broadcast %199 : vector<1x1x32xf32> to vector<2x64x32xf32>
    %202 = arith.mulf %197, %201 : vector<2x64x32xf32>
    %cst_338 = arith.constant dense<0.000000e+00> : vector<2x64xf32>
    %203 = vector.multi_reduction <add>, %202, %cst_338 [2] : vector<2x64x32xf32> to vector<2x64xf32>
    %204 = vector.broadcast %200 : vector<1x1xf32> to vector<2x64xf32>
    %205 = arith.addf %203, %204 : vector<2x64xf32>
    %cst_339 = arith.constant 0.000000e+00 : f32
    %206 = vector.broadcast %cst_339 : f32 to vector<2x64xf32>
    %207 = arith.maximumf %205, %206 : vector<2x64xf32>
    %c1_340 = arith.constant 1 : index
    %c0_341 = arith.constant 0 : index
    %208 = vector.load %arg5[%c1_340, %c0_341] : memref<3x32xf32, #tpu.memory_space<vmem>>, vector<1x32xf32>
    %209 = vector.shape_cast %208 : vector<1x32xf32> to vector<1x1x32xf32>
    %c1_342 = arith.constant 1 : index
    %c0_343 = arith.constant 0 : index
    %210 = vector.load %arg6[%c1_342, %c0_343] : memref<3x1xf32, #tpu.memory_space<vmem>>, vector<1x1xf32>
    %211 = vector.broadcast %209 : vector<1x1x32xf32> to vector<2x64x32xf32>
    %212 = arith.mulf %197, %211 : vector<2x64x32xf32>
    %cst_344 = arith.constant dense<0.000000e+00> : vector<2x64xf32>
    %213 = vector.multi_reduction <add>, %212, %cst_344 [2] : vector<2x64x32xf32> to vector<2x64xf32>
    %214 = vector.broadcast %210 : vector<1x1xf32> to vector<2x64xf32>
    %215 = arith.addf %213, %214 : vector<2x64xf32>
    %cst_345 = arith.constant 0.000000e+00 : f32
    %216 = vector.broadcast %cst_345 : f32 to vector<2x64xf32>
    %217 = arith.maximumf %215, %216 : vector<2x64xf32>
    %c2_346 = arith.constant 2 : index
    %c0_347 = arith.constant 0 : index
    %218 = vector.load %arg5[%c2_346, %c0_347] : memref<3x32xf32, #tpu.memory_space<vmem>>, vector<1x32xf32>
    %219 = vector.shape_cast %218 : vector<1x32xf32> to vector<1x1x32xf32>
    %c2_348 = arith.constant 2 : index
    %c0_349 = arith.constant 0 : index
    %220 = vector.load %arg6[%c2_348, %c0_349] : memref<3x1xf32, #tpu.memory_space<vmem>>, vector<1x1xf32>
    %221 = vector.broadcast %219 : vector<1x1x32xf32> to vector<2x64x32xf32>
    %222 = arith.mulf %197, %221 : vector<2x64x32xf32>
    %cst_350 = arith.constant dense<0.000000e+00> : vector<2x64xf32>
    %223 = vector.multi_reduction <add>, %222, %cst_350 [2] : vector<2x64x32xf32> to vector<2x64xf32>
    %224 = vector.broadcast %220 : vector<1x1xf32> to vector<2x64xf32>
    %225 = arith.addf %223, %224 : vector<2x64xf32>
    %cst_351 = arith.constant 0.000000e+00 : f32
    %226 = vector.broadcast %cst_351 : f32 to vector<2x64xf32>
    %227 = arith.maximumf %225, %226 : vector<2x64xf32>
    %c0_352 = arith.constant 0 : index
    %c0_353 = arith.constant 0 : index
    %228 = vector.load %arg7[%c0_352, %c0_353] : memref<64x32xf32, #tpu.memory_space<vmem>>, vector<64x32xf32>
    %cst_354 = arith.constant dense<0.000000e+00> : vector<2x32xf32>
    %229 = tpu.matmul %207, %228, %cst_354 {dimension_numbers = #tpu.dot_dimension_numbers<[1], [0], [0], [1], [0, 0, 1, 1], [], []>} : vector<2x64xf32>, vector<64x32xf32>, vector<2x32xf32> -> vector<2x32xf32>
    %c0_355 = arith.constant 0 : index
    %c0_356 = arith.constant 0 : index
    %230 = vector.load %arg8[%c0_355, %c0_356] : memref<64x32xf32, #tpu.memory_space<vmem>>, vector<64x32xf32>
    %cst_357 = arith.constant dense<0.000000e+00> : vector<2x32xf32>
    %231 = tpu.matmul %217, %230, %cst_357 {dimension_numbers = #tpu.dot_dimension_numbers<[1], [0], [0], [1], [0, 0, 1, 1], [], []>} : vector<2x64xf32>, vector<64x32xf32>, vector<2x32xf32> -> vector<2x32xf32>
    %232 = arith.addf %229, %231 : vector<2x32xf32>
    %c0_358 = arith.constant 0 : index
    %c0_359 = arith.constant 0 : index
    %233 = vector.load %arg9[%c0_358, %c0_359] : memref<1x32xf32, #tpu.memory_space<vmem>>, vector<1x32xf32>
    %234 = vector.broadcast %233 : vector<1x32xf32> to vector<2x32xf32>
    %235 = arith.addf %232, %234 : vector<2x32xf32>
    %cst_360 = arith.constant dense<0xFF800000> : vector<2xf32>
    %236 = vector.multi_reduction <maximumf>, %235, %cst_360 [1] : vector<2x32xf32> to vector<2xf32>
    %237 = vector.shape_cast %236 : vector<2xf32> to vector<2x1xf32>
    %238 = vector.broadcast %237 : vector<2x1xf32> to vector<2x32xf32>
    %239 = arith.subf %235, %238 : vector<2x32xf32>
    %240 = math.exp %239 : vector<2x32xf32>
    %cst_361 = arith.constant dense<0.000000e+00> : vector<2xf32>
    %241 = vector.multi_reduction <add>, %240, %cst_361 [1] : vector<2x32xf32> to vector<2xf32>
    %242 = vector.shape_cast %241 : vector<2xf32> to vector<2x1xf32>
    %243 = vector.broadcast %242 : vector<2x1xf32> to vector<2x32xf32>
    %244 = arith.divf %240, %243 : vector<2x32xf32>
    %c0_362 = arith.constant 0 : index
    %c0_363 = arith.constant 0 : index
    %245 = vector.load %arg14[%c0_362, %c0_363] : memref<2x32xf32, #tpu.memory_space<vmem>>, vector<2x32xf32>
    tpu.vector_store %arg14[%c0_362, %c0_363], %244 {strides = array<i32>} : memref<2x32xf32, #tpu.memory_space<vmem>>, vector<2x32xf32>,
    %c0_364 = arith.constant 0 : index
    %c0_365 = arith.constant 0 : index
    %246 = vector.load %arg10[%c0_364, %c0_365] : memref<64x32xf32, #tpu.memory_space<vmem>>, vector<64x32xf32>
    %cst_366 = arith.constant dense<0.000000e+00> : vector<2x32xf32>
    %247 = tpu.matmul %227, %246, %cst_366 {dimension_numbers = #tpu.dot_dimension_numbers<[1], [0], [0], [1], [0, 0, 1, 1], [], []>} : vector<2x64xf32>, vector<64x32xf32>, vector<2x32xf32> -> vector<2x32xf32>
    %c0_367 = arith.constant 0 : index
    %c0_368 = arith.constant 0 : index
    %248 = vector.load %arg11[%c0_367, %c0_368] : memref<1x32xf32, #tpu.memory_space<vmem>>, vector<1x32xf32>
    %249 = vector.broadcast %248 : vector<1x32xf32> to vector<2x32xf32>
    %250 = arith.addf %247, %249 : vector<2x32xf32>
    %cst_369 = arith.constant 0.000000e+00 : f32
    %251 = vector.broadcast %cst_369 : f32 to vector<2x32xf32>
    %252 = arith.maximumf %250, %251 : vector<2x32xf32>
    %c0_370 = arith.constant 0 : index
    %c0_371 = arith.constant 0 : index
    %253 = vector.load %arg12[%c0_370, %c0_371] : memref<32x1xf32, #tpu.memory_space<vmem>>, vector<32x1xf32>
    %cst_372 = arith.constant dense<0.000000e+00> : vector<2x1xf32>
    %254 = tpu.matmul %252, %253, %cst_372 {dimension_numbers = #tpu.dot_dimension_numbers<[1], [0], [0], [1], [0, 0, 1, 1], [], []>} : vector<2x32xf32>, vector<32x1xf32>, vector<2x1xf32> -> vector<2x1xf32>
    %c0_373 = arith.constant 0 : index
    %c0_374 = arith.constant 0 : index
    %255 = vector.load %arg13[%c0_373, %c0_374] : memref<1x1xf32, #tpu.memory_space<vmem>>, vector<1x1xf32>
    %256 = vector.broadcast %255 : vector<1x1xf32> to vector<2x1xf32>
    %257 = arith.addf %254, %256 : vector<2x1xf32>
    %258 = math.tanh %257 : vector<2x1xf32>
    %c0_375 = arith.constant 0 : index
    %c0_376 = arith.constant 0 : index
    %259 = vector.load %arg15[%c0_375, %c0_376] : memref<2x1xf32, #tpu.memory_space<vmem>>, vector<2x1xf32>
    tpu.vector_store %arg15[%c0_375, %c0_376], %258 {strides = array<i32>} : memref<2x1xf32, #tpu.memory_space<vmem>>, vector<2x1xf32>,
    return
  }
}

</mosaic_0001>

<llo_original>
// kernel: pv_model_forward.1
$region0: #{pv_model_forward.1}
  #allocation0 [shape = 'u32[]', space=smem, size = 0x4, offset = 0x4, fixed_abs, tag = 'smem constant byte address 0x4 - core index']
  #allocation1 [shape = 'u32[144,128]{1,0:T(1,128)}', space=vmem, size = 0x12000, scoped, tag = 'internal scratch']
  #allocation2 [shape = 'f32[2,10,10,32]{3,2,1,0:T(8,128)}', space=vmem, size = 0x28000, scoped, tag = 'scratch operand']
  #allocation3 [shape = 'f32[128,288]{1,0:T(8,128)}', space=vmem, size = 0x30000, scoped, tag = 'scratch operand']
  #allocation4 [shape = 'f32[1,1]{1,0:T(1,128)S(1)}', space=vmem, size = 0x200, scoped, tag = 'scoped memory for pv_model_forward.1']
  %s0 = inlined_call_operand.vmem [shape: f32[2,8,8,32], index: 0, kind: input, shape index: {}]
  %s1 = inlined_call_operand.vmem [shape: f32[288,32], index: 1, kind: input, shape index: {}]
  %s2 = inlined_call_operand.vmem [shape: f32[1,32], index: 2, kind: input, shape index: {}]
  %s3 = inlined_call_operand.vmem [shape: f32[4,288,32], index: 3, kind: input, shape index: {}]
  %s4 = inlined_call_operand.vmem [shape: f32[4,1,32], index: 4, kind: input, shape index: {}]
  %s5 = inlined_call_operand.vmem [shape: f32[3,32], index: 5, kind: input, shape index: {}]
  %s6 = inlined_call_operand.vmem [shape: f32[3,1], index: 6, kind: input, shape index: {}]
  %s7 = inlined_call_operand.vmem [shape: f32[64,32], index: 7, kind: input, shape index: {}]
  %s8 = inlined_call_operand.vmem [shape: f32[64,32], index: 8, kind: input, shape index: {}]
  %s9 = inlined_call_operand.vmem [shape: f32[1,32], index: 9, kind: input, shape index: {}]
  %s10 = inlined_call_operand.vmem [shape: f32[64,32], index: 10, kind: input, shape index: {}]
  %s11 = inlined_call_operand.vmem [shape: f32[1,32], index: 11, kind: input, shape index: {}]
  %s12 = inlined_call_operand.vmem [shape: f32[32,1], index: 12, kind: input, shape index: {}]
  %s13 = inlined_call_operand.<no memory space> [shape: f32[1,1], index: 13, kind: input, shape index: {}]
  %s14 = inlined_call_operand.hbm [shape: f32[2,32], index: 14, kind: output, shape index: {0}]
  %s15 = inlined_call_operand.vmem [shape: f32[2,1], index: 15, kind: output, shape index: {1}]
  %16 = xla_tuple %s14, %s15
  %s17 = sld [smem:[#allocation0]]
  $region74: #{pv_model_forward.1} parent=0
    _
  %s19 = ssub.s32 1, %s17
  %s20 = scalar_select 0, %s19, %s17
  %v21 = vstv %s13
  %22 = vst [vmem:[#allocation4] sm:$0x1] %v21
  $region1: #{pv_model_forward.1} parent=0
    #allocation5 [shape = 'u8[1024]{0}', space=vmem, size = 0x400, scoped, tag = 'output window, operand 0, single buffered']
    #allocation6 [shape = 's32[1]{0}', space=sflag, size = 0x4, scoped, tag = 'scoped memory for pv_model_forward.1']
    %23 = vsyncpa [#allocation6], 0
    // Predicated region
    $region2: #{pv_model_forward.1} parent=1 // pred_check
      _
    $region3: #{pv_model_forward.1} parent=1 // pred_check_branch
      %25 = sbr.rel (0) target = $region5
    $region4: #{pv_model_forward.1} parent=1 // pred_region
      _
    $region5: #{pv_model_forward.1} parent=1 // pred_fallthru
      _
    // Predicated region
    $region6: #{pv_model_forward.1} parent=1 // pred_check
      _
    $region7: #{pv_model_forward.1} parent=1 // pred_check_branch
      %27 = sbr.rel (0) target = $region9
    $region8: #{pv_model_forward.1} parent=1 // pred_region
      _
    $region9: #{pv_model_forward.1} parent=1 // pred_fallthru
      _
    // Predicated region
    $region10: #{pv_model_forward.1} parent=1 // pred_check
      _
    $region11: #{pv_model_forward.1} parent=1 // pred_check_branch
      %29 = sbr.rel (0) target = $region13
    $region12: #{pv_model_forward.1} parent=1 // pred_region
      _
    $region13: #{pv_model_forward.1} parent=1 // pred_fallthru
      _
    // Predicated region
    $region14: #{pv_model_forward.1} parent=1 // pred_check
      _
    $region15: #{pv_model_forward.1} parent=1 // pred_check_branch
      %31 = sbr.rel (0) target = $region17
    $region16: #{pv_model_forward.1} parent=1 // pred_region
      _
    $region17: #{pv_model_forward.1} parent=1 // pred_fallthru
      _
    // Predicated region
    $region18: #{pv_model_forward.1} parent=1 // pred_check
      _
    $region19: #{pv_model_forward.1} parent=1 // pred_check_branch
      %33 = sbr.rel (0) target = $region21
    $region20: #{pv_model_forward.1} parent=1 // pred_region
      _
    $region21: #{pv_model_forward.1} parent=1 // pred_fallthru
      _
    // Predicated region
    $region22: #{pv_model_forward.1} parent=1 // pred_check
      _
    $region23: #{pv_model_forward.1} parent=1 // pred_check_branch
      %35 = sbr.rel (0) target = $region25
    $region24: #{pv_model_forward.1} parent=1 // pred_region
      _
    $region25: #{pv_model_forward.1} parent=1 // pred_fallthru
      _
    // Predicated region
    $region26: #{pv_model_forward.1} parent=1 // pred_check
      _
    $region27: #{pv_model_forward.1} parent=1 // pred_check_branch
      %37 = sbr.rel (0) target = $region29
    $region28: #{pv_model_forward.1} parent=1 // pred_region
      _
    $region29: #{pv_model_forward.1} parent=1 // pred_fallthru
      _
    // Predicated region
    $region30: #{pv_model_forward.1} parent=1 // pred_check
      _
    $region31: #{pv_model_forward.1} parent=1 // pred_check_branch
      %39 = sbr.rel (0) target = $region33
    $region32: #{pv_model_forward.1} parent=1 // pred_region
      _
    $region33: #{pv_model_forward.1} parent=1 // pred_fallthru
      _
    // Predicated region
    $region34: #{pv_model_forward.1} parent=1 // pred_check
      _
    $region35: #{pv_model_forward.1} parent=1 // pred_check_branch
      %41 = sbr.rel (0) target = $region37
    $region36: #{pv_model_forward.1} parent=1 // pred_region
      _
    $region37: #{pv_model_forward.1} parent=1 // pred_fallthru
      _
    // Predicated region
    $region38: #{pv_model_forward.1} parent=1 // pred_check
      _
    $region39: #{pv_model_forward.1} parent=1 // pred_check_branch
      %43 = sbr.rel (0) target = $region41
    $region40: #{pv_model_forward.1} parent=1 // pred_region
      _
    $region41: #{pv_model_forward.1} parent=1 // pred_fallthru
      _
    // Predicated region
    $region42: #{pv_model_forward.1} parent=1 // pred_check
      _
    $region43: #{pv_model_forward.1} parent=1 // pred_check_branch
      %45 = sbr.rel (0) target = $region45
    $region44: #{pv_model_forward.1} parent=1 // pred_region
      _
    $region45: #{pv_model_forward.1} parent=1 // pred_fallthru
      _
    // Predicated region
    $region46: #{pv_model_forward.1} parent=1 // pred_check
      _
    $region47: #{pv_model_forward.1} parent=1 // pred_check_branch
      %47 = sbr.rel (0) target = $region49
    $region48: #{pv_model_forward.1} parent=1 // pred_region
      _
    $region49: #{pv_model_forward.1} parent=1 // pred_fallthru
      _
    // Predicated region
    $region50: #{pv_model_forward.1} parent=1 // pred_check
      _
    $region51: #{pv_model_forward.1} parent=1 // pred_check_branch
      %49 = sbr.rel (0) target = $region53
    $region52: #{pv_model_forward.1} parent=1 // pred_region
      _
    $region53: #{pv_model_forward.1} parent=1 // pred_fallthru
      _
    // Predicated region
    $region54: #{pv_model_forward.1} parent=1 // pred_check
      _
    $region55: #{pv_model_forward.1} parent=1 // pred_check_branch
      %51 = sbr.rel (0) target = $region57
    $region56: #{pv_model_forward.1} parent=1 // pred_region
      _
    $region57: #{pv_model_forward.1} parent=1 // pred_fallthru
      _
    %vm52 = vcmask 261120
    %53 = vst.msk [vmem:[#allocation2] sm:$0xff] %vm52, 0.0
    %vm54 = vcmask 254976
    %55 = vst.msk [vmem:[#allocation2 + $0x8] sm:$0x3] %vm54, 0.0
    %56 = vst.msk [vmem:[#allocation2 + $0x10] sm:$0xff] %vm52, 0.0
    %57 = vst.msk [vmem:[#allocation2 + $0x18] sm:$0x3] %vm54, 0.0
    %58 = vst.msk [vmem:[#allocation2 + $0x20] sm:$0xff] %vm52, 0.0
    %59 = vst.msk [vmem:[#allocation2 + $0x28] sm:$0x3] %vm54, 0.0
    %60 = vst.msk [vmem:[#allocation2 + $0x30] sm:$0xff] %vm52, 0.0
    %61 = vst.msk [vmem:[#allocation2 + $0x38] sm:$0x3] %vm54, 0.0
    %62 = vst.msk [vmem:[#allocation2 + $0x40] sm:$0xff] %vm52, 0.0
    %63 = vst.msk [vmem:[#allocation2 + $0x48] sm:$0x3] %vm54, 0.0
    %64 = vst.msk [vmem:[#allocation2 + $0x50] sm:$0xff] %vm52, 0.0
    %65 = vst.msk [vmem:[#allocation2 + $0x58] sm:$0x3] %vm54, 0.0
    %66 = vst.msk [vmem:[#allocation2 + $0x60] sm:$0xff] %vm52, 0.0
    %67 = vst.msk [vmem:[#allocation2 + $0x68] sm:$0x3] %vm54, 0.0
    %68 = vst.msk [vmem:[#allocation2 + $0x70] sm:$0xff] %vm52, 0.0
    %69 = vst.msk [vmem:[#allocation2 + $0x78] sm:$0x3] %vm54, 0.0
    %70 = vst.msk [vmem:[#allocation2 + $0x80] sm:$0xff] %vm52, 0.0
    %71 = vst.msk [vmem:[#allocation2 + $0x88] sm:$0x3] %vm54, 0.0
    %72 = vst.msk [vmem:[#allocation2 + $0x90] sm:$0xff] %vm52, 0.0
    %73 = vst.msk [vmem:[#allocation2 + $0x98] sm:$0x3] %vm54, 0.0
    %74 = vst.msk [vmem:[#allocation2 + $0xa0] sm:$0xff] %vm52, 0.0
    %75 = vst.msk [vmem:[#allocation2 + $0xa8] sm:$0x3] %vm54, 0.0
    %76 = vst.msk [vmem:[#allocation2 + $0xb0] sm:$0xff] %vm52, 0.0
    %77 = vst.msk [vmem:[#allocation2 + $0xb8] sm:$0x3] %vm54, 0.0
    %78 = vst.msk [vmem:[#allocation2 + $0xc0] sm:$0xff] %vm52, 0.0
    %79 = vst.msk [vmem:[#allocation2 + $0xc8] sm:$0x3] %vm54, 0.0
    %80 = vst.msk [vmem:[#allocation2 + $0xd0] sm:$0xff] %vm52, 0.0
    %81 = vst.msk [vmem:[#allocation2 + $0xd8] sm:$0x3] %vm54, 0.0
    %82 = vst.msk [vmem:[#allocation2 + $0xe0] sm:$0xff] %vm52, 0.0
    %83 = vst.msk [vmem:[#allocation2 + $0xe8] sm:$0x3] %vm54, 0.0
    %84 = vst.msk [vmem:[#allocation2 + $0xf0] sm:$0xff] %vm52, 0.0
    %85 = vst.msk [vmem:[#allocation2 + $0xf8] sm:$0x3] %vm54, 0.0
    %86 = vst.msk [vmem:[#allocation2 + $0x100] sm:$0xff] %vm52, 0.0
    %87 = vst.msk [vmem:[#allocation2 + $0x108] sm:$0x3] %vm54, 0.0
    %88 = vst.msk [vmem:[#allocation2 + $0x110] sm:$0xff] %vm52, 0.0
    %89 = vst.msk [vmem:[#allocation2 + $0x118] sm:$0x3] %vm54, 0.0
    %90 = vst.msk [vmem:[#allocation2 + $0x120] sm:$0xff] %vm52, 0.0
    %91 = vst.msk [vmem:[#allocation2 + $0x128] sm:$0x3] %vm54, 0.0
    %92 = vst.msk [vmem:[#allocation2 + $0x130] sm:$0xff] %vm52, 0.0
    %93 = vst.msk [vmem:[#allocation2 + $0x138] sm:$0x3] %vm54, 0.0
    %v94 = vld [vmem:[%s0] sm:$0xff]
    %v95 = vld [vmem:[%s0 + $0x8] sm:$0xff]
    %v96 = vld [vmem:[%s0 + $0x10] sm:$0xff]
    %v97 = vld [vmem:[%s0 + $0x18] sm:$0xff]
    %v98 = vld [vmem:[%s0 + $0x20] sm:$0xff]
    %v99 = vld [vmem:[%s0 + $0x28] sm:$0xff]
    %v100 = vld [vmem:[%s0 + $0x30] sm:$0xff]
    %v101 = vld [vmem:[%s0 + $0x38] sm:$0xff]
    %v102 = vld [vmem:[%s0 + $0x40] sm:$0xff]
    %v103 = vld [vmem:[%s0 + $0x48] sm:$0xff]
    %v104 = vld [vmem:[%s0 + $0x50] sm:$0xff]
    %v105 = vld [vmem:[%s0 + $0x58] sm:$0xff]
    %v106 = vld [vmem:[%s0 + $0x60] sm:$0xff]
    %v107 = vld [vmem:[%s0 + $0x68] sm:$0xff]
    %v108 = vld [vmem:[%s0 + $0x70] sm:$0xff]
    %v109 = vld [vmem:[%s0 + $0x78] sm:$0xff]
    %s110 = scalar_lea.vmem [#allocation2], 16
    %111 = vst.msk [vmem:[%s110 + $0x1] sm:$0xff] %vm52, %v94
    %112 = vst.msk [vmem:[%s110 + $0x11] sm:$0xff] %vm52, %v95
    %113 = vst.msk [vmem:[%s110 + $0x21] sm:$0xff] %vm52, %v96
    %114 = vst.msk [vmem:[%s110 + $0x31] sm:$0xff] %vm52, %v97
    %115 = vst.msk [vmem:[%s110 + $0x41] sm:$0xff] %vm52, %v98
    %116 = vst.msk [vmem:[%s110 + $0x51] sm:$0xff] %vm52, %v99
    %117 = vst.msk [vmem:[%s110 + $0x61] sm:$0xff] %vm52, %v100
    %118 = vst.msk [vmem:[%s110 + $0x71] sm:$0xff] %vm52, %v101
    %119 = vst.msk [vmem:[%s110 + $0xa1] sm:$0xff] %vm52, %v102
    %120 = vst.msk [vmem:[%s110 + $0xb1] sm:$0xff] %vm52, %v103
    %121 = vst.msk [vmem:[%s110 + $0xc1] sm:$0xff] %vm52, %v104
    %122 = vst.msk [vmem:[%s110 + $0xd1] sm:$0xff] %vm52, %v105
    %123 = vst.msk [vmem:[%s110 + $0xe1] sm:$0xff] %vm52, %v106
    %124 = vst.msk [vmem:[%s110 + $0xf1] sm:$0xff] %vm52, %v107
    %125 = vst.msk [vmem:[%s110 + $0x101] sm:$0xff] %vm52, %v108
    %126 = vst.msk [vmem:[%s110 + $0x111] sm:$0xff] %vm52, %v109
    %v127 = vld [vmem:[%s1] sm:$0xff]
    %v128 = vld [vmem:[%s1 + $0x8] sm:$0xff]
    %v129 = vld [vmem:[%s1 + $0x10] sm:$0xff]
    %v130 = vld [vmem:[%s1 + $0x18] sm:$0xff]
    %v131 = vld [vmem:[%s1 + $0x20] sm:$0xff]
    %v132 = vld [vmem:[%s1 + $0x28] sm:$0xff]
    %v133 = vld [vmem:[%s1 + $0x30] sm:$0xff]
    %v134 = vld [vmem:[%s1 + $0x38] sm:$0xff]
    %v135 = vld [vmem:[%s1 + $0x40] sm:$0xff]
    %v136 = vld [vmem:[%s1 + $0x48] sm:$0xff]
    %v137 = vld [vmem:[%s1 + $0x50] sm:$0xff]
    %v138 = vld [vmem:[%s1 + $0x58] sm:$0xff]
    %v139 = vld [vmem:[%s1 + $0x60] sm:$0xff]
    %v140 = vld [vmem:[%s1 + $0x68] sm:$0xff]
    %v141 = vld [vmem:[%s1 + $0x70] sm:$0xff]
    %v142 = vld [vmem:[%s1 + $0x78] sm:$0xff]
    %v143 = vld [vmem:[%s1 + $0x80] sm:$0xff]
    %v144 = vld [vmem:[%s1 + $0x88] sm:$0xff]
    %v145 = vld [vmem:[%s1 + $0x90] sm:$0xff]
    %v146 = vld [vmem:[%s1 + $0x98] sm:$0xff]
    %v147 = vld [vmem:[%s1 + $0xa0] sm:$0xff]
    %v148 = vld [vmem:[%s1 + $0xa8] sm:$0xff]
    %v149 = vld [vmem:[%s1 + $0xb0] sm:$0xff]
    %v150 = vld [vmem:[%s1 + $0xb8] sm:$0xff]
    %v151 = vld [vmem:[%s1 + $0xc0] sm:$0xff]
    %v152 = vld [vmem:[%s1 + $0xc8] sm:$0xff]
    %v153 = vld [vmem:[%s1 + $0xd0] sm:$0xff]
    %v154 = vld [vmem:[%s1 + $0xd8] sm:$0xff]
    %v155 = vld [vmem:[%s1 + $0xe0] sm:$0xff]
    %v156 = vld [vmem:[%s1 + $0xe8] sm:$0xff]
    %v157 = vld [vmem:[%s1 + $0xf0] sm:$0xff]
    %v158 = vld [vmem:[%s1 + $0xf8] sm:$0xff]
    %v159 = vld [vmem:[%s1 + $0x100] sm:$0xff]
    %v160 = vld [vmem:[%s1 + $0x108] sm:$0xff]
    %v161 = vld [vmem:[%s1 + $0x110] sm:$0xff]
    %v162 = vld [vmem:[%s1 + $0x118] sm:$0xff]
    %v163 = vld [vmem:[%s2] sm:$0x1]
    %v164 = vld [vmem:[#allocation2] sm:$0xff]
    %v165 = vld [vmem:[#allocation2 + $0x10] sm:$0xff]
    %v166 = vld [vmem:[#allocation2 + $0x20] sm:$0xff]
    %v167 = vld [vmem:[#allocation2 + $0x30] sm:$0xff]
    %v168 = vld [vmem:[#allocation2 + $0x40] sm:$0xff]
    %v169 = vld [vmem:[#allocation2 + $0x50] sm:$0xff]
    %v170 = vld [vmem:[#allocation2 + $0x60] sm:$0xff]
    %v171 = vld [vmem:[#allocation2 + $0x70] sm:$0xff]
    %v172 = vld [vmem:[#allocation2 + $0xa0] sm:$0xff]
    %v173 = vld [vmem:[#allocation2 + $0xb0] sm:$0xff]
    %v174 = vld [vmem:[#allocation2 + $0xc0] sm:$0xff]
    %v175 = vld [vmem:[#allocation2 + $0xd0] sm:$0xff]
    %v176 = vld [vmem:[#allocation2 + $0xe0] sm:$0xff]
    %v177 = vld [vmem:[#allocation2 + $0xf0] sm:$0xff]
    %v178 = vld [vmem:[#allocation2 + $0x100] sm:$0xff]
    %v179 = vld [vmem:[#allocation2 + $0x110] sm:$0xff]
    %180 = vst.msk [vmem:[#allocation3] sm:$0xff] %vm52, %v164
    %181 = vst.msk [vmem:[#allocation3 + $0x18] sm:$0xff] %vm52, %v165
    %182 = vst.msk [vmem:[#allocation3 + $0x30] sm:$0xff] %vm52, %v166
    %183 = vst.msk [vmem:[#allocation3 + $0x48] sm:$0xff] %vm52, %v167
    %184 = vst.msk [vmem:[#allocation3 + $0x60] sm:$0xff] %vm52, %v168
    %185 = vst.msk [vmem:[#allocation3 + $0x78] sm:$0xff] %vm52, %v169
    %186 = vst.msk [vmem:[#allocation3 + $0x90] sm:$0xff] %vm52, %v170
    %187 = vst.msk [vmem:[#allocation3 + $0xa8] sm:$0xff] %vm52, %v171
    %188 = vst.msk [vmem:[#allocation3 + $0xc0] sm:$0xff] %vm52, %v172
    %189 = vst.msk [vmem:[#allocation3 + $0xd8] sm:$0xff] %vm52, %v173
    %190 = vst.msk [vmem:[#allocation3 + $0xf0] sm:$0xff] %vm52, %v174
    %191 = vst.msk [vmem:[#allocation3 + $0x108] sm:$0xff] %vm52, %v175
    %192 = vst.msk [vmem:[#allocation3 + $0x120] sm:$0xff] %vm52, %v176
    %193 = vst.msk [vmem:[#allocation3 + $0x138] sm:$0xff] %vm52, %v177
    %194 = vst.msk [vmem:[#allocation3 + $0x150] sm:$0xff] %vm52, %v178
    %195 = vst.msk [vmem:[#allocation3 + $0x168] sm:$0xff] %vm52, %v179
    %v196 = vld [vmem:[#allocation2 + $0x1] sm:$0xff]
    %v197 = vld [vmem:[#allocation2 + $0x11] sm:$0xff]
    %v198 = vld [vmem:[#allocation2 + $0x21] sm:$0xff]
    %v199 = vld [vmem:[#allocation2 + $0x31] sm:$0xff]
    %v200 = vld [vmem:[#allocation2 + $0x41] sm:$0xff]
    %v201 = vld [vmem:[#allocation2 + $0x51] sm:$0xff]
    %v202 = vld [vmem:[#allocation2 + $0x61] sm:$0xff]
    %v203 = vld [vmem:[#allocation2 + $0x71] sm:$0xff]
    %v204 = vld [vmem:[#allocation2 + $0xa1] sm:$0xff]
    %v205 = vld [vmem:[#allocation2 + $0xb1] sm:$0xff]
    %v206 = vld [vmem:[#allocation2 + $0xc1] sm:$0xff]
    %v207 = vld [vmem:[#allocation2 + $0xd1] sm:$0xff]
    %v208 = vld [vmem:[#allocation2 + $0xe1] sm:$0xff]
    %v209 = vld [vmem:[#allocation2 + $0xf1] sm:$0xff]
    %v210 = vld [vmem:[#allocation2 + $0x101] sm:$0xff]
    %v211 = vld [vmem:[#allocation2 + $0x111] sm:$0xff]
    %228 = vrot.lane.b32.xlu0 %v196, 32
    %v229 = vpop.permute.xlu0 %228
    %230 = vrot.lane.b32.xlu0 %v197, 32
    %v231 = vpop.permute.xlu0 %230
    %232 = vrot.lane.b32.xlu0 %v198, 32
    %v233 = vpop.permute.xlu0 %232
    %234 = vrot.lane.b32.xlu0 %v199, 32
    %v235 = vpop.permute.xlu0 %234
    %236 = vrot.lane.b32.xlu0 %v200, 32
    %v237 = vpop.permute.xlu0 %236
    %238 = vrot.lane.b32.xlu0 %v201, 32
    %v239 = vpop.permute.xlu0 %238
    %240 = vrot.lane.b32.xlu0 %v202, 32
    %v241 = vpop.permute.xlu0 %240
    %242 = vrot.lane.b32.xlu0 %v203, 32
    %v243 = vpop.permute.xlu0 %242
    %244 = vrot.lane.b32.xlu0 %v204, 32
    %v245 = vpop.permute.xlu0 %244
    %246 = vrot.lane.b32.xlu0 %v205, 32
    %v247 = vpop.permute.xlu0 %246
    %248 = vrot.lane.b32.xlu0 %v206, 32
    %v249 = vpop.permute.xlu0 %248
    %250 = vrot.lane.b32.xlu0 %v207, 32
    %v251 = vpop.permute.xlu0 %250
    %252 = vrot.lane.b32.xlu0 %v208, 32
    %v253 = vpop.permute.xlu0 %252
    %254 = vrot.lane.b32.xlu0 %v209, 32
    %v255 = vpop.permute.xlu0 %254
    %256 = vrot.lane.b32.xlu0 %v210, 32
    %v257 = vpop.permute.xlu0 %256
    %258 = vrot.lane.b32.xlu0 %v211, 32
    %v259 = vpop.permute.xlu0 %258
    %vm276 = vcmask 523520
    %277 = vst.msk [vmem:[#allocation3] sm:$0xff] %vm276, %v229
    %278 = vst.msk [vmem:[#allocation3 + $0x18] sm:$0xff] %vm276, %v231
    %279 = vst.msk [vmem:[#allocation3 + $0x30] sm:$0xff] %vm276, %v233
    %280 = vst.msk [vmem:[#allocation3 + $0x48] sm:$0xff] %vm276, %v235
    %281 = vst.msk [vmem:[#allocation3 + $0x60] sm:$0xff] %vm276, %v237
    %282 = vst.msk [vmem:[#allocation3 + $0x78] sm:$0xff] %vm276, %v239
    %283 = vst.msk [vmem:[#allocation3 + $0x90] sm:$0xff] %vm276, %v241
    %284 = vst.msk [vmem:[#allocation3 + $0xa8] sm:$0xff] %vm276, %v243
    %285 = vst.msk [vmem:[#allocation3 + $0xc0] sm:$0xff] %vm276, %v245
    %286 = vst.msk [vmem:[#allocation3 + $0xd8] sm:$0xff] %vm276, %v247
    %287 = vst.msk [vmem:[#allocation3 + $0xf0] sm:$0xff] %vm276, %v249
    %288 = vst.msk [vmem:[#allocation3 + $0x108] sm:$0xff] %vm276, %v251
    %289 = vst.msk [vmem:[#allocation3 + $0x120] sm:$0xff] %vm276, %v253
    %290 = vst.msk [vmem:[#allocation3 + $0x138] sm:$0xff] %vm276, %v255
    %291 = vst.msk [vmem:[#allocation3 + $0x150] sm:$0xff] %vm276, %v257
    %292 = vst.msk [vmem:[#allocation3 + $0x168] sm:$0xff] %vm276, %v259
    %v293 = vld [vmem:[#allocation2 + $0x2] sm:$0xff]
    %v294 = vld [vmem:[#allocation2 + $0x12] sm:$0xff]
    %v295 = vld [vmem:[#allocation2 + $0x22] sm:$0xff]
    %v296 = vld [vmem:[#allocation2 + $0x32] sm:$0xff]
    %v297 = vld [vmem:[#allocation2 + $0x42] sm:$0xff]
    %v298 = vld [vmem:[#allocation2 + $0x52] sm:$0xff]
    %v299 = vld [vmem:[#allocation2 + $0x62] sm:$0xff]
    %v300 = vld [vmem:[#allocation2 + $0x72] sm:$0xff]
    %v301 = vld [vmem:[#allocation2 + $0xa2] sm:$0xff]
    %v302 = vld [vmem:[#allocation2 + $0xb2] sm:$0xff]
    %v303 = vld [vmem:[#allocation2 + $0xc2] sm:$0xff]
    %v304 = vld [vmem:[#allocation2 + $0xd2] sm:$0xff]
    %v305 = vld [vmem:[#allocation2 + $0xe2] sm:$0xff]
    %v306 = vld [vmem:[#allocation2 + $0xf2] sm:$0xff]
    %v307 = vld [vmem:[#allocation2 + $0x102] sm:$0xff]
    %v308 = vld [vmem:[#allocation2 + $0x112] sm:$0xff]
    %325 = vrot.lane.b32.xlu0 %v293, 64
    %v326 = vpop.permute.xlu0 %325
    %327 = vrot.lane.b32.xlu0 %v294, 64
    %v328 = vpop.permute.xlu0 %327
    %329 = vrot.lane.b32.xlu0 %v295, 64
    %v330 = vpop.permute.xlu0 %329
    %331 = vrot.lane.b32.xlu0 %v296, 64
    %v332 = vpop.permute.xlu0 %331
    %333 = vrot.lane.b32.xlu0 %v297, 64
    %v334 = vpop.permute.xlu0 %333
    %335 = vrot.lane.b32.xlu0 %v298, 64
    %v336 = vpop.permute.xlu0 %335
    %337 = vrot.lane.b32.xlu0 %v299, 64
    %v338 = vpop.permute.xlu0 %337
    %339 = vrot.lane.b32.xlu0 %v300, 64
    %v340 = vpop.permute.xlu0 %339
    %341 = vrot.lane.b32.xlu0 %v301, 64
    %v342 = vpop.permute.xlu0 %341
    %343 = vrot.lane.b32.xlu0 %v302, 64
    %v344 = vpop.permute.xlu0 %343
    %345 = vrot.lane.b32.xlu0 %v303, 64
    %v346 = vpop.permute.xlu0 %345
    %347 = vrot.lane.b32.xlu0 %v304, 64
    %v348 = vpop.permute.xlu0 %347
    %349 = vrot.lane.b32.xlu0 %v305, 64
    %v350 = vpop.permute.xlu0 %349
    %351 = vrot.lane.b32.xlu0 %v306, 64
    %v352 = vpop.permute.xlu0 %351
    %353 = vrot.lane.b32.xlu0 %v307, 64
    %v354 = vpop.permute.xlu0 %353
    %355 = vrot.lane.b32.xlu0 %v308, 64
    %v356 = vpop.permute.xlu0 %355
    %vm373 = vcmask 785920
    %374 = vst.msk [vmem:[#allocation3] sm:$0xff] %vm373, %v326
    %375 = vst.msk [vmem:[#allocation3 + $0x18] sm:$0xff] %vm373, %v328
    %376 = vst.msk [vmem:[#allocation3 + $0x30] sm:$0xff] %vm373, %v330
    %377 = vst.msk [vmem:[#allocation3 + $0x48] sm:$0xff] %vm373, %v332
    %378 = vst.msk [vmem:[#allocation3 + $0x60] sm:$0xff] %vm373, %v334
    %379 = vst.msk [vmem:[#allocation3 + $0x78] sm:$0xff] %vm373, %v336
    %380 = vst.msk [vmem:[#allocation3 + $0x90] sm:$0xff] %vm373, %v338
    %381 = vst.msk [vmem:[#allocation3 + $0xa8] sm:$0xff] %vm373, %v340
    %382 = vst.msk [vmem:[#allocation3 + $0xc0] sm:$0xff] %vm373, %v342
    %383 = vst.msk [vmem:[#allocation3 + $0xd8] sm:$0xff] %vm373, %v344
    %384 = vst.msk [vmem:[#allocation3 + $0xf0] sm:$0xff] %vm373, %v346
    %385 = vst.msk [vmem:[#allocation3 + $0x108] sm:$0xff] %vm373, %v348
    %386 = vst.msk [vmem:[#allocation3 + $0x120] sm:$0xff] %vm373, %v350
    %387 = vst.msk [vmem:[#allocation3 + $0x138] sm:$0xff] %vm373, %v352
    %388 = vst.msk [vmem:[#allocation3 + $0x150] sm:$0xff] %vm373, %v354
    %389 = vst.msk [vmem:[#allocation3 + $0x168] sm:$0xff] %vm373, %v356
    %v390 = vld [vmem:[%s110] sm:$0xff]
    %v391 = vld [vmem:[%s110 + $0x10] sm:$0xff]
    %v392 = vld [vmem:[%s110 + $0x20] sm:$0xff]
    %v393 = vld [vmem:[%s110 + $0x30] sm:$0xff]
    %v394 = vld [vmem:[%s110 + $0x40] sm:$0xff]
    %v395 = vld [vmem:[%s110 + $0x50] sm:$0xff]
    %v396 = vld [vmem:[%s110 + $0x60] sm:$0xff]
    %v397 = vld [vmem:[%s110 + $0x70] sm:$0xff]
    %v398 = vld [vmem:[%s110 + $0xa0] sm:$0xff]
    %v399 = vld [vmem:[%s110 + $0xb0] sm:$0xff]
    %v400 = vld [vmem:[%s110 + $0xc0] sm:$0xff]
    %v401 = vld [vmem:[%s110 + $0xd0] sm:$0xff]
    %v402 = vld [vmem:[%s110 + $0xe0] sm:$0xff]
    %v403 = vld [vmem:[%s110 + $0xf0] sm:$0xff]
    %v404 = vld [vmem:[%s110 + $0x100] sm:$0xff]
    %v405 = vld [vmem:[%s110 + $0x110] sm:$0xff]
    %422 = vrot.lane.b32.xlu0 %v390, 96
    %v423 = vpop.permute.xlu0 %422
    %424 = vrot.lane.b32.xlu0 %v391, 96
    %v425 = vpop.permute.xlu0 %424
    %426 = vrot.lane.b32.xlu0 %v392, 96
    %v427 = vpop.permute.xlu0 %426
    %428 = vrot.lane.b32.xlu0 %v393, 96
    %v429 = vpop.permute.xlu0 %428
    %430 = vrot.lane.b32.xlu0 %v394, 96
    %v431 = vpop.permute.xlu0 %430
    %432 = vrot.lane.b32.xlu0 %v395, 96
    %v433 = vpop.permute.xlu0 %432
    %434 = vrot.lane.b32.xlu0 %v396, 96
    %v435 = vpop.permute.xlu0 %434
    %436 = vrot.lane.b32.xlu0 %v397, 96
    %v437 = vpop.permute.xlu0 %436
    %438 = vrot.lane.b32.xlu0 %v398, 96
    %v439 = vpop.permute.xlu0 %438
    %440 = vrot.lane.b32.xlu0 %v399, 96
    %v441 = vpop.permute.xlu0 %440
    %442 = vrot.lane.b32.xlu0 %v400, 96
    %v443 = vpop.permute.xlu0 %442
    %444 = vrot.lane.b32.xlu0 %v401, 96
    %v445 = vpop.permute.xlu0 %444
    %446 = vrot.lane.b32.xlu0 %v402, 96
    %v447 = vpop.permute.xlu0 %446
    %448 = vrot.lane.b32.xlu0 %v403, 96
    %v449 = vpop.permute.xlu0 %448
    %450 = vrot.lane.b32.xlu0 %v404, 96
    %v451 = vpop.permute.xlu0 %450
    %452 = vrot.lane.b32.xlu0 %v405, 96
    %v453 = vpop.permute.xlu0 %452
    %vm470 = vcmask 1048320
    %471 = vst.msk [vmem:[#allocation3] sm:$0xff] %vm470, %v423
    %472 = vst.msk [vmem:[#allocation3 + $0x18] sm:$0xff] %vm470, %v425
    %473 = vst.msk [vmem:[#allocation3 + $0x30] sm:$0xff] %vm470, %v427
    %474 = vst.msk [vmem:[#allocation3 + $0x48] sm:$0xff] %vm470, %v429
    %475 = vst.msk [vmem:[#allocation3 + $0x60] sm:$0xff] %vm470, %v431
    %476 = vst.msk [vmem:[#allocation3 + $0x78] sm:$0xff] %vm470, %v433
    %477 = vst.msk [vmem:[#allocation3 + $0x90] sm:$0xff] %vm470, %v435
    %478 = vst.msk [vmem:[#allocation3 + $0xa8] sm:$0xff] %vm470, %v437
    %479 = vst.msk [vmem:[#allocation3 + $0xc0] sm:$0xff] %vm470, %v439
    %480 = vst.msk [vmem:[#allocation3 + $0xd8] sm:$0xff] %vm470, %v441
    %481 = vst.msk [vmem:[#allocation3 + $0xf0] sm:$0xff] %vm470, %v443
    %482 = vst.msk [vmem:[#allocation3 + $0x108] sm:$0xff] %vm470, %v445
    %483 = vst.msk [vmem:[#allocation3 + $0x120] sm:$0xff] %vm470, %v447
    %484 = vst.msk [vmem:[#allocation3 + $0x138] sm:$0xff] %vm470, %v449
    %485 = vst.msk [vmem:[#allocation3 + $0x150] sm:$0xff] %vm470, %v451
    %486 = vst.msk [vmem:[#allocation3 + $0x168] sm:$0xff] %vm470, %v453
    %v487 = vld [vmem:[%s110 + $0x1] sm:$0xff]
    %v488 = vld [vmem:[%s110 + $0x11] sm:$0xff]
    %v489 = vld [vmem:[%s110 + $0x21] sm:$0xff]
    %v490 = vld [vmem:[%s110 + $0x31] sm:$0xff]
    %v491 = vld [vmem:[%s110 + $0x41] sm:$0xff]
    %v492 = vld [vmem:[%s110 + $0x51] sm:$0xff]
    %v493 = vld [vmem:[%s110 + $0x61] sm:$0xff]
    %v494 = vld [vmem:[%s110 + $0x71] sm:$0xff]
    %v495 = vld [vmem:[%s110 + $0xa1] sm:$0xff]
    %v496 = vld [vmem:[%s110 + $0xb1] sm:$0xff]
    %v497 = vld [vmem:[%s110 + $0xc1] sm:$0xff]
    %v498 = vld [vmem:[%s110 + $0xd1] sm:$0xff]
    %v499 = vld [vmem:[%s110 + $0xe1] sm:$0xff]
    %v500 = vld [vmem:[%s110 + $0xf1] sm:$0xff]
    %v501 = vld [vmem:[%s110 + $0x101] sm:$0xff]
    %v502 = vld [vmem:[%s110 + $0x111] sm:$0xff]
    %503 = vst.msk [vmem:[#allocation3 + $0x8] sm:$0xff] %vm52, %v487
    %504 = vst.msk [vmem:[#allocation3 + $0x20] sm:$0xff] %vm52, %v488
    %505 = vst.msk [vmem:[#allocation3 + $0x38] sm:$0xff] %vm52, %v489
    %506 = vst.msk [vmem:[#allocation3 + $0x50] sm:$0xff] %vm52, %v490
    %507 = vst.msk [vmem:[#allocation3 + $0x68] sm:$0xff] %vm52, %v491
    %508 = vst.msk [vmem:[#allocation3 + $0x80] sm:$0xff] %vm52, %v492
    %509 = vst.msk [vmem:[#allocation3 + $0x98] sm:$0xff] %vm52, %v493
    %510 = vst.msk [vmem:[#allocation3 + $0xb0] sm:$0xff] %vm52, %v494
    %511 = vst.msk [vmem:[#allocation3 + $0xc8] sm:$0xff] %vm52, %v495
    %512 = vst.msk [vmem:[#allocation3 + $0xe0] sm:$0xff] %vm52, %v496
    %513 = vst.msk [vmem:[#allocation3 + $0xf8] sm:$0xff] %vm52, %v497
    %514 = vst.msk [vmem:[#allocation3 + $0x110] sm:$0xff] %vm52, %v498
    %515 = vst.msk [vmem:[#allocation3 + $0x128] sm:$0xff] %vm52, %v499
    %516 = vst.msk [vmem:[#allocation3 + $0x140] sm:$0xff] %vm52, %v500
    %517 = vst.msk [vmem:[#allocation3 + $0x158] sm:$0xff] %vm52, %v501
    %518 = vst.msk [vmem:[#allocation3 + $0x170] sm:$0xff] %vm52, %v502
    %v519 = vld [vmem:[%s110 + $0x2] sm:$0xff]
    %v520 = vld [vmem:[%s110 + $0x12] sm:$0xff]
    %v521 = vld [vmem:[%s110 + $0x22] sm:$0xff]
    %v522 = vld [vmem:[%s110 + $0x32] sm:$0xff]
    %v523 = vld [vmem:[%s110 + $0x42] sm:$0xff]
    %v524 = vld [vmem:[%s110 + $0x52] sm:$0xff]
    %v525 = vld [vmem:[%s110 + $0x62] sm:$0xff]
    %v526 = vld [vmem:[%s110 + $0x72] sm:$0xff]
    %v527 = vld [vmem:[%s110 + $0xa2] sm:$0xff]
    %v528 = vld [vmem:[%s110 + $0xb2] sm:$0xff]
    %v529 = vld [vmem:[%s110 + $0xc2] sm:$0xff]
    %v530 = vld [vmem:[%s110 + $0xd2] sm:$0xff]
    %v531 = vld [vmem:[%s110 + $0xe2] sm:$0xff]
    %v532 = vld [vmem:[%s110 + $0xf2] sm:$0xff]
    %v533 = vld [vmem:[%s110 + $0x102] sm:$0xff]
    %v534 = vld [vmem:[%s110 + $0x112] sm:$0xff]
    %551 = vrot.lane.b32.xlu0 %v519, 32
    %v552 = vpop.permute.xlu0 %551
    %553 = vrot.lane.b32.xlu0 %v520, 32
    %v554 = vpop.permute.xlu0 %553
    %555 = vrot.lane.b32.xlu0 %v521, 32
    %v556 = vpop.permute.xlu0 %555
    %557 = vrot.lane.b32.xlu0 %v522, 32
    %v558 = vpop.permute.xlu0 %557
    %559 = vrot.lane.b32.xlu0 %v523, 32
    %v560 = vpop.permute.xlu0 %559
    %561 = vrot.lane.b32.xlu0 %v524, 32
    %v562 = vpop.permute.xlu0 %561
    %563 = vrot.lane.b32.xlu0 %v525, 32
    %v564 = vpop.permute.xlu0 %563
    %565 = vrot.lane.b32.xlu0 %v526, 32
    %v566 = vpop.permute.xlu0 %565
    %567 = vrot.lane.b32.xlu0 %v527, 32
    %v568 = vpop.permute.xlu0 %567
    %569 = vrot.lane.b32.xlu0 %v528, 32
    %v570 = vpop.permute.xlu0 %569
    %571 = vrot.lane.b32.xlu0 %v529, 32
    %v572 = vpop.permute.xlu0 %571
    %573 = vrot.lane.b32.xlu0 %v530, 32
    %v574 = vpop.permute.xlu0 %573
    %575 = vrot.lane.b32.xlu0 %v531, 32
    %v576 = vpop.permute.xlu0 %575
    %577 = vrot.lane.b32.xlu0 %v532, 32
    %v578 = vpop.permute.xlu0 %577
    %579 = vrot.lane.b32.xlu0 %v533, 32
    %v580 = vpop.permute.xlu0 %579
    %581 = vrot.lane.b32.xlu0 %v534, 32
    %v582 = vpop.permute.xlu0 %581
    %599 = vst.msk [vmem:[#allocation3 + $0x8] sm:$0xff] %vm276, %v552
    %600 = vst.msk [vmem:[#allocation3 + $0x20] sm:$0xff] %vm276, %v554
    %601 = vst.msk [vmem:[#allocation3 + $0x38] sm:$0xff] %vm276, %v556
    %602 = vst.msk [vmem:[#allocation3 + $0x50] sm:$0xff] %vm276, %v558
    %603 = vst.msk [vmem:[#allocation3 + $0x68] sm:$0xff] %vm276, %v560
    %604 = vst.msk [vmem:[#allocation3 + $0x80] sm:$0xff] %vm276, %v562
    %605 = vst.msk [vmem:[#allocation3 + $0x98] sm:$0xff] %vm276, %v564
    %606 = vst.msk [vmem:[#allocation3 + $0xb0] sm:$0xff] %vm276, %v566
    %607 = vst.msk [vmem:[#allocation3 + $0xc8] sm:$0xff] %vm276, %v568
    %608 = vst.msk [vmem:[#allocation3 + $0xe0] sm:$0xff] %vm276, %v570
    %609 = vst.msk [vmem:[#allocation3 + $0xf8] sm:$0xff] %vm276, %v572
    %610 = vst.msk [vmem:[#allocation3 + $0x110] sm:$0xff] %vm276, %v574
    %611 = vst.msk [vmem:[#allocation3 + $0x128] sm:$0xff] %vm276, %v576
    %612 = vst.msk [vmem:[#allocation3 + $0x140] sm:$0xff] %vm276, %v578
    %613 = vst.msk [vmem:[#allocation3 + $0x158] sm:$0xff] %vm276, %v580
    %614 = vst.msk [vmem:[#allocation3 + $0x170] sm:$0xff] %vm276, %v582
    %s615 = scalar_lea.vmem [#allocation2], 32
    %v616 = vld [vmem:[%s615] sm:$0xff]
    %v617 = vld [vmem:[%s615 + $0x10] sm:$0xff]
    %v618 = vld [vmem:[%s615 + $0x20] sm:$0xff]
    %v619 = vld [vmem:[%s615 + $0x30] sm:$0xff]
    %v620 = vld [vmem:[%s615 + $0x40] sm:$0xff]
    %v621 = vld [vmem:[%s615 + $0x50] sm:$0xff]
    %v622 = vld [vmem:[%s615 + $0x60] sm:$0xff]
    %v623 = vld [vmem:[%s615 + $0x70] sm:$0xff]
    %v624 = vld [vmem:[%s615 + $0xa0] sm:$0xff]
    %v625 = vld [vmem:[%s615 + $0xb0] sm:$0xff]
    %v626 = vld [vmem:[%s615 + $0xc0] sm:$0xff]
    %v627 = vld [vmem:[%s615 + $0xd0] sm:$0xff]
    %v628 = vld [vmem:[%s615 + $0xe0] sm:$0xff]
    %v629 = vld [vmem:[%s615 + $0xf0] sm:$0xff]
    %v630 = vld [vmem:[%s615 + $0x100] sm:$0xff]
    %v631 = vld [vmem:[%s615 + $0x110] sm:$0xff]
    %648 = vrot.lane.b32.xlu0 %v616, 64
    %v649 = vpop.permute.xlu0 %648
    %650 = vrot.lane.b32.xlu0 %v617, 64
    %v651 = vpop.permute.xlu0 %650
    %652 = vrot.lane.b32.xlu0 %v618, 64
    %v653 = vpop.permute.xlu0 %652
    %654 = vrot.lane.b32.xlu0 %v619, 64
    %v655 = vpop.permute.xlu0 %654
    %656 = vrot.lane.b32.xlu0 %v620, 64
    %v657 = vpop.permute.xlu0 %656
    %658 = vrot.lane.b32.xlu0 %v621, 64
    %v659 = vpop.permute.xlu0 %658
    %660 = vrot.lane.b32.xlu0 %v622, 64
    %v661 = vpop.permute.xlu0 %660
    %662 = vrot.lane.b32.xlu0 %v623, 64
    %v663 = vpop.permute.xlu0 %662
    %664 = vrot.lane.b32.xlu0 %v624, 64
    %v665 = vpop.permute.xlu0 %664
    %666 = vrot.lane.b32.xlu0 %v625, 64
    %v667 = vpop.permute.xlu0 %666
    %668 = vrot.lane.b32.xlu0 %v626, 64
    %v669 = vpop.permute.xlu0 %668
    %670 = vrot.lane.b32.xlu0 %v627, 64
    %v671 = vpop.permute.xlu0 %670
    %672 = vrot.lane.b32.xlu0 %v628, 64
    %v673 = vpop.permute.xlu0 %672
    %674 = vrot.lane.b32.xlu0 %v629, 64
    %v675 = vpop.permute.xlu0 %674
    %676 = vrot.lane.b32.xlu0 %v630, 64
    %v677 = vpop.permute.xlu0 %676
    %678 = vrot.lane.b32.xlu0 %v631, 64
    %v679 = vpop.permute.xlu0 %678
    %696 = vst.msk [vmem:[#allocation3 + $0x8] sm:$0xff] %vm373, %v649
    %697 = vst.msk [vmem:[#allocation3 + $0x20] sm:$0xff] %vm373, %v651
    %698 = vst.msk [vmem:[#allocation3 + $0x38] sm:$0xff] %vm373, %v653
    %699 = vst.msk [vmem:[#allocation3 + $0x50] sm:$0xff] %vm373, %v655
    %700 = vst.msk [vmem:[#allocation3 + $0x68] sm:$0xff] %vm373, %v657
    %701 = vst.msk [vmem:[#allocation3 + $0x80] sm:$0xff] %vm373, %v659
    %702 = vst.msk [vmem:[#allocation3 + $0x98] sm:$0xff] %vm373, %v661
    %703 = vst.msk [vmem:[#allocation3 + $0xb0] sm:$0xff] %vm373, %v663
    %704 = vst.msk [vmem:[#allocation3 + $0xc8] sm:$0xff] %vm373, %v665
    %705 = vst.msk [vmem:[#allocation3 + $0xe0] sm:$0xff] %vm373, %v667
    %706 = vst.msk [vmem:[#allocation3 + $0xf8] sm:$0xff] %vm373, %v669
    %707 = vst.msk [vmem:[#allocation3 + $0x110] sm:$0xff] %vm373, %v671
    %708 = vst.msk [vmem:[#allocation3 + $0x128] sm:$0xff] %vm373, %v673
    %709 = vst.msk [vmem:[#allocation3 + $0x140] sm:$0xff] %vm373, %v675
    %710 = vst.msk [vmem:[#allocation3 + $0x158] sm:$0xff] %vm373, %v677
    %711 = vst.msk [vmem:[#allocation3 + $0x170] sm:$0xff] %vm373, %v679
    %v712 = vld [vmem:[%s615 + $0x1] sm:$0xff]
    %v713 = vld [vmem:[%s615 + $0x11] sm:$0xff]
    %v714 = vld [vmem:[%s615 + $0x21] sm:$0xff]
    %v715 = vld [vmem:[%s615 + $0x31] sm:$0xff]
    %v716 = vld [vmem:[%s615 + $0x41] sm:$0xff]
    %v717 = vld [vmem:[%s615 + $0x51] sm:$0xff]
    %v718 = vld [vmem:[%s615 + $0x61] sm:$0xff]
    %v719 = vld [vmem:[%s615 + $0x71] sm:$0xff]
    %v720 = vld [vmem:[%s615 + $0xa1] sm:$0xff]
    %v721 = vld [vmem:[%s615 + $0xb1] sm:$0xff]
    %v722 = vld [vmem:[%s615 + $0xc1] sm:$0xff]
    %v723 = vld [vmem:[%s615 + $0xd1] sm:$0xff]
    %v724 = vld [vmem:[%s615 + $0xe1] sm:$0xff]
    %v725 = vld [vmem:[%s615 + $0xf1] sm:$0xff]
    %v726 = vld [vmem:[%s615 + $0x101] sm:$0xff]
    %v727 = vld [vmem:[%s615 + $0x111] sm:$0xff]
    %744 = vrot.lane.b32.xlu0 %v712, 96
    %v745 = vpop.permute.xlu0 %744
    %746 = vrot.lane.b32.xlu0 %v713, 96
    %v747 = vpop.permute.xlu0 %746
    %748 = vrot.lane.b32.xlu0 %v714, 96
    %v749 = vpop.permute.xlu0 %748
    %750 = vrot.lane.b32.xlu0 %v715, 96
    %v751 = vpop.permute.xlu0 %750
    %752 = vrot.lane.b32.xlu0 %v716, 96
    %v753 = vpop.permute.xlu0 %752
    %754 = vrot.lane.b32.xlu0 %v717, 96
    %v755 = vpop.permute.xlu0 %754
    %756 = vrot.lane.b32.xlu0 %v718, 96
    %v757 = vpop.permute.xlu0 %756
    %758 = vrot.lane.b32.xlu0 %v719, 96
    %v759 = vpop.permute.xlu0 %758
    %760 = vrot.lane.b32.xlu0 %v720, 96
    %v761 = vpop.permute.xlu0 %760
    %762 = vrot.lane.b32.xlu0 %v721, 96
    %v763 = vpop.permute.xlu0 %762
    %764 = vrot.lane.b32.xlu0 %v722, 96
    %v765 = vpop.permute.xlu0 %764
    %766 = vrot.lane.b32.xlu0 %v723, 96
    %v767 = vpop.permute.xlu0 %766
    %768 = vrot.lane.b32.xlu0 %v724, 96
    %v769 = vpop.permute.xlu0 %768
    %770 = vrot.lane.b32.xlu0 %v725, 96
    %v771 = vpop.permute.xlu0 %770
    %772 = vrot.lane.b32.xlu0 %v726, 96
    %v773 = vpop.permute.xlu0 %772
    %774 = vrot.lane.b32.xlu0 %v727, 96
    %v775 = vpop.permute.xlu0 %774
    %792 = vst.msk [vmem:[#allocation3 + $0x8] sm:$0xff] %vm470, %v745
    %793 = vst.msk [vmem:[#allocation3 + $0x20] sm:$0xff] %vm470, %v747
    %794 = vst.msk [vmem:[#allocation3 + $0x38] sm:$0xff] %vm470, %v749
    %795 = vst.msk [vmem:[#allocation3 + $0x50] sm:$0xff] %vm470, %v751
    %796 = vst.msk [vmem:[#allocation3 + $0x68] sm:$0xff] %vm470, %v753
    %797 = vst.msk [vmem:[#allocation3 + $0x80] sm:$0xff] %vm470, %v755
    %798 = vst.msk [vmem:[#allocation3 + $0x98] sm:$0xff] %vm470, %v757
    %799 = vst.msk [vmem:[#allocation3 + $0xb0] sm:$0xff] %vm470, %v759
    %800 = vst.msk [vmem:[#allocation3 + $0xc8] sm:$0xff] %vm470, %v761
    %801 = vst.msk [vmem:[#allocation3 + $0xe0] sm:$0xff] %vm470, %v763
    %802 = vst.msk [vmem:[#allocation3 + $0xf8] sm:$0xff] %vm470, %v765
    %803 = vst.msk [vmem:[#allocation3 + $0x110] sm:$0xff] %vm470, %v767
    %804 = vst.msk [vmem:[#allocation3 + $0x128] sm:$0xff] %vm470, %v769
    %805 = vst.msk [vmem:[#allocation3 + $0x140] sm:$0xff] %vm470, %v771
    %806 = vst.msk [vmem:[#allocation3 + $0x158] sm:$0xff] %vm470, %v773
    %807 = vst.msk [vmem:[#allocation3 + $0x170] sm:$0xff] %vm470, %v775
    %v808 = vld [vmem:[%s615 + $0x2] sm:$0xff]
    %v809 = vld [vmem:[%s615 + $0x12] sm:$0xff]
    %v810 = vld [vmem:[%s615 + $0x22] sm:$0xff]
    %v811 = vld [vmem:[%s615 + $0x32] sm:$0xff]
    %v812 = vld [vmem:[%s615 + $0x42] sm:$0xff]
    %v813 = vld [vmem:[%s615 + $0x52] sm:$0xff]
    %v814 = vld [vmem:[%s615 + $0x62] sm:$0xff]
    %v815 = vld [vmem:[%s615 + $0x72] sm:$0xff]
    %v816 = vld [vmem:[%s615 + $0xa2] sm:$0xff]
    %v817 = vld [vmem:[%s615 + $0xb2] sm:$0xff]
    %v818 = vld [vmem:[%s615 + $0xc2] sm:$0xff]
    %v819 = vld [vmem:[%s615 + $0xd2] sm:$0xff]
    %v820 = vld [vmem:[%s615 + $0xe2] sm:$0xff]
    %v821 = vld [vmem:[%s615 + $0xf2] sm:$0xff]
    %v822 = vld [vmem:[%s615 + $0x102] sm:$0xff]
    %v823 = vld [vmem:[%s615 + $0x112] sm:$0xff]
    %824 = vst.msk [vmem:[#allocation3 + $0x10] sm:$0xff] %vm52, %v808
    %825 = vst.msk [vmem:[#allocation3 + $0x28] sm:$0xff] %vm52, %v809
    %826 = vst.msk [vmem:[#allocation3 + $0x40] sm:$0xff] %vm52, %v810
    %827 = vst.msk [vmem:[#allocation3 + $0x58] sm:$0xff] %vm52, %v811
    %828 = vst.msk [vmem:[#allocation3 + $0x70] sm:$0xff] %vm52, %v812
    %829 = vst.msk [vmem:[#allocation3 + $0x88] sm:$0xff] %vm52, %v813
    %830 = vst.msk [vmem:[#allocation3 + $0xa0] sm:$0xff] %vm52, %v814
    %831 = vst.msk [vmem:[#allocation3 + $0xb8] sm:$0xff] %vm52, %v815
    %832 = vst.msk [vmem:[#allocation3 + $0xd0] sm:$0xff] %vm52, %v816
    %833 = vst.msk [vmem:[#allocation3 + $0xe8] sm:$0xff] %vm52, %v817
    %834 = vst.msk [vmem:[#allocation3 + $0x100] sm:$0xff] %vm52, %v818
    %835 = vst.msk [vmem:[#allocation3 + $0x118] sm:$0xff] %vm52, %v819
    %836 = vst.msk [vmem:[#allocation3 + $0x130] sm:$0xff] %vm52, %v820
    %837 = vst.msk [vmem:[#allocation3 + $0x148] sm:$0xff] %vm52, %v821
    %838 = vst.msk [vmem:[#allocation3 + $0x160] sm:$0xff] %vm52, %v822
    %839 = vst.msk [vmem:[#allocation3 + $0x178] sm:$0xff] %vm52, %v823
    %v840 = vld [vmem:[#allocation3] sm:$0xff]
    %v841 = vld [vmem:[#allocation3 + $0x8] sm:$0xff]
    %v842 = vld [vmem:[#allocation3 + $0x10] sm:$0xff]
    %v843 = vld [vmem:[#allocation3 + $0x18] sm:$0xff]
    %v844 = vld [vmem:[#allocation3 + $0x20] sm:$0xff]
    %v845 = vld [vmem:[#allocation3 + $0x28] sm:$0xff]
    %v846 = vld [vmem:[#allocation3 + $0x30] sm:$0xff]
    %v847 = vld [vmem:[#allocation3 + $0x38] sm:$0xff]
    %v848 = vld [vmem:[#allocation3 + $0x40] sm:$0xff]
    %v849 = vld [vmem:[#allocation3 + $0x48] sm:$0xff]
    %v850 = vld [vmem:[#allocation3 + $0x50] sm:$0xff]
    %v851 = vld [vmem:[#allocation3 + $0x58] sm:$0xff]
    %v852 = vld [vmem:[#allocation3 + $0x60] sm:$0xff]
    %v853 = vld [vmem:[#allocation3 + $0x68] sm:$0xff]
    %v854 = vld [vmem:[#allocation3 + $0x70] sm:$0xff]
    %v855 = vld [vmem:[#allocation3 + $0x78] sm:$0xff]
    %v856 = vld [vmem:[#allocation3 + $0x80] sm:$0xff]
    %v857 = vld [vmem:[#allocation3 + $0x88] sm:$0xff]
    %v858 = vld [vmem:[#allocation3 + $0x90] sm:$0xff]
    %v859 = vld [vmem:[#allocation3 + $0x98] sm:$0xff]
    %v860 = vld [vmem:[#allocation3 + $0xa0] sm:$0xff]
    %v861 = vld [vmem:[#allocation3 + $0xa8] sm:$0xff]
    %v862 = vld [vmem:[#allocation3 + $0xb0] sm:$0xff]
    %v863 = vld [vmem:[#allocation3 + $0xb8] sm:$0xff]
    %v864 = vld [vmem:[#allocation3 + $0xc0] sm:$0xff]
    %v865 = vld [vmem:[#allocation3 + $0xc8] sm:$0xff]
    %v866 = vld [vmem:[#allocation3 + $0xd0] sm:$0xff]
    %v867 = vld [vmem:[#allocation3 + $0xd8] sm:$0xff]
    %v868 = vld [vmem:[#allocation3 + $0xe0] sm:$0xff]
    %v869 = vld [vmem:[#allocation3 + $0xe8] sm:$0xff]
    %v870 = vld [vmem:[#allocation3 + $0xf0] sm:$0xff]
    %v871 = vld [vmem:[#allocation3 + $0xf8] sm:$0xff]
    %v872 = vld [vmem:[#allocation3 + $0x100] sm:$0xff]
    %v873 = vld [vmem:[#allocation3 + $0x108] sm:$0xff]
    %v874 = vld [vmem:[#allocation3 + $0x110] sm:$0xff]
    %v875 = vld [vmem:[#allocation3 + $0x118] sm:$0xff]
    %v876 = vld [vmem:[#allocation3 + $0x120] sm:$0xff]
    %v877 = vld [vmem:[#allocation3 + $0x128] sm:$0xff]
    %v878 = vld [vmem:[#allocation3 + $0x130] sm:$0xff]
    %v879 = vld [vmem:[#allocation3 + $0x138] sm:$0xff]
    %v880 = vld [vmem:[#allocation3 + $0x140] sm:$0xff]
    %v881 = vld [vmem:[#allocation3 + $0x148] sm:$0xff]
    %v882 = vld [vmem:[#allocation3 + $0x150] sm:$0xff]
    %v883 = vld [vmem:[#allocation3 + $0x158] sm:$0xff]
    %v884 = vld [vmem:[#allocation3 + $0x160] sm:$0xff]
    %v885 = vld [vmem:[#allocation3 + $0x168] sm:$0xff]
    %v886 = vld [vmem:[#allocation3 + $0x170] sm:$0xff]
    %v887 = vld [vmem:[#allocation3 + $0x178] sm:$0xff]
    %v889 = vlaneseq
    %v890 = vshrl.u32 %v889, 7
    %v891 = vsub.s32 0, %v890
    %v892 = vrot.slane %v163, %v891
    %v895 = vsel %vm52, %v842, 0
    %v898 = vsel %vm52, %v845, 0
    %v901 = vsel %vm52, %v848, 0
    %v904 = vsel %vm52, %v851, 0
    %v907 = vsel %vm52, %v854, 0
    %v910 = vsel %vm52, %v857, 0
    %v913 = vsel %vm52, %v860, 0
    %v916 = vsel %vm52, %v863, 0
    %v919 = vsel %vm52, %v866, 0
    %v922 = vsel %vm52, %v869, 0
    %v925 = vsel %vm52, %v872, 0
    %v928 = vsel %vm52, %v875, 0
    %v931 = vsel %vm52, %v878, 0
    %v934 = vsel %vm52, %v881, 0
    %v937 = vsel %vm52, %v884, 0
    %v940 = vsel %vm52, %v887, 0
    %942 = vmatprep.subr.mxu0 0.0
    %943 = vmatpush1.msra.mxu0 %v127
    %944 = vmatprep.subr.mxu0 0.0
    %945 = vmatpush1.msra.mxu0 %v128
    %946 = vmatprep.subr.mxu0 0.0
    %947 = vmatpush1.msra.mxu0 %v129
    %948 = vmatprep.subr.mxu0 0.0
    %949 = vmatpush1.msra.mxu0 %v130
    %950 = vmatprep.subr.mxu0 0.0
    %951 = vmatpush1.msra.mxu0 %v131
    %952 = vmatprep.subr.mxu0 0.0
    %953 = vmatpush1.msra.mxu0 %v132
    %954 = vmatprep.subr.mxu0 0.0
    %955 = vmatpush1.msra.mxu0 %v133
    %956 = vmatprep.subr.mxu0 0.0
    %957 = vmatpush1.msra.mxu0 %v134
    %958 = vmatprep.subr.mxu0 0.0
    %959 = vmatpush1.msra.mxu0 %v135
    %960 = vmatprep.subr.mxu0 0.0
    %961 = vmatpush1.msra.mxu0 %v136
    %962 = vmatprep.subr.mxu0 0.0
    %963 = vmatpush1.msra.mxu0 %v137
    %964 = vmatprep.subr.mxu0 0.0
    %965 = vmatpush1.msra.mxu0 %v138
    %966 = vmatprep.subr.mxu0 0.0
    %967 = vmatpush1.msra.mxu0 %v139
    %968 = vmatprep.subr.mxu0 0.0
    %969 = vmatpush1.msra.mxu0 %v140
    %970 = vmatprep.subr.mxu0 0.0
    %971 = vmatpush1.msra.mxu0 %v141
    %972 = vmatprep.subr.mxu0 0.0
    %973 = vmatpush1.msra.mxu0 %v142
    %974 = vmatprep.subr.mxu0 0.0
    %975 = vmatpush1.msra.mxu0 %v143
    %976 = vmatprep.subr.mxu0 0.0
    %977 = vmatpush1.msra.mxu0 %v144
    %978 = vmatprep.subr.mxu0 0.0
    %979 = vmatpush1.msra.mxu0 %v145
    %980 = vmatprep.subr.mxu0 0.0
    %981 = vmatpush1.msra.mxu0 %v146
    %982 = vmatprep.subr.mxu0 0.0
    %983 = vmatpush1.msra.mxu0 %v147
    %984 = vmatprep.subr.mxu0 0.0
    %985 = vmatpush1.msra.mxu0 %v148
    %986 = vmatprep.subr.mxu0 0.0
    %987 = vmatpush1.msra.mxu0 %v149
    %988 = vmatprep.subr.mxu0 0.0
    %989 = vmatpush1.msra.mxu0 %v150
    %990 = vmatprep.subr.mxu0 0.0
    %991 = vmatpush1.msra.mxu0 %v151
    %992 = vmatprep.subr.mxu0 0.0
    %993 = vmatpush1.msra.mxu0 %v152
    %994 = vmatprep.subr.mxu0 0.0
    %995 = vmatpush1.msra.mxu0 %v153
    %996 = vmatprep.subr.mxu0 0.0
    %997 = vmatpush1.msra.mxu0 %v154
    %998 = vmatprep.subr.mxu0 0.0
    %999 = vmatpush1.msra.mxu0 %v155
    %1000 = vmatprep.subr.mxu0 0.0
    %1001 = vmatpush1.msra.mxu0 %v156
    %1002 = vmatprep.subr.mxu0 0.0
    %1003 = vmatpush1.msra.mxu0 %v157
    %1004 = vmatprep.subr.mxu0 0.0
    %1005 = vmatpush1.msra.mxu0 %v158
    %1006 = vmatprep.mubr.f32.mxu0 %v841
    %1007 = vmatmul.mubr.f32.gmra.mrb[0].mxu0 %v840
    %v1008 = vpop.f32.mrb[0].mxu0
    %v1009 = vadd.f32 %v892, %v1008
    %v1010 = vpop.f32.mrb[0].mxu0
    %1011 = vmatprep.mubr.f32.mxu0 %v844
    %1012 = vmatmul.mubr.f32.gmra.mrb[0].mxu0 %v843
    %v1013 = vpop.f32.mrb[0].mxu0
    %v1014 = vadd.f32 %v892, %v1013
    %v1015 = vpop.f32.mrb[0].mxu0
    %1016 = vmatprep.mubr.f32.mxu0 %v847
    %1017 = vmatmul.mubr.f32.gmra.mrb[0].mxu0 %v846
    %v1018 = vpop.f32.mrb[0].mxu0
    %v1019 = vadd.f32 %v892, %v1018
    %v1020 = vpop.f32.mrb[0].mxu0
    %1021 = vmatprep.mubr.f32.mxu0 %v850
    %1022 = vmatmul.mubr.f32.gmra.mrb[0].mxu0 %v849
    %v1023 = vpop.f32.mrb[0].mxu0
    %v1024 = vadd.f32 %v892, %v1023
    %v1025 = vpop.f32.mrb[0].mxu0
    %1026 = vmatprep.mubr.f32.mxu0 %v853
    %1027 = vmatmul.mubr.f32.gmra.mrb[0].mxu0 %v852
    %v1028 = vpop.f32.mrb[0].mxu0
    %v1029 = vadd.f32 %v892, %v1028
    %v1030 = vpop.f32.mrb[0].mxu0
    %1031 = vmatprep.mubr.f32.mxu0 %v856
    %1032 = vmatmul.mubr.f32.gmra.mrb[0].mxu0 %v855
    %v1033 = vpop.f32.mrb[0].mxu0
    %v1034 = vadd.f32 %v892, %v1033
    %v1035 = vpop.f32.mrb[0].mxu0
    %1036 = vmatprep.mubr.f32.mxu0 %v859
    %1037 = vmatmul.mubr.f32.gmra.mrb[0].mxu0 %v858
    %v1038 = vpop.f32.mrb[0].mxu0
    %v1039 = vadd.f32 %v892, %v1038
    %v1040 = vpop.f32.mrb[0].mxu0
    %1041 = vmatprep.mubr.f32.mxu0 %v862
    %1042 = vmatmul.mubr.f32.gmra.mrb[0].mxu0 %v861
    %v1043 = vpop.f32.mrb[0].mxu0
    %v1044 = vadd.f32 %v892, %v1043
    %v1045 = vpop.f32.mrb[0].mxu0
    %1046 = vmatprep.mubr.f32.mxu0 %v865
    %1047 = vmatmul.mubr.f32.gmra.mrb[0].mxu0 %v864
    %v1048 = vpop.f32.mrb[0].mxu0
    %v1049 = vadd.f32 %v892, %v1048
    %v1050 = vpop.f32.mrb[0].mxu0
    %1051 = vmatprep.mubr.f32.mxu0 %v868
    %1052 = vmatmul.mubr.f32.gmra.mrb[0].mxu0 %v867
    %v1053 = vpop.f32.mrb[0].mxu0
    %v1054 = vadd.f32 %v892, %v1053
    %v1055 = vpop.f32.mrb[0].mxu0
    %1056 = vmatprep.mubr.f32.mxu0 %v871
    %1057 = vmatmul.mubr.f32.gmra.mrb[0].mxu0 %v870
    %v1058 = vpop.f32.mrb[0].mxu0
    %v1059 = vadd.f32 %v892, %v1058
    %v1060 = vpop.f32.mrb[0].mxu0
    %1061 = vmatprep.mubr.f32.mxu0 %v874
    %1062 = vmatmul.mubr.f32.gmra.mrb[0].mxu0 %v873
    %v1063 = vpop.f32.mrb[0].mxu0
    %v1064 = vadd.f32 %v892, %v1063
    %v1065 = vpop.f32.mrb[0].mxu0
    %1066 = vmatprep.mubr.f32.mxu0 %v877
    %1067 = vmatmul.mubr.f32.gmra.mrb[0].mxu0 %v876
    %v1068 = vpop.f32.mrb[0].mxu0
    %v1069 = vadd.f32 %v892, %v1068
    %v1070 = vpop.f32.mrb[0].mxu0
    %1071 = vmatprep.mubr.f32.mxu0 %v880
    %1072 = vmatmul.mubr.f32.gmra.mrb[0].mxu0 %v879
    %v1073 = vpop.f32.mrb[0].mxu0
    %v1074 = vadd.f32 %v892, %v1073
    %v1075 = vpop.f32.mrb[0].mxu0
    %1076 = vmatprep.mubr.f32.mxu0 %v883
    %1077 = vmatmul.mubr.f32.gmra.mrb[0].mxu0 %v882
    %v1078 = vpop.f32.mrb[0].mxu0
    %v1079 = vadd.f32 %v892, %v1078
    %v1080 = vpop.f32.mrb[0].mxu0
    %1081 = vmatprep.mubr.f32.mxu0 %v886
    %1082 = vmatmul.mubr.f32.gmra.mrb[0].mxu0 %v885
    %v1083 = vpop.f32.mrb[0].mxu0
    %v1084 = vadd.f32 %v892, %v1083
    %v1085 = vpop.f32.mrb[0].mxu0
    %1086 = vdwg.mxu0
    %1087 = vmatprep.subr.mxu0 0.0
    %1088 = vmatpush1.msra.mxu0 %v159
    %1089 = vmatprep.subr.mxu0 0.0
    %1090 = vmatpush1.msra.mxu0 %v160
    %1091 = vmatprep.subr.mxu0 0.0
    %1092 = vmatpush1.msra.mxu0 %v161
    %1093 = vmatprep.subr.mxu0 0.0
    %1094 = vmatpush1.msra.mxu0 %v162
    %1095 = vmatprep.subr.mxu0 0.0
    %1096 = vmatpush1.msra.mxu0 0.0
    %1097 = vmatprep.subr.mxu0 0.0
    %1098 = vmatpush1.msra.mxu0 0.0
    %1099 = vmatprep.subr.mxu0 0.0
    %1100 = vmatpush1.msra.mxu0 0.0
    %1101 = vmatprep.subr.mxu0 0.0
    %1102 = vmatpush1.msra.mxu0 0.0
    %1103 = vmatprep.subr.mxu0 0.0
    %1104 = vmatpush1.msra.mxu0 0.0
    %1105 = vmatprep.subr.mxu0 0.0
    %1106 = vmatpush1.msra.mxu0 0.0
    %1107 = vmatprep.subr.mxu0 0.0
    %1108 = vmatpush1.msra.mxu0 0.0
    %1109 = vmatprep.subr.mxu0 0.0
    %1110 = vmatpush1.msra.mxu0 0.0
    %1111 = vmatprep.subr.mxu0 0.0
    %1112 = vmatpush1.msra.mxu0 0.0
    %1113 = vmatprep.subr.mxu0 0.0
    %1114 = vmatpush1.msra.mxu0 0.0
    %1115 = vmatprep.subr.mxu0 0.0
    %1116 = vmatpush1.msra.mxu0 0.0
    %1117 = vmatprep.subr.mxu0 0.0
    %1118 = vmatpush1.msra.mxu0 0.0
    %1119 = vmatprep.subr.mxu0 0.0
    %1120 = vmatpush1.msra.mxu0 0.0
    %1121 = vmatprep.subr.mxu0 0.0
    %1122 = vmatpush1.msra.mxu0 0.0
    %1123 = vmatprep.subr.mxu0 0.0
    %1124 = vmatpush1.msra.mxu0 0.0
    %1125 = vmatprep.subr.mxu0 0.0
    %1126 = vmatpush1.msra.mxu0 0.0
    %1127 = vmatprep.subr.mxu0 0.0
    %1128 = vmatpush1.msra.mxu0 0.0
    %1129 = vmatprep.subr.mxu0 0.0
    %1130 = vmatpush1.msra.mxu0 0.0
    %1131 = vmatprep.subr.mxu0 0.0
    %1132 = vmatpush1.msra.mxu0 0.0
    %1133 = vmatprep.subr.mxu0 0.0
    %1134 = vmatpush1.msra.mxu0 0.0
    %1135 = vmatprep.subr.mxu0 0.0
    %1136 = vmatpush1.msra.mxu0 0.0
    %1137 = vmatprep.subr.mxu0 0.0
    %1138 = vmatpush1.msra.mxu0 0.0
    %1139 = vmatprep.subr.mxu0 0.0
    %1140 = vmatpush1.msra.mxu0 0.0
    %1141 = vmatprep.subr.mxu0 0.0
    %1142 = vmatpush1.msra.mxu0 0.0
    %1143 = vmatprep.subr.mxu0 0.0
    %1144 = vmatpush1.msra.mxu0 0.0
    %1145 = vmatprep.subr.mxu0 0.0
    %1146 = vmatpush1.msra.mxu0 0.0
    %1147 = vmatprep.subr.mxu0 0.0
    %1148 = vmatpush1.msra.mxu0 0.0
    %1149 = vmatprep.subr.mxu0 0.0
    %1150 = vmatpush1.msra.mxu0 0.0
    %1151 = vmatprep.mubr.f32.mxu0 0.0
    %1152 = vmatmul.mubr.f32.gmra.mrb[0].mxu0 %v895
    %v1153 = vpop.f32.mrb[0].mxu0
    %v1154 = vadd.f32 %v1009, %v1153
    %v1155 = vpop.f32.mrb[0].mxu0
    %1156 = vmatprep.mubr.f32.mxu0 0.0
    %1157 = vmatmul.mubr.f32.gmra.mrb[0].mxu0 %v898
    %v1158 = vpop.f32.mrb[0].mxu0
    %v1159 = vadd.f32 %v1014, %v1158
    %v1160 = vpop.f32.mrb[0].mxu0
    %1161 = vmatprep.mubr.f32.mxu0 0.0
    %1162 = vmatmul.mubr.f32.gmra.mrb[0].mxu0 %v901
    %v1163 = vpop.f32.mrb[0].mxu0
    %v1164 = vadd.f32 %v1019, %v1163
    %v1165 = vpop.f32.mrb[0].mxu0
    %1166 = vmatprep.mubr.f32.mxu0 0.0
    %1167 = vmatmul.mubr.f32.gmra.mrb[0].mxu0 %v904
    %v1168 = vpop.f32.mrb[0].mxu0
    %v1169 = vadd.f32 %v1024, %v1168
    %v1170 = vpop.f32.mrb[0].mxu0
    %1171 = vmatprep.mubr.f32.mxu0 0.0
    %1172 = vmatmul.mubr.f32.gmra.mrb[0].mxu0 %v907
    %v1173 = vpop.f32.mrb[0].mxu0
    %v1174 = vadd.f32 %v1029, %v1173
    %v1175 = vpop.f32.mrb[0].mxu0
    %1176 = vmatprep.mubr.f32.mxu0 0.0
    %1177 = vmatmul.mubr.f32.gmra.mrb[0].mxu0 %v910
    %v1178 = vpop.f32.mrb[0].mxu0
    %v1179 = vadd.f32 %v1034, %v1178
    %v1180 = vpop.f32.mrb[0].mxu0
    %1181 = vmatprep.mubr.f32.mxu0 0.0
    %1182 = vmatmul.mubr.f32.gmra.mrb[0].mxu0 %v913
    %v1183 = vpop.f32.mrb[0].mxu0
    %v1184 = vadd.f32 %v1039, %v1183
    %v1185 = vpop.f32.mrb[0].mxu0
    %1186 = vmatprep.mubr.f32.mxu0 0.0
    %1187 = vmatmul.mubr.f32.gmra.mrb[0].mxu0 %v916
    %v1188 = vpop.f32.mrb[0].mxu0
    %v1189 = vadd.f32 %v1044, %v1188
    %v1190 = vpop.f32.mrb[0].mxu0
    %1191 = vmatprep.mubr.f32.mxu0 0.0
    %1192 = vmatmul.mubr.f32.gmra.mrb[0].mxu0 %v919
    %v1193 = vpop.f32.mrb[0].mxu0
    %v1194 = vadd.f32 %v1049, %v1193
    %v1195 = vpop.f32.mrb[0].mxu0
    %1196 = vmatprep.mubr.f32.mxu0 0.0
    %1197 = vmatmul.mubr.f32.gmra.mrb[0].mxu0 %v922
    %v1198 = vpop.f32.mrb[0].mxu0
    %v1199 = vadd.f32 %v1054, %v1198
    %v1200 = vpop.f32.mrb[0].mxu0
    %1201 = vmatprep.mubr.f32.mxu0 0.0
    %1202 = vmatmul.mubr.f32.gmra.mrb[0].mxu0 %v925
    %v1203 = vpop.f32.mrb[0].mxu0
    %v1204 = vadd.f32 %v1059, %v1203
    %v1205 = vpop.f32.mrb[0].mxu0
    %1206 = vmatprep.mubr.f32.mxu0 0.0
    %1207 = vmatmul.mubr.f32.gmra.mrb[0].mxu0 %v928
    %v1208 = vpop.f32.mrb[0].mxu0
    %v1209 = vadd.f32 %v1064, %v1208
    %v1210 = vpop.f32.mrb[0].mxu0
    %1211 = vmatprep.mubr.f32.mxu0 0.0
    %1212 = vmatmul.mubr.f32.gmra.mrb[0].mxu0 %v931
    %v1213 = vpop.f32.mrb[0].mxu0
    %v1214 = vadd.f32 %v1069, %v1213
    %v1215 = vpop.f32.mrb[0].mxu0
    %1216 = vmatprep.mubr.f32.mxu0 0.0
    %1217 = vmatmul.mubr.f32.gmra.mrb[0].mxu0 %v934
    %v1218 = vpop.f32.mrb[0].mxu0
    %v1219 = vadd.f32 %v1074, %v1218
    %v1220 = vpop.f32.mrb[0].mxu0
    %1221 = vmatprep.mubr.f32.mxu0 0.0
    %1222 = vmatmul.mubr.f32.gmra.mrb[0].mxu0 %v937
    %v1223 = vpop.f32.mrb[0].mxu0
    %v1224 = vadd.f32 %v1079, %v1223
    %v1225 = vpop.f32.mrb[0].mxu0
    %1226 = vmatprep.mubr.f32.mxu0 0.0
    %1227 = vmatmul.mubr.f32.gmra.mrb[0].mxu0 %v940
    %v1228 = vpop.f32.mrb[0].mxu0
    %v1229 = vadd.f32 %v1084, %v1228
    %v1230 = vpop.f32.mrb[0].mxu0
    %1231 = vdwg.mxu0
    %v1232 = vmax.f32 %v1154, 0.0
    %v1233 = vmax.f32 %v1159, 0.0
    %v1234 = vmax.f32 %v1164, 0.0
    %v1235 = vmax.f32 %v1169, 0.0
    %v1236 = vmax.f32 %v1174, 0.0
    %v1237 = vmax.f32 %v1179, 0.0
    %v1238 = vmax.f32 %v1184, 0.0
    %v1239 = vmax.f32 %v1189, 0.0
    %v1240 = vmax.f32 %v1194, 0.0
    %v1241 = vmax.f32 %v1199, 0.0
    %v1242 = vmax.f32 %v1204, 0.0
    %v1243 = vmax.f32 %v1209, 0.0
    %v1244 = vmax.f32 %v1214, 0.0
    %v1245 = vmax.f32 %v1219, 0.0
    %v1246 = vmax.f32 %v1224, 0.0
    %v1247 = vmax.f32 %v1229, 0.0
    %1248 = vst.msk [vmem:[%s110 + $0x1] sm:$0xff] %vm52, %v1232
    %1249 = vst.msk [vmem:[%s110 + $0x11] sm:$0xff] %vm52, %v1233
    %1250 = vst.msk [vmem:[%s110 + $0x21] sm:$0xff] %vm52, %v1234
    %1251 = vst.msk [vmem:[%s110 + $0x31] sm:$0xff] %vm52, %v1235
    %1252 = vst.msk [vmem:[%s110 + $0x41] sm:$0xff] %vm52, %v1236
    %1253 = vst.msk [vmem:[%s110 + $0x51] sm:$0xff] %vm52, %v1237
    %1254 = vst.msk [vmem:[%s110 + $0x61] sm:$0xff] %vm52, %v1238
    %1255 = vst.msk [vmem:[%s110 + $0x71] sm:$0xff] %vm52, %v1239
    %1256 = vst.msk [vmem:[%s110 + $0xa1] sm:$0xff] %vm52, %v1240
    %1257 = vst.msk [vmem:[%s110 + $0xb1] sm:$0xff] %vm52, %v1241
    %1258 = vst.msk [vmem:[%s110 + $0xc1] sm:$0xff] %vm52, %v1242
    %1259 = vst.msk [vmem:[%s110 + $0xd1] sm:$0xff] %vm52, %v1243
    %1260 = vst.msk [vmem:[%s110 + $0xe1] sm:$0xff] %vm52, %v1244
    %1261 = vst.msk [vmem:[%s110 + $0xf1] sm:$0xff] %vm52, %v1245
    %1262 = vst.msk [vmem:[%s110 + $0x101] sm:$0xff] %vm52, %v1246
    %1263 = vst.msk [vmem:[%s110 + $0x111] sm:$0xff] %vm52, %v1247
    %v1264 = vld [vmem:[%s3] sm:$0xff]
    %v1265 = vld [vmem:[%s3 + $0x8] sm:$0xff]
    %v1266 = vld [vmem:[%s3 + $0x10] sm:$0xff]
    %v1267 = vld [vmem:[%s3 + $0x18] sm:$0xff]
    %v1268 = vld [vmem:[%s3 + $0x20] sm:$0xff]
    %v1269 = vld [vmem:[%s3 + $0x28] sm:$0xff]
    %v1270 = vld [vmem:[%s3 + $0x30] sm:$0xff]
    %v1271 = vld [vmem:[%s3 + $0x38] sm:$0xff]
    %v1272 = vld [vmem:[%s3 + $0x40] sm:$0xff]
    %v1273 = vld [vmem:[%s3 + $0x48] sm:$0xff]
    %v1274 = vld [vmem:[%s3 + $0x50] sm:$0xff]
    %v1275 = vld [vmem:[%s3 + $0x58] sm:$0xff]
    %v1276 = vld [vmem:[%s3 + $0x60] sm:$0xff]
    %v1277 = vld [vmem:[%s3 + $0x68] sm:$0xff]
    %v1278 = vld [vmem:[%s3 + $0x70] sm:$0xff]
    %v1279 = vld [vmem:[%s3 + $0x78] sm:$0xff]
    %v1280 = vld [vmem:[%s3 + $0x80] sm:$0xff]
    %v1281 = vld [vmem:[%s3 + $0x88] sm:$0xff]
    %v1282 = vld [vmem:[%s3 + $0x90] sm:$0xff]
    %v1283 = vld [vmem:[%s3 + $0x98] sm:$0xff]
    %v1284 = vld [vmem:[%s3 + $0xa0] sm:$0xff]
    %v1285 = vld [vmem:[%s3 + $0xa8] sm:$0xff]
    %v1286 = vld [vmem:[%s3 + $0xb0] sm:$0xff]
    %v1287 = vld [vmem:[%s3 + $0xb8] sm:$0xff]
    %v1288 = vld [vmem:[%s3 + $0xc0] sm:$0xff]
    %v1289 = vld [vmem:[%s3 + $0xc8] sm:$0xff]
    %v1290 = vld [vmem:[%s3 + $0xd0] sm:$0xff]
    %v1291 = vld [vmem:[%s3 + $0xd8] sm:$0xff]
    %v1292 = vld [vmem:[%s3 + $0xe0] sm:$0xff]
    %v1293 = vld [vmem:[%s3 + $0xe8] sm:$0xff]
    %v1294 = vld [vmem:[%s3 + $0xf0] sm:$0xff]
    %v1295 = vld [vmem:[%s3 + $0xf8] sm:$0xff]
    %v1296 = vld [vmem:[%s3 + $0x100] sm:$0xff]
    %v1297 = vld [vmem:[%s3 + $0x108] sm:$0xff]
    %v1298 = vld [vmem:[%s3 + $0x110] sm:$0xff]
    %v1299 = vld [vmem:[%s3 + $0x118] sm:$0xff]
    %v1300 = vld [vmem:[%s4] sm:$0x1]
    %v1301 = vld [vmem:[#allocation2] sm:$0xff]
    %v1302 = vld [vmem:[#allocation2 + $0x10] sm:$0xff]
    %v1303 = vld [vmem:[#allocation2 + $0x20] sm:$0xff]
    %v1304 = vld [vmem:[#allocation2 + $0x30] sm:$0xff]
    %v1305 = vld [vmem:[#allocation2 + $0x40] sm:$0xff]
    %v1306 = vld [vmem:[#allocation2 + $0x50] sm:$0xff]
    %v1307 = vld [vmem:[#allocation2 + $0x60] sm:$0xff]
    %v1308 = vld [vmem:[#allocation2 + $0x70] sm:$0xff]
    %v1309 = vld [vmem:[#allocation2 + $0xa0] sm:$0xff]
    %v1310 = vld [vmem:[#allocation2 + $0xb0] sm:$0xff]
    %v1311 = vld [vmem:[#allocation2 + $0xc0] sm:$0xff]
    %v1312 = vld [vmem:[#allocation2 + $0xd0] sm:$0xff]
    %v1313 = vld [vmem:[#allocation2 + $0xe0] sm:$0xff]
    %v1314 = vld [vmem:[#allocation2 + $0xf0] sm:$0xff]
    %v1315 = vld [vmem:[#allocation2 + $0x100] sm:$0xff]
    %v1316 = vld [vmem:[#allocation2 + $0x110] sm:$0xff]
    %1317 = vst.msk [vmem:[#allocation3] sm:$0xff] %vm52, %v1301
    %1318 = vst.msk [vmem:[#allocation3 + $0x18] sm:$0xff] %vm52, %v1302
    %1319 = vst.msk [vmem:[#allocation3 + $0x30] sm:$0xff] %vm52, %v1303
    %1320 = vst.msk [vmem:[#allocation3 + $0x48] sm:$0xff] %vm52, %v1304
    %1321 = vst.msk [vmem:[#allocation3 + $0x60] sm:$0xff] %vm52, %v1305
    %1322 = vst.msk [vmem:[#allocation3 + $0x78] sm:$0xff] %vm52, %v1306
    %1323 = vst.msk [vmem:[#allocation3 + $0x90] sm:$0xff] %vm52, %v1307
    %1324 = vst.msk [vmem:[#allocation3 + $0xa8] sm:$0xff] %vm52, %v1308
    %1325 = vst.msk [vmem:[#allocation3 + $0xc0] sm:$0xff] %vm52, %v1309
    %1326 = vst.msk [vmem:[#allocation3 + $0xd8] sm:$0xff] %vm52, %v1310
    %1327 = vst.msk [vmem:[#allocation3 + $0xf0] sm:$0xff] %vm52, %v1311
    %1328 = vst.msk [vmem:[#allocation3 + $0x108] sm:$0xff] %vm52, %v1312
    %1329 = vst.msk [vmem:[#allocation3 + $0x120] sm:$0xff] %vm52, %v1313
    %1330 = vst.msk [vmem:[#allocation3 + $0x138] sm:$0xff] %vm52, %v1314
    %1331 = vst.msk [vmem:[#allocation3 + $0x150] sm:$0xff] %vm52, %v1315
    %1332 = vst.msk [vmem:[#allocation3 + $0x168] sm:$0xff] %vm52, %v1316
    %v1333 = vld [vmem:[#allocation2 + $0x1] sm:$0xff]
    %v1334 = vld [vmem:[#allocation2 + $0x11] sm:$0xff]
    %v1335 = vld [vmem:[#allocation2 + $0x21] sm:$0xff]
    %v1336 = vld [vmem:[#allocation2 + $0x31] sm:$0xff]
    %v1337 = vld [vmem:[#allocation2 + $0x41] sm:$0xff]
    %v1338 = vld [vmem:[#allocation2 + $0x51] sm:$0xff]
    %v1339 = vld [vmem:[#allocation2 + $0x61] sm:$0xff]
    %v1340 = vld [vmem:[#allocation2 + $0x71] sm:$0xff]
    %v1341 = vld [vmem:[#allocation2 + $0xa1] sm:$0xff]
    %v1342 = vld [vmem:[#allocation2 + $0xb1] sm:$0xff]
    %v1343 = vld [vmem:[#allocation2 + $0xc1] sm:$0xff]
    %v1344 = vld [vmem:[#allocation2 + $0xd1] sm:$0xff]
    %v1345 = vld [vmem:[#allocation2 + $0xe1] sm:$0xff]
    %v1346 = vld [vmem:[#allocation2 + $0xf1] sm:$0xff]
    %v1347 = vld [vmem:[#allocation2 + $0x101] sm:$0xff]
    %v1348 = vld [vmem:[#allocation2 + $0x111] sm:$0xff]
    %1365 = vrot.lane.b32.xlu0 %v1333, 32
    %v1366 = vpop.permute.xlu0 %1365
    %1367 = vrot.lane.b32.xlu0 %v1334, 32
    %v1368 = vpop.permute.xlu0 %1367
    %1369 = vrot.lane.b32.xlu0 %v1335, 32
    %v1370 = vpop.permute.xlu0 %1369
    %1371 = vrot.lane.b32.xlu0 %v1336, 32
    %v1372 = vpop.permute.xlu0 %1371
    %1373 = vrot.lane.b32.xlu0 %v1337, 32
    %v1374 = vpop.permute.xlu0 %1373
    %1375 = vrot.lane.b32.xlu0 %v1338, 32
    %v1376 = vpop.permute.xlu0 %1375
    %1377 = vrot.lane.b32.xlu0 %v1339, 32
    %v1378 = vpop.permute.xlu0 %1377
    %1379 = vrot.lane.b32.xlu0 %v1340, 32
    %v1380 = vpop.permute.xlu0 %1379
    %1381 = vrot.lane.b32.xlu0 %v1341, 32
    %v1382 = vpop.permute.xlu0 %1381
    %1383 = vrot.lane.b32.xlu0 %v1342, 32
    %v1384 = vpop.permute.xlu0 %1383
    %1385 = vrot.lane.b32.xlu0 %v1343, 32
    %v1386 = vpop.permute.xlu0 %1385
    %1387 = vrot.lane.b32.xlu0 %v1344, 32
    %v1388 = vpop.permute.xlu0 %1387
    %1389 = vrot.lane.b32.xlu0 %v1345, 32
    %v1390 = vpop.permute.xlu0 %1389
    %1391 = vrot.lane.b32.xlu0 %v1346, 32
    %v1392 = vpop.permute.xlu0 %1391
    %1393 = vrot.lane.b32.xlu0 %v1347, 32
    %v1394 = vpop.permute.xlu0 %1393
    %1395 = vrot.lane.b32.xlu0 %v1348, 32
    %v1396 = vpop.permute.xlu0 %1395
    %1413 = vst.msk [vmem:[#allocation3] sm:$0xff] %vm276, %v1366
    %1414 = vst.msk [vmem:[#allocation3 + $0x18] sm:$0xff] %vm276, %v1368
    %1415 = vst.msk [vmem:[#allocation3 + $0x30] sm:$0xff] %vm276, %v1370
    %1416 = vst.msk [vmem:[#allocation3 + $0x48] sm:$0xff] %vm276, %v1372
    %1417 = vst.msk [vmem:[#allocation3 + $0x60] sm:$0xff] %vm276, %v1374
    %1418 = vst.msk [vmem:[#allocation3 + $0x78] sm:$0xff] %vm276, %v1376
    %1419 = vst.msk [vmem:[#allocation3 + $0x90] sm:$0xff] %vm276, %v1378
    %1420 = vst.msk [vmem:[#allocation3 + $0xa8] sm:$0xff] %vm276, %v1380
    %1421 = vst.msk [vmem:[#allocation3 + $0xc0] sm:$0xff] %vm276, %v1382
    %1422 = vst.msk [vmem:[#allocation3 + $0xd8] sm:$0xff] %vm276, %v1384
    %1423 = vst.msk [vmem:[#allocation3 + $0xf0] sm:$0xff] %vm276, %v1386
    %1424 = vst.msk [vmem:[#allocation3 + $0x108] sm:$0xff] %vm276, %v1388
    %1425 = vst.msk [vmem:[#allocation3 + $0x120] sm:$0xff] %vm276, %v1390
    %1426 = vst.msk [vmem:[#allocation3 + $0x138] sm:$0xff] %vm276, %v1392
    %1427 = vst.msk [vmem:[#allocation3 + $0x150] sm:$0xff] %vm276, %v1394
    %1428 = vst.msk [vmem:[#allocation3 + $0x168] sm:$0xff] %vm276, %v1396
    %v1429 = vld [vmem:[#allocation2 + $0x2] sm:$0xff]
    %v1430 = vld [vmem:[#allocation2 + $0x12] sm:$0xff]
    %v1431 = vld [vmem:[#allocation2 + $0x22] sm:$0xff]
    %v1432 = vld [vmem:[#allocation2 + $0x32] sm:$0xff]
    %v1433 = vld [vmem:[#allocation2 + $0x42] sm:$0xff]
    %v1434 = vld [vmem:[#allocation2 + $0x52] sm:$0xff]
    %v1435 = vld [vmem:[#allocation2 + $0x62] sm:$0xff]
    %v1436 = vld [vmem:[#allocation2 + $0x72] sm:$0xff]
    %v1437 = vld [vmem:[#allocation2 + $0xa2] sm:$0xff]
    %v1438 = vld [vmem:[#allocation2 + $0xb2] sm:$0xff]
    %v1439 = vld [vmem:[#allocation2 + $0xc2] sm:$0xff]
    %v1440 = vld [vmem:[#allocation2 + $0xd2] sm:$0xff]
    %v1441 = vld [vmem:[#allocation2 + $0xe2] sm:$0xff]
    %v1442 = vld [vmem:[#allocation2 + $0xf2] sm:$0xff]
    %v1443 = vld [vmem:[#allocation2 + $0x102] sm:$0xff]
    %v1444 = vld [vmem:[#allocation2 + $0x112] sm:$0xff]
    %1461 = vrot.lane.b32.xlu0 %v1429, 64
    %v1462 = vpop.permute.xlu0 %1461
    %1463 = vrot.lane.b32.xlu0 %v1430, 64
    %v1464 = vpop.permute.xlu0 %1463
    %1465 = vrot.lane.b32.xlu0 %v1431, 64
    %v1466 = vpop.permute.xlu0 %1465
    %1467 = vrot.lane.b32.xlu0 %v1432, 64
    %v1468 = vpop.permute.xlu0 %1467
    %1469 = vrot.lane.b32.xlu0 %v1433, 64
    %v1470 = vpop.permute.xlu0 %1469
    %1471 = vrot.lane.b32.xlu0 %v1434, 64
    %v1472 = vpop.permute.xlu0 %1471
    %1473 = vrot.lane.b32.xlu0 %v1435, 64
    %v1474 = vpop.permute.xlu0 %1473
    %1475 = vrot.lane.b32.xlu0 %v1436, 64
    %v1476 = vpop.permute.xlu0 %1475
    %1477 = vrot.lane.b32.xlu0 %v1437, 64
    %v1478 = vpop.permute.xlu0 %1477
    %1479 = vrot.lane.b32.xlu0 %v1438, 64
    %v1480 = vpop.permute.xlu0 %1479
    %1481 = vrot.lane.b32.xlu0 %v1439, 64
    %v1482 = vpop.permute.xlu0 %1481
    %1483 = vrot.lane.b32.xlu0 %v1440, 64
    %v1484 = vpop.permute.xlu0 %1483
    %1485 = vrot.lane.b32.xlu0 %v1441, 64
    %v1486 = vpop.permute.xlu0 %1485
    %1487 = vrot.lane.b32.xlu0 %v1442, 64
    %v1488 = vpop.permute.xlu0 %1487
    %1489 = vrot.lane.b32.xlu0 %v1443, 64
    %v1490 = vpop.permute.xlu0 %1489
    %1491 = vrot.lane.b32.xlu0 %v1444, 64
    %v1492 = vpop.permute.xlu0 %1491
    %1509 = vst.msk [vmem:[#allocation3] sm:$0xff] %vm373, %v1462
    %1510 = vst.msk [vmem:[#allocation3 + $0x18] sm:$0xff] %vm373, %v1464
    %1511 = vst.msk [vmem:[#allocation3 + $0x30] sm:$0xff] %vm373, %v1466
    %1512 = vst.msk [vmem:[#allocation3 + $0x48] sm:$0xff] %vm373, %v1468
    %1513 = vst.msk [vmem:[#allocation3 + $0x60] sm:$0xff] %vm373, %v1470
    %1514 = vst.msk [vmem:[#allocation3 + $0x78] sm:$0xff] %vm373, %v1472
    %1515 = vst.msk [vmem:[#allocation3 + $0x90] sm:$0xff] %vm373, %v1474
    %1516 = vst.msk [vmem:[#allocation3 + $0xa8] sm:$0xff] %vm373, %v1476
    %1517 = vst.msk [vmem:[#allocation3 + $0xc0] sm:$0xff] %vm373, %v1478
    %1518 = vst.msk [vmem:[#allocation3 + $0xd8] sm:$0xff] %vm373, %v1480
    %1519 = vst.msk [vmem:[#allocation3 + $0xf0] sm:$0xff] %vm373, %v1482
    %1520 = vst.msk [vmem:[#allocation3 + $0x108] sm:$0xff] %vm373, %v1484
    %1521 = vst.msk [vmem:[#allocation3 + $0x120] sm:$0xff] %vm373, %v1486
    %1522 = vst.msk [vmem:[#allocation3 + $0x138] sm:$0xff] %vm373, %v1488
    %1523 = vst.msk [vmem:[#allocation3 + $0x150] sm:$0xff] %vm373, %v1490
    %1524 = vst.msk [vmem:[#allocation3 + $0x168] sm:$0xff] %vm373, %v1492
    %v1525 = vld [vmem:[%s110] sm:$0xff]
    %v1526 = vld [vmem:[%s110 + $0x10] sm:$0xff]
    %v1527 = vld [vmem:[%s110 + $0x20] sm:$0xff]
    %v1528 = vld [vmem:[%s110 + $0x30] sm:$0xff]
    %v1529 = vld [vmem:[%s110 + $0x40] sm:$0xff]
    %v1530 = vld [vmem:[%s110 + $0x50] sm:$0xff]
    %v1531 = vld [vmem:[%s110 + $0x60] sm:$0xff]
    %v1532 = vld [vmem:[%s110 + $0x70] sm:$0xff]
    %v1533 = vld [vmem:[%s110 + $0xa0] sm:$0xff]
    %v1534 = vld [vmem:[%s110 + $0xb0] sm:$0xff]
    %v1535 = vld [vmem:[%s110 + $0xc0] sm:$0xff]
    %v1536 = vld [vmem:[%s110 + $0xd0] sm:$0xff]
    %v1537 = vld [vmem:[%s110 + $0xe0] sm:$0xff]
    %v1538 = vld [vmem:[%s110 + $0xf0] sm:$0xff]
    %v1539 = vld [vmem:[%s110 + $0x100] sm:$0xff]
    %v1540 = vld [vmem:[%s110 + $0x110] sm:$0xff]
    %1557 = vrot.lane.b32.xlu0 %v1525, 96
    %v1558 = vpop.permute.xlu0 %1557
    %1559 = vrot.lane.b32.xlu0 %v1526, 96
    %v1560 = vpop.permute.xlu0 %1559
    %1561 = vrot.lane.b32.xlu0 %v1527, 96
    %v1562 = vpop.permute.xlu0 %1561
    %1563 = vrot.lane.b32.xlu0 %v1528, 96
    %v1564 = vpop.permute.xlu0 %1563
    %1565 = vrot.lane.b32.xlu0 %v1529, 96
    %v1566 = vpop.permute.xlu0 %1565
    %1567 = vrot.lane.b32.xlu0 %v1530, 96
    %v1568 = vpop.permute.xlu0 %1567
    %1569 = vrot.lane.b32.xlu0 %v1531, 96
    %v1570 = vpop.permute.xlu0 %1569
    %1571 = vrot.lane.b32.xlu0 %v1532, 96
    %v1572 = vpop.permute.xlu0 %1571
    %1573 = vrot.lane.b32.xlu0 %v1533, 96
    %v1574 = vpop.permute.xlu0 %1573
    %1575 = vrot.lane.b32.xlu0 %v1534, 96
    %v1576 = vpop.permute.xlu0 %1575
    %1577 = vrot.lane.b32.xlu0 %v1535, 96
    %v1578 = vpop.permute.xlu0 %1577
    %1579 = vrot.lane.b32.xlu0 %v1536, 96
    %v1580 = vpop.permute.xlu0 %1579
    %1581 = vrot.lane.b32.xlu0 %v1537, 96
    %v1582 = vpop.permute.xlu0 %1581
    %1583 = vrot.lane.b32.xlu0 %v1538, 96
    %v1584 = vpop.permute.xlu0 %1583
    %1585 = vrot.lane.b32.xlu0 %v1539, 96
    %v1586 = vpop.permute.xlu0 %1585
    %1587 = vrot.lane.b32.xlu0 %v1540, 96
    %v1588 = vpop.permute.xlu0 %1587
    %1605 = vst.msk [vmem:[#allocation3] sm:$0xff] %vm470, %v1558
    %1606 = vst.msk [vmem:[#allocation3 + $0x18] sm:$0xff] %vm470, %v1560
    %1607 = vst.msk [vmem:[#allocation3 + $0x30] sm:$0xff] %vm470, %v1562
    %1608 = vst.msk [vmem:[#allocation3 + $0x48] sm:$0xff] %vm470, %v1564
    %1609 = vst.msk [vmem:[#allocation3 + $0x60] sm:$0xff] %vm470, %v1566
    %1610 = vst.msk [vmem:[#allocation3 + $0x78] sm:$0xff] %vm470, %v1568
    %1611 = vst.msk [vmem:[#allocation3 + $0x90] sm:$0xff] %vm470, %v1570
    %1612 = vst.msk [vmem:[#allocation3 + $0xa8] sm:$0xff] %vm470, %v1572
    %1613 = vst.msk [vmem:[#allocation3 + $0xc0] sm:$0xff] %vm470, %v1574
    %1614 = vst.msk [vmem:[#allocation3 + $0xd8] sm:$0xff] %vm470, %v1576
    %1615 = vst.msk [vmem:[#allocation3 + $0xf0] sm:$0xff] %vm470, %v1578
    %1616 = vst.msk [vmem:[#allocation3 + $0x108] sm:$0xff] %vm470, %v1580
    %1617 = vst.msk [vmem:[#allocation3 + $0x120] sm:$0xff] %vm470, %v1582
    %1618 = vst.msk [vmem:[#allocation3 + $0x138] sm:$0xff] %vm470, %v1584
    %1619 = vst.msk [vmem:[#allocation3 + $0x150] sm:$0xff] %vm470, %v1586
    %1620 = vst.msk [vmem:[#allocation3 + $0x168] sm:$0xff] %vm470, %v1588
    %v1621 = vld [vmem:[%s110 + $0x1] sm:$0xff]
    %v1622 = vld [vmem:[%s110 + $0x11] sm:$0xff]
    %v1623 = vld [vmem:[%s110 + $0x21] sm:$0xff]
    %v1624 = vld [vmem:[%s110 + $0x31] sm:$0xff]
    %v1625 = vld [vmem:[%s110 + $0x41] sm:$0xff]
    %v1626 = vld [vmem:[%s110 + $0x51] sm:$0xff]
    %v1627 = vld [vmem:[%s110 + $0x61] sm:$0xff]
    %v1628 = vld [vmem:[%s110 + $0x71] sm:$0xff]
    %v1629 = vld [vmem:[%s110 + $0xa1] sm:$0xff]
    %v1630 = vld [vmem:[%s110 + $0xb1] sm:$0xff]
    %v1631 = vld [vmem:[%s110 + $0xc1] sm:$0xff]
    %v1632 = vld [vmem:[%s110 + $0xd1] sm:$0xff]
    %v1633 = vld [vmem:[%s110 + $0xe1] sm:$0xff]
    %v1634 = vld [vmem:[%s110 + $0xf1] sm:$0xff]
    %v1635 = vld [vmem:[%s110 + $0x101] sm:$0xff]
    %v1636 = vld [vmem:[%s110 + $0x111] sm:$0xff]
    %1637 = vst.msk [vmem:[#allocation3 + $0x8] sm:$0xff] %vm52, %v1621
    %1638 = vst.msk [vmem:[#allocation3 + $0x20] sm:$0xff] %vm52, %v1622
    %1639 = vst.msk [vmem:[#allocation3 + $0x38] sm:$0xff] %vm52, %v1623
    %1640 = vst.msk [vmem:[#allocation3 + $0x50] sm:$0xff] %vm52, %v1624
    %1641 = vst.msk [vmem:[#allocation3 + $0x68] sm:$0xff] %vm52, %v1625
    %1642 = vst.msk [vmem:[#allocation3 + $0x80] sm:$0xff] %vm52, %v1626
    %1643 = vst.msk [vmem:[#allocation3 + $0x98] sm:$0xff] %vm52, %v1627
    %1644 = vst.msk [vmem:[#allocation3 + $0xb0] sm:$0xff] %vm52, %v1628
    %1645 = vst.msk [vmem:[#allocation3 + $0xc8] sm:$0xff] %vm52, %v1629
    %1646 = vst.msk [vmem:[#allocation3 + $0xe0] sm:$0xff] %vm52, %v1630
    %1647 = vst.msk [vmem:[#allocation3 + $0xf8] sm:$0xff] %vm52, %v1631
    %1648 = vst.msk [vmem:[#allocation3 + $0x110] sm:$0xff] %vm52, %v1632
    %1649 = vst.msk [vmem:[#allocation3 + $0x128] sm:$0xff] %vm52, %v1633
    %1650 = vst.msk [vmem:[#allocation3 + $0x140] sm:$0xff] %vm52, %v1634
    %1651 = vst.msk [vmem:[#allocation3 + $0x158] sm:$0xff] %vm52, %v1635
    %1652 = vst.msk [vmem:[#allocation3 + $0x170] sm:$0xff] %vm52, %v1636
    %v1653 = vld [vmem:[%s110 + $0x2] sm:$0xff]
    %v1654 = vld [vmem:[%s110 + $0x12] sm:$0xff]
    %v1655 = vld [vmem:[%s110 + $0x22] sm:$0xff]
    %v1656 = vld [vmem:[%s110 + $0x32] sm:$0xff]
    %v1657 = vld [vmem:[%s110 + $0x42] sm:$0xff]
    %v1658 = vld [vmem:[%s110 + $0x52] sm:$0xff]
    %v1659 = vld [vmem:[%s110 + $0x62] sm:$0xff]
    %v1660 = vld [vmem:[%s110 + $0x72] sm:$0xff]
    %v1661 = vld [vmem:[%s110 + $0xa2] sm:$0xff]
    %v1662 = vld [vmem:[%s110 + $0xb2] sm:$0xff]
    %v1663 = vld [vmem:[%s110 + $0xc2] sm:$0xff]
    %v1664 = vld [vmem:[%s110 + $0xd2] sm:$0xff]
    %v1665 = vld [vmem:[%s110 + $0xe2] sm:$0xff]
    %v1666 = vld [vmem:[%s110 + $0xf2] sm:$0xff]
    %v1667 = vld [vmem:[%s110 + $0x102] sm:$0xff]
    %v1668 = vld [vmem:[%s110 + $0x112] sm:$0xff]
    %1685 = vrot.lane.b32.xlu0 %v1653, 32
    %v1686 = vpop.permute.xlu0 %1685
    %1687 = vrot.lane.b32.xlu0 %v1654, 32
    %v1688 = vpop.permute.xlu0 %1687
    %1689 = vrot.lane.b32.xlu0 %v1655, 32
    %v1690 = vpop.permute.xlu0 %1689
    %1691 = vrot.lane.b32.xlu0 %v1656, 32
    %v1692 = vpop.permute.xlu0 %1691
    %1693 = vrot.lane.b32.xlu0 %v1657, 32
    %v1694 = vpop.permute.xlu0 %1693
    %1695 = vrot.lane.b32.xlu0 %v1658, 32
    %v1696 = vpop.permute.xlu0 %1695
    %1697 = vrot.lane.b32.xlu0 %v1659, 32
    %v1698 = vpop.permute.xlu0 %1697
    %1699 = vrot.lane.b32.xlu0 %v1660, 32
    %v1700 = vpop.permute.xlu0 %1699
    %1701 = vrot.lane.b32.xlu0 %v1661, 32
    %v1702 = vpop.permute.xlu0 %1701
    %1703 = vrot.lane.b32.xlu0 %v1662, 32
    %v1704 = vpop.permute.xlu0 %1703
    %1705 = vrot.lane.b32.xlu0 %v1663, 32
    %v1706 = vpop.permute.xlu0 %1705
    %1707 = vrot.lane.b32.xlu0 %v1664, 32
    %v1708 = vpop.permute.xlu0 %1707
    %1709 = vrot.lane.b32.xlu0 %v1665, 32
    %v1710 = vpop.permute.xlu0 %1709
    %1711 = vrot.lane.b32.xlu0 %v1666, 32
    %v1712 = vpop.permute.xlu0 %1711
    %1713 = vrot.lane.b32.xlu0 %v1667, 32
    %v1714 = vpop.permute.xlu0 %1713
    %1715 = vrot.lane.b32.xlu0 %v1668, 32
    %v1716 = vpop.permute.xlu0 %1715
    %1733 = vst.msk [vmem:[#allocation3 + $0x8] sm:$0xff] %vm276, %v1686
    %1734 = vst.msk [vmem:[#allocation3 + $0x20] sm:$0xff] %vm276, %v1688
    %1735 = vst.msk [vmem:[#allocation3 + $0x38] sm:$0xff] %vm276, %v1690
    %1736 = vst.msk [vmem:[#allocation3 + $0x50] sm:$0xff] %vm276, %v1692
    %1737 = vst.msk [vmem:[#allocation3 + $0x68] sm:$0xff] %vm276, %v1694
    %1738 = vst.msk [vmem:[#allocation3 + $0x80] sm:$0xff] %vm276, %v1696
    %1739 = vst.msk [vmem:[#allocation3 + $0x98] sm:$0xff] %vm276, %v1698
    %1740 = vst.msk [vmem:[#allocation3 + $0xb0] sm:$0xff] %vm276, %v1700
    %1741 = vst.msk [vmem:[#allocation3 + $0xc8] sm:$0xff] %vm276, %v1702
    %1742 = vst.msk [vmem:[#allocation3 + $0xe0] sm:$0xff] %vm276, %v1704
    %1743 = vst.msk [vmem:[#allocation3 + $0xf8] sm:$0xff] %vm276, %v1706
    %1744 = vst.msk [vmem:[#allocation3 + $0x110] sm:$0xff] %vm276, %v1708
    %1745 = vst.msk [vmem:[#allocation3 + $0x128] sm:$0xff] %vm276, %v1710
    %1746 = vst.msk [vmem:[#allocation3 + $0x140] sm:$0xff] %vm276, %v1712
    %1747 = vst.msk [vmem:[#allocation3 + $0x158] sm:$0xff] %vm276, %v1714
    %1748 = vst.msk [vmem:[#allocation3 + $0x170] sm:$0xff] %vm276, %v1716
    %v1749 = vld [vmem:[%s615] sm:$0xff]
    %v1750 = vld [vmem:[%s615 + $0x10] sm:$0xff]
    %v1751 = vld [vmem:[%s615 + $0x20] sm:$0xff]
    %v1752 = vld [vmem:[%s615 + $0x30] sm:$0xff]
    %v1753 = vld [vmem:[%s615 + $0x40] sm:$0xff]
    %v1754 = vld [vmem:[%s615 + $0x50] sm:$0xff]
    %v1755 = vld [vmem:[%s615 + $0x60] sm:$0xff]
    %v1756 = vld [vmem:[%s615 + $0x70] sm:$0xff]
    %v1757 = vld [vmem:[%s615 + $0xa0] sm:$0xff]
    %v1758 = vld [vmem:[%s615 + $0xb0] sm:$0xff]
    %v1759 = vld [vmem:[%s615 + $0xc0] sm:$0xff]
    %v1760 = vld [vmem:[%s615 + $0xd0] sm:$0xff]
    %v1761 = vld [vmem:[%s615 + $0xe0] sm:$0xff]
    %v1762 = vld [vmem:[%s615 + $0xf0] sm:$0xff]
    %v1763 = vld [vmem:[%s615 + $0x100] sm:$0xff]
    %v1764 = vld [vmem:[%s615 + $0x110] sm:$0xff]
    %1781 = vrot.lane.b32.xlu0 %v1749, 64
    %v1782 = vpop.permute.xlu0 %1781
    %1783 = vrot.lane.b32.xlu0 %v1750, 64
    %v1784 = vpop.permute.xlu0 %1783
    %1785 = vrot.lane.b32.xlu0 %v1751, 64
    %v1786 = vpop.permute.xlu0 %1785
    %1787 = vrot.lane.b32.xlu0 %v1752, 64
    %v1788 = vpop.permute.xlu0 %1787
    %1789 = vrot.lane.b32.xlu0 %v1753, 64
    %v1790 = vpop.permute.xlu0 %1789
    %1791 = vrot.lane.b32.xlu0 %v1754, 64
    %v1792 = vpop.permute.xlu0 %1791
    %1793 = vrot.lane.b32.xlu0 %v1755, 64
    %v1794 = vpop.permute.xlu0 %1793
    %1795 = vrot.lane.b32.xlu0 %v1756, 64
    %v1796 = vpop.permute.xlu0 %1795
    %1797 = vrot.lane.b32.xlu0 %v1757, 64
    %v1798 = vpop.permute.xlu0 %1797
    %1799 = vrot.lane.b32.xlu0 %v1758, 64
    %v1800 = vpop.permute.xlu0 %1799
    %1801 = vrot.lane.b32.xlu0 %v1759, 64
    %v1802 = vpop.permute.xlu0 %1801
    %1803 = vrot.lane.b32.xlu0 %v1760, 64
    %v1804 = vpop.permute.xlu0 %1803
    %1805 = vrot.lane.b32.xlu0 %v1761, 64
    %v1806 = vpop.permute.xlu0 %1805
    %1807 = vrot.lane.b32.xlu0 %v1762, 64
    %v1808 = vpop.permute.xlu0 %1807
    %1809 = vrot.lane.b32.xlu0 %v1763, 64
    %v1810 = vpop.permute.xlu0 %1809
    %1811 = vrot.lane.b32.xlu0 %v1764, 64
    %v1812 = vpop.permute.xlu0 %1811
    %1829 = vst.msk [vmem:[#allocation3 + $0x8] sm:$0xff] %vm373, %v1782
    %1830 = vst.msk [vmem:[#allocation3 + $0x20] sm:$0xff] %vm373, %v1784
    %1831 = vst.msk [vmem:[#allocation3 + $0x38] sm:$0xff] %vm373, %v1786
    %1832 = vst.msk [vmem:[#allocation3 + $0x50] sm:$0xff] %vm373, %v1788
    %1833 = vst.msk [vmem:[#allocation3 + $0x68] sm:$0xff] %vm373, %v1790
    %1834 = vst.msk [vmem:[#allocation3 + $0x80] sm:$0xff] %vm373, %v1792
    %1835 = vst.msk [vmem:[#allocation3 + $0x98] sm:$0xff] %vm373, %v1794
    %1836 = vst.msk [vmem:[#allocation3 + $0xb0] sm:$0xff] %vm373, %v1796
    %1837 = vst.msk [vmem:[#allocation3 + $0xc8] sm:$0xff] %vm373, %v1798
    %1838 = vst.msk [vmem:[#allocation3 + $0xe0] sm:$0xff] %vm373, %v1800
    %1839 = vst.msk [vmem:[#allocation3 + $0xf8] sm:$0xff] %vm373, %v1802
    %1840 = vst.msk [vmem:[#allocation3 + $0x110] sm:$0xff] %vm373, %v1804
    %1841 = vst.msk [vmem:[#allocation3 + $0x128] sm:$0xff] %vm373, %v1806
    %1842 = vst.msk [vmem:[#allocation3 + $0x140] sm:$0xff] %vm373, %v1808
    %1843 = vst.msk [vmem:[#allocation3 + $0x158] sm:$0xff] %vm373, %v1810
    %1844 = vst.msk [vmem:[#allocation3 + $0x170] sm:$0xff] %vm373, %v1812
    %v1845 = vld [vmem:[%s615 + $0x1] sm:$0xff]
    %v1846 = vld [vmem:[%s615 + $0x11] sm:$0xff]
    %v1847 = vld [vmem:[%s615 + $0x21] sm:$0xff]
    %v1848 = vld [vmem:[%s615 + $0x31] sm:$0xff]
    %v1849 = vld [vmem:[%s615 + $0x41] sm:$0xff]
    %v1850 = vld [vmem:[%s615 + $0x51] sm:$0xff]
    %v1851 = vld [vmem:[%s615 + $0x61] sm:$0xff]
    %v1852 = vld [vmem:[%s615 + $0x71] sm:$0xff]
    %v1853 = vld [vmem:[%s615 + $0xa1] sm:$0xff]
    %v1854 = vld [vmem:[%s615 + $0xb1] sm:$0xff]
    %v1855 = vld [vmem:[%s615 + $0xc1] sm:$0xff]
    %v1856 = vld [vmem:[%s615 + $0xd1] sm:$0xff]
    %v1857 = vld [vmem:[%s615 + $0xe1] sm:$0xff]
    %v1858 = vld [vmem:[%s615 + $0xf1] sm:$0xff]
    %v1859 = vld [vmem:[%s615 + $0x101] sm:$0xff]
    %v1860 = vld [vmem:[%s615 + $0x111] sm:$0xff]
    %1877 = vrot.lane.b32.xlu0 %v1845, 96
    %v1878 = vpop.permute.xlu0 %1877
    %1879 = vrot.lane.b32.xlu0 %v1846, 96
    %v1880 = vpop.permute.xlu0 %1879
    %1881 = vrot.lane.b32.xlu0 %v1847, 96
    %v1882 = vpop.permute.xlu0 %1881
    %1883 = vrot.lane.b32.xlu0 %v1848, 96
    %v1884 = vpop.permute.xlu0 %1883
    %1885 = vrot.lane.b32.xlu0 %v1849, 96
    %v1886 = vpop.permute.xlu0 %1885
    %1887 = vrot.lane.b32.xlu0 %v1850, 96
    %v1888 = vpop.permute.xlu0 %1887
    %1889 = vrot.lane.b32.xlu0 %v1851, 96
    %v1890 = vpop.permute.xlu0 %1889
    %1891 = vrot.lane.b32.xlu0 %v1852, 96
    %v1892 = vpop.permute.xlu0 %1891
    %1893 = vrot.lane.b32.xlu0 %v1853, 96
    %v1894 = vpop.permute.xlu0 %1893
    %1895 = vrot.lane.b32.xlu0 %v1854, 96
    %v1896 = vpop.permute.xlu0 %1895
    %1897 = vrot.lane.b32.xlu0 %v1855, 96
    %v1898 = vpop.permute.xlu0 %1897
    %1899 = vrot.lane.b32.xlu0 %v1856, 96
    %v1900 = vpop.permute.xlu0 %1899
    %1901 = vrot.lane.b32.xlu0 %v1857, 96
    %v1902 = vpop.permute.xlu0 %1901
    %1903 = vrot.lane.b32.xlu0 %v1858, 96
    %v1904 = vpop.permute.xlu0 %1903
    %1905 = vrot.lane.b32.xlu0 %v1859, 96
    %v1906 = vpop.permute.xlu0 %1905
    %1907 = vrot.lane.b32.xlu0 %v1860, 96
    %v1908 = vpop.permute.xlu0 %1907
    %1925 = vst.msk [vmem:[#allocation3 + $0x8] sm:$0xff] %vm470, %v1878
    %1926 = vst.msk [vmem:[#allocation3 + $0x20] sm:$0xff] %vm470, %v1880
    %1927 = vst.msk [vmem:[#allocation3 + $0x38] sm:$0xff] %vm470, %v1882
    %1928 = vst.msk [vmem:[#allocation3 + $0x50] sm:$0xff] %vm470, %v1884
    %1929 = vst.msk [vmem:[#allocation3 + $0x68] sm:$0xff] %vm470, %v1886
    %1930 = vst.msk [vmem:[#allocation3 + $0x80] sm:$0xff] %vm470, %v1888
    %1931 = vst.msk [vmem:[#allocation3 + $0x98] sm:$0xff] %vm470, %v1890
    %1932 = vst.msk [vmem:[#allocation3 + $0xb0] sm:$0xff] %vm470, %v1892
    %1933 = vst.msk [vmem:[#allocation3 + $0xc8] sm:$0xff] %vm470, %v1894
    %1934 = vst.msk [vmem:[#allocation3 + $0xe0] sm:$0xff] %vm470, %v1896
    %1935 = vst.msk [vmem:[#allocation3 + $0xf8] sm:$0xff] %vm470, %v1898
    %1936 = vst.msk [vmem:[#allocation3 + $0x110] sm:$0xff] %vm470, %v1900
    %1937 = vst.msk [vmem:[#allocation3 + $0x128] sm:$0xff] %vm470, %v1902
    %1938 = vst.msk [vmem:[#allocation3 + $0x140] sm:$0xff] %vm470, %v1904
    %1939 = vst.msk [vmem:[#allocation3 + $0x158] sm:$0xff] %vm470, %v1906
    %1940 = vst.msk [vmem:[#allocation3 + $0x170] sm:$0xff] %vm470, %v1908
    %v1941 = vld [vmem:[%s615 + $0x2] sm:$0xff]
    %v1942 = vld [vmem:[%s615 + $0x12] sm:$0xff]
    %v1943 = vld [vmem:[%s615 + $0x22] sm:$0xff]
    %v1944 = vld [vmem:[%s615 + $0x32] sm:$0xff]
    %v1945 = vld [vmem:[%s615 + $0x42] sm:$0xff]
    %v1946 = vld [vmem:[%s615 + $0x52] sm:$0xff]
    %v1947 = vld [vmem:[%s615 + $0x62] sm:$0xff]
    %v1948 = vld [vmem:[%s615 + $0x72] sm:$0xff]
    %v1949 = vld [vmem:[%s615 + $0xa2] sm:$0xff]
    %v1950 = vld [vmem:[%s615 + $0xb2] sm:$0xff]
    %v1951 = vld [vmem:[%s615 + $0xc2] sm:$0xff]
    %v1952 = vld [vmem:[%s615 + $0xd2] sm:$0xff]
    %v1953 = vld [vmem:[%s615 + $0xe2] sm:$0xff]
    %v1954 = vld [vmem:[%s615 + $0xf2] sm:$0xff]
    %v1955 = vld [vmem:[%s615 + $0x102] sm:$0xff]
    %v1956 = vld [vmem:[%s615 + $0x112] sm:$0xff]
    %1957 = vst.msk [vmem:[#allocation3 + $0x10] sm:$0xff] %vm52, %v1941
    %1958 = vst.msk [vmem:[#allocation3 + $0x28] sm:$0xff] %vm52, %v1942
    %1959 = vst.msk [vmem:[#allocation3 + $0x40] sm:$0xff] %vm52, %v1943
    %1960 = vst.msk [vmem:[#allocation3 + $0x58] sm:$0xff] %vm52, %v1944
    %1961 = vst.msk [vmem:[#allocation3 + $0x70] sm:$0xff] %vm52, %v1945
    %1962 = vst.msk [vmem:[#allocation3 + $0x88] sm:$0xff] %vm52, %v1946
    %1963 = vst.msk [vmem:[#allocation3 + $0xa0] sm:$0xff] %vm52, %v1947
    %1964 = vst.msk [vmem:[#allocation3 + $0xb8] sm:$0xff] %vm52, %v1948
    %1965 = vst.msk [vmem:[#allocation3 + $0xd0] sm:$0xff] %vm52, %v1949
    %1966 = vst.msk [vmem:[#allocation3 + $0xe8] sm:$0xff] %vm52, %v1950
    %1967 = vst.msk [vmem:[#allocation3 + $0x100] sm:$0xff] %vm52, %v1951
    %1968 = vst.msk [vmem:[#allocation3 + $0x118] sm:$0xff] %vm52, %v1952
    %1969 = vst.msk [vmem:[#allocation3 + $0x130] sm:$0xff] %vm52, %v1953
    %1970 = vst.msk [vmem:[#allocation3 + $0x148] sm:$0xff] %vm52, %v1954
    %1971 = vst.msk [vmem:[#allocation3 + $0x160] sm:$0xff] %vm52, %v1955
    %1972 = vst.msk [vmem:[#allocation3 + $0x178] sm:$0xff] %vm52, %v1956
    %v1973 = vld [vmem:[#allocation3] sm:$0xff]
    %v1974 = vld [vmem:[#allocation3 + $0x8] sm:$0xff]
    %v1975 = vld [vmem:[#allocation3 + $0x10] sm:$0xff]
    %v1976 = vld [vmem:[#allocation3 + $0x18] sm:$0xff]
    %v1977 = vld [vmem:[#allocation3 + $0x20] sm:$0xff]
    %v1978 = vld [vmem:[#allocation3 + $0x28] sm:$0xff]
    %v1979 = vld [vmem:[#allocation3 + $0x30] sm:$0xff]
    %v1980 = vld [vmem:[#allocation3 + $0x38] sm:$0xff]
    %v1981 = vld [vmem:[#allocation3 + $0x40] sm:$0xff]
    %v1982 = vld [vmem:[#allocation3 + $0x48] sm:$0xff]
    %v1983 = vld [vmem:[#allocation3 + $0x50] sm:$0xff]
    %v1984 = vld [vmem:[#allocation3 + $0x58] sm:$0xff]
    %v1985 = vld [vmem:[#allocation3 + $0x60] sm:$0xff]
    %v1986 = vld [vmem:[#allocation3 + $0x68] sm:$0xff]
    %v1987 = vld [vmem:[#allocation3 + $0x70] sm:$0xff]
    %v1988 = vld [vmem:[#allocation3 + $0x78] sm:$0xff]
    %v1989 = vld [vmem:[#allocation3 + $0x80] sm:$0xff]
    %v1990 = vld [vmem:[#allocation3 + $0x88] sm:$0xff]
    %v1991 = vld [vmem:[#allocation3 + $0x90] sm:$0xff]
    %v1992 = vld [vmem:[#allocation3 + $0x98] sm:$0xff]
    %v1993 = vld [vmem:[#allocation3 + $0xa0] sm:$0xff]
    %v1994 = vld [vmem:[#allocation3 + $0xa8] sm:$0xff]
    %v1995 = vld [vmem:[#allocation3 + $0xb0] sm:$0xff]
    %v1996 = vld [vmem:[#allocation3 + $0xb8] sm:$0xff]
    %v1997 = vld [vmem:[#allocation3 + $0xc0] sm:$0xff]
    %v1998 = vld [vmem:[#allocation3 + $0xc8] sm:$0xff]
    %v1999 = vld [vmem:[#allocation3 + $0xd0] sm:$0xff]
    %v2000 = vld [vmem:[#allocation3 + $0xd8] sm:$0xff]
    %v2001 = vld [vmem:[#allocation3 + $0xe0] sm:$0xff]
    %v2002 = vld [vmem:[#allocation3 + $0xe8] sm:$0xff]
    %v2003 = vld [vmem:[#allocation3 + $0xf0] sm:$0xff]
    %v2004 = vld [vmem:[#allocation3 + $0xf8] sm:$0xff]
    %v2005 = vld [vmem:[#allocation3 + $0x100] sm:$0xff]
    %v2006 = vld [vmem:[#allocation3 + $0x108] sm:$0xff]
    %v2007 = vld [vmem:[#allocation3 + $0x110] sm:$0xff]
    %v2008 = vld [vmem:[#allocation3 + $0x118] sm:$0xff]
    %v2009 = vld [vmem:[#allocation3 + $0x120] sm:$0xff]
    %v2010 = vld [vmem:[#allocation3 + $0x128] sm:$0xff]
    %v2011 = vld [vmem:[#allocation3 + $0x130] sm:$0xff]
    %v2012 = vld [vmem:[#allocation3 + $0x138] sm:$0xff]
    %v2013 = vld [vmem:[#allocation3 + $0x140] sm:$0xff]
    %v2014 = vld [vmem:[#allocation3 + $0x148] sm:$0xff]
    %v2015 = vld [vmem:[#allocation3 + $0x150] sm:$0xff]
    %v2016 = vld [vmem:[#allocation3 + $0x158] sm:$0xff]
    %v2017 = vld [vmem:[#allocation3 + $0x160] sm:$0xff]
    %v2018 = vld [vmem:[#allocation3 + $0x168] sm:$0xff]
    %v2019 = vld [vmem:[#allocation3 + $0x170] sm:$0xff]
    %v2020 = vld [vmem:[#allocation3 + $0x178] sm:$0xff]
    %v2022 = vlaneseq
    %v2023 = vshrl.u32 %v2022, 7
    %v2024 = vsub.s32 0, %v2023
    %v2025 = vrot.slane %v1300, %v2024
    %v2028 = vsel %vm52, %v1975, 0
    %v2031 = vsel %vm52, %v1978, 0
    %v2034 = vsel %vm52, %v1981, 0
    %v2037 = vsel %vm52, %v1984, 0
    %v2040 = vsel %vm52, %v1987, 0
    %v2043 = vsel %vm52, %v1990, 0
    %v2046 = vsel %vm52, %v1993, 0
    %v2049 = vsel %vm52, %v1996, 0
    %v2052 = vsel %vm52, %v1999, 0
    %v2055 = vsel %vm52, %v2002, 0
    %v2058 = vsel %vm52, %v2005, 0
    %v2061 = vsel %vm52, %v2008, 0
    %v2064 = vsel %vm52, %v2011, 0
    %v2067 = vsel %vm52, %v2014, 0
    %v2070 = vsel %vm52, %v2017, 0
    %v2073 = vsel %vm52, %v2020, 0
    %2075 = vmatprep.subr.mxu0 0.0
    %2076 = vmatpush1.msra.mxu0 %v1264
    %2077 = vmatprep.subr.mxu0 0.0
    %2078 = vmatpush1.msra.mxu0 %v1265
    %2079 = vmatprep.subr.mxu0 0.0
    %2080 = vmatpush1.msra.mxu0 %v1266
    %2081 = vmatprep.subr.mxu0 0.0
    %2082 = vmatpush1.msra.mxu0 %v1267
    %2083 = vmatprep.subr.mxu0 0.0
    %2084 = vmatpush1.msra.mxu0 %v1268
    %2085 = vmatprep.subr.mxu0 0.0
    %2086 = vmatpush1.msra.mxu0 %v1269
    %2087 = vmatprep.subr.mxu0 0.0
    %2088 = vmatpush1.msra.mxu0 %v1270
    %2089 = vmatprep.subr.mxu0 0.0
    %2090 = vmatpush1.msra.mxu0 %v1271
    %2091 = vmatprep.subr.mxu0 0.0
    %2092 = vmatpush1.msra.mxu0 %v1272
    %2093 = vmatprep.subr.mxu0 0.0
    %2094 = vmatpush1.msra.mxu0 %v1273
    %2095 = vmatprep.subr.mxu0 0.0
    %2096 = vmatpush1.msra.mxu0 %v1274
    %2097 = vmatprep.subr.mxu0 0.0
    %2098 = vmatpush1.msra.mxu0 %v1275
    %2099 = vmatprep.subr.mxu0 0.0
    %2100 = vmatpush1.msra.mxu0 %v1276
    %2101 = vmatprep.subr.mxu0 0.0
    %2102 = vmatpush1.msra.mxu0 %v1277
    %2103 = vmatprep.subr.mxu0 0.0
    %2104 = vmatpush1.msra.mxu0 %v1278
    %2105 = vmatprep.subr.mxu0 0.0
    %2106 = vmatpush1.msra.mxu0 %v1279
    %2107 = vmatprep.subr.mxu0 0.0
    %2108 = vmatpush1.msra.mxu0 %v1280
    %2109 = vmatprep.subr.mxu0 0.0
    %2110 = vmatpush1.msra.mxu0 %v1281
    %2111 = vmatprep.subr.mxu0 0.0
    %2112 = vmatpush1.msra.mxu0 %v1282
    %2113 = vmatprep.subr.mxu0 0.0
    %2114 = vmatpush1.msra.mxu0 %v1283
    %2115 = vmatprep.subr.mxu0 0.0
    %2116 = vmatpush1.msra.mxu0 %v1284
    %2117 = vmatprep.subr.mxu0 0.0
    %2118 = vmatpush1.msra.mxu0 %v1285
    %2119 = vmatprep.subr.mxu0 0.0
    %2120 = vmatpush1.msra.mxu0 %v1286
    %2121 = vmatprep.subr.mxu0 0.0
    %2122 = vmatpush1.msra.mxu0 %v1287
    %2123 = vmatprep.subr.mxu0 0.0
    %2124 = vmatpush1.msra.mxu0 %v1288
    %2125 = vmatprep.subr.mxu0 0.0
    %2126 = vmatpush1.msra.mxu0 %v1289
    %2127 = vmatprep.subr.mxu0 0.0
    %2128 = vmatpush1.msra.mxu0 %v1290
    %2129 = vmatprep.subr.mxu0 0.0
    %2130 = vmatpush1.msra.mxu0 %v1291
    %2131 = vmatprep.subr.mxu0 0.0
    %2132 = vmatpush1.msra.mxu0 %v1292
    %2133 = vmatprep.subr.mxu0 0.0
    %2134 = vmatpush1.msra.mxu0 %v1293
    %2135 = vmatprep.subr.mxu0 0.0
    %2136 = vmatpush1.msra.mxu0 %v1294
    %2137 = vmatprep.subr.mxu0 0.0
    %2138 = vmatpush1.msra.mxu0 %v1295
    %2139 = vmatprep.mubr.f32.mxu0 %v1974
    %2140 = vmatmul.mubr.f32.gmra.mrb[0].mxu0 %v1973
    %v2141 = vpop.f32.mrb[0].mxu0
    %v2142 = vadd.f32 %v2025, %v2141
    %v2143 = vpop.f32.mrb[0].mxu0
    %2144 = vmatprep.mubr.f32.mxu0 %v1977
    %2145 = vmatmul.mubr.f32.gmra.mrb[0].mxu0 %v1976
    %v2146 = vpop.f32.mrb[0].mxu0
    %v2147 = vadd.f32 %v2025, %v2146
    %v2148 = vpop.f32.mrb[0].mxu0
    %2149 = vmatprep.mubr.f32.mxu0 %v1980
    %2150 = vmatmul.mubr.f32.gmra.mrb[0].mxu0 %v1979
    %v2151 = vpop.f32.mrb[0].mxu0
    %v2152 = vadd.f32 %v2025, %v2151
    %v2153 = vpop.f32.mrb[0].mxu0
    %2154 = vmatprep.mubr.f32.mxu0 %v1983
    %2155 = vmatmul.mubr.f32.gmra.mrb[0].mxu0 %v1982
    %v2156 = vpop.f32.mrb[0].mxu0
    %v2157 = vadd.f32 %v2025, %v2156
    %v2158 = vpop.f32.mrb[0].mxu0
    %2159 = vmatprep.mubr.f32.mxu0 %v1986
    %2160 = vmatmul.mubr.f32.gmra.mrb[0].mxu0 %v1985
    %v2161 = vpop.f32.mrb[0].mxu0
    %v2162 = vadd.f32 %v2025, %v2161
    %v2163 = vpop.f32.mrb[0].mxu0
    %2164 = vmatprep.mubr.f32.mxu0 %v1989
    %2165 = vmatmul.mubr.f32.gmra.mrb[0].mxu0 %v1988
    %v2166 = vpop.f32.mrb[0].mxu0
    %v2167 = vadd.f32 %v2025, %v2166
    %v2168 = vpop.f32.mrb[0].mxu0
    %2169 = vmatprep.mubr.f32.mxu0 %v1992
    %2170 = vmatmul.mubr.f32.gmra.mrb[0].mxu0 %v1991
    %v2171 = vpop.f32.mrb[0].mxu0
    %v2172 = vadd.f32 %v2025, %v2171
    %v2173 = vpop.f32.mrb[0].mxu0
    %2174 = vmatprep.mubr.f32.mxu0 %v1995
    %2175 = vmatmul.mubr.f32.gmra.mrb[0].mxu0 %v1994
    %v2176 = vpop.f32.mrb[0].mxu0
    %v2177 = vadd.f32 %v2025, %v2176
    %v2178 = vpop.f32.mrb[0].mxu0
    %2179 = vmatprep.mubr.f32.mxu0 %v1998
    %2180 = vmatmul.mubr.f32.gmra.mrb[0].mxu0 %v1997
    %v2181 = vpop.f32.mrb[0].mxu0
    %v2182 = vadd.f32 %v2025, %v2181
    %v2183 = vpop.f32.mrb[0].mxu0
    %2184 = vmatprep.mubr.f32.mxu0 %v2001
    %2185 = vmatmul.mubr.f32.gmra.mrb[0].mxu0 %v2000
    %v2186 = vpop.f32.mrb[0].mxu0
    %v2187 = vadd.f32 %v2025, %v2186
    %v2188 = vpop.f32.mrb[0].mxu0
    %2189 = vmatprep.mubr.f32.mxu0 %v2004
    %2190 = vmatmul.mubr.f32.gmra.mrb[0].mxu0 %v2003
    %v2191 = vpop.f32.mrb[0].mxu0
    %v2192 = vadd.f32 %v2025, %v2191
    %v2193 = vpop.f32.mrb[0].mxu0
    %2194 = vmatprep.mubr.f32.mxu0 %v2007
    %2195 = vmatmul.mubr.f32.gmra.mrb[0].mxu0 %v2006
    %v2196 = vpop.f32.mrb[0].mxu0
    %v2197 = vadd.f32 %v2025, %v2196
    %v2198 = vpop.f32.mrb[0].mxu0
    %2199 = vmatprep.mubr.f32.mxu0 %v2010
    %2200 = vmatmul.mubr.f32.gmra.mrb[0].mxu0 %v2009
    %v2201 = vpop.f32.mrb[0].mxu0
    %v2202 = vadd.f32 %v2025, %v2201
    %v2203 = vpop.f32.mrb[0].mxu0
    %2204 = vmatprep.mubr.f32.mxu0 %v2013
    %2205 = vmatmul.mubr.f32.gmra.mrb[0].mxu0 %v2012
    %v2206 = vpop.f32.mrb[0].mxu0
    %v2207 = vadd.f32 %v2025, %v2206
    %v2208 = vpop.f32.mrb[0].mxu0
    %2209 = vmatprep.mubr.f32.mxu0 %v2016
    %2210 = vmatmul.mubr.f32.gmra.mrb[0].mxu0 %v2015
    %v2211 = vpop.f32.mrb[0].mxu0
    %v2212 = vadd.f32 %v2025, %v2211
    %v2213 = vpop.f32.mrb[0].mxu0
    %2214 = vmatprep.mubr.f32.mxu0 %v2019
    %2215 = vmatmul.mubr.f32.gmra.mrb[0].mxu0 %v2018
    %v2216 = vpop.f32.mrb[0].mxu0
    %v2217 = vadd.f32 %v2025, %v2216
    %v2218 = vpop.f32.mrb[0].mxu0
    %2219 = vdwg.mxu0
    %2220 = vmatprep.subr.mxu0 0.0
    %2221 = vmatpush1.msra.mxu0 %v1296
    %2222 = vmatprep.subr.mxu0 0.0
    %2223 = vmatpush1.msra.mxu0 %v1297
    %2224 = vmatprep.subr.mxu0 0.0
    %2225 = vmatpush1.msra.mxu0 %v1298
    %2226 = vmatprep.subr.mxu0 0.0
    %2227 = vmatpush1.msra.mxu0 %v1299
    %2228 = vmatprep.subr.mxu0 0.0
    %2229 = vmatpush1.msra.mxu0 0.0
    %2230 = vmatprep.subr.mxu0 0.0
    %2231 = vmatpush1.msra.mxu0 0.0
    %2232 = vmatprep.subr.mxu0 0.0
    %2233 = vmatpush1.msra.mxu0 0.0
    %2234 = vmatprep.subr.mxu0 0.0
    %2235 = vmatpush1.msra.mxu0 0.0
    %2236 = vmatprep.subr.mxu0 0.0
    %2237 = vmatpush1.msra.mxu0 0.0
    %2238 = vmatprep.subr.mxu0 0.0
    %2239 = vmatpush1.msra.mxu0 0.0
    %2240 = vmatprep.subr.mxu0 0.0
    %2241 = vmatpush1.msra.mxu0 0.0
    %2242 = vmatprep.subr.mxu0 0.0
    %2243 = vmatpush1.msra.mxu0 0.0
    %2244 = vmatprep.subr.mxu0 0.0
    %2245 = vmatpush1.msra.mxu0 0.0
    %2246 = vmatprep.subr.mxu0 0.0
    %2247 = vmatpush1.msra.mxu0 0.0
    %2248 = vmatprep.subr.mxu0 0.0
    %2249 = vmatpush1.msra.mxu0 0.0
    %2250 = vmatprep.subr.mxu0 0.0
    %2251 = vmatpush1.msra.mxu0 0.0
    %2252 = vmatprep.subr.mxu0 0.0
    %2253 = vmatpush1.msra.mxu0 0.0
    %2254 = vmatprep.subr.mxu0 0.0
    %2255 = vmatpush1.msra.mxu0 0.0
    %2256 = vmatprep.subr.mxu0 0.0
    %2257 = vmatpush1.msra.mxu0 0.0
    %2258 = vmatprep.subr.mxu0 0.0
    %2259 = vmatpush1.msra.mxu0 0.0
    %2260 = vmatprep.subr.mxu0 0.0
    %2261 = vmatpush1.msra.mxu0 0.0
    %2262 = vmatprep.subr.mxu0 0.0
    %2263 = vmatpush1.msra.mxu0 0.0
    %2264 = vmatprep.subr.mxu0 0.0
    %2265 = vmatpush1.msra.mxu0 0.0
    %2266 = vmatprep.subr.mxu0 0.0
    %2267 = vmatpush1.msra.mxu0 0.0
    %2268 = vmatprep.subr.mxu0 0.0
    %2269 = vmatpush1.msra.mxu0 0.0
    %2270 = vmatprep.subr.mxu0 0.0
    %2271 = vmatpush1.msra.mxu0 0.0
    %2272 = vmatprep.subr.mxu0 0.0
    %2273 = vmatpush1.msra.mxu0 0.0
    %2274 = vmatprep.subr.mxu0 0.0
    %2275 = vmatpush1.msra.mxu0 0.0
    %2276 = vmatprep.subr.mxu0 0.0
    %2277 = vmatpush1.msra.mxu0 0.0
    %2278 = vmatprep.subr.mxu0 0.0
    %2279 = vmatpush1.msra.mxu0 0.0
    %2280 = vmatprep.subr.mxu0 0.0
    %2281 = vmatpush1.msra.mxu0 0.0
    %2282 = vmatprep.subr.mxu0 0.0
    %2283 = vmatpush1.msra.mxu0 0.0
    %2284 = vmatprep.mubr.f32.mxu0 0.0
    %2285 = vmatmul.mubr.f32.gmra.mrb[0].mxu0 %v2028
    %v2286 = vpop.f32.mrb[0].mxu0
    %v2287 = vadd.f32 %v2142, %v2286
    %v2288 = vpop.f32.mrb[0].mxu0
    %2289 = vmatprep.mubr.f32.mxu0 0.0
    %2290 = vmatmul.mubr.f32.gmra.mrb[0].mxu0 %v2031
    %v2291 = vpop.f32.mrb[0].mxu0
    %v2292 = vadd.f32 %v2147, %v2291
    %v2293 = vpop.f32.mrb[0].mxu0
    %2294 = vmatprep.mubr.f32.mxu0 0.0
    %2295 = vmatmul.mubr.f32.gmra.mrb[0].mxu0 %v2034
    %v2296 = vpop.f32.mrb[0].mxu0
    %v2297 = vadd.f32 %v2152, %v2296
    %v2298 = vpop.f32.mrb[0].mxu0
    %2299 = vmatprep.mubr.f32.mxu0 0.0
    %2300 = vmatmul.mubr.f32.gmra.mrb[0].mxu0 %v2037
    %v2301 = vpop.f32.mrb[0].mxu0
    %v2302 = vadd.f32 %v2157, %v2301
    %v2303 = vpop.f32.mrb[0].mxu0
    %2304 = vmatprep.mubr.f32.mxu0 0.0
    %2305 = vmatmul.mubr.f32.gmra.mrb[0].mxu0 %v2040
    %v2306 = vpop.f32.mrb[0].mxu0
    %v2307 = vadd.f32 %v2162, %v2306
    %v2308 = vpop.f32.mrb[0].mxu0
    %2309 = vmatprep.mubr.f32.mxu0 0.0
    %2310 = vmatmul.mubr.f32.gmra.mrb[0].mxu0 %v2043
    %v2311 = vpop.f32.mrb[0].mxu0
    %v2312 = vadd.f32 %v2167, %v2311
    %v2313 = vpop.f32.mrb[0].mxu0
    %2314 = vmatprep.mubr.f32.mxu0 0.0
    %2315 = vmatmul.mubr.f32.gmra.mrb[0].mxu0 %v2046
    %v2316 = vpop.f32.mrb[0].mxu0
    %v2317 = vadd.f32 %v2172, %v2316
    %v2318 = vpop.f32.mrb[0].mxu0
    %2319 = vmatprep.mubr.f32.mxu0 0.0
    %2320 = vmatmul.mubr.f32.gmra.mrb[0].mxu0 %v2049
    %v2321 = vpop.f32.mrb[0].mxu0
    %v2322 = vadd.f32 %v2177, %v2321
    %v2323 = vpop.f32.mrb[0].mxu0
    %2324 = vmatprep.mubr.f32.mxu0 0.0
    %2325 = vmatmul.mubr.f32.gmra.mrb[0].mxu0 %v2052
    %v2326 = vpop.f32.mrb[0].mxu0
    %v2327 = vadd.f32 %v2182, %v2326
    %v2328 = vpop.f32.mrb[0].mxu0
    %2329 = vmatprep.mubr.f32.mxu0 0.0
    %2330 = vmatmul.mubr.f32.gmra.mrb[0].mxu0 %v2055
    %v2331 = vpop.f32.mrb[0].mxu0
    %v2332 = vadd.f32 %v2187, %v2331
    %v2333 = vpop.f32.mrb[0].mxu0
    %2334 = vmatprep.mubr.f32.mxu0 0.0
    %2335 = vmatmul.mubr.f32.gmra.mrb[0].mxu0 %v2058
    %v2336 = vpop.f32.mrb[0].mxu0
    %v2337 = vadd.f32 %v2192, %v2336
    %v2338 = vpop.f32.mrb[0].mxu0
    %2339 = vmatprep.mubr.f32.mxu0 0.0
    %2340 = vmatmul.mubr.f32.gmra.mrb[0].mxu0 %v2061
    %v2341 = vpop.f32.mrb[0].mxu0
    %v2342 = vadd.f32 %v2197, %v2341
    %v2343 = vpop.f32.mrb[0].mxu0
    %2344 = vmatprep.mubr.f32.mxu0 0.0
    %2345 = vmatmul.mubr.f32.gmra.mrb[0].mxu0 %v2064
    %v2346 = vpop.f32.mrb[0].mxu0
    %v2347 = vadd.f32 %v2202, %v2346
    %v2348 = vpop.f32.mrb[0].mxu0
    %2349 = vmatprep.mubr.f32.mxu0 0.0
    %2350 = vmatmul.mubr.f32.gmra.mrb[0].mxu0 %v2067
    %v2351 = vpop.f32.mrb[0].mxu0
    %v2352 = vadd.f32 %v2207, %v2351
    %v2353 = vpop.f32.mrb[0].mxu0
    %2354 = vmatprep.mubr.f32.mxu0 0.0
    %2355 = vmatmul.mubr.f32.gmra.mrb[0].mxu0 %v2070
    %v2356 = vpop.f32.mrb[0].mxu0
    %v2357 = vadd.f32 %v2212, %v2356
    %v2358 = vpop.f32.mrb[0].mxu0
    %2359 = vmatprep.mubr.f32.mxu0 0.0
    %2360 = vmatmul.mubr.f32.gmra.mrb[0].mxu0 %v2073
    %v2361 = vpop.f32.mrb[0].mxu0
    %v2362 = vadd.f32 %v2217, %v2361
    %v2363 = vpop.f32.mrb[0].mxu0
    %2364 = vdwg.mxu0
    %v2365 = vmax.f32 %v2287, 0.0
    %v2366 = vmax.f32 %v2292, 0.0
    %v2367 = vmax.f32 %v2297, 0.0
    %v2368 = vmax.f32 %v2302, 0.0
    %v2369 = vmax.f32 %v2307, 0.0
    %v2370 = vmax.f32 %v2312, 0.0
    %v2371 = vmax.f32 %v2317, 0.0
    %v2372 = vmax.f32 %v2322, 0.0
    %v2373 = vmax.f32 %v2327, 0.0
    %v2374 = vmax.f32 %v2332, 0.0
    %v2375 = vmax.f32 %v2337, 0.0
    %v2376 = vmax.f32 %v2342, 0.0
    %v2377 = vmax.f32 %v2347, 0.0
    %v2378 = vmax.f32 %v2352, 0.0
    %v2379 = vmax.f32 %v2357, 0.0
    %v2380 = vmax.f32 %v2362, 0.0
    %2381 = vst.msk [vmem:[%s110 + $0x1] sm:$0xff] %vm52, %v2365
    %2382 = vst.msk [vmem:[%s110 + $0x11] sm:$0xff] %vm52, %v2366
    %2383 = vst.msk [vmem:[%s110 + $0x21] sm:$0xff] %vm52, %v2367
    %2384 = vst.msk [vmem:[%s110 + $0x31] sm:$0xff] %vm52, %v2368
    %2385 = vst.msk [vmem:[%s110 + $0x41] sm:$0xff] %vm52, %v2369
    %2386 = vst.msk [vmem:[%s110 + $0x51] sm:$0xff] %vm52, %v2370
    %2387 = vst.msk [vmem:[%s110 + $0x61] sm:$0xff] %vm52, %v2371
    %2388 = vst.msk [vmem:[%s110 + $0x71] sm:$0xff] %vm52, %v2372
    %2389 = vst.msk [vmem:[%s110 + $0xa1] sm:$0xff] %vm52, %v2373
    %2390 = vst.msk [vmem:[%s110 + $0xb1] sm:$0xff] %vm52, %v2374
    %2391 = vst.msk [vmem:[%s110 + $0xc1] sm:$0xff] %vm52, %v2375
    %2392 = vst.msk [vmem:[%s110 + $0xd1] sm:$0xff] %vm52, %v2376
    %2393 = vst.msk [vmem:[%s110 + $0xe1] sm:$0xff] %vm52, %v2377
    %2394 = vst.msk [vmem:[%s110 + $0xf1] sm:$0xff] %vm52, %v2378
    %2395 = vst.msk [vmem:[%s110 + $0x101] sm:$0xff] %vm52, %v2379
    %2396 = vst.msk [vmem:[%s110 + $0x111] sm:$0xff] %vm52, %v2380
    %s2397 = scalar_lea.vmem %s3, 288
    %v2398 = vld [vmem:[%s2397] sm:$0xff]
    %v2399 = vld [vmem:[%s2397 + $0x8] sm:$0xff]
    %v2400 = vld [vmem:[%s2397 + $0x10] sm:$0xff]
    %v2401 = vld [vmem:[%s2397 + $0x18] sm:$0xff]
    %v2402 = vld [vmem:[%s2397 + $0x20] sm:$0xff]
    %v2403 = vld [vmem:[%s2397 + $0x28] sm:$0xff]
    %v2404 = vld [vmem:[%s2397 + $0x30] sm:$0xff]
    %v2405 = vld [vmem:[%s2397 + $0x38] sm:$0xff]
    %v2406 = vld [vmem:[%s2397 + $0x40] sm:$0xff]
    %v2407 = vld [vmem:[%s2397 + $0x48] sm:$0xff]
    %v2408 = vld [vmem:[%s2397 + $0x50] sm:$0xff]
    %v2409 = vld [vmem:[%s2397 + $0x58] sm:$0xff]
    %v2410 = vld [vmem:[%s2397 + $0x60] sm:$0xff]
    %v2411 = vld [vmem:[%s2397 + $0x68] sm:$0xff]
    %v2412 = vld [vmem:[%s2397 + $0x70] sm:$0xff]
    %v2413 = vld [vmem:[%s2397 + $0x78] sm:$0xff]
    %v2414 = vld [vmem:[%s2397 + $0x80] sm:$0xff]
    %v2415 = vld [vmem:[%s2397 + $0x88] sm:$0xff]
    %v2416 = vld [vmem:[%s2397 + $0x90] sm:$0xff]
    %v2417 = vld [vmem:[%s2397 + $0x98] sm:$0xff]
    %v2418 = vld [vmem:[%s2397 + $0xa0] sm:$0xff]
    %v2419 = vld [vmem:[%s2397 + $0xa8] sm:$0xff]
    %v2420 = vld [vmem:[%s2397 + $0xb0] sm:$0xff]
    %v2421 = vld [vmem:[%s2397 + $0xb8] sm:$0xff]
    %v2422 = vld [vmem:[%s2397 + $0xc0] sm:$0xff]
    %v2423 = vld [vmem:[%s2397 + $0xc8] sm:$0xff]
    %v2424 = vld [vmem:[%s2397 + $0xd0] sm:$0xff]
    %v2425 = vld [vmem:[%s2397 + $0xd8] sm:$0xff]
    %v2426 = vld [vmem:[%s2397 + $0xe0] sm:$0xff]
    %v2427 = vld [vmem:[%s2397 + $0xe8] sm:$0xff]
    %v2428 = vld [vmem:[%s2397 + $0xf0] sm:$0xff]
    %v2429 = vld [vmem:[%s2397 + $0xf8] sm:$0xff]
    %v2430 = vld [vmem:[%s2397 + $0x100] sm:$0xff]
    %v2431 = vld [vmem:[%s2397 + $0x108] sm:$0xff]
    %v2432 = vld [vmem:[%s2397 + $0x110] sm:$0xff]
    %v2433 = vld [vmem:[%s2397 + $0x118] sm:$0xff]
    %s2434 = scalar_lea.vmem %s4, 1
    %v2435 = vld [vmem:[%s2434] sm:$0x1]
    %v2436 = vld [vmem:[#allocation2] sm:$0xff]
    %v2437 = vld [vmem:[#allocation2 + $0x10] sm:$0xff]
    %v2438 = vld [vmem:[#allocation2 + $0x20] sm:$0xff]
    %v2439 = vld [vmem:[#allocation2 + $0x30] sm:$0xff]
    %v2440 = vld [vmem:[#allocation2 + $0x40] sm:$0xff]
    %v2441 = vld [vmem:[#allocation2 + $0x50] sm:$0xff]
    %v2442 = vld [vmem:[#allocation2 + $0x60] sm:$0xff]
    %v2443 = vld [vmem:[#allocation2 + $0x70] sm:$0xff]
    %v2444 = vld [vmem:[#allocation2 + $0xa0] sm:$0xff]
    %v2445 = vld [vmem:[#allocation2 + $0xb0] sm:$0xff]
    %v2446 = vld [vmem:[#allocation2 + $0xc0] sm:$0xff]
    %v2447 = vld [vmem:[#allocation2 + $0xd0] sm:$0xff]
    %v2448 = vld [vmem:[#allocation2 + $0xe0] sm:$0xff]
    %v2449 = vld [vmem:[#allocation2 + $0xf0] sm:$0xff]
    %v2450 = vld [vmem:[#allocation2 + $0x100] sm:$0xff]
    %v2451 = vld [vmem:[#allocation2 + $0x110] sm:$0xff]
    %2452 = vst.msk [vmem:[#allocation3] sm:$0xff] %vm52, %v2436
    %2453 = vst.msk [vmem:[#allocation3 + $0x18] sm:$0xff] %vm52, %v2437
    %2454 = vst.msk [vmem:[#allocation3 + $0x30] sm:$0xff] %vm52, %v2438
    %2455 = vst.msk [vmem:[#allocation3 + $0x48] sm:$0xff] %vm52, %v2439
    %2456 = vst.msk [vmem:[#allocation3 + $0x60] sm:$0xff] %vm52, %v2440
    %2457 = vst.msk [vmem:[#allocation3 + $0x78] sm:$0xff] %vm52, %v2441
    %2458 = vst.msk [vmem:[#allocation3 + $0x90] sm:$0xff] %vm52, %v2442
    %2459 = vst.msk [vmem:[#allocation3 + $0xa8] sm:$0xff] %vm52, %v2443
    %2460 = vst.msk [vmem:[#allocation3 + $0xc0] sm:$0xff] %vm52, %v2444
    %2461 = vst.msk [vmem:[#allocation3 + $0xd8] sm:$0xff] %vm52, %v2445
    %2462 = vst.msk [vmem:[#allocation3 + $0xf0] sm:$0xff] %vm52, %v2446
    %2463 = vst.msk [vmem:[#allocation3 + $0x108] sm:$0xff] %vm52, %v2447
    %2464 = vst.msk [vmem:[#allocation3 + $0x120] sm:$0xff] %vm52, %v2448
    %2465 = vst.msk [vmem:[#allocation3 + $0x138] sm:$0xff] %vm52, %v2449
    %2466 = vst.msk [vmem:[#allocation3 + $0x150] sm:$0xff] %vm52, %v2450
    %2467 = vst.msk [vmem:[#allocation3 + $0x168] sm:$0xff] %vm52, %v2451
    %v2468 = vld [vmem:[#allocation2 + $0x1] sm:$0xff]
    %v2469 = vld [vmem:[#allocation2 + $0x11] sm:$0xff]
    %v2470 = vld [vmem:[#allocation2 + $0x21] sm:$0xff]
    %v2471 = vld [vmem:[#allocation2 + $0x31] sm:$0xff]
    %v2472 = vld [vmem:[#allocation2 + $0x41] sm:$0xff]
    %v2473 = vld [vmem:[#allocation2 + $0x51] sm:$0xff]
    %v2474 = vld [vmem:[#allocation2 + $0x61] sm:$0xff]
    %v2475 = vld [vmem:[#allocation2 + $0x71] sm:$0xff]
    %v2476 = vld [vmem:[#allocation2 + $0xa1] sm:$0xff]
    %v2477 = vld [vmem:[#allocation2 + $0xb1] sm:$0xff]
    %v2478 = vld [vmem:[#allocation2 + $0xc1] sm:$0xff]
    %v2479 = vld [vmem:[#allocation2 + $0xd1] sm:$0xff]
    %v2480 = vld [vmem:[#allocation2 + $0xe1] sm:$0xff]
    %v2481 = vld [vmem:[#allocation2 + $0xf1] sm:$0xff]
    %v2482 = vld [vmem:[#allocation2 + $0x101] sm:$0xff]
    %v2483 = vld [vmem:[#allocation2 + $0x111] sm:$0xff]
    %2500 = vrot.lane.b32.xlu0 %v2468, 32
    %v2501 = vpop.permute.xlu0 %2500
    %2502 = vrot.lane.b32.xlu0 %v2469, 32
    %v2503 = vpop.permute.xlu0 %2502
    %2504 = vrot.lane.b32.xlu0 %v2470, 32
    %v2505 = vpop.permute.xlu0 %2504
    %2506 = vrot.lane.b32.xlu0 %v2471, 32
    %v2507 = vpop.permute.xlu0 %2506
    %2508 = vrot.lane.b32.xlu0 %v2472, 32
    %v2509 = vpop.permute.xlu0 %2508
    %2510 = vrot.lane.b32.xlu0 %v2473, 32
    %v2511 = vpop.permute.xlu0 %2510
    %2512 = vrot.lane.b32.xlu0 %v2474, 32
    %v2513 = vpop.permute.xlu0 %2512
    %2514 = vrot.lane.b32.xlu0 %v2475, 32
    %v2515 = vpop.permute.xlu0 %2514
    %2516 = vrot.lane.b32.xlu0 %v2476, 32
    %v2517 = vpop.permute.xlu0 %2516
    %2518 = vrot.lane.b32.xlu0 %v2477, 32
    %v2519 = vpop.permute.xlu0 %2518
    %2520 = vrot.lane.b32.xlu0 %v2478, 32
    %v2521 = vpop.permute.xlu0 %2520
    %2522 = vrot.lane.b32.xlu0 %v2479, 32
    %v2523 = vpop.permute.xlu0 %2522
    %2524 = vrot.lane.b32.xlu0 %v2480, 32
    %v2525 = vpop.permute.xlu0 %2524
    %2526 = vrot.lane.b32.xlu0 %v2481, 32
    %v2527 = vpop.permute.xlu0 %2526
    %2528 = vrot.lane.b32.xlu0 %v2482, 32
    %v2529 = vpop.permute.xlu0 %2528
    %2530 = vrot.lane.b32.xlu0 %v2483, 32
    %v2531 = vpop.permute.xlu0 %2530
    %2548 = vst.msk [vmem:[#allocation3] sm:$0xff] %vm276, %v2501
    %2549 = vst.msk [vmem:[#allocation3 + $0x18] sm:$0xff] %vm276, %v2503
    %2550 = vst.msk [vmem:[#allocation3 + $0x30] sm:$0xff] %vm276, %v2505
    %2551 = vst.msk [vmem:[#allocation3 + $0x48] sm:$0xff] %vm276, %v2507
    %2552 = vst.msk [vmem:[#allocation3 + $0x60] sm:$0xff] %vm276, %v2509
    %2553 = vst.msk [vmem:[#allocation3 + $0x78] sm:$0xff] %vm276, %v2511
    %2554 = vst.msk [vmem:[#allocation3 + $0x90] sm:$0xff] %vm276, %v2513
    %2555 = vst.msk [vmem:[#allocation3 + $0xa8] sm:$0xff] %vm276, %v2515
    %2556 = vst.msk [vmem:[#allocation3 + $0xc0] sm:$0xff] %vm276, %v2517
    %2557 = vst.msk [vmem:[#allocation3 + $0xd8] sm:$0xff] %vm276, %v2519
    %2558 = vst.msk [vmem:[#allocation3 + $0xf0] sm:$0xff] %vm276, %v2521
    %2559 = vst.msk [vmem:[#allocation3 + $0x108] sm:$0xff] %vm276, %v2523
    %2560 = vst.msk [vmem:[#allocation3 + $0x120] sm:$0xff] %vm276, %v2525
    %2561 = vst.msk [vmem:[#allocation3 + $0x138] sm:$0xff] %vm276, %v2527
    %2562 = vst.msk [vmem:[#allocation3 + $0x150] sm:$0xff] %vm276, %v2529
    %2563 = vst.msk [vmem:[#allocation3 + $0x168] sm:$0xff] %vm276, %v2531
    %v2564 = vld [vmem:[#allocation2 + $0x2] sm:$0xff]
    %v2565 = vld [vmem:[#allocation2 + $0x12] sm:$0xff]
    %v2566 = vld [vmem:[#allocation2 + $0x22] sm:$0xff]
    %v2567 = vld [vmem:[#allocation2 + $0x32] sm:$0xff]
    %v2568 = vld [vmem:[#allocation2 + $0x42] sm:$0xff]
    %v2569 = vld [vmem:[#allocation2 + $0x52] sm:$0xff]
    %v2570 = vld [vmem:[#allocation2 + $0x62] sm:$0xff]
    %v2571 = vld [vmem:[#allocation2 + $0x72] sm:$0xff]
    %v2572 = vld [vmem:[#allocation2 + $0xa2] sm:$0xff]
    %v2573 = vld [vmem:[#allocation2 + $0xb2] sm:$0xff]
    %v2574 = vld [vmem:[#allocation2 + $0xc2] sm:$0xff]
    %v2575 = vld [vmem:[#allocation2 + $0xd2] sm:$0xff]
    %v2576 = vld [vmem:[#allocation2 + $0xe2] sm:$0xff]
    %v2577 = vld [vmem:[#allocation2 + $0xf2] sm:$0xff]
    %v2578 = vld [vmem:[#allocation2 + $0x102] sm:$0xff]
    %v2579 = vld [vmem:[#allocation2 + $0x112] sm:$0xff]
    %2596 = vrot.lane.b32.xlu0 %v2564, 64
    %v2597 = vpop.permute.xlu0 %2596
    %2598 = vrot.lane.b32.xlu0 %v2565, 64
    %v2599 = vpop.permute.xlu0 %2598
    %2600 = vrot.lane.b32.xlu0 %v2566, 64
    %v2601 = vpop.permute.xlu0 %2600
    %2602 = vrot.lane.b32.xlu0 %v2567, 64
    %v2603 = vpop.permute.xlu0 %2602
    %2604 = vrot.lane.b32.xlu0 %v2568, 64
    %v2605 = vpop.permute.xlu0 %2604
    %2606 = vrot.lane.b32.xlu0 %v2569, 64
    %v2607 = vpop.permute.xlu0 %2606
    %2608 = vrot.lane.b32.xlu0 %v2570, 64
    %v2609 = vpop.permute.xlu0 %2608
    %2610 = vrot.lane.b32.xlu0 %v2571, 64
    %v2611 = vpop.permute.xlu0 %2610
    %2612 = vrot.lane.b32.xlu0 %v2572, 64
    %v2613 = vpop.permute.xlu0 %2612
    %2614 = vrot.lane.b32.xlu0 %v2573, 64
    %v2615 = vpop.permute.xlu0 %2614
    %2616 = vrot.lane.b32.xlu0 %v2574, 64
    %v2617 = vpop.permute.xlu0 %2616
    %2618 = vrot.lane.b32.xlu0 %v2575, 64
    %v2619 = vpop.permute.xlu0 %2618
    %2620 = vrot.lane.b32.xlu0 %v2576, 64
    %v2621 = vpop.permute.xlu0 %2620
    %2622 = vrot.lane.b32.xlu0 %v2577, 64
    %v2623 = vpop.permute.xlu0 %2622
    %2624 = vrot.lane.b32.xlu0 %v2578, 64
    %v2625 = vpop.permute.xlu0 %2624
    %2626 = vrot.lane.b32.xlu0 %v2579, 64
    %v2627 = vpop.permute.xlu0 %2626
    %2644 = vst.msk [vmem:[#allocation3] sm:$0xff] %vm373, %v2597
    %2645 = vst.msk [vmem:[#allocation3 + $0x18] sm:$0xff] %vm373, %v2599
    %2646 = vst.msk [vmem:[#allocation3 + $0x30] sm:$0xff] %vm373, %v2601
    %2647 = vst.msk [vmem:[#allocation3 + $0x48] sm:$0xff] %vm373, %v2603
    %2648 = vst.msk [vmem:[#allocation3 + $0x60] sm:$0xff] %vm373, %v2605
    %2649 = vst.msk [vmem:[#allocation3 + $0x78] sm:$0xff] %vm373, %v2607
    %2650 = vst.msk [vmem:[#allocation3 + $0x90] sm:$0xff] %vm373, %v2609
    %2651 = vst.msk [vmem:[#allocation3 + $0xa8] sm:$0xff] %vm373, %v2611
    %2652 = vst.msk [vmem:[#allocation3 + $0xc0] sm:$0xff] %vm373, %v2613
    %2653 = vst.msk [vmem:[#allocation3 + $0xd8] sm:$0xff] %vm373, %v2615
    %2654 = vst.msk [vmem:[#allocation3 + $0xf0] sm:$0xff] %vm373, %v2617
    %2655 = vst.msk [vmem:[#allocation3 + $0x108] sm:$0xff] %vm373, %v2619
    %2656 = vst.msk [vmem:[#allocation3 + $0x120] sm:$0xff] %vm373, %v2621
    %2657 = vst.msk [vmem:[#allocation3 + $0x138] sm:$0xff] %vm373, %v2623
    %2658 = vst.msk [vmem:[#allocation3 + $0x150] sm:$0xff] %vm373, %v2625
    %2659 = vst.msk [vmem:[#allocation3 + $0x168] sm:$0xff] %vm373, %v2627
    %v2660 = vld [vmem:[%s110] sm:$0xff]
    %v2661 = vld [vmem:[%s110 + $0x10] sm:$0xff]
    %v2662 = vld [vmem:[%s110 + $0x20] sm:$0xff]
    %v2663 = vld [vmem:[%s110 + $0x30] sm:$0xff]
    %v2664 = vld [vmem:[%s110 + $0x40] sm:$0xff]
    %v2665 = vld [vmem:[%s110 + $0x50] sm:$0xff]
    %v2666 = vld [vmem:[%s110 + $0x60] sm:$0xff]
    %v2667 = vld [vmem:[%s110 + $0x70] sm:$0xff]
    %v2668 = vld [vmem:[%s110 + $0xa0] sm:$0xff]
    %v2669 = vld [vmem:[%s110 + $0xb0] sm:$0xff]
    %v2670 = vld [vmem:[%s110 + $0xc0] sm:$0xff]
    %v2671 = vld [vmem:[%s110 + $0xd0] sm:$0xff]
    %v2672 = vld [vmem:[%s110 + $0xe0] sm:$0xff]
    %v2673 = vld [vmem:[%s110 + $0xf0] sm:$0xff]
    %v2674 = vld [vmem:[%s110 + $0x100] sm:$0xff]
    %v2675 = vld [vmem:[%s110 + $0x110] sm:$0xff]
    %2692 = vrot.lane.b32.xlu0 %v2660, 96
    %v2693 = vpop.permute.xlu0 %2692
    %2694 = vrot.lane.b32.xlu0 %v2661, 96
    %v2695 = vpop.permute.xlu0 %2694
    %2696 = vrot.lane.b32.xlu0 %v2662, 96
    %v2697 = vpop.permute.xlu0 %2696
    %2698 = vrot.lane.b32.xlu0 %v2663, 96
    %v2699 = vpop.permute.xlu0 %2698
    %2700 = vrot.lane.b32.xlu0 %v2664, 96
    %v2701 = vpop.permute.xlu0 %2700
    %2702 = vrot.lane.b32.xlu0 %v2665, 96
    %v2703 = vpop.permute.xlu0 %2702
    %2704 = vrot.lane.b32.xlu0 %v2666, 96
    %v2705 = vpop.permute.xlu0 %2704
    %2706 = vrot.lane.b32.xlu0 %v2667, 96
    %v2707 = vpop.permute.xlu0 %2706
    %2708 = vrot.lane.b32.xlu0 %v2668, 96
    %v2709 = vpop.permute.xlu0 %2708
    %2710 = vrot.lane.b32.xlu0 %v2669, 96
    %v2711 = vpop.permute.xlu0 %2710
    %2712 = vrot.lane.b32.xlu0 %v2670, 96
    %v2713 = vpop.permute.xlu0 %2712
    %2714 = vrot.lane.b32.xlu0 %v2671, 96
    %v2715 = vpop.permute.xlu0 %2714
    %2716 = vrot.lane.b32.xlu0 %v2672, 96
    %v2717 = vpop.permute.xlu0 %2716
    %2718 = vrot.lane.b32.xlu0 %v2673, 96
    %v2719 = vpop.permute.xlu0 %2718
    %2720 = vrot.lane.b32.xlu0 %v2674, 96
    %v2721 = vpop.permute.xlu0 %2720
    %2722 = vrot.lane.b32.xlu0 %v2675, 96
    %v2723 = vpop.permute.xlu0 %2722
    %2740 = vst.msk [vmem:[#allocation3] sm:$0xff] %vm470, %v2693
    %2741 = vst.msk [vmem:[#allocation3 + $0x18] sm:$0xff] %vm470, %v2695
    %2742 = vst.msk [vmem:[#allocation3 + $0x30] sm:$0xff] %vm470, %v2697
    %2743 = vst.msk [vmem:[#allocation3 + $0x48] sm:$0xff] %vm470, %v2699
    %2744 = vst.msk [vmem:[#allocation3 + $0x60] sm:$0xff] %vm470, %v2701
    %2745 = vst.msk [vmem:[#allocation3 + $0x78] sm:$0xff] %vm470, %v2703
    %2746 = vst.msk [vmem:[#allocation3 + $0x90] sm:$0xff] %vm470, %v2705
    %2747 = vst.msk [vmem:[#allocation3 + $0xa8] sm:$0xff] %vm470, %v2707
    %2748 = vst.msk [vmem:[#allocation3 + $0xc0] sm:$0xff] %vm470, %v2709
    %2749 = vst.msk [vmem:[#allocation3 + $0xd8] sm:$0xff] %vm470, %v2711
    %2750 = vst.msk [vmem:[#allocation3 + $0xf0] sm:$0xff] %vm470, %v2713
    %2751 = vst.msk [vmem:[#allocation3 + $0x108] sm:$0xff] %vm470, %v2715
    %2752 = vst.msk [vmem:[#allocation3 + $0x120] sm:$0xff] %vm470, %v2717
    %2753 = vst.msk [vmem:[#allocation3 + $0x138] sm:$0xff] %vm470, %v2719
    %2754 = vst.msk [vmem:[#allocation3 + $0x150] sm:$0xff] %vm470, %v2721
    %2755 = vst.msk [vmem:[#allocation3 + $0x168] sm:$0xff] %vm470, %v2723
    %v2756 = vld [vmem:[%s110 + $0x1] sm:$0xff]
    %v2757 = vld [vmem:[%s110 + $0x11] sm:$0xff]
    %v2758 = vld [vmem:[%s110 + $0x21] sm:$0xff]
    %v2759 = vld [vmem:[%s110 + $0x31] sm:$0xff]
    %v2760 = vld [vmem:[%s110 + $0x41] sm:$0xff]
    %v2761 = vld [vmem:[%s110 + $0x51] sm:$0xff]
    %v2762 = vld [vmem:[%s110 + $0x61] sm:$0xff]
    %v2763 = vld [vmem:[%s110 + $0x71] sm:$0xff]
    %v2764 = vld [vmem:[%s110 + $0xa1] sm:$0xff]
    %v2765 = vld [vmem:[%s110 + $0xb1] sm:$0xff]
    %v2766 = vld [vmem:[%s110 + $0xc1] sm:$0xff]
    %v2767 = vld [vmem:[%s110 + $0xd1] sm:$0xff]
    %v2768 = vld [vmem:[%s110 + $0xe1] sm:$0xff]
    %v2769 = vld [vmem:[%s110 + $0xf1] sm:$0xff]
    %v2770 = vld [vmem:[%s110 + $0x101] sm:$0xff]
    %v2771 = vld [vmem:[%s110 + $0x111] sm:$0xff]
    %2772 = vst.msk [vmem:[#allocation3 + $0x8] sm:$0xff] %vm52, %v2756
    %2773 = vst.msk [vmem:[#allocation3 + $0x20] sm:$0xff] %vm52, %v2757
    %2774 = vst.msk [vmem:[#allocation3 + $0x38] sm:$0xff] %vm52, %v2758
    %2775 = vst.msk [vmem:[#allocation3 + $0x50] sm:$0xff] %vm52, %v2759
    %2776 = vst.msk [vmem:[#allocation3 + $0x68] sm:$0xff] %vm52, %v2760
    %2777 = vst.msk [vmem:[#allocation3 + $0x80] sm:$0xff] %vm52, %v2761
    %2778 = vst.msk [vmem:[#allocation3 + $0x98] sm:$0xff] %vm52, %v2762
    %2779 = vst.msk [vmem:[#allocation3 + $0xb0] sm:$0xff] %vm52, %v2763
    %2780 = vst.msk [vmem:[#allocation3 + $0xc8] sm:$0xff] %vm52, %v2764
    %2781 = vst.msk [vmem:[#allocation3 + $0xe0] sm:$0xff] %vm52, %v2765
    %2782 = vst.msk [vmem:[#allocation3 + $0xf8] sm:$0xff] %vm52, %v2766
    %2783 = vst.msk [vmem:[#allocation3 + $0x110] sm:$0xff] %vm52, %v2767
    %2784 = vst.msk [vmem:[#allocation3 + $0x128] sm:$0xff] %vm52, %v2768
    %2785 = vst.msk [vmem:[#allocation3 + $0x140] sm:$0xff] %vm52, %v2769
    %2786 = vst.msk [vmem:[#allocation3 + $0x158] sm:$0xff] %vm52, %v2770
    %2787 = vst.msk [vmem:[#allocation3 + $0x170] sm:$0xff] %vm52, %v2771
    %v2788 = vld [vmem:[%s110 + $0x2] sm:$0xff]
    %v2789 = vld [vmem:[%s110 + $0x12] sm:$0xff]
    %v2790 = vld [vmem:[%s110 + $0x22] sm:$0xff]
    %v2791 = vld [vmem:[%s110 + $0x32] sm:$0xff]
    %v2792 = vld [vmem:[%s110 + $0x42] sm:$0xff]
    %v2793 = vld [vmem:[%s110 + $0x52] sm:$0xff]
    %v2794 = vld [vmem:[%s110 + $0x62] sm:$0xff]
    %v2795 = vld [vmem:[%s110 + $0x72] sm:$0xff]
    %v2796 = vld [vmem:[%s110 + $0xa2] sm:$0xff]
    %v2797 = vld [vmem:[%s110 + $0xb2] sm:$0xff]
    %v2798 = vld [vmem:[%s110 + $0xc2] sm:$0xff]
    %v2799 = vld [vmem:[%s110 + $0xd2] sm:$0xff]
    %v2800 = vld [vmem:[%s110 + $0xe2] sm:$0xff]
    %v2801 = vld [vmem:[%s110 + $0xf2] sm:$0xff]
    %v2802 = vld [vmem:[%s110 + $0x102] sm:$0xff]
    %v2803 = vld [vmem:[%s110 + $0x112] sm:$0xff]
    %2820 = vrot.lane.b32.xlu0 %v2788, 32
    %v2821 = vpop.permute.xlu0 %2820
    %2822 = vrot.lane.b32.xlu0 %v2789, 32
    %v2823 = vpop.permute.xlu0 %2822
    %2824 = vrot.lane.b32.xlu0 %v2790, 32
    %v2825 = vpop.permute.xlu0 %2824
    %2826 = vrot.lane.b32.xlu0 %v2791, 32
    %v2827 = vpop.permute.xlu0 %2826
    %2828 = vrot.lane.b32.xlu0 %v2792, 32
    %v2829 = vpop.permute.xlu0 %2828
    %2830 = vrot.lane.b32.xlu0 %v2793, 32
    %v2831 = vpop.permute.xlu0 %2830
    %2832 = vrot.lane.b32.xlu0 %v2794, 32
    %v2833 = vpop.permute.xlu0 %2832
    %2834 = vrot.lane.b32.xlu0 %v2795, 32
    %v2835 = vpop.permute.xlu0 %2834
    %2836 = vrot.lane.b32.xlu0 %v2796, 32
    %v2837 = vpop.permute.xlu0 %2836
    %2838 = vrot.lane.b32.xlu0 %v2797, 32
    %v2839 = vpop.permute.xlu0 %2838
    %2840 = vrot.lane.b32.xlu0 %v2798, 32
    %v2841 = vpop.permute.xlu0 %2840
    %2842 = vrot.lane.b32.xlu0 %v2799, 32
    %v2843 = vpop.permute.xlu0 %2842
    %2844 = vrot.lane.b32.xlu0 %v2800, 32
    %v2845 = vpop.permute.xlu0 %2844
    %2846 = vrot.lane.b32.xlu0 %v2801, 32
    %v2847 = vpop.permute.xlu0 %2846
    %2848 = vrot.lane.b32.xlu0 %v2802, 32
    %v2849 = vpop.permute.xlu0 %2848
    %2850 = vrot.lane.b32.xlu0 %v2803, 32
    %v2851 = vpop.permute.xlu0 %2850
    %2868 = vst.msk [vmem:[#allocation3 + $0x8] sm:$0xff] %vm276, %v2821
    %2869 = vst.msk [vmem:[#allocation3 + $0x20] sm:$0xff] %vm276, %v2823
    %2870 = vst.msk [vmem:[#allocation3 + $0x38] sm:$0xff] %vm276, %v2825
    %2871 = vst.msk [vmem:[#allocation3 + $0x50] sm:$0xff] %vm276, %v2827
    %2872 = vst.msk [vmem:[#allocation3 + $0x68] sm:$0xff] %vm276, %v2829
    %2873 = vst.msk [vmem:[#allocation3 + $0x80] sm:$0xff] %vm276, %v2831
    %2874 = vst.msk [vmem:[#allocation3 + $0x98] sm:$0xff] %vm276, %v2833
    %2875 = vst.msk [vmem:[#allocation3 + $0xb0] sm:$0xff] %vm276, %v2835
    %2876 = vst.msk [vmem:[#allocation3 + $0xc8] sm:$0xff] %vm276, %v2837
    %2877 = vst.msk [vmem:[#allocation3 + $0xe0] sm:$0xff] %vm276, %v2839
    %2878 = vst.msk [vmem:[#allocation3 + $0xf8] sm:$0xff] %vm276, %v2841
    %2879 = vst.msk [vmem:[#allocation3 + $0x110] sm:$0xff] %vm276, %v2843
    %2880 = vst.msk [vmem:[#allocation3 + $0x128] sm:$0xff] %vm276, %v2845
    %2881 = vst.msk [vmem:[#allocation3 + $0x140] sm:$0xff] %vm276, %v2847
    %2882 = vst.msk [vmem:[#allocation3 + $0x158] sm:$0xff] %vm276, %v2849
    %2883 = vst.msk [vmem:[#allocation3 + $0x170] sm:$0xff] %vm276, %v2851
    %v2884 = vld [vmem:[%s615] sm:$0xff]
    %v2885 = vld [vmem:[%s615 + $0x10] sm:$0xff]
    %v2886 = vld [vmem:[%s615 + $0x20] sm:$0xff]
    %v2887 = vld [vmem:[%s615 + $0x30] sm:$0xff]
    %v2888 = vld [vmem:[%s615 + $0x40] sm:$0xff]
    %v2889 = vld [vmem:[%s615 + $0x50] sm:$0xff]
    %v2890 = vld [vmem:[%s615 + $0x60] sm:$0xff]
    %v2891 = vld [vmem:[%s615 + $0x70] sm:$0xff]
    %v2892 = vld [vmem:[%s615 + $0xa0] sm:$0xff]
    %v2893 = vld [vmem:[%s615 + $0xb0] sm:$0xff]
    %v2894 = vld [vmem:[%s615 + $0xc0] sm:$0xff]
    %v2895 = vld [vmem:[%s615 + $0xd0] sm:$0xff]
    %v2896 = vld [vmem:[%s615 + $0xe0] sm:$0xff]
    %v2897 = vld [vmem:[%s615 + $0xf0] sm:$0xff]
    %v2898 = vld [vmem:[%s615 + $0x100] sm:$0xff]
    %v2899 = vld [vmem:[%s615 + $0x110] sm:$0xff]
    %2916 = vrot.lane.b32.xlu0 %v2884, 64
    %v2917 = vpop.permute.xlu0 %2916
    %2918 = vrot.lane.b32.xlu0 %v2885, 64
    %v2919 = vpop.permute.xlu0 %2918
    %2920 = vrot.lane.b32.xlu0 %v2886, 64
    %v2921 = vpop.permute.xlu0 %2920
    %2922 = vrot.lane.b32.xlu0 %v2887, 64
    %v2923 = vpop.permute.xlu0 %2922
    %2924 = vrot.lane.b32.xlu0 %v2888, 64
    %v2925 = vpop.permute.xlu0 %2924
    %2926 = vrot.lane.b32.xlu0 %v2889, 64
    %v2927 = vpop.permute.xlu0 %2926
    %2928 = vrot.lane.b32.xlu0 %v2890, 64
    %v2929 = vpop.permute.xlu0 %2928
    %2930 = vrot.lane.b32.xlu0 %v2891, 64
    %v2931 = vpop.permute.xlu0 %2930
    %2932 = vrot.lane.b32.xlu0 %v2892, 64
    %v2933 = vpop.permute.xlu0 %2932
    %2934 = vrot.lane.b32.xlu0 %v2893, 64
    %v2935 = vpop.permute.xlu0 %2934
    %2936 = vrot.lane.b32.xlu0 %v2894, 64
    %v2937 = vpop.permute.xlu0 %2936
    %2938 = vrot.lane.b32.xlu0 %v2895, 64
    %v2939 = vpop.permute.xlu0 %2938
    %2940 = vrot.lane.b32.xlu0 %v2896, 64
    %v2941 = vpop.permute.xlu0 %2940
    %2942 = vrot.lane.b32.xlu0 %v2897, 64
    %v2943 = vpop.permute.xlu0 %2942
    %2944 = vrot.lane.b32.xlu0 %v2898, 64
    %v2945 = vpop.permute.xlu0 %2944
    %2946 = vrot.lane.b32.xlu0 %v2899, 64
    %v2947 = vpop.permute.xlu0 %2946
    %2964 = vst.msk [vmem:[#allocation3 + $0x8] sm:$0xff] %vm373, %v2917
    %2965 = vst.msk [vmem:[#allocation3 + $0x20] sm:$0xff] %vm373, %v2919
    %2966 = vst.msk [vmem:[#allocation3 + $0x38] sm:$0xff] %vm373, %v2921
    %2967 = vst.msk [vmem:[#allocation3 + $0x50] sm:$0xff] %vm373, %v2923
    %2968 = vst.msk [vmem:[#allocation3 + $0x68] sm:$0xff] %vm373, %v2925
    %2969 = vst.msk [vmem:[#allocation3 + $0x80] sm:$0xff] %vm373, %v2927
    %2970 = vst.msk [vmem:[#allocation3 + $0x98] sm:$0xff] %vm373, %v2929
    %2971 = vst.msk [vmem:[#allocation3 + $0xb0] sm:$0xff] %vm373, %v2931
    %2972 = vst.msk [vmem:[#allocation3 + $0xc8] sm:$0xff] %vm373, %v2933
    %2973 = vst.msk [vmem:[#allocation3 + $0xe0] sm:$0xff] %vm373, %v2935
    %2974 = vst.msk [vmem:[#allocation3 + $0xf8] sm:$0xff] %vm373, %v2937
    %2975 = vst.msk [vmem:[#allocation3 + $0x110] sm:$0xff] %vm373, %v2939
    %2976 = vst.msk [vmem:[#allocation3 + $0x128] sm:$0xff] %vm373, %v2941
    %2977 = vst.msk [vmem:[#allocation3 + $0x140] sm:$0xff] %vm373, %v2943
    %2978 = vst.msk [vmem:[#allocation3 + $0x158] sm:$0xff] %vm373, %v2945
    %2979 = vst.msk [vmem:[#allocation3 + $0x170] sm:$0xff] %vm373, %v2947
    %v2980 = vld [vmem:[%s615 + $0x1] sm:$0xff]
    %v2981 = vld [vmem:[%s615 + $0x11] sm:$0xff]
    %v2982 = vld [vmem:[%s615 + $0x21] sm:$0xff]
    %v2983 = vld [vmem:[%s615 + $0x31] sm:$0xff]
    %v2984 = vld [vmem:[%s615 + $0x41] sm:$0xff]
    %v2985 = vld [vmem:[%s615 + $0x51] sm:$0xff]
    %v2986 = vld [vmem:[%s615 + $0x61] sm:$0xff]
    %v2987 = vld [vmem:[%s615 + $0x71] sm:$0xff]
    %v2988 = vld [vmem:[%s615 + $0xa1] sm:$0xff]
    %v2989 = vld [vmem:[%s615 + $0xb1] sm:$0xff]
    %v2990 = vld [vmem:[%s615 + $0xc1] sm:$0xff]
    %v2991 = vld [vmem:[%s615 + $0xd1] sm:$0xff]
    %v2992 = vld [vmem:[%s615 + $0xe1] sm:$0xff]
    %v2993 = vld [vmem:[%s615 + $0xf1] sm:$0xff]
    %v2994 = vld [vmem:[%s615 + $0x101] sm:$0xff]
    %v2995 = vld [vmem:[%s615 + $0x111] sm:$0xff]
    %3012 = vrot.lane.b32.xlu0 %v2980, 96
    %v3013 = vpop.permute.xlu0 %3012
    %3014 = vrot.lane.b32.xlu0 %v2981, 96
    %v3015 = vpop.permute.xlu0 %3014
    %3016 = vrot.lane.b32.xlu0 %v2982, 96
    %v3017 = vpop.permute.xlu0 %3016
    %3018 = vrot.lane.b32.xlu0 %v2983, 96
    %v3019 = vpop.permute.xlu0 %3018
    %3020 = vrot.lane.b32.xlu0 %v2984, 96
    %v3021 = vpop.permute.xlu0 %3020
    %3022 = vrot.lane.b32.xlu0 %v2985, 96
    %v3023 = vpop.permute.xlu0 %3022
    %3024 = vrot.lane.b32.xlu0 %v2986, 96
    %v3025 = vpop.permute.xlu0 %3024
    %3026 = vrot.lane.b32.xlu0 %v2987, 96
    %v3027 = vpop.permute.xlu0 %3026
    %3028 = vrot.lane.b32.xlu0 %v2988, 96
    %v3029 = vpop.permute.xlu0 %3028
    %3030 = vrot.lane.b32.xlu0 %v2989, 96
    %v3031 = vpop.permute.xlu0 %3030
    %3032 = vrot.lane.b32.xlu0 %v2990, 96
    %v3033 = vpop.permute.xlu0 %3032
    %3034 = vrot.lane.b32.xlu0 %v2991, 96
    %v3035 = vpop.permute.xlu0 %3034
    %3036 = vrot.lane.b32.xlu0 %v2992, 96
    %v3037 = vpop.permute.xlu0 %3036
    %3038 = vrot.lane.b32.xlu0 %v2993, 96
    %v3039 = vpop.permute.xlu0 %3038
    %3040 = vrot.lane.b32.xlu0 %v2994, 96
    %v3041 = vpop.permute.xlu0 %3040
    %3042 = vrot.lane.b32.xlu0 %v2995, 96
    %v3043 = vpop.permute.xlu0 %3042
    %3060 = vst.msk [vmem:[#allocation3 + $0x8] sm:$0xff] %vm470, %v3013
    %3061 = vst.msk [vmem:[#allocation3 + $0x20] sm:$0xff] %vm470, %v3015
    %3062 = vst.msk [vmem:[#allocation3 + $0x38] sm:$0xff] %vm470, %v3017
    %3063 = vst.msk [vmem:[#allocation3 + $0x50] sm:$0xff] %vm470, %v3019
    %3064 = vst.msk [vmem:[#allocation3 + $0x68] sm:$0xff] %vm470, %v3021
    %3065 = vst.msk [vmem:[#allocation3 + $0x80] sm:$0xff] %vm470, %v3023
    %3066 = vst.msk [vmem:[#allocation3 + $0x98] sm:$0xff] %vm470, %v3025
    %3067 = vst.msk [vmem:[#allocation3 + $0xb0] sm:$0xff] %vm470, %v3027
    %3068 = vst.msk [vmem:[#allocation3 + $0xc8] sm:$0xff] %vm470, %v3029
    %3069 = vst.msk [vmem:[#allocation3 + $0xe0] sm:$0xff] %vm470, %v3031
    %3070 = vst.msk [vmem:[#allocation3 + $0xf8] sm:$0xff] %vm470, %v3033
    %3071 = vst.msk [vmem:[#allocation3 + $0x110] sm:$0xff] %vm470, %v3035
    %3072 = vst.msk [vmem:[#allocation3 + $0x128] sm:$0xff] %vm470, %v3037
    %3073 = vst.msk [vmem:[#allocation3 + $0x140] sm:$0xff] %vm470, %v3039
    %3074 = vst.msk [vmem:[#allocation3 + $0x158] sm:$0xff] %vm470, %v3041
    %3075 = vst.msk [vmem:[#allocation3 + $0x170] sm:$0xff] %vm470, %v3043
    %v3076 = vld [vmem:[%s615 + $0x2] sm:$0xff]
    %v3077 = vld [vmem:[%s615 + $0x12] sm:$0xff]
    %v3078 = vld [vmem:[%s615 + $0x22] sm:$0xff]
    %v3079 = vld [vmem:[%s615 + $0x32] sm:$0xff]
    %v3080 = vld [vmem:[%s615 + $0x42] sm:$0xff]
    %v3081 = vld [vmem:[%s615 + $0x52] sm:$0xff]
    %v3082 = vld [vmem:[%s615 + $0x62] sm:$0xff]
    %v3083 = vld [vmem:[%s615 + $0x72] sm:$0xff]
    %v3084 = vld [vmem:[%s615 + $0xa2] sm:$0xff]
    %v3085 = vld [vmem:[%s615 + $0xb2] sm:$0xff]
    %v3086 = vld [vmem:[%s615 + $0xc2] sm:$0xff]
    %v3087 = vld [vmem:[%s615 + $0xd2] sm:$0xff]
    %v3088 = vld [vmem:[%s615 + $0xe2] sm:$0xff]
    %v3089 = vld [vmem:[%s615 + $0xf2] sm:$0xff]
    %v3090 = vld [vmem:[%s615 + $0x102] sm:$0xff]
    %v3091 = vld [vmem:[%s615 + $0x112] sm:$0xff]
    %3092 = vst.msk [vmem:[#allocation3 + $0x10] sm:$0xff] %vm52, %v3076
    %3093 = vst.msk [vmem:[#allocation3 + $0x28] sm:$0xff] %vm52, %v3077
    %3094 = vst.msk [vmem:[#allocation3 + $0x40] sm:$0xff] %vm52, %v3078
    %3095 = vst.msk [vmem:[#allocation3 + $0x58] sm:$0xff] %vm52, %v3079
    %3096 = vst.msk [vmem:[#allocation3 + $0x70] sm:$0xff] %vm52, %v3080
    %3097 = vst.msk [vmem:[#allocation3 + $0x88] sm:$0xff] %vm52, %v3081
    %3098 = vst.msk [vmem:[#allocation3 + $0xa0] sm:$0xff] %vm52, %v3082
    %3099 = vst.msk [vmem:[#allocation3 + $0xb8] sm:$0xff] %vm52, %v3083
    %3100 = vst.msk [vmem:[#allocation3 + $0xd0] sm:$0xff] %vm52, %v3084
    %3101 = vst.msk [vmem:[#allocation3 + $0xe8] sm:$0xff] %vm52, %v3085
    %3102 = vst.msk [vmem:[#allocation3 + $0x100] sm:$0xff] %vm52, %v3086
    %3103 = vst.msk [vmem:[#allocation3 + $0x118] sm:$0xff] %vm52, %v3087
    %3104 = vst.msk [vmem:[#allocation3 + $0x130] sm:$0xff] %vm52, %v3088
    %3105 = vst.msk [vmem:[#allocation3 + $0x148] sm:$0xff] %vm52, %v3089
    %3106 = vst.msk [vmem:[#allocation3 + $0x160] sm:$0xff] %vm52, %v3090
    %3107 = vst.msk [vmem:[#allocation3 + $0x178] sm:$0xff] %vm52, %v3091
    %v3108 = vld [vmem:[#allocation3] sm:$0xff]
    %v3109 = vld [vmem:[#allocation3 + $0x8] sm:$0xff]
    %v3110 = vld [vmem:[#allocation3 + $0x10] sm:$0xff]
    %v3111 = vld [vmem:[#allocation3 + $0x18] sm:$0xff]
    %v3112 = vld [vmem:[#allocation3 + $0x20] sm:$0xff]
    %v3113 = vld [vmem:[#allocation3 + $0x28] sm:$0xff]
    %v3114 = vld [vmem:[#allocation3 + $0x30] sm:$0xff]
    %v3115 = vld [vmem:[#allocation3 + $0x38] sm:$0xff]
    %v3116 = vld [vmem:[#allocation3 + $0x40] sm:$0xff]
    %v3117 = vld [vmem:[#allocation3 + $0x48] sm:$0xff]
    %v3118 = vld [vmem:[#allocation3 + $0x50] sm:$0xff]
    %v3119 = vld [vmem:[#allocation3 + $0x58] sm:$0xff]
    %v3120 = vld [vmem:[#allocation3 + $0x60] sm:$0xff]
    %v3121 = vld [vmem:[#allocation3 + $0x68] sm:$0xff]
    %v3122 = vld [vmem:[#allocation3 + $0x70] sm:$0xff]
    %v3123 = vld [vmem:[#allocation3 + $0x78] sm:$0xff]
    %v3124 = vld [vmem:[#allocation3 + $0x80] sm:$0xff]
    %v3125 = vld [vmem:[#allocation3 + $0x88] sm:$0xff]
    %v3126 = vld [vmem:[#allocation3 + $0x90] sm:$0xff]
    %v3127 = vld [vmem:[#allocation3 + $0x98] sm:$0xff]
    %v3128 = vld [vmem:[#allocation3 + $0xa0] sm:$0xff]
    %v3129 = vld [vmem:[#allocation3 + $0xa8] sm:$0xff]
    %v3130 = vld [vmem:[#allocation3 + $0xb0] sm:$0xff]
    %v3131 = vld [vmem:[#allocation3 + $0xb8] sm:$0xff]
    %v3132 = vld [vmem:[#allocation3 + $0xc0] sm:$0xff]
    %v3133 = vld [vmem:[#allocation3 + $0xc8] sm:$0xff]
    %v3134 = vld [vmem:[#allocation3 + $0xd0] sm:$0xff]
    %v3135 = vld [vmem:[#allocation3 + $0xd8] sm:$0xff]
    %v3136 = vld [vmem:[#allocation3 + $0xe0] sm:$0xff]
    %v3137 = vld [vmem:[#allocation3 + $0xe8] sm:$0xff]
    %v3138 = vld [vmem:[#allocation3 + $0xf0] sm:$0xff]
    %v3139 = vld [vmem:[#allocation3 + $0xf8] sm:$0xff]
    %v3140 = vld [vmem:[#allocation3 + $0x100] sm:$0xff]
    %v3141 = vld [vmem:[#allocation3 + $0x108] sm:$0xff]
    %v3142 = vld [vmem:[#allocation3 + $0x110] sm:$0xff]
    %v3143 = vld [vmem:[#allocation3 + $0x118] sm:$0xff]
    %v3144 = vld [vmem:[#allocation3 + $0x120] sm:$0xff]
    %v3145 = vld [vmem:[#allocation3 + $0x128] sm:$0xff]
    %v3146 = vld [vmem:[#allocation3 + $0x130] sm:$0xff]
    %v3147 = vld [vmem:[#allocation3 + $0x138] sm:$0xff]
    %v3148 = vld [vmem:[#allocation3 + $0x140] sm:$0xff]
    %v3149 = vld [vmem:[#allocation3 + $0x148] sm:$0xff]
    %v3150 = vld [vmem:[#allocation3 + $0x150] sm:$0xff]
    %v3151 = vld [vmem:[#allocation3 + $0x158] sm:$0xff]
    %v3152 = vld [vmem:[#allocation3 + $0x160] sm:$0xff]
    %v3153 = vld [vmem:[#allocation3 + $0x168] sm:$0xff]
    %v3154 = vld [vmem:[#allocation3 + $0x170] sm:$0xff]
    %v3155 = vld [vmem:[#allocation3 + $0x178] sm:$0xff]
    %v3157 = vlaneseq
    %v3158 = vshrl.u32 %v3157, 7
    %v3159 = vsub.s32 0, %v3158
    %v3160 = vrot.slane %v2435, %v3159
    %v3163 = vsel %vm52, %v3110, 0
    %v3166 = vsel %vm52, %v3113, 0
    %v3169 = vsel %vm52, %v3116, 0
    %v3172 = vsel %vm52, %v3119, 0
    %v3175 = vsel %vm52, %v3122, 0
    %v3178 = vsel %vm52, %v3125, 0
    %v3181 = vsel %vm52, %v3128, 0
    %v3184 = vsel %vm52, %v3131, 0
    %v3187 = vsel %vm52, %v3134, 0
    %v3190 = vsel %vm52, %v3137, 0
    %v3193 = vsel %vm52, %v3140, 0
    %v3196 = vsel %vm52, %v3143, 0
    %v3199 = vsel %vm52, %v3146, 0
    %v3202 = vsel %vm52, %v3149, 0
    %v3205 = vsel %vm52, %v3152, 0
    %v3208 = vsel %vm52, %v3155, 0
    %3210 = vmatprep.subr.mxu0 0.0
    %3211 = vmatpush1.msra.mxu0 %v2398
    %3212 = vmatprep.subr.mxu0 0.0
    %3213 = vmatpush1.msra.mxu0 %v2399
    %3214 = vmatprep.subr.mxu0 0.0
    %3215 = vmatpush1.msra.mxu0 %v2400
    %3216 = vmatprep.subr.mxu0 0.0
    %3217 = vmatpush1.msra.mxu0 %v2401
    %3218 = vmatprep.subr.mxu0 0.0
    %3219 = vmatpush1.msra.mxu0 %v2402
    %3220 = vmatprep.subr.mxu0 0.0
    %3221 = vmatpush1.msra.mxu0 %v2403
    %3222 = vmatprep.subr.mxu0 0.0
    %3223 = vmatpush1.msra.mxu0 %v2404
    %3224 = vmatprep.subr.mxu0 0.0
    %3225 = vmatpush1.msra.mxu0 %v2405
    %3226 = vmatprep.subr.mxu0 0.0
    %3227 = vmatpush1.msra.mxu0 %v2406
    %3228 = vmatprep.subr.mxu0 0.0
    %3229 = vmatpush1.msra.mxu0 %v2407
    %3230 = vmatprep.subr.mxu0 0.0
    %3231 = vmatpush1.msra.mxu0 %v2408
    %3232 = vmatprep.subr.mxu0 0.0
    %3233 = vmatpush1.msra.mxu0 %v2409
    %3234 = vmatprep.subr.mxu0 0.0
    %3235 = vmatpush1.msra.mxu0 %v2410
    %3236 = vmatprep.subr.mxu0 0.0
    %3237 = vmatpush1.msra.mxu0 %v2411
    %3238 = vmatprep.subr.mxu0 0.0
    %3239 = vmatpush1.msra.mxu0 %v2412
    %3240 = vmatprep.subr.mxu0 0.0
    %3241 = vmatpush1.msra.mxu0 %v2413
    %3242 = vmatprep.subr.mxu0 0.0
    %3243 = vmatpush1.msra.mxu0 %v2414
    %3244 = vmatprep.subr.mxu0 0.0
    %3245 = vmatpush1.msra.mxu0 %v2415
    %3246 = vmatprep.subr.mxu0 0.0
    %3247 = vmatpush1.msra.mxu0 %v2416
    %3248 = vmatprep.subr.mxu0 0.0
    %3249 = vmatpush1.msra.mxu0 %v2417
    %3250 = vmatprep.subr.mxu0 0.0
    %3251 = vmatpush1.msra.mxu0 %v2418
    %3252 = vmatprep.subr.mxu0 0.0
    %3253 = vmatpush1.msra.mxu0 %v2419
    %3254 = vmatprep.subr.mxu0 0.0
    %3255 = vmatpush1.msra.mxu0 %v2420
    %3256 = vmatprep.subr.mxu0 0.0
    %3257 = vmatpush1.msra.mxu0 %v2421
    %3258 = vmatprep.subr.mxu0 0.0
    %3259 = vmatpush1.msra.mxu0 %v2422
    %3260 = vmatprep.subr.mxu0 0.0
    %3261 = vmatpush1.msra.mxu0 %v2423
    %3262 = vmatprep.subr.mxu0 0.0
    %3263 = vmatpush1.msra.mxu0 %v2424
    %3264 = vmatprep.subr.mxu0 0.0
    %3265 = vmatpush1.msra.mxu0 %v2425
    %3266 = vmatprep.subr.mxu0 0.0
    %3267 = vmatpush1.msra.mxu0 %v2426
    %3268 = vmatprep.subr.mxu0 0.0
    %3269 = vmatpush1.msra.mxu0 %v2427
    %3270 = vmatprep.subr.mxu0 0.0
    %3271 = vmatpush1.msra.mxu0 %v2428
    %3272 = vmatprep.subr.mxu0 0.0
    %3273 = vmatpush1.msra.mxu0 %v2429
    %3274 = vmatprep.mubr.f32.mxu0 %v3109
    %3275 = vmatmul.mubr.f32.gmra.mrb[0].mxu0 %v3108
    %v3276 = vpop.f32.mrb[0].mxu0
    %v3277 = vadd.f32 %v3160, %v3276
    %v3278 = vpop.f32.mrb[0].mxu0
    %3279 = vmatprep.mubr.f32.mxu0 %v3112
    %3280 = vmatmul.mubr.f32.gmra.mrb[0].mxu0 %v3111
    %v3281 = vpop.f32.mrb[0].mxu0
    %v3282 = vadd.f32 %v3160, %v3281
    %v3283 = vpop.f32.mrb[0].mxu0
    %3284 = vmatprep.mubr.f32.mxu0 %v3115
    %3285 = vmatmul.mubr.f32.gmra.mrb[0].mxu0 %v3114
    %v3286 = vpop.f32.mrb[0].mxu0
    %v3287 = vadd.f32 %v3160, %v3286
    %v3288 = vpop.f32.mrb[0].mxu0
    %3289 = vmatprep.mubr.f32.mxu0 %v3118
    %3290 = vmatmul.mubr.f32.gmra.mrb[0].mxu0 %v3117
    %v3291 = vpop.f32.mrb[0].mxu0
    %v3292 = vadd.f32 %v3160, %v3291
    %v3293 = vpop.f32.mrb[0].mxu0
    %3294 = vmatprep.mubr.f32.mxu0 %v3121
    %3295 = vmatmul.mubr.f32.gmra.mrb[0].mxu0 %v3120
    %v3296 = vpop.f32.mrb[0].mxu0
    %v3297 = vadd.f32 %v3160, %v3296
    %v3298 = vpop.f32.mrb[0].mxu0
    %3299 = vmatprep.mubr.f32.mxu0 %v3124
    %3300 = vmatmul.mubr.f32.gmra.mrb[0].mxu0 %v3123
    %v3301 = vpop.f32.mrb[0].mxu0
    %v3302 = vadd.f32 %v3160, %v3301
    %v3303 = vpop.f32.mrb[0].mxu0
    %3304 = vmatprep.mubr.f32.mxu0 %v3127
    %3305 = vmatmul.mubr.f32.gmra.mrb[0].mxu0 %v3126
    %v3306 = vpop.f32.mrb[0].mxu0
    %v3307 = vadd.f32 %v3160, %v3306
    %v3308 = vpop.f32.mrb[0].mxu0
    %3309 = vmatprep.mubr.f32.mxu0 %v3130
    %3310 = vmatmul.mubr.f32.gmra.mrb[0].mxu0 %v3129
    %v3311 = vpop.f32.mrb[0].mxu0
    %v3312 = vadd.f32 %v3160, %v3311
    %v3313 = vpop.f32.mrb[0].mxu0
    %3314 = vmatprep.mubr.f32.mxu0 %v3133
    %3315 = vmatmul.mubr.f32.gmra.mrb[0].mxu0 %v3132
    %v3316 = vpop.f32.mrb[0].mxu0
    %v3317 = vadd.f32 %v3160, %v3316
    %v3318 = vpop.f32.mrb[0].mxu0
    %3319 = vmatprep.mubr.f32.mxu0 %v3136
    %3320 = vmatmul.mubr.f32.gmra.mrb[0].mxu0 %v3135
    %v3321 = vpop.f32.mrb[0].mxu0
    %v3322 = vadd.f32 %v3160, %v3321
    %v3323 = vpop.f32.mrb[0].mxu0
    %3324 = vmatprep.mubr.f32.mxu0 %v3139
    %3325 = vmatmul.mubr.f32.gmra.mrb[0].mxu0 %v3138
    %v3326 = vpop.f32.mrb[0].mxu0
    %v3327 = vadd.f32 %v3160, %v3326
    %v3328 = vpop.f32.mrb[0].mxu0
    %3329 = vmatprep.mubr.f32.mxu0 %v3142
    %3330 = vmatmul.mubr.f32.gmra.mrb[0].mxu0 %v3141
    %v3331 = vpop.f32.mrb[0].mxu0
    %v3332 = vadd.f32 %v3160, %v3331
    %v3333 = vpop.f32.mrb[0].mxu0
    %3334 = vmatprep.mubr.f32.mxu0 %v3145
    %3335 = vmatmul.mubr.f32.gmra.mrb[0].mxu0 %v3144
    %v3336 = vpop.f32.mrb[0].mxu0
    %v3337 = vadd.f32 %v3160, %v3336
    %v3338 = vpop.f32.mrb[0].mxu0
    %3339 = vmatprep.mubr.f32.mxu0 %v3148
    %3340 = vmatmul.mubr.f32.gmra.mrb[0].mxu0 %v3147
    %v3341 = vpop.f32.mrb[0].mxu0
    %v3342 = vadd.f32 %v3160, %v3341
    %v3343 = vpop.f32.mrb[0].mxu0
    %3344 = vmatprep.mubr.f32.mxu0 %v3151
    %3345 = vmatmul.mubr.f32.gmra.mrb[0].mxu0 %v3150
    %v3346 = vpop.f32.mrb[0].mxu0
    %v3347 = vadd.f32 %v3160, %v3346
    %v3348 = vpop.f32.mrb[0].mxu0
    %3349 = vmatprep.mubr.f32.mxu0 %v3154
    %3350 = vmatmul.mubr.f32.gmra.mrb[0].mxu0 %v3153
    %v3351 = vpop.f32.mrb[0].mxu0
    %v3352 = vadd.f32 %v3160, %v3351
    %v3353 = vpop.f32.mrb[0].mxu0
    %3354 = vdwg.mxu0
    %3355 = vmatprep.subr.mxu0 0.0
    %3356 = vmatpush1.msra.mxu0 %v2430
    %3357 = vmatprep.subr.mxu0 0.0
    %3358 = vmatpush1.msra.mxu0 %v2431
    %3359 = vmatprep.subr.mxu0 0.0
    %3360 = vmatpush1.msra.mxu0 %v2432
    %3361 = vmatprep.subr.mxu0 0.0
    %3362 = vmatpush1.msra.mxu0 %v2433
    %3363 = vmatprep.subr.mxu0 0.0
    %3364 = vmatpush1.msra.mxu0 0.0
    %3365 = vmatprep.subr.mxu0 0.0
    %3366 = vmatpush1.msra.mxu0 0.0
    %3367 = vmatprep.subr.mxu0 0.0
    %3368 = vmatpush1.msra.mxu0 0.0
    %3369 = vmatprep.subr.mxu0 0.0
    %3370 = vmatpush1.msra.mxu0 0.0
    %3371 = vmatprep.subr.mxu0 0.0
    %3372 = vmatpush1.msra.mxu0 0.0
    %3373 = vmatprep.subr.mxu0 0.0
    %3374 = vmatpush1.msra.mxu0 0.0
    %3375 = vmatprep.subr.mxu0 0.0
    %3376 = vmatpush1.msra.mxu0 0.0
    %3377 = vmatprep.subr.mxu0 0.0
    %3378 = vmatpush1.msra.mxu0 0.0
    %3379 = vmatprep.subr.mxu0 0.0
    %3380 = vmatpush1.msra.mxu0 0.0
    %3381 = vmatprep.subr.mxu0 0.0
    %3382 = vmatpush1.msra.mxu0 0.0
    %3383 = vmatprep.subr.mxu0 0.0
    %3384 = vmatpush1.msra.mxu0 0.0
    %3385 = vmatprep.subr.mxu0 0.0
    %3386 = vmatpush1.msra.mxu0 0.0
    %3387 = vmatprep.subr.mxu0 0.0
    %3388 = vmatpush1.msra.mxu0 0.0
    %3389 = vmatprep.subr.mxu0 0.0
    %3390 = vmatpush1.msra.mxu0 0.0
    %3391 = vmatprep.subr.mxu0 0.0
    %3392 = vmatpush1.msra.mxu0 0.0
    %3393 = vmatprep.subr.mxu0 0.0
    %3394 = vmatpush1.msra.mxu0 0.0
    %3395 = vmatprep.subr.mxu0 0.0
    %3396 = vmatpush1.msra.mxu0 0.0
    %3397 = vmatprep.subr.mxu0 0.0
    %3398 = vmatpush1.msra.mxu0 0.0
    %3399 = vmatprep.subr.mxu0 0.0
    %3400 = vmatpush1.msra.mxu0 0.0
    %3401 = vmatprep.subr.mxu0 0.0
    %3402 = vmatpush1.msra.mxu0 0.0
    %3403 = vmatprep.subr.mxu0 0.0
    %3404 = vmatpush1.msra.mxu0 0.0
    %3405 = vmatprep.subr.mxu0 0.0
    %3406 = vmatpush1.msra.mxu0 0.0
    %3407 = vmatprep.subr.mxu0 0.0
    %3408 = vmatpush1.msra.mxu0 0.0
    %3409 = vmatprep.subr.mxu0 0.0
    %3410 = vmatpush1.msra.mxu0 0.0
    %3411 = vmatprep.subr.mxu0 0.0
    %3412 = vmatpush1.msra.mxu0 0.0
    %3413 = vmatprep.subr.mxu0 0.0
    %3414 = vmatpush1.msra.mxu0 0.0
    %3415 = vmatprep.subr.mxu0 0.0
    %3416 = vmatpush1.msra.mxu0 0.0
    %3417 = vmatprep.subr.mxu0 0.0
    %3418 = vmatpush1.msra.mxu0 0.0
    %3419 = vmatprep.mubr.f32.mxu0 0.0
    %3420 = vmatmul.mubr.f32.gmra.mrb[0].mxu0 %v3163
    %v3421 = vpop.f32.mrb[0].mxu0
    %v3422 = vadd.f32 %v3277, %v3421
    %v3423 = vpop.f32.mrb[0].mxu0
    %3424 = vmatprep.mubr.f32.mxu0 0.0
    %3425 = vmatmul.mubr.f32.gmra.mrb[0].mxu0 %v3166
    %v3426 = vpop.f32.mrb[0].mxu0
    %v3427 = vadd.f32 %v3282, %v3426
    %v3428 = vpop.f32.mrb[0].mxu0
    %3429 = vmatprep.mubr.f32.mxu0 0.0
    %3430 = vmatmul.mubr.f32.gmra.mrb[0].mxu0 %v3169
    %v3431 = vpop.f32.mrb[0].mxu0
    %v3432 = vadd.f32 %v3287, %v3431
    %v3433 = vpop.f32.mrb[0].mxu0
    %3434 = vmatprep.mubr.f32.mxu0 0.0
    %3435 = vmatmul.mubr.f32.gmra.mrb[0].mxu0 %v3172
    %v3436 = vpop.f32.mrb[0].mxu0
    %v3437 = vadd.f32 %v3292, %v3436
    %v3438 = vpop.f32.mrb[0].mxu0
    %3439 = vmatprep.mubr.f32.mxu0 0.0
    %3440 = vmatmul.mubr.f32.gmra.mrb[0].mxu0 %v3175
    %v3441 = vpop.f32.mrb[0].mxu0
    %v3442 = vadd.f32 %v3297, %v3441
    %v3443 = vpop.f32.mrb[0].mxu0
    %3444 = vmatprep.mubr.f32.mxu0 0.0
    %3445 = vmatmul.mubr.f32.gmra.mrb[0].mxu0 %v3178
    %v3446 = vpop.f32.mrb[0].mxu0
    %v3447 = vadd.f32 %v3302, %v3446
    %v3448 = vpop.f32.mrb[0].mxu0
    %3449 = vmatprep.mubr.f32.mxu0 0.0
    %3450 = vmatmul.mubr.f32.gmra.mrb[0].mxu0 %v3181
    %v3451 = vpop.f32.mrb[0].mxu0
    %v3452 = vadd.f32 %v3307, %v3451
    %v3453 = vpop.f32.mrb[0].mxu0
    %3454 = vmatprep.mubr.f32.mxu0 0.0
    %3455 = vmatmul.mubr.f32.gmra.mrb[0].mxu0 %v3184
    %v3456 = vpop.f32.mrb[0].mxu0
    %v3457 = vadd.f32 %v3312, %v3456
    %v3458 = vpop.f32.mrb[0].mxu0
    %3459 = vmatprep.mubr.f32.mxu0 0.0
    %3460 = vmatmul.mubr.f32.gmra.mrb[0].mxu0 %v3187
    %v3461 = vpop.f32.mrb[0].mxu0
    %v3462 = vadd.f32 %v3317, %v3461
    %v3463 = vpop.f32.mrb[0].mxu0
    %3464 = vmatprep.mubr.f32.mxu0 0.0
    %3465 = vmatmul.mubr.f32.gmra.mrb[0].mxu0 %v3190
    %v3466 = vpop.f32.mrb[0].mxu0
    %v3467 = vadd.f32 %v3322, %v3466
    %v3468 = vpop.f32.mrb[0].mxu0
    %3469 = vmatprep.mubr.f32.mxu0 0.0
    %3470 = vmatmul.mubr.f32.gmra.mrb[0].mxu0 %v3193
    %v3471 = vpop.f32.mrb[0].mxu0
    %v3472 = vadd.f32 %v3327, %v3471
    %v3473 = vpop.f32.mrb[0].mxu0
    %3474 = vmatprep.mubr.f32.mxu0 0.0
    %3475 = vmatmul.mubr.f32.gmra.mrb[0].mxu0 %v3196
    %v3476 = vpop.f32.mrb[0].mxu0
    %v3477 = vadd.f32 %v3332, %v3476
    %v3478 = vpop.f32.mrb[0].mxu0
    %3479 = vmatprep.mubr.f32.mxu0 0.0
    %3480 = vmatmul.mubr.f32.gmra.mrb[0].mxu0 %v3199
    %v3481 = vpop.f32.mrb[0].mxu0
    %v3482 = vadd.f32 %v3337, %v3481
    %v3483 = vpop.f32.mrb[0].mxu0
    %3484 = vmatprep.mubr.f32.mxu0 0.0
    %3485 = vmatmul.mubr.f32.gmra.mrb[0].mxu0 %v3202
    %v3486 = vpop.f32.mrb[0].mxu0
    %v3487 = vadd.f32 %v3342, %v3486
    %v3488 = vpop.f32.mrb[0].mxu0
    %3489 = vmatprep.mubr.f32.mxu0 0.0
    %3490 = vmatmul.mubr.f32.gmra.mrb[0].mxu0 %v3205
    %v3491 = vpop.f32.mrb[0].mxu0
    %v3492 = vadd.f32 %v3347, %v3491
    %v3493 = vpop.f32.mrb[0].mxu0
    %3494 = vmatprep.mubr.f32.mxu0 0.0
    %3495 = vmatmul.mubr.f32.gmra.mrb[0].mxu0 %v3208
    %v3496 = vpop.f32.mrb[0].mxu0
    %v3497 = vadd.f32 %v3352, %v3496
    %v3498 = vpop.f32.mrb[0].mxu0
    %3499 = vdwg.mxu0
    %v3500 = vadd.f32 %v3422, %v1232
    %v3501 = vadd.f32 %v3427, %v1233
    %v3502 = vadd.f32 %v3432, %v1234
    %v3503 = vadd.f32 %v3437, %v1235
    %v3504 = vadd.f32 %v3442, %v1236
    %v3505 = vadd.f32 %v3447, %v1237
    %v3506 = vadd.f32 %v3452, %v1238
    %v3507 = vadd.f32 %v3457, %v1239
    %v3508 = vadd.f32 %v3462, %v1240
    %v3509 = vadd.f32 %v3467, %v1241
    %v3510 = vadd.f32 %v3472, %v1242
    %v3511 = vadd.f32 %v3477, %v1243
    %v3512 = vadd.f32 %v3482, %v1244
    %v3513 = vadd.f32 %v3487, %v1245
    %v3514 = vadd.f32 %v3492, %v1246
    %v3515 = vadd.f32 %v3497, %v1247
    %v3516 = vmax.f32 %v3500, 0.0
    %v3517 = vmax.f32 %v3501, 0.0
    %v3518 = vmax.f32 %v3502, 0.0
    %v3519 = vmax.f32 %v3503, 0.0
    %v3520 = vmax.f32 %v3504, 0.0
    %v3521 = vmax.f32 %v3505, 0.0
    %v3522 = vmax.f32 %v3506, 0.0
    %v3523 = vmax.f32 %v3507, 0.0
    %v3524 = vmax.f32 %v3508, 0.0
    %v3525 = vmax.f32 %v3509, 0.0
    %v3526 = vmax.f32 %v3510, 0.0
    %v3527 = vmax.f32 %v3511, 0.0
    %v3528 = vmax.f32 %v3512, 0.0
    %v3529 = vmax.f32 %v3513, 0.0
    %v3530 = vmax.f32 %v3514, 0.0
    %v3531 = vmax.f32 %v3515, 0.0
    %3532 = vst.msk [vmem:[%s110 + $0x1] sm:$0xff] %vm52, %v3516
    %3533 = vst.msk [vmem:[%s110 + $0x11] sm:$0xff] %vm52, %v3517
    %3534 = vst.msk [vmem:[%s110 + $0x21] sm:$0xff] %vm52, %v3518
    %3535 = vst.msk [vmem:[%s110 + $0x31] sm:$0xff] %vm52, %v3519
    %3536 = vst.msk [vmem:[%s110 + $0x41] sm:$0xff] %vm52, %v3520
    %3537 = vst.msk [vmem:[%s110 + $0x51] sm:$0xff] %vm52, %v3521
    %3538 = vst.msk [vmem:[%s110 + $0x61] sm:$0xff] %vm52, %v3522
    %3539 = vst.msk [vmem:[%s110 + $0x71] sm:$0xff] %vm52, %v3523
    %3540 = vst.msk [vmem:[%s110 + $0xa1] sm:$0xff] %vm52, %v3524
    %3541 = vst.msk [vmem:[%s110 + $0xb1] sm:$0xff] %vm52, %v3525
    %3542 = vst.msk [vmem:[%s110 + $0xc1] sm:$0xff] %vm52, %v3526
    %3543 = vst.msk [vmem:[%s110 + $0xd1] sm:$0xff] %vm52, %v3527
    %3544 = vst.msk [vmem:[%s110 + $0xe1] sm:$0xff] %vm52, %v3528
    %3545 = vst.msk [vmem:[%s110 + $0xf1] sm:$0xff] %vm52, %v3529
    %3546 = vst.msk [vmem:[%s110 + $0x101] sm:$0xff] %vm52, %v3530
    %3547 = vst.msk [vmem:[%s110 + $0x111] sm:$0xff] %vm52, %v3531
    %s3548 = scalar_lea.vmem %s3, 576
    %v3549 = vld [vmem:[%s3548] sm:$0xff]
    %v3550 = vld [vmem:[%s3548 + $0x8] sm:$0xff]
    %v3551 = vld [vmem:[%s3548 + $0x10] sm:$0xff]
    %v3552 = vld [vmem:[%s3548 + $0x18] sm:$0xff]
    %v3553 = vld [vmem:[%s3548 + $0x20] sm:$0xff]
    %v3554 = vld [vmem:[%s3548 + $0x28] sm:$0xff]
    %v3555 = vld [vmem:[%s3548 + $0x30] sm:$0xff]
    %v3556 = vld [vmem:[%s3548 + $0x38] sm:$0xff]
    %v3557 = vld [vmem:[%s3548 + $0x40] sm:$0xff]
    %v3558 = vld [vmem:[%s3548 + $0x48] sm:$0xff]
    %v3559 = vld [vmem:[%s3548 + $0x50] sm:$0xff]
    %v3560 = vld [vmem:[%s3548 + $0x58] sm:$0xff]
    %v3561 = vld [vmem:[%s3548 + $0x60] sm:$0xff]
    %v3562 = vld [vmem:[%s3548 + $0x68] sm:$0xff]
    %v3563 = vld [vmem:[%s3548 + $0x70] sm:$0xff]
    %v3564 = vld [vmem:[%s3548 + $0x78] sm:$0xff]
    %v3565 = vld [vmem:[%s3548 + $0x80] sm:$0xff]
    %v3566 = vld [vmem:[%s3548 + $0x88] sm:$0xff]
    %v3567 = vld [vmem:[%s3548 + $0x90] sm:$0xff]
    %v3568 = vld [vmem:[%s3548 + $0x98] sm:$0xff]
    %v3569 = vld [vmem:[%s3548 + $0xa0] sm:$0xff]
    %v3570 = vld [vmem:[%s3548 + $0xa8] sm:$0xff]
    %v3571 = vld [vmem:[%s3548 + $0xb0] sm:$0xff]
    %v3572 = vld [vmem:[%s3548 + $0xb8] sm:$0xff]
    %v3573 = vld [vmem:[%s3548 + $0xc0] sm:$0xff]
    %v3574 = vld [vmem:[%s3548 + $0xc8] sm:$0xff]
    %v3575 = vld [vmem:[%s3548 + $0xd0] sm:$0xff]
    %v3576 = vld [vmem:[%s3548 + $0xd8] sm:$0xff]
    %v3577 = vld [vmem:[%s3548 + $0xe0] sm:$0xff]
    %v3578 = vld [vmem:[%s3548 + $0xe8] sm:$0xff]
    %v3579 = vld [vmem:[%s3548 + $0xf0] sm:$0xff]
    %v3580 = vld [vmem:[%s3548 + $0xf8] sm:$0xff]
    %v3581 = vld [vmem:[%s3548 + $0x100] sm:$0xff]
    %v3582 = vld [vmem:[%s3548 + $0x108] sm:$0xff]
    %v3583 = vld [vmem:[%s3548 + $0x110] sm:$0xff]
    %v3584 = vld [vmem:[%s3548 + $0x118] sm:$0xff]
    %s3585 = scalar_lea.vmem %s4, 2
    %v3586 = vld [vmem:[%s3585] sm:$0x1]
    %v3587 = vld [vmem:[#allocation2] sm:$0xff]
    %v3588 = vld [vmem:[#allocation2 + $0x10] sm:$0xff]
    %v3589 = vld [vmem:[#allocation2 + $0x20] sm:$0xff]
    %v3590 = vld [vmem:[#allocation2 + $0x30] sm:$0xff]
    %v3591 = vld [vmem:[#allocation2 + $0x40] sm:$0xff]
    %v3592 = vld [vmem:[#allocation2 + $0x50] sm:$0xff]
    %v3593 = vld [vmem:[#allocation2 + $0x60] sm:$0xff]
    %v3594 = vld [vmem:[#allocation2 + $0x70] sm:$0xff]
    %v3595 = vld [vmem:[#allocation2 + $0xa0] sm:$0xff]
    %v3596 = vld [vmem:[#allocation2 + $0xb0] sm:$0xff]
    %v3597 = vld [vmem:[#allocation2 + $0xc0] sm:$0xff]
    %v3598 = vld [vmem:[#allocation2 + $0xd0] sm:$0xff]
    %v3599 = vld [vmem:[#allocation2 + $0xe0] sm:$0xff]
    %v3600 = vld [vmem:[#allocation2 + $0xf0] sm:$0xff]
    %v3601 = vld [vmem:[#allocation2 + $0x100] sm:$0xff]
    %v3602 = vld [vmem:[#allocation2 + $0x110] sm:$0xff]
    %3603 = vst.msk [vmem:[#allocation3] sm:$0xff] %vm52, %v3587
    %3604 = vst.msk [vmem:[#allocation3 + $0x18] sm:$0xff] %vm52, %v3588
    %3605 = vst.msk [vmem:[#allocation3 + $0x30] sm:$0xff] %vm52, %v3589
    %3606 = vst.msk [vmem:[#allocation3 + $0x48] sm:$0xff] %vm52, %v3590
    %3607 = vst.msk [vmem:[#allocation3 + $0x60] sm:$0xff] %vm52, %v3591
    %3608 = vst.msk [vmem:[#allocation3 + $0x78] sm:$0xff] %vm52, %v3592
    %3609 = vst.msk [vmem:[#allocation3 + $0x90] sm:$0xff] %vm52, %v3593
    %3610 = vst.msk [vmem:[#allocation3 + $0xa8] sm:$0xff] %vm52, %v3594
    %3611 = vst.msk [vmem:[#allocation3 + $0xc0] sm:$0xff] %vm52, %v3595
    %3612 = vst.msk [vmem:[#allocation3 + $0xd8] sm:$0xff] %vm52, %v3596
    %3613 = vst.msk [vmem:[#allocation3 + $0xf0] sm:$0xff] %vm52, %v3597
    %3614 = vst.msk [vmem:[#allocation3 + $0x108] sm:$0xff] %vm52, %v3598
    %3615 = vst.msk [vmem:[#allocation3 + $0x120] sm:$0xff] %vm52, %v3599
    %3616 = vst.msk [vmem:[#allocation3 + $0x138] sm:$0xff] %vm52, %v3600
    %3617 = vst.msk [vmem:[#allocation3 + $0x150] sm:$0xff] %vm52, %v3601
    %3618 = vst.msk [vmem:[#allocation3 + $0x168] sm:$0xff] %vm52, %v3602
    %v3619 = vld [vmem:[#allocation2 + $0x1] sm:$0xff]
    %v3620 = vld [vmem:[#allocation2 + $0x11] sm:$0xff]
    %v3621 = vld [vmem:[#allocation2 + $0x21] sm:$0xff]
    %v3622 = vld [vmem:[#allocation2 + $0x31] sm:$0xff]
    %v3623 = vld [vmem:[#allocation2 + $0x41] sm:$0xff]
    %v3624 = vld [vmem:[#allocation2 + $0x51] sm:$0xff]
    %v3625 = vld [vmem:[#allocation2 + $0x61] sm:$0xff]
    %v3626 = vld [vmem:[#allocation2 + $0x71] sm:$0xff]
    %v3627 = vld [vmem:[#allocation2 + $0xa1] sm:$0xff]
    %v3628 = vld [vmem:[#allocation2 + $0xb1] sm:$0xff]
    %v3629 = vld [vmem:[#allocation2 + $0xc1] sm:$0xff]
    %v3630 = vld [vmem:[#allocation2 + $0xd1] sm:$0xff]
    %v3631 = vld [vmem:[#allocation2 + $0xe1] sm:$0xff]
    %v3632 = vld [vmem:[#allocation2 + $0xf1] sm:$0xff]
    %v3633 = vld [vmem:[#allocation2 + $0x101] sm:$0xff]
    %v3634 = vld [vmem:[#allocation2 + $0x111] sm:$0xff]
    %3651 = vrot.lane.b32.xlu0 %v3619, 32
    %v3652 = vpop.permute.xlu0 %3651
    %3653 = vrot.lane.b32.xlu0 %v3620, 32
    %v3654 = vpop.permute.xlu0 %3653
    %3655 = vrot.lane.b32.xlu0 %v3621, 32
    %v3656 = vpop.permute.xlu0 %3655
    %3657 = vrot.lane.b32.xlu0 %v3622, 32
    %v3658 = vpop.permute.xlu0 %3657
    %3659 = vrot.lane.b32.xlu0 %v3623, 32
    %v3660 = vpop.permute.xlu0 %3659
    %3661 = vrot.lane.b32.xlu0 %v3624, 32
    %v3662 = vpop.permute.xlu0 %3661
    %3663 = vrot.lane.b32.xlu0 %v3625, 32
    %v3664 = vpop.permute.xlu0 %3663
    %3665 = vrot.lane.b32.xlu0 %v3626, 32
    %v3666 = vpop.permute.xlu0 %3665
    %3667 = vrot.lane.b32.xlu0 %v3627, 32
    %v3668 = vpop.permute.xlu0 %3667
    %3669 = vrot.lane.b32.xlu0 %v3628, 32
    %v3670 = vpop.permute.xlu0 %3669
    %3671 = vrot.lane.b32.xlu0 %v3629, 32
    %v3672 = vpop.permute.xlu0 %3671
    %3673 = vrot.lane.b32.xlu0 %v3630, 32
    %v3674 = vpop.permute.xlu0 %3673
    %3675 = vrot.lane.b32.xlu0 %v3631, 32
    %v3676 = vpop.permute.xlu0 %3675
    %3677 = vrot.lane.b32.xlu0 %v3632, 32
    %v3678 = vpop.permute.xlu0 %3677
    %3679 = vrot.lane.b32.xlu0 %v3633, 32
    %v3680 = vpop.permute.xlu0 %3679
    %3681 = vrot.lane.b32.xlu0 %v3634, 32
    %v3682 = vpop.permute.xlu0 %3681
    %3699 = vst.msk [vmem:[#allocation3] sm:$0xff] %vm276, %v3652
    %3700 = vst.msk [vmem:[#allocation3 + $0x18] sm:$0xff] %vm276, %v3654
    %3701 = vst.msk [vmem:[#allocation3 + $0x30] sm:$0xff] %vm276, %v3656
    %3702 = vst.msk [vmem:[#allocation3 + $0x48] sm:$0xff] %vm276, %v3658
    %3703 = vst.msk [vmem:[#allocation3 + $0x60] sm:$0xff] %vm276, %v3660
    %3704 = vst.msk [vmem:[#allocation3 + $0x78] sm:$0xff] %vm276, %v3662
    %3705 = vst.msk [vmem:[#allocation3 + $0x90] sm:$0xff] %vm276, %v3664
    %3706 = vst.msk [vmem:[#allocation3 + $0xa8] sm:$0xff] %vm276, %v3666
    %3707 = vst.msk [vmem:[#allocation3 + $0xc0] sm:$0xff] %vm276, %v3668
    %3708 = vst.msk [vmem:[#allocation3 + $0xd8] sm:$0xff] %vm276, %v3670
    %3709 = vst.msk [vmem:[#allocation3 + $0xf0] sm:$0xff] %vm276, %v3672
    %3710 = vst.msk [vmem:[#allocation3 + $0x108] sm:$0xff] %vm276, %v3674
    %3711 = vst.msk [vmem:[#allocation3 + $0x120] sm:$0xff] %vm276, %v3676
    %3712 = vst.msk [vmem:[#allocation3 + $0x138] sm:$0xff] %vm276, %v3678
    %3713 = vst.msk [vmem:[#allocation3 + $0x150] sm:$0xff] %vm276, %v3680
    %3714 = vst.msk [vmem:[#allocation3 + $0x168] sm:$0xff] %vm276, %v3682
    %v3715 = vld [vmem:[#allocation2 + $0x2] sm:$0xff]
    %v3716 = vld [vmem:[#allocation2 + $0x12] sm:$0xff]
    %v3717 = vld [vmem:[#allocation2 + $0x22] sm:$0xff]
    %v3718 = vld [vmem:[#allocation2 + $0x32] sm:$0xff]
    %v3719 = vld [vmem:[#allocation2 + $0x42] sm:$0xff]
    %v3720 = vld [vmem:[#allocation2 + $0x52] sm:$0xff]
    %v3721 = vld [vmem:[#allocation2 + $0x62] sm:$0xff]
    %v3722 = vld [vmem:[#allocation2 + $0x72] sm:$0xff]
    %v3723 = vld [vmem:[#allocation2 + $0xa2] sm:$0xff]
    %v3724 = vld [vmem:[#allocation2 + $0xb2] sm:$0xff]
    %v3725 = vld [vmem:[#allocation2 + $0xc2] sm:$0xff]
    %v3726 = vld [vmem:[#allocation2 + $0xd2] sm:$0xff]
    %v3727 = vld [vmem:[#allocation2 + $0xe2] sm:$0xff]
    %v3728 = vld [vmem:[#allocation2 + $0xf2] sm:$0xff]
    %v3729 = vld [vmem:[#allocation2 + $0x102] sm:$0xff]
    %v3730 = vld [vmem:[#allocation2 + $0x112] sm:$0xff]
    %3747 = vrot.lane.b32.xlu0 %v3715, 64
    %v3748 = vpop.permute.xlu0 %3747
    %3749 = vrot.lane.b32.xlu0 %v3716, 64
    %v3750 = vpop.permute.xlu0 %3749
    %3751 = vrot.lane.b32.xlu0 %v3717, 64
    %v3752 = vpop.permute.xlu0 %3751
    %3753 = vrot.lane.b32.xlu0 %v3718, 64
    %v3754 = vpop.permute.xlu0 %3753
    %3755 = vrot.lane.b32.xlu0 %v3719, 64
    %v3756 = vpop.permute.xlu0 %3755
    %3757 = vrot.lane.b32.xlu0 %v3720, 64
    %v3758 = vpop.permute.xlu0 %3757
    %3759 = vrot.lane.b32.xlu0 %v3721, 64
    %v3760 = vpop.permute.xlu0 %3759
    %3761 = vrot.lane.b32.xlu0 %v3722, 64
    %v3762 = vpop.permute.xlu0 %3761
    %3763 = vrot.lane.b32.xlu0 %v3723, 64
    %v3764 = vpop.permute.xlu0 %3763
    %3765 = vrot.lane.b32.xlu0 %v3724, 64
    %v3766 = vpop.permute.xlu0 %3765
    %3767 = vrot.lane.b32.xlu0 %v3725, 64
    %v3768 = vpop.permute.xlu0 %3767
    %3769 = vrot.lane.b32.xlu0 %v3726, 64
    %v3770 = vpop.permute.xlu0 %3769
    %3771 = vrot.lane.b32.xlu0 %v3727, 64
    %v3772 = vpop.permute.xlu0 %3771
    %3773 = vrot.lane.b32.xlu0 %v3728, 64
    %v3774 = vpop.permute.xlu0 %3773
    %3775 = vrot.lane.b32.xlu0 %v3729, 64
    %v3776 = vpop.permute.xlu0 %3775
    %3777 = vrot.lane.b32.xlu0 %v3730, 64
    %v3778 = vpop.permute.xlu0 %3777
    %3795 = vst.msk [vmem:[#allocation3] sm:$0xff] %vm373, %v3748
    %3796 = vst.msk [vmem:[#allocation3 + $0x18] sm:$0xff] %vm373, %v3750
    %3797 = vst.msk [vmem:[#allocation3 + $0x30] sm:$0xff] %vm373, %v3752
    %3798 = vst.msk [vmem:[#allocation3 + $0x48] sm:$0xff] %vm373, %v3754
    %3799 = vst.msk [vmem:[#allocation3 + $0x60] sm:$0xff] %vm373, %v3756
    %3800 = vst.msk [vmem:[#allocation3 + $0x78] sm:$0xff] %vm373, %v3758
    %3801 = vst.msk [vmem:[#allocation3 + $0x90] sm:$0xff] %vm373, %v3760
    %3802 = vst.msk [vmem:[#allocation3 + $0xa8] sm:$0xff] %vm373, %v3762
    %3803 = vst.msk [vmem:[#allocation3 + $0xc0] sm:$0xff] %vm373, %v3764
    %3804 = vst.msk [vmem:[#allocation3 + $0xd8] sm:$0xff] %vm373, %v3766
    %3805 = vst.msk [vmem:[#allocation3 + $0xf0] sm:$0xff] %vm373, %v3768
    %3806 = vst.msk [vmem:[#allocation3 + $0x108] sm:$0xff] %vm373, %v3770
    %3807 = vst.msk [vmem:[#allocation3 + $0x120] sm:$0xff] %vm373, %v3772
    %3808 = vst.msk [vmem:[#allocation3 + $0x138] sm:$0xff] %vm373, %v3774
    %3809 = vst.msk [vmem:[#allocation3 + $0x150] sm:$0xff] %vm373, %v3776
    %3810 = vst.msk [vmem:[#allocation3 + $0x168] sm:$0xff] %vm373, %v3778
    %v3811 = vld [vmem:[%s110] sm:$0xff]
    %v3812 = vld [vmem:[%s110 + $0x10] sm:$0xff]
    %v3813 = vld [vmem:[%s110 + $0x20] sm:$0xff]
    %v3814 = vld [vmem:[%s110 + $0x30] sm:$0xff]
    %v3815 = vld [vmem:[%s110 + $0x40] sm:$0xff]
    %v3816 = vld [vmem:[%s110 + $0x50] sm:$0xff]
    %v3817 = vld [vmem:[%s110 + $0x60] sm:$0xff]
    %v3818 = vld [vmem:[%s110 + $0x70] sm:$0xff]
    %v3819 = vld [vmem:[%s110 + $0xa0] sm:$0xff]
    %v3820 = vld [vmem:[%s110 + $0xb0] sm:$0xff]
    %v3821 = vld [vmem:[%s110 + $0xc0] sm:$0xff]
    %v3822 = vld [vmem:[%s110 + $0xd0] sm:$0xff]
    %v3823 = vld [vmem:[%s110 + $0xe0] sm:$0xff]
    %v3824 = vld [vmem:[%s110 + $0xf0] sm:$0xff]
    %v3825 = vld [vmem:[%s110 + $0x100] sm:$0xff]
    %v3826 = vld [vmem:[%s110 + $0x110] sm:$0xff]
    %3843 = vrot.lane.b32.xlu0 %v3811, 96
    %v3844 = vpop.permute.xlu0 %3843
    %3845 = vrot.lane.b32.xlu0 %v3812, 96
    %v3846 = vpop.permute.xlu0 %3845
    %3847 = vrot.lane.b32.xlu0 %v3813, 96
    %v3848 = vpop.permute.xlu0 %3847
    %3849 = vrot.lane.b32.xlu0 %v3814, 96
    %v3850 = vpop.permute.xlu0 %3849
    %3851 = vrot.lane.b32.xlu0 %v3815, 96
    %v3852 = vpop.permute.xlu0 %3851
    %3853 = vrot.lane.b32.xlu0 %v3816, 96
    %v3854 = vpop.permute.xlu0 %3853
    %3855 = vrot.lane.b32.xlu0 %v3817, 96
    %v3856 = vpop.permute.xlu0 %3855
    %3857 = vrot.lane.b32.xlu0 %v3818, 96
    %v3858 = vpop.permute.xlu0 %3857
    %3859 = vrot.lane.b32.xlu0 %v3819, 96
    %v3860 = vpop.permute.xlu0 %3859
    %3861 = vrot.lane.b32.xlu0 %v3820, 96
    %v3862 = vpop.permute.xlu0 %3861
    %3863 = vrot.lane.b32.xlu0 %v3821, 96
    %v3864 = vpop.permute.xlu0 %3863
    %3865 = vrot.lane.b32.xlu0 %v3822, 96
    %v3866 = vpop.permute.xlu0 %3865
    %3867 = vrot.lane.b32.xlu0 %v3823, 96
    %v3868 = vpop.permute.xlu0 %3867
    %3869 = vrot.lane.b32.xlu0 %v3824, 96
    %v3870 = vpop.permute.xlu0 %3869
    %3871 = vrot.lane.b32.xlu0 %v3825, 96
    %v3872 = vpop.permute.xlu0 %3871
    %3873 = vrot.lane.b32.xlu0 %v3826, 96
    %v3874 = vpop.permute.xlu0 %3873
    %3891 = vst.msk [vmem:[#allocation3] sm:$0xff] %vm470, %v3844
    %3892 = vst.msk [vmem:[#allocation3 + $0x18] sm:$0xff] %vm470, %v3846
    %3893 = vst.msk [vmem:[#allocation3 + $0x30] sm:$0xff] %vm470, %v3848
    %3894 = vst.msk [vmem:[#allocation3 + $0x48] sm:$0xff] %vm470, %v3850
    %3895 = vst.msk [vmem:[#allocation3 + $0x60] sm:$0xff] %vm470, %v3852
    %3896 = vst.msk [vmem:[#allocation3 + $0x78] sm:$0xff] %vm470, %v3854
    %3897 = vst.msk [vmem:[#allocation3 + $0x90] sm:$0xff] %vm470, %v3856
    %3898 = vst.msk [vmem:[#allocation3 + $0xa8] sm:$0xff] %vm470, %v3858
    %3899 = vst.msk [vmem:[#allocation3 + $0xc0] sm:$0xff] %vm470, %v3860
    %3900 = vst.msk [vmem:[#allocation3 + $0xd8] sm:$0xff] %vm470, %v3862
    %3901 = vst.msk [vmem:[#allocation3 + $0xf0] sm:$0xff] %vm470, %v3864
    %3902 = vst.msk [vmem:[#allocation3 + $0x108] sm:$0xff] %vm470, %v3866
    %3903 = vst.msk [vmem:[#allocation3 + $0x120] sm:$0xff] %vm470, %v3868
    %3904 = vst.msk [vmem:[#allocation3 + $0x138] sm:$0xff] %vm470, %v3870
    %3905 = vst.msk [vmem:[#allocation3 + $0x150] sm:$0xff] %vm470, %v3872
    %3906 = vst.msk [vmem:[#allocation3 + $0x168] sm:$0xff] %vm470, %v3874
    %v3907 = vld [vmem:[%s110 + $0x1] sm:$0xff]
    %v3908 = vld [vmem:[%s110 + $0x11] sm:$0xff]
    %v3909 = vld [vmem:[%s110 + $0x21] sm:$0xff]
    %v3910 = vld [vmem:[%s110 + $0x31] sm:$0xff]
    %v3911 = vld [vmem:[%s110 + $0x41] sm:$0xff]
    %v3912 = vld [vmem:[%s110 + $0x51] sm:$0xff]
    %v3913 = vld [vmem:[%s110 + $0x61] sm:$0xff]
    %v3914 = vld [vmem:[%s110 + $0x71] sm:$0xff]
    %v3915 = vld [vmem:[%s110 + $0xa1] sm:$0xff]
    %v3916 = vld [vmem:[%s110 + $0xb1] sm:$0xff]
    %v3917 = vld [vmem:[%s110 + $0xc1] sm:$0xff]
    %v3918 = vld [vmem:[%s110 + $0xd1] sm:$0xff]
    %v3919 = vld [vmem:[%s110 + $0xe1] sm:$0xff]
    %v3920 = vld [vmem:[%s110 + $0xf1] sm:$0xff]
    %v3921 = vld [vmem:[%s110 + $0x101] sm:$0xff]
    %v3922 = vld [vmem:[%s110 + $0x111] sm:$0xff]
    %3923 = vst.msk [vmem:[#allocation3 + $0x8] sm:$0xff] %vm52, %v3907
    %3924 = vst.msk [vmem:[#allocation3 + $0x20] sm:$0xff] %vm52, %v3908
    %3925 = vst.msk [vmem:[#allocation3 + $0x38] sm:$0xff] %vm52, %v3909
    %3926 = vst.msk [vmem:[#allocation3 + $0x50] sm:$0xff] %vm52, %v3910
    %3927 = vst.msk [vmem:[#allocation3 + $0x68] sm:$0xff] %vm52, %v3911
    %3928 = vst.msk [vmem:[#allocation3 + $0x80] sm:$0xff] %vm52, %v3912
    %3929 = vst.msk [vmem:[#allocation3 + $0x98] sm:$0xff] %vm52, %v3913
    %3930 = vst.msk [vmem:[#allocation3 + $0xb0] sm:$0xff] %vm52, %v3914
    %3931 = vst.msk [vmem:[#allocation3 + $0xc8] sm:$0xff] %vm52, %v3915
    %3932 = vst.msk [vmem:[#allocation3 + $0xe0] sm:$0xff] %vm52, %v3916
    %3933 = vst.msk [vmem:[#allocation3 + $0xf8] sm:$0xff] %vm52, %v3917
    %3934 = vst.msk [vmem:[#allocation3 + $0x110] sm:$0xff] %vm52, %v3918
    %3935 = vst.msk [vmem:[#allocation3 + $0x128] sm:$0xff] %vm52, %v3919
    %3936 = vst.msk [vmem:[#allocation3 + $0x140] sm:$0xff] %vm52, %v3920
    %3937 = vst.msk [vmem:[#allocation3 + $0x158] sm:$0xff] %vm52, %v3921
    %3938 = vst.msk [vmem:[#allocation3 + $0x170] sm:$0xff] %vm52, %v3922
    %v3939 = vld [vmem:[%s110 + $0x2] sm:$0xff]
    %v3940 = vld [vmem:[%s110 + $0x12] sm:$0xff]
    %v3941 = vld [vmem:[%s110 + $0x22] sm:$0xff]
    %v3942 = vld [vmem:[%s110 + $0x32] sm:$0xff]
    %v3943 = vld [vmem:[%s110 + $0x42] sm:$0xff]
    %v3944 = vld [vmem:[%s110 + $0x52] sm:$0xff]
    %v3945 = vld [vmem:[%s110 + $0x62] sm:$0xff]
    %v3946 = vld [vmem:[%s110 + $0x72] sm:$0xff]
    %v3947 = vld [vmem:[%s110 + $0xa2] sm:$0xff]
    %v3948 = vld [vmem:[%s110 + $0xb2] sm:$0xff]
    %v3949 = vld [vmem:[%s110 + $0xc2] sm:$0xff]
    %v3950 = vld [vmem:[%s110 + $0xd2] sm:$0xff]
    %v3951 = vld [vmem:[%s110 + $0xe2] sm:$0xff]
    %v3952 = vld [vmem:[%s110 + $0xf2] sm:$0xff]
    %v3953 = vld [vmem:[%s110 + $0x102] sm:$0xff]
    %v3954 = vld [vmem:[%s110 + $0x112] sm:$0xff]
    %3971 = vrot.lane.b32.xlu0 %v3939, 32
    %v3972 = vpop.permute.xlu0 %3971
    %3973 = vrot.lane.b32.xlu0 %v3940, 32
    %v3974 = vpop.permute.xlu0 %3973
    %3975 = vrot.lane.b32.xlu0 %v3941, 32
    %v3976 = vpop.permute.xlu0 %3975
    %3977 = vrot.lane.b32.xlu0 %v3942, 32
    %v3978 = vpop.permute.xlu0 %3977
    %3979 = vrot.lane.b32.xlu0 %v3943, 32
    %v3980 = vpop.permute.xlu0 %3979
    %3981 = vrot.lane.b32.xlu0 %v3944, 32
    %v3982 = vpop.permute.xlu0 %3981
    %3983 = vrot.lane.b32.xlu0 %v3945, 32
    %v3984 = vpop.permute.xlu0 %3983
    %3985 = vrot.lane.b32.xlu0 %v3946, 32
    %v3986 = vpop.permute.xlu0 %3985
    %3987 = vrot.lane.b32.xlu0 %v3947, 32
    %v3988 = vpop.permute.xlu0 %3987
    %3989 = vrot.lane.b32.xlu0 %v3948, 32
    %v3990 = vpop.permute.xlu0 %3989
    %3991 = vrot.lane.b32.xlu0 %v3949, 32
    %v3992 = vpop.permute.xlu0 %3991
    %3993 = vrot.lane.b32.xlu0 %v3950, 32
    %v3994 = vpop.permute.xlu0 %3993
    %3995 = vrot.lane.b32.xlu0 %v3951, 32
    %v3996 = vpop.permute.xlu0 %3995
    %3997 = vrot.lane.b32.xlu0 %v3952, 32
    %v3998 = vpop.permute.xlu0 %3997
    %3999 = vrot.lane.b32.xlu0 %v3953, 32
    %v4000 = vpop.permute.xlu0 %3999
    %4001 = vrot.lane.b32.xlu0 %v3954, 32
    %v4002 = vpop.permute.xlu0 %4001
    %4019 = vst.msk [vmem:[#allocation3 + $0x8] sm:$0xff] %vm276, %v3972
    %4020 = vst.msk [vmem:[#allocation3 + $0x20] sm:$0xff] %vm276, %v3974
    %4021 = vst.msk [vmem:[#allocation3 + $0x38] sm:$0xff] %vm276, %v3976
    %4022 = vst.msk [vmem:[#allocation3 + $0x50] sm:$0xff] %vm276, %v3978
    %4023 = vst.msk [vmem:[#allocation3 + $0x68] sm:$0xff] %vm276, %v3980
    %4024 = vst.msk [vmem:[#allocation3 + $0x80] sm:$0xff] %vm276, %v3982
    %4025 = vst.msk [vmem:[#allocation3 + $0x98] sm:$0xff] %vm276, %v3984
    %4026 = vst.msk [vmem:[#allocation3 + $0xb0] sm:$0xff] %vm276, %v3986
    %4027 = vst.msk [vmem:[#allocation3 + $0xc8] sm:$0xff] %vm276, %v3988
    %4028 = vst.msk [vmem:[#allocation3 + $0xe0] sm:$0xff] %vm276, %v3990
    %4029 = vst.msk [vmem:[#allocation3 + $0xf8] sm:$0xff] %vm276, %v3992
    %4030 = vst.msk [vmem:[#allocation3 + $0x110] sm:$0xff] %vm276, %v3994
    %4031 = vst.msk [vmem:[#allocation3 + $0x128] sm:$0xff] %vm276, %v3996
    %4032 = vst.msk [vmem:[#allocation3 + $0x140] sm:$0xff] %vm276, %v3998
    %4033 = vst.msk [vmem:[#allocation3 + $0x158] sm:$0xff] %vm276, %v4000
    %4034 = vst.msk [vmem:[#allocation3 + $0x170] sm:$0xff] %vm276, %v4002
    %v4035 = vld [vmem:[%s615] sm:$0xff]
    %v4036 = vld [vmem:[%s615 + $0x10] sm:$0xff]
    %v4037 = vld [vmem:[%s615 + $0x20] sm:$0xff]
    %v4038 = vld [vmem:[%s615 + $0x30] sm:$0xff]
    %v4039 = vld [vmem:[%s615 + $0x40] sm:$0xff]
    %v4040 = vld [vmem:[%s615 + $0x50] sm:$0xff]
    %v4041 = vld [vmem:[%s615 + $0x60] sm:$0xff]
    %v4042 = vld [vmem:[%s615 + $0x70] sm:$0xff]
    %v4043 = vld [vmem:[%s615 + $0xa0] sm:$0xff]
    %v4044 = vld [vmem:[%s615 + $0xb0] sm:$0xff]
    %v4045 = vld [vmem:[%s615 + $0xc0] sm:$0xff]
    %v4046 = vld [vmem:[%s615 + $0xd0] sm:$0xff]
    %v4047 = vld [vmem:[%s615 + $0xe0] sm:$0xff]
    %v4048 = vld [vmem:[%s615 + $0xf0] sm:$0xff]
    %v4049 = vld [vmem:[%s615 + $0x100] sm:$0xff]
    %v4050 = vld [vmem:[%s615 + $0x110] sm:$0xff]
    %4067 = vrot.lane.b32.xlu0 %v4035, 64
    %v4068 = vpop.permute.xlu0 %4067
    %4069 = vrot.lane.b32.xlu0 %v4036, 64
    %v4070 = vpop.permute.xlu0 %4069
    %4071 = vrot.lane.b32.xlu0 %v4037, 64
    %v4072 = vpop.permute.xlu0 %4071
    %4073 = vrot.lane.b32.xlu0 %v4038, 64
    %v4074 = vpop.permute.xlu0 %4073
    %4075 = vrot.lane.b32.xlu0 %v4039, 64
    %v4076 = vpop.permute.xlu0 %4075
    %4077 = vrot.lane.b32.xlu0 %v4040, 64
    %v4078 = vpop.permute.xlu0 %4077
    %4079 = vrot.lane.b32.xlu0 %v4041, 64
    %v4080 = vpop.permute.xlu0 %4079
    %4081 = vrot.lane.b32.xlu0 %v4042, 64
    %v4082 = vpop.permute.xlu0 %4081
    %4083 = vrot.lane.b32.xlu0 %v4043, 64
    %v4084 = vpop.permute.xlu0 %4083
    %4085 = vrot.lane.b32.xlu0 %v4044, 64
    %v4086 = vpop.permute.xlu0 %4085
    %4087 = vrot.lane.b32.xlu0 %v4045, 64
    %v4088 = vpop.permute.xlu0 %4087
    %4089 = vrot.lane.b32.xlu0 %v4046, 64
    %v4090 = vpop.permute.xlu0 %4089
    %4091 = vrot.lane.b32.xlu0 %v4047, 64
    %v4092 = vpop.permute.xlu0 %4091
    %4093 = vrot.lane.b32.xlu0 %v4048, 64
    %v4094 = vpop.permute.xlu0 %4093
    %4095 = vrot.lane.b32.xlu0 %v4049, 64
    %v4096 = vpop.permute.xlu0 %4095
    %4097 = vrot.lane.b32.xlu0 %v4050, 64
    %v4098 = vpop.permute.xlu0 %4097
    %4115 = vst.msk [vmem:[#allocation3 + $0x8] sm:$0xff] %vm373, %v4068
    %4116 = vst.msk [vmem:[#allocation3 + $0x20] sm:$0xff] %vm373, %v4070
    %4117 = vst.msk [vmem:[#allocation3 + $0x38] sm:$0xff] %vm373, %v4072
    %4118 = vst.msk [vmem:[#allocation3 + $0x50] sm:$0xff] %vm373, %v4074
    %4119 = vst.msk [vmem:[#allocation3 + $0x68] sm:$0xff] %vm373, %v4076
    %4120 = vst.msk [vmem:[#allocation3 + $0x80] sm:$0xff] %vm373, %v4078
    %4121 = vst.msk [vmem:[#allocation3 + $0x98] sm:$0xff] %vm373, %v4080
    %4122 = vst.msk [vmem:[#allocation3 + $0xb0] sm:$0xff] %vm373, %v4082
    %4123 = vst.msk [vmem:[#allocation3 + $0xc8] sm:$0xff] %vm373, %v4084
    %4124 = vst.msk [vmem:[#allocation3 + $0xe0] sm:$0xff] %vm373, %v4086
    %4125 = vst.msk [vmem:[#allocation3 + $0xf8] sm:$0xff] %vm373, %v4088
    %4126 = vst.msk [vmem:[#allocation3 + $0x110] sm:$0xff] %vm373, %v4090
    %4127 = vst.msk [vmem:[#allocation3 + $0x128] sm:$0xff] %vm373, %v4092
    %4128 = vst.msk [vmem:[#allocation3 + $0x140] sm:$0xff] %vm373, %v4094
    %4129 = vst.msk [vmem:[#allocation3 + $0x158] sm:$0xff] %vm373, %v4096
    %4130 = vst.msk [vmem:[#allocation3 + $0x170] sm:$0xff] %vm373, %v4098
    %v4131 = vld [vmem:[%s615 + $0x1] sm:$0xff]
    %v4132 = vld [vmem:[%s615 + $0x11] sm:$0xff]
    %v4133 = vld [vmem:[%s615 + $0x21] sm:$0xff]
    %v4134 = vld [vmem:[%s615 + $0x31] sm:$0xff]
    %v4135 = vld [vmem:[%s615 + $0x41] sm:$0xff]
    %v4136 = vld [vmem:[%s615 + $0x51] sm:$0xff]
    %v4137 = vld [vmem:[%s615 + $0x61] sm:$0xff]
    %v4138 = vld [vmem:[%s615 + $0x71] sm:$0xff]
    %v4139 = vld [vmem:[%s615 + $0xa1] sm:$0xff]
    %v4140 = vld [vmem:[%s615 + $0xb1] sm:$0xff]
    %v4141 = vld [vmem:[%s615 + $0xc1] sm:$0xff]
    %v4142 = vld [vmem:[%s615 + $0xd1] sm:$0xff]
    %v4143 = vld [vmem:[%s615 + $0xe1] sm:$0xff]
    %v4144 = vld [vmem:[%s615 + $0xf1] sm:$0xff]
    %v4145 = vld [vmem:[%s615 + $0x101] sm:$0xff]
    %v4146 = vld [vmem:[%s615 + $0x111] sm:$0xff]
    %4163 = vrot.lane.b32.xlu0 %v4131, 96
    %v4164 = vpop.permute.xlu0 %4163
    %4165 = vrot.lane.b32.xlu0 %v4132, 96
    %v4166 = vpop.permute.xlu0 %4165
    %4167 = vrot.lane.b32.xlu0 %v4133, 96
    %v4168 = vpop.permute.xlu0 %4167
    %4169 = vrot.lane.b32.xlu0 %v4134, 96
    %v4170 = vpop.permute.xlu0 %4169
    %4171 = vrot.lane.b32.xlu0 %v4135, 96
    %v4172 = vpop.permute.xlu0 %4171
    %4173 = vrot.lane.b32.xlu0 %v4136, 96
    %v4174 = vpop.permute.xlu0 %4173
    %4175 = vrot.lane.b32.xlu0 %v4137, 96
    %v4176 = vpop.permute.xlu0 %4175
    %4177 = vrot.lane.b32.xlu0 %v4138, 96
    %v4178 = vpop.permute.xlu0 %4177
    %4179 = vrot.lane.b32.xlu0 %v4139, 96
    %v4180 = vpop.permute.xlu0 %4179
    %4181 = vrot.lane.b32.xlu0 %v4140, 96
    %v4182 = vpop.permute.xlu0 %4181
    %4183 = vrot.lane.b32.xlu0 %v4141, 96
    %v4184 = vpop.permute.xlu0 %4183
    %4185 = vrot.lane.b32.xlu0 %v4142, 96
    %v4186 = vpop.permute.xlu0 %4185
    %4187 = vrot.lane.b32.xlu0 %v4143, 96
    %v4188 = vpop.permute.xlu0 %4187
    %4189 = vrot.lane.b32.xlu0 %v4144, 96
    %v4190 = vpop.permute.xlu0 %4189
    %4191 = vrot.lane.b32.xlu0 %v4145, 96
    %v4192 = vpop.permute.xlu0 %4191
    %4193 = vrot.lane.b32.xlu0 %v4146, 96
    %v4194 = vpop.permute.xlu0 %4193
    %4211 = vst.msk [vmem:[#allocation3 + $0x8] sm:$0xff] %vm470, %v4164
    %4212 = vst.msk [vmem:[#allocation3 + $0x20] sm:$0xff] %vm470, %v4166
    %4213 = vst.msk [vmem:[#allocation3 + $0x38] sm:$0xff] %vm470, %v4168
    %4214 = vst.msk [vmem:[#allocation3 + $0x50] sm:$0xff] %vm470, %v4170
    %4215 = vst.msk [vmem:[#allocation3 + $0x68] sm:$0xff] %vm470, %v4172
    %4216 = vst.msk [vmem:[#allocation3 + $0x80] sm:$0xff] %vm470, %v4174
    %4217 = vst.msk [vmem:[#allocation3 + $0x98] sm:$0xff] %vm470, %v4176
    %4218 = vst.msk [vmem:[#allocation3 + $0xb0] sm:$0xff] %vm470, %v4178
    %4219 = vst.msk [vmem:[#allocation3 + $0xc8] sm:$0xff] %vm470, %v4180
    %4220 = vst.msk [vmem:[#allocation3 + $0xe0] sm:$0xff] %vm470, %v4182
    %4221 = vst.msk [vmem:[#allocation3 + $0xf8] sm:$0xff] %vm470, %v4184
    %4222 = vst.msk [vmem:[#allocation3 + $0x110] sm:$0xff] %vm470, %v4186
    %4223 = vst.msk [vmem:[#allocation3 + $0x128] sm:$0xff] %vm470, %v4188
    %4224 = vst.msk [vmem:[#allocation3 + $0x140] sm:$0xff] %vm470, %v4190
    %4225 = vst.msk [vmem:[#allocation3 + $0x158] sm:$0xff] %vm470, %v4192
    %4226 = vst.msk [vmem:[#allocation3 + $0x170] sm:$0xff] %vm470, %v4194
    %v4227 = vld [vmem:[%s615 + $0x2] sm:$0xff]
    %v4228 = vld [vmem:[%s615 + $0x12] sm:$0xff]
    %v4229 = vld [vmem:[%s615 + $0x22] sm:$0xff]
    %v4230 = vld [vmem:[%s615 + $0x32] sm:$0xff]
    %v4231 = vld [vmem:[%s615 + $0x42] sm:$0xff]
    %v4232 = vld [vmem:[%s615 + $0x52] sm:$0xff]
    %v4233 = vld [vmem:[%s615 + $0x62] sm:$0xff]
    %v4234 = vld [vmem:[%s615 + $0x72] sm:$0xff]
    %v4235 = vld [vmem:[%s615 + $0xa2] sm:$0xff]
    %v4236 = vld [vmem:[%s615 + $0xb2] sm:$0xff]
    %v4237 = vld [vmem:[%s615 + $0xc2] sm:$0xff]
    %v4238 = vld [vmem:[%s615 + $0xd2] sm:$0xff]
    %v4239 = vld [vmem:[%s615 + $0xe2] sm:$0xff]
    %v4240 = vld [vmem:[%s615 + $0xf2] sm:$0xff]
    %v4241 = vld [vmem:[%s615 + $0x102] sm:$0xff]
    %v4242 = vld [vmem:[%s615 + $0x112] sm:$0xff]
    %4243 = vst.msk [vmem:[#allocation3 + $0x10] sm:$0xff] %vm52, %v4227
    %4244 = vst.msk [vmem:[#allocation3 + $0x28] sm:$0xff] %vm52, %v4228
    %4245 = vst.msk [vmem:[#allocation3 + $0x40] sm:$0xff] %vm52, %v4229
    %4246 = vst.msk [vmem:[#allocation3 + $0x58] sm:$0xff] %vm52, %v4230
    %4247 = vst.msk [vmem:[#allocation3 + $0x70] sm:$0xff] %vm52, %v4231
    %4248 = vst.msk [vmem:[#allocation3 + $0x88] sm:$0xff] %vm52, %v4232
    %4249 = vst.msk [vmem:[#allocation3 + $0xa0] sm:$0xff] %vm52, %v4233
    %4250 = vst.msk [vmem:[#allocation3 + $0xb8] sm:$0xff] %vm52, %v4234
    %4251 = vst.msk [vmem:[#allocation3 + $0xd0] sm:$0xff] %vm52, %v4235
    %4252 = vst.msk [vmem:[#allocation3 + $0xe8] sm:$0xff] %vm52, %v4236
    %4253 = vst.msk [vmem:[#allocation3 + $0x100] sm:$0xff] %vm52, %v4237
    %4254 = vst.msk [vmem:[#allocation3 + $0x118] sm:$0xff] %vm52, %v4238
    %4255 = vst.msk [vmem:[#allocation3 + $0x130] sm:$0xff] %vm52, %v4239
    %4256 = vst.msk [vmem:[#allocation3 + $0x148] sm:$0xff] %vm52, %v4240
    %4257 = vst.msk [vmem:[#allocation3 + $0x160] sm:$0xff] %vm52, %v4241
    %4258 = vst.msk [vmem:[#allocation3 + $0x178] sm:$0xff] %vm52, %v4242
    %v4259 = vld [vmem:[#allocation3] sm:$0xff]
    %v4260 = vld [vmem:[#allocation3 + $0x8] sm:$0xff]
    %v4261 = vld [vmem:[#allocation3 + $0x10] sm:$0xff]
    %v4262 = vld [vmem:[#allocation3 + $0x18] sm:$0xff]
    %v4263 = vld [vmem:[#allocation3 + $0x20] sm:$0xff]
    %v4264 = vld [vmem:[#allocation3 + $0x28] sm:$0xff]
    %v4265 = vld [vmem:[#allocation3 + $0x30] sm:$0xff]
    %v4266 = vld [vmem:[#allocation3 + $0x38] sm:$0xff]
    %v4267 = vld [vmem:[#allocation3 + $0x40] sm:$0xff]
    %v4268 = vld [vmem:[#allocation3 + $0x48] sm:$0xff]
    %v4269 = vld [vmem:[#allocation3 + $0x50] sm:$0xff]
    %v4270 = vld [vmem:[#allocation3 + $0x58] sm:$0xff]
    %v4271 = vld [vmem:[#allocation3 + $0x60] sm:$0xff]
    %v4272 = vld [vmem:[#allocation3 + $0x68] sm:$0xff]
    %v4273 = vld [vmem:[#allocation3 + $0x70] sm:$0xff]
    %v4274 = vld [vmem:[#allocation3 + $0x78] sm:$0xff]
    %v4275 = vld [vmem:[#allocation3 + $0x80] sm:$0xff]
    %v4276 = vld [vmem:[#allocation3 + $0x88] sm:$0xff]
    %v4277 = vld [vmem:[#allocation3 + $0x90] sm:$0xff]
    %v4278 = vld [vmem:[#allocation3 + $0x98] sm:$0xff]
    %v4279 = vld [vmem:[#allocation3 + $0xa0] sm:$0xff]
    %v4280 = vld [vmem:[#allocation3 + $0xa8] sm:$0xff]
    %v4281 = vld [vmem:[#allocation3 + $0xb0] sm:$0xff]
    %v4282 = vld [vmem:[#allocation3 + $0xb8] sm:$0xff]
    %v4283 = vld [vmem:[#allocation3 + $0xc0] sm:$0xff]
    %v4284 = vld [vmem:[#allocation3 + $0xc8] sm:$0xff]
    %v4285 = vld [vmem:[#allocation3 + $0xd0] sm:$0xff]
    %v4286 = vld [vmem:[#allocation3 + $0xd8] sm:$0xff]
    %v4287 = vld [vmem:[#allocation3 + $0xe0] sm:$0xff]
    %v4288 = vld [vmem:[#allocation3 + $0xe8] sm:$0xff]
    %v4289 = vld [vmem:[#allocation3 + $0xf0] sm:$0xff]
    %v4290 = vld [vmem:[#allocation3 + $0xf8] sm:$0xff]
    %v4291 = vld [vmem:[#allocation3 + $0x100] sm:$0xff]
    %v4292 = vld [vmem:[#allocation3 + $0x108] sm:$0xff]
    %v4293 = vld [vmem:[#allocation3 + $0x110] sm:$0xff]
    %v4294 = vld [vmem:[#allocation3 + $0x118] sm:$0xff]
    %v4295 = vld [vmem:[#allocation3 + $0x120] sm:$0xff]
    %v4296 = vld [vmem:[#allocation3 + $0x128] sm:$0xff]
    %v4297 = vld [vmem:[#allocation3 + $0x130] sm:$0xff]
    %v4298 = vld [vmem:[#allocation3 + $0x138] sm:$0xff]
    %v4299 = vld [vmem:[#allocation3 + $0x140] sm:$0xff]
    %v4300 = vld [vmem:[#allocation3 + $0x148] sm:$0xff]
    %v4301 = vld [vmem:[#allocation3 + $0x150] sm:$0xff]
    %v4302 = vld [vmem:[#allocation3 + $0x158] sm:$0xff]
    %v4303 = vld [vmem:[#allocation3 + $0x160] sm:$0xff]
    %v4304 = vld [vmem:[#allocation3 + $0x168] sm:$0xff]
    %v4305 = vld [vmem:[#allocation3 + $0x170] sm:$0xff]
    %v4306 = vld [vmem:[#allocation3 + $0x178] sm:$0xff]
    %v4308 = vlaneseq
    %v4309 = vshrl.u32 %v4308, 7
    %v4310 = vsub.s32 0, %v4309
    %v4311 = vrot.slane %v3586, %v4310
    %v4314 = vsel %vm52, %v4261, 0
    %v4317 = vsel %vm52, %v4264, 0
    %v4320 = vsel %vm52, %v4267, 0
    %v4323 = vsel %vm52, %v4270, 0
    %v4326 = vsel %vm52, %v4273, 0
    %v4329 = vsel %vm52, %v4276, 0
    %v4332 = vsel %vm52, %v4279, 0
    %v4335 = vsel %vm52, %v4282, 0
    %v4338 = vsel %vm52, %v4285, 0
    %v4341 = vsel %vm52, %v4288, 0
    %v4344 = vsel %vm52, %v4291, 0
    %v4347 = vsel %vm52, %v4294, 0
    %v4350 = vsel %vm52, %v4297, 0
    %v4353 = vsel %vm52, %v4300, 0
    %v4356 = vsel %vm52, %v4303, 0
    %v4359 = vsel %vm52, %v4306, 0
    %4361 = vmatprep.subr.mxu0 0.0
    %4362 = vmatpush1.msra.mxu0 %v3549
    %4363 = vmatprep.subr.mxu0 0.0
    %4364 = vmatpush1.msra.mxu0 %v3550
    %4365 = vmatprep.subr.mxu0 0.0
    %4366 = vmatpush1.msra.mxu0 %v3551
    %4367 = vmatprep.subr.mxu0 0.0
    %4368 = vmatpush1.msra.mxu0 %v3552
    %4369 = vmatprep.subr.mxu0 0.0
    %4370 = vmatpush1.msra.mxu0 %v3553
    %4371 = vmatprep.subr.mxu0 0.0
    %4372 = vmatpush1.msra.mxu0 %v3554
    %4373 = vmatprep.subr.mxu0 0.0
    %4374 = vmatpush1.msra.mxu0 %v3555
    %4375 = vmatprep.subr.mxu0 0.0
    %4376 = vmatpush1.msra.mxu0 %v3556
    %4377 = vmatprep.subr.mxu0 0.0
    %4378 = vmatpush1.msra.mxu0 %v3557
    %4379 = vmatprep.subr.mxu0 0.0
    %4380 = vmatpush1.msra.mxu0 %v3558
    %4381 = vmatprep.subr.mxu0 0.0
    %4382 = vmatpush1.msra.mxu0 %v3559
    %4383 = vmatprep.subr.mxu0 0.0
    %4384 = vmatpush1.msra.mxu0 %v3560
    %4385 = vmatprep.subr.mxu0 0.0
    %4386 = vmatpush1.msra.mxu0 %v3561
    %4387 = vmatprep.subr.mxu0 0.0
    %4388 = vmatpush1.msra.mxu0 %v3562
    %4389 = vmatprep.subr.mxu0 0.0
    %4390 = vmatpush1.msra.mxu0 %v3563
    %4391 = vmatprep.subr.mxu0 0.0
    %4392 = vmatpush1.msra.mxu0 %v3564
    %4393 = vmatprep.subr.mxu0 0.0
    %4394 = vmatpush1.msra.mxu0 %v3565
    %4395 = vmatprep.subr.mxu0 0.0
    %4396 = vmatpush1.msra.mxu0 %v3566
    %4397 = vmatprep.subr.mxu0 0.0
    %4398 = vmatpush1.msra.mxu0 %v3567
    %4399 = vmatprep.subr.mxu0 0.0
    %4400 = vmatpush1.msra.mxu0 %v3568
    %4401 = vmatprep.subr.mxu0 0.0
    %4402 = vmatpush1.msra.mxu0 %v3569
    %4403 = vmatprep.subr.mxu0 0.0
    %4404 = vmatpush1.msra.mxu0 %v3570
    %4405 = vmatprep.subr.mxu0 0.0
    %4406 = vmatpush1.msra.mxu0 %v3571
    %4407 = vmatprep.subr.mxu0 0.0
    %4408 = vmatpush1.msra.mxu0 %v3572
    %4409 = vmatprep.subr.mxu0 0.0
    %4410 = vmatpush1.msra.mxu0 %v3573
    %4411 = vmatprep.subr.mxu0 0.0
    %4412 = vmatpush1.msra.mxu0 %v3574
    %4413 = vmatprep.subr.mxu0 0.0
    %4414 = vmatpush1.msra.mxu0 %v3575
    %4415 = vmatprep.subr.mxu0 0.0
    %4416 = vmatpush1.msra.mxu0 %v3576
    %4417 = vmatprep.subr.mxu0 0.0
    %4418 = vmatpush1.msra.mxu0 %v3577
    %4419 = vmatprep.subr.mxu0 0.0
    %4420 = vmatpush1.msra.mxu0 %v3578
    %4421 = vmatprep.subr.mxu0 0.0
    %4422 = vmatpush1.msra.mxu0 %v3579
    %4423 = vmatprep.subr.mxu0 0.0
    %4424 = vmatpush1.msra.mxu0 %v3580
    %4425 = vmatprep.mubr.f32.mxu0 %v4260
    %4426 = vmatmul.mubr.f32.gmra.mrb[0].mxu0 %v4259
    %v4427 = vpop.f32.mrb[0].mxu0
    %v4428 = vadd.f32 %v4311, %v4427
    %v4429 = vpop.f32.mrb[0].mxu0
    %4430 = vmatprep.mubr.f32.mxu0 %v4263
    %4431 = vmatmul.mubr.f32.gmra.mrb[0].mxu0 %v4262
    %v4432 = vpop.f32.mrb[0].mxu0
    %v4433 = vadd.f32 %v4311, %v4432
    %v4434 = vpop.f32.mrb[0].mxu0
    %4435 = vmatprep.mubr.f32.mxu0 %v4266
    %4436 = vmatmul.mubr.f32.gmra.mrb[0].mxu0 %v4265
    %v4437 = vpop.f32.mrb[0].mxu0
    %v4438 = vadd.f32 %v4311, %v4437
    %v4439 = vpop.f32.mrb[0].mxu0
    %4440 = vmatprep.mubr.f32.mxu0 %v4269
    %4441 = vmatmul.mubr.f32.gmra.mrb[0].mxu0 %v4268
    %v4442 = vpop.f32.mrb[0].mxu0
    %v4443 = vadd.f32 %v4311, %v4442
    %v4444 = vpop.f32.mrb[0].mxu0
    %4445 = vmatprep.mubr.f32.mxu0 %v4272
    %4446 = vmatmul.mubr.f32.gmra.mrb[0].mxu0 %v4271
    %v4447 = vpop.f32.mrb[0].mxu0
    %v4448 = vadd.f32 %v4311, %v4447
    %v4449 = vpop.f32.mrb[0].mxu0
    %4450 = vmatprep.mubr.f32.mxu0 %v4275
    %4451 = vmatmul.mubr.f32.gmra.mrb[0].mxu0 %v4274
    %v4452 = vpop.f32.mrb[0].mxu0
    %v4453 = vadd.f32 %v4311, %v4452
    %v4454 = vpop.f32.mrb[0].mxu0
    %4455 = vmatprep.mubr.f32.mxu0 %v4278
    %4456 = vmatmul.mubr.f32.gmra.mrb[0].mxu0 %v4277
    %v4457 = vpop.f32.mrb[0].mxu0
    %v4458 = vadd.f32 %v4311, %v4457
    %v4459 = vpop.f32.mrb[0].mxu0
    %4460 = vmatprep.mubr.f32.mxu0 %v4281
    %4461 = vmatmul.mubr.f32.gmra.mrb[0].mxu0 %v4280
    %v4462 = vpop.f32.mrb[0].mxu0
    %v4463 = vadd.f32 %v4311, %v4462
    %v4464 = vpop.f32.mrb[0].mxu0
    %4465 = vmatprep.mubr.f32.mxu0 %v4284
    %4466 = vmatmul.mubr.f32.gmra.mrb[0].mxu0 %v4283
    %v4467 = vpop.f32.mrb[0].mxu0
    %v4468 = vadd.f32 %v4311, %v4467
    %v4469 = vpop.f32.mrb[0].mxu0
    %4470 = vmatprep.mubr.f32.mxu0 %v4287
    %4471 = vmatmul.mubr.f32.gmra.mrb[0].mxu0 %v4286
    %v4472 = vpop.f32.mrb[0].mxu0
    %v4473 = vadd.f32 %v4311, %v4472
    %v4474 = vpop.f32.mrb[0].mxu0
    %4475 = vmatprep.mubr.f32.mxu0 %v4290
    %4476 = vmatmul.mubr.f32.gmra.mrb[0].mxu0 %v4289
    %v4477 = vpop.f32.mrb[0].mxu0
    %v4478 = vadd.f32 %v4311, %v4477
    %v4479 = vpop.f32.mrb[0].mxu0
    %4480 = vmatprep.mubr.f32.mxu0 %v4293
    %4481 = vmatmul.mubr.f32.gmra.mrb[0].mxu0 %v4292
    %v4482 = vpop.f32.mrb[0].mxu0
    %v4483 = vadd.f32 %v4311, %v4482
    %v4484 = vpop.f32.mrb[0].mxu0
    %4485 = vmatprep.mubr.f32.mxu0 %v4296
    %4486 = vmatmul.mubr.f32.gmra.mrb[0].mxu0 %v4295
    %v4487 = vpop.f32.mrb[0].mxu0
    %v4488 = vadd.f32 %v4311, %v4487
    %v4489 = vpop.f32.mrb[0].mxu0
    %4490 = vmatprep.mubr.f32.mxu0 %v4299
    %4491 = vmatmul.mubr.f32.gmra.mrb[0].mxu0 %v4298
    %v4492 = vpop.f32.mrb[0].mxu0
    %v4493 = vadd.f32 %v4311, %v4492
    %v4494 = vpop.f32.mrb[0].mxu0
    %4495 = vmatprep.mubr.f32.mxu0 %v4302
    %4496 = vmatmul.mubr.f32.gmra.mrb[0].mxu0 %v4301
    %v4497 = vpop.f32.mrb[0].mxu0
    %v4498 = vadd.f32 %v4311, %v4497
    %v4499 = vpop.f32.mrb[0].mxu0
    %4500 = vmatprep.mubr.f32.mxu0 %v4305
    %4501 = vmatmul.mubr.f32.gmra.mrb[0].mxu0 %v4304
    %v4502 = vpop.f32.mrb[0].mxu0
    %v4503 = vadd.f32 %v4311, %v4502
    %v4504 = vpop.f32.mrb[0].mxu0
    %4505 = vdwg.mxu0
    %4506 = vmatprep.subr.mxu0 0.0
    %4507 = vmatpush1.msra.mxu0 %v3581
    %4508 = vmatprep.subr.mxu0 0.0
    %4509 = vmatpush1.msra.mxu0 %v3582
    %4510 = vmatprep.subr.mxu0 0.0
    %4511 = vmatpush1.msra.mxu0 %v3583
    %4512 = vmatprep.subr.mxu0 0.0
    %4513 = vmatpush1.msra.mxu0 %v3584
    %4514 = vmatprep.subr.mxu0 0.0
    %4515 = vmatpush1.msra.mxu0 0.0
    %4516 = vmatprep.subr.mxu0 0.0
    %4517 = vmatpush1.msra.mxu0 0.0
    %4518 = vmatprep.subr.mxu0 0.0
    %4519 = vmatpush1.msra.mxu0 0.0
    %4520 = vmatprep.subr.mxu0 0.0
    %4521 = vmatpush1.msra.mxu0 0.0
    %4522 = vmatprep.subr.mxu0 0.0
    %4523 = vmatpush1.msra.mxu0 0.0
    %4524 = vmatprep.subr.mxu0 0.0
    %4525 = vmatpush1.msra.mxu0 0.0
    %4526 = vmatprep.subr.mxu0 0.0
    %4527 = vmatpush1.msra.mxu0 0.0
    %4528 = vmatprep.subr.mxu0 0.0
    %4529 = vmatpush1.msra.mxu0 0.0
    %4530 = vmatprep.subr.mxu0 0.0
    %4531 = vmatpush1.msra.mxu0 0.0
    %4532 = vmatprep.subr.mxu0 0.0
    %4533 = vmatpush1.msra.mxu0 0.0
    %4534 = vmatprep.subr.mxu0 0.0
    %4535 = vmatpush1.msra.mxu0 0.0
    %4536 = vmatprep.subr.mxu0 0.0
    %4537 = vmatpush1.msra.mxu0 0.0
    %4538 = vmatprep.subr.mxu0 0.0
    %4539 = vmatpush1.msra.mxu0 0.0
    %4540 = vmatprep.subr.mxu0 0.0
    %4541 = vmatpush1.msra.mxu0 0.0
    %4542 = vmatprep.subr.mxu0 0.0
    %4543 = vmatpush1.msra.mxu0 0.0
    %4544 = vmatprep.subr.mxu0 0.0
    %4545 = vmatpush1.msra.mxu0 0.0
    %4546 = vmatprep.subr.mxu0 0.0
    %4547 = vmatpush1.msra.mxu0 0.0
    %4548 = vmatprep.subr.mxu0 0.0
    %4549 = vmatpush1.msra.mxu0 0.0
    %4550 = vmatprep.subr.mxu0 0.0
    %4551 = vmatpush1.msra.mxu0 0.0
    %4552 = vmatprep.subr.mxu0 0.0
    %4553 = vmatpush1.msra.mxu0 0.0
    %4554 = vmatprep.subr.mxu0 0.0
    %4555 = vmatpush1.msra.mxu0 0.0
    %4556 = vmatprep.subr.mxu0 0.0
    %4557 = vmatpush1.msra.mxu0 0.0
    %4558 = vmatprep.subr.mxu0 0.0
    %4559 = vmatpush1.msra.mxu0 0.0
    %4560 = vmatprep.subr.mxu0 0.0
    %4561 = vmatpush1.msra.mxu0 0.0
    %4562 = vmatprep.subr.mxu0 0.0
    %4563 = vmatpush1.msra.mxu0 0.0
    %4564 = vmatprep.subr.mxu0 0.0
    %4565 = vmatpush1.msra.mxu0 0.0
    %4566 = vmatprep.subr.mxu0 0.0
    %4567 = vmatpush1.msra.mxu0 0.0
    %4568 = vmatprep.subr.mxu0 0.0
    %4569 = vmatpush1.msra.mxu0 0.0
    %4570 = vmatprep.mubr.f32.mxu0 0.0
    %4571 = vmatmul.mubr.f32.gmra.mrb[0].mxu0 %v4314
    %v4572 = vpop.f32.mrb[0].mxu0
    %v4573 = vadd.f32 %v4428, %v4572
    %v4574 = vpop.f32.mrb[0].mxu0
    %4575 = vmatprep.mubr.f32.mxu0 0.0
    %4576 = vmatmul.mubr.f32.gmra.mrb[0].mxu0 %v4317
    %v4577 = vpop.f32.mrb[0].mxu0
    %v4578 = vadd.f32 %v4433, %v4577
    %v4579 = vpop.f32.mrb[0].mxu0
    %4580 = vmatprep.mubr.f32.mxu0 0.0
    %4581 = vmatmul.mubr.f32.gmra.mrb[0].mxu0 %v4320
    %v4582 = vpop.f32.mrb[0].mxu0
    %v4583 = vadd.f32 %v4438, %v4582
    %v4584 = vpop.f32.mrb[0].mxu0
    %4585 = vmatprep.mubr.f32.mxu0 0.0
    %4586 = vmatmul.mubr.f32.gmra.mrb[0].mxu0 %v4323
    %v4587 = vpop.f32.mrb[0].mxu0
    %v4588 = vadd.f32 %v4443, %v4587
    %v4589 = vpop.f32.mrb[0].mxu0
    %4590 = vmatprep.mubr.f32.mxu0 0.0
    %4591 = vmatmul.mubr.f32.gmra.mrb[0].mxu0 %v4326
    %v4592 = vpop.f32.mrb[0].mxu0
    %v4593 = vadd.f32 %v4448, %v4592
    %v4594 = vpop.f32.mrb[0].mxu0
    %4595 = vmatprep.mubr.f32.mxu0 0.0
    %4596 = vmatmul.mubr.f32.gmra.mrb[0].mxu0 %v4329
    %v4597 = vpop.f32.mrb[0].mxu0
    %v4598 = vadd.f32 %v4453, %v4597
    %v4599 = vpop.f32.mrb[0].mxu0
    %4600 = vmatprep.mubr.f32.mxu0 0.0
    %4601 = vmatmul.mubr.f32.gmra.mrb[0].mxu0 %v4332
    %v4602 = vpop.f32.mrb[0].mxu0
    %v4603 = vadd.f32 %v4458, %v4602
    %v4604 = vpop.f32.mrb[0].mxu0
    %4605 = vmatprep.mubr.f32.mxu0 0.0
    %4606 = vmatmul.mubr.f32.gmra.mrb[0].mxu0 %v4335
    %v4607 = vpop.f32.mrb[0].mxu0
    %v4608 = vadd.f32 %v4463, %v4607
    %v4609 = vpop.f32.mrb[0].mxu0
    %4610 = vmatprep.mubr.f32.mxu0 0.0
    %4611 = vmatmul.mubr.f32.gmra.mrb[0].mxu0 %v4338
    %v4612 = vpop.f32.mrb[0].mxu0
    %v4613 = vadd.f32 %v4468, %v4612
    %v4614 = vpop.f32.mrb[0].mxu0
    %4615 = vmatprep.mubr.f32.mxu0 0.0
    %4616 = vmatmul.mubr.f32.gmra.mrb[0].mxu0 %v4341
    %v4617 = vpop.f32.mrb[0].mxu0
    %v4618 = vadd.f32 %v4473, %v4617
    %v4619 = vpop.f32.mrb[0].mxu0
    %4620 = vmatprep.mubr.f32.mxu0 0.0
    %4621 = vmatmul.mubr.f32.gmra.mrb[0].mxu0 %v4344
    %v4622 = vpop.f32.mrb[0].mxu0
    %v4623 = vadd.f32 %v4478, %v4622
    %v4624 = vpop.f32.mrb[0].mxu0
    %4625 = vmatprep.mubr.f32.mxu0 0.0
    %4626 = vmatmul.mubr.f32.gmra.mrb[0].mxu0 %v4347
    %v4627 = vpop.f32.mrb[0].mxu0
    %v4628 = vadd.f32 %v4483, %v4627
    %v4629 = vpop.f32.mrb[0].mxu0
    %4630 = vmatprep.mubr.f32.mxu0 0.0
    %4631 = vmatmul.mubr.f32.gmra.mrb[0].mxu0 %v4350
    %v4632 = vpop.f32.mrb[0].mxu0
    %v4633 = vadd.f32 %v4488, %v4632
    %v4634 = vpop.f32.mrb[0].mxu0
    %4635 = vmatprep.mubr.f32.mxu0 0.0
    %4636 = vmatmul.mubr.f32.gmra.mrb[0].mxu0 %v4353
    %v4637 = vpop.f32.mrb[0].mxu0
    %v4638 = vadd.f32 %v4493, %v4637
    %v4639 = vpop.f32.mrb[0].mxu0
    %4640 = vmatprep.mubr.f32.mxu0 0.0
    %4641 = vmatmul.mubr.f32.gmra.mrb[0].mxu0 %v4356
    %v4642 = vpop.f32.mrb[0].mxu0
    %v4643 = vadd.f32 %v4498, %v4642
    %v4644 = vpop.f32.mrb[0].mxu0
    %4645 = vmatprep.mubr.f32.mxu0 0.0
    %4646 = vmatmul.mubr.f32.gmra.mrb[0].mxu0 %v4359
    %v4647 = vpop.f32.mrb[0].mxu0
    %v4648 = vadd.f32 %v4503, %v4647
    %v4649 = vpop.f32.mrb[0].mxu0
    %4650 = vdwg.mxu0
    %v4651 = vmax.f32 %v4573, 0.0
    %v4652 = vmax.f32 %v4578, 0.0
    %v4653 = vmax.f32 %v4583, 0.0
    %v4654 = vmax.f32 %v4588, 0.0
    %v4655 = vmax.f32 %v4593, 0.0
    %v4656 = vmax.f32 %v4598, 0.0
    %v4657 = vmax.f32 %v4603, 0.0
    %v4658 = vmax.f32 %v4608, 0.0
    %v4659 = vmax.f32 %v4613, 0.0
    %v4660 = vmax.f32 %v4618, 0.0
    %v4661 = vmax.f32 %v4623, 0.0
    %v4662 = vmax.f32 %v4628, 0.0
    %v4663 = vmax.f32 %v4633, 0.0
    %v4664 = vmax.f32 %v4638, 0.0
    %v4665 = vmax.f32 %v4643, 0.0
    %v4666 = vmax.f32 %v4648, 0.0
    %4667 = vst.msk [vmem:[%s110 + $0x1] sm:$0xff] %vm52, %v4651
    %4668 = vst.msk [vmem:[%s110 + $0x11] sm:$0xff] %vm52, %v4652
    %4669 = vst.msk [vmem:[%s110 + $0x21] sm:$0xff] %vm52, %v4653
    %4670 = vst.msk [vmem:[%s110 + $0x31] sm:$0xff] %vm52, %v4654
    %4671 = vst.msk [vmem:[%s110 + $0x41] sm:$0xff] %vm52, %v4655
    %4672 = vst.msk [vmem:[%s110 + $0x51] sm:$0xff] %vm52, %v4656
    %4673 = vst.msk [vmem:[%s110 + $0x61] sm:$0xff] %vm52, %v4657
    %4674 = vst.msk [vmem:[%s110 + $0x71] sm:$0xff] %vm52, %v4658
    %4675 = vst.msk [vmem:[%s110 + $0xa1] sm:$0xff] %vm52, %v4659
    %4676 = vst.msk [vmem:[%s110 + $0xb1] sm:$0xff] %vm52, %v4660
    %4677 = vst.msk [vmem:[%s110 + $0xc1] sm:$0xff] %vm52, %v4661
    %4678 = vst.msk [vmem:[%s110 + $0xd1] sm:$0xff] %vm52, %v4662
    %4679 = vst.msk [vmem:[%s110 + $0xe1] sm:$0xff] %vm52, %v4663
    %4680 = vst.msk [vmem:[%s110 + $0xf1] sm:$0xff] %vm52, %v4664
    %4681 = vst.msk [vmem:[%s110 + $0x101] sm:$0xff] %vm52, %v4665
    %4682 = vst.msk [vmem:[%s110 + $0x111] sm:$0xff] %vm52, %v4666
    %s4683 = scalar_lea.vmem %s3, 864
    %v4684 = vld [vmem:[%s4683] sm:$0xff]
    %v4685 = vld [vmem:[%s4683 + $0x8] sm:$0xff]
    %v4686 = vld [vmem:[%s4683 + $0x10] sm:$0xff]
    %v4687 = vld [vmem:[%s4683 + $0x18] sm:$0xff]
    %v4688 = vld [vmem:[%s4683 + $0x20] sm:$0xff]
    %v4689 = vld [vmem:[%s4683 + $0x28] sm:$0xff]
    %v4690 = vld [vmem:[%s4683 + $0x30] sm:$0xff]
    %v4691 = vld [vmem:[%s4683 + $0x38] sm:$0xff]
    %v4692 = vld [vmem:[%s4683 + $0x40] sm:$0xff]
    %v4693 = vld [vmem:[%s4683 + $0x48] sm:$0xff]
    %v4694 = vld [vmem:[%s4683 + $0x50] sm:$0xff]
    %v4695 = vld [vmem:[%s4683 + $0x58] sm:$0xff]
    %v4696 = vld [vmem:[%s4683 + $0x60] sm:$0xff]
    %v4697 = vld [vmem:[%s4683 + $0x68] sm:$0xff]
    %v4698 = vld [vmem:[%s4683 + $0x70] sm:$0xff]
    %v4699 = vld [vmem:[%s4683 + $0x78] sm:$0xff]
    %v4700 = vld [vmem:[%s4683 + $0x80] sm:$0xff]
    %v4701 = vld [vmem:[%s4683 + $0x88] sm:$0xff]
    %v4702 = vld [vmem:[%s4683 + $0x90] sm:$0xff]
    %v4703 = vld [vmem:[%s4683 + $0x98] sm:$0xff]
    %v4704 = vld [vmem:[%s4683 + $0xa0] sm:$0xff]
    %v4705 = vld [vmem:[%s4683 + $0xa8] sm:$0xff]
    %v4706 = vld [vmem:[%s4683 + $0xb0] sm:$0xff]
    %v4707 = vld [vmem:[%s4683 + $0xb8] sm:$0xff]
    %v4708 = vld [vmem:[%s4683 + $0xc0] sm:$0xff]
    %v4709 = vld [vmem:[%s4683 + $0xc8] sm:$0xff]
    %v4710 = vld [vmem:[%s4683 + $0xd0] sm:$0xff]
    %v4711 = vld [vmem:[%s4683 + $0xd8] sm:$0xff]
    %v4712 = vld [vmem:[%s4683 + $0xe0] sm:$0xff]
    %v4713 = vld [vmem:[%s4683 + $0xe8] sm:$0xff]
    %v4714 = vld [vmem:[%s4683 + $0xf0] sm:$0xff]
    %v4715 = vld [vmem:[%s4683 + $0xf8] sm:$0xff]
    %v4716 = vld [vmem:[%s4683 + $0x100] sm:$0xff]
    %v4717 = vld [vmem:[%s4683 + $0x108] sm:$0xff]
    %v4718 = vld [vmem:[%s4683 + $0x110] sm:$0xff]
    %v4719 = vld [vmem:[%s4683 + $0x118] sm:$0xff]
    %s4720 = scalar_lea.vmem %s4, 3
    %v4721 = vld [vmem:[%s4720] sm:$0x1]
    %v4722 = vld [vmem:[#allocation2] sm:$0xff]
    %v4723 = vld [vmem:[#allocation2 + $0x10] sm:$0xff]
    %v4724 = vld [vmem:[#allocation2 + $0x20] sm:$0xff]
    %v4725 = vld [vmem:[#allocation2 + $0x30] sm:$0xff]
    %v4726 = vld [vmem:[#allocation2 + $0x40] sm:$0xff]
    %v4727 = vld [vmem:[#allocation2 + $0x50] sm:$0xff]
    %v4728 = vld [vmem:[#allocation2 + $0x60] sm:$0xff]
    %v4729 = vld [vmem:[#allocation2 + $0x70] sm:$0xff]
    %v4730 = vld [vmem:[#allocation2 + $0xa0] sm:$0xff]
    %v4731 = vld [vmem:[#allocation2 + $0xb0] sm:$0xff]
    %v4732 = vld [vmem:[#allocation2 + $0xc0] sm:$0xff]
    %v4733 = vld [vmem:[#allocation2 + $0xd0] sm:$0xff]
    %v4734 = vld [vmem:[#allocation2 + $0xe0] sm:$0xff]
    %v4735 = vld [vmem:[#allocation2 + $0xf0] sm:$0xff]
    %v4736 = vld [vmem:[#allocation2 + $0x100] sm:$0xff]
    %v4737 = vld [vmem:[#allocation2 + $0x110] sm:$0xff]
    %4738 = vst.msk [vmem:[#allocation3] sm:$0xff] %vm52, %v4722
    %4739 = vst.msk [vmem:[#allocation3 + $0x18] sm:$0xff] %vm52, %v4723
    %4740 = vst.msk [vmem:[#allocation3 + $0x30] sm:$0xff] %vm52, %v4724
    %4741 = vst.msk [vmem:[#allocation3 + $0x48] sm:$0xff] %vm52, %v4725
    %4742 = vst.msk [vmem:[#allocation3 + $0x60] sm:$0xff] %vm52, %v4726
    %4743 = vst.msk [vmem:[#allocation3 + $0x78] sm:$0xff] %vm52, %v4727
    %4744 = vst.msk [vmem:[#allocation3 + $0x90] sm:$0xff] %vm52, %v4728
    %4745 = vst.msk [vmem:[#allocation3 + $0xa8] sm:$0xff] %vm52, %v4729
    %4746 = vst.msk [vmem:[#allocation3 + $0xc0] sm:$0xff] %vm52, %v4730
    %4747 = vst.msk [vmem:[#allocation3 + $0xd8] sm:$0xff] %vm52, %v4731
    %4748 = vst.msk [vmem:[#allocation3 + $0xf0] sm:$0xff] %vm52, %v4732
    %4749 = vst.msk [vmem:[#allocation3 + $0x108] sm:$0xff] %vm52, %v4733
    %4750 = vst.msk [vmem:[#allocation3 + $0x120] sm:$0xff] %vm52, %v4734
    %4751 = vst.msk [vmem:[#allocation3 + $0x138] sm:$0xff] %vm52, %v4735
    %4752 = vst.msk [vmem:[#allocation3 + $0x150] sm:$0xff] %vm52, %v4736
    %4753 = vst.msk [vmem:[#allocation3 + $0x168] sm:$0xff] %vm52, %v4737
    %v4754 = vld [vmem:[#allocation2 + $0x1] sm:$0xff]
    %v4755 = vld [vmem:[#allocation2 + $0x11] sm:$0xff]
    %v4756 = vld [vmem:[#allocation2 + $0x21] sm:$0xff]
    %v4757 = vld [vmem:[#allocation2 + $0x31] sm:$0xff]
    %v4758 = vld [vmem:[#allocation2 + $0x41] sm:$0xff]
    %v4759 = vld [vmem:[#allocation2 + $0x51] sm:$0xff]
    %v4760 = vld [vmem:[#allocation2 + $0x61] sm:$0xff]
    %v4761 = vld [vmem:[#allocation2 + $0x71] sm:$0xff]
    %v4762 = vld [vmem:[#allocation2 + $0xa1] sm:$0xff]
    %v4763 = vld [vmem:[#allocation2 + $0xb1] sm:$0xff]
    %v4764 = vld [vmem:[#allocation2 + $0xc1] sm:$0xff]
    %v4765 = vld [vmem:[#allocation2 + $0xd1] sm:$0xff]
    %v4766 = vld [vmem:[#allocation2 + $0xe1] sm:$0xff]
    %v4767 = vld [vmem:[#allocation2 + $0xf1] sm:$0xff]
    %v4768 = vld [vmem:[#allocation2 + $0x101] sm:$0xff]
    %v4769 = vld [vmem:[#allocation2 + $0x111] sm:$0xff]
    %4786 = vrot.lane.b32.xlu0 %v4754, 32
    %v4787 = vpop.permute.xlu0 %4786
    %4788 = vrot.lane.b32.xlu0 %v4755, 32
    %v4789 = vpop.permute.xlu0 %4788
    %4790 = vrot.lane.b32.xlu0 %v4756, 32
    %v4791 = vpop.permute.xlu0 %4790
    %4792 = vrot.lane.b32.xlu0 %v4757, 32
    %v4793 = vpop.permute.xlu0 %4792
    %4794 = vrot.lane.b32.xlu0 %v4758, 32
    %v4795 = vpop.permute.xlu0 %4794
    %4796 = vrot.lane.b32.xlu0 %v4759, 32
    %v4797 = vpop.permute.xlu0 %4796
    %4798 = vrot.lane.b32.xlu0 %v4760, 32
    %v4799 = vpop.permute.xlu0 %4798
    %4800 = vrot.lane.b32.xlu0 %v4761, 32
    %v4801 = vpop.permute.xlu0 %4800
    %4802 = vrot.lane.b32.xlu0 %v4762, 32
    %v4803 = vpop.permute.xlu0 %4802
    %4804 = vrot.lane.b32.xlu0 %v4763, 32
    %v4805 = vpop.permute.xlu0 %4804
    %4806 = vrot.lane.b32.xlu0 %v4764, 32
    %v4807 = vpop.permute.xlu0 %4806
    %4808 = vrot.lane.b32.xlu0 %v4765, 32
    %v4809 = vpop.permute.xlu0 %4808
    %4810 = vrot.lane.b32.xlu0 %v4766, 32
    %v4811 = vpop.permute.xlu0 %4810
    %4812 = vrot.lane.b32.xlu0 %v4767, 32
    %v4813 = vpop.permute.xlu0 %4812
    %4814 = vrot.lane.b32.xlu0 %v4768, 32
    %v4815 = vpop.permute.xlu0 %4814
    %4816 = vrot.lane.b32.xlu0 %v4769, 32
    %v4817 = vpop.permute.xlu0 %4816
    %4834 = vst.msk [vmem:[#allocation3] sm:$0xff] %vm276, %v4787
    %4835 = vst.msk [vmem:[#allocation3 + $0x18] sm:$0xff] %vm276, %v4789
    %4836 = vst.msk [vmem:[#allocation3 + $0x30] sm:$0xff] %vm276, %v4791
    %4837 = vst.msk [vmem:[#allocation3 + $0x48] sm:$0xff] %vm276, %v4793
    %4838 = vst.msk [vmem:[#allocation3 + $0x60] sm:$0xff] %vm276, %v4795
    %4839 = vst.msk [vmem:[#allocation3 + $0x78] sm:$0xff] %vm276, %v4797
    %4840 = vst.msk [vmem:[#allocation3 + $0x90] sm:$0xff] %vm276, %v4799
    %4841 = vst.msk [vmem:[#allocation3 + $0xa8] sm:$0xff] %vm276, %v4801
    %4842 = vst.msk [vmem:[#allocation3 + $0xc0] sm:$0xff] %vm276, %v4803
    %4843 = vst.msk [vmem:[#allocation3 + $0xd8] sm:$0xff] %vm276, %v4805
    %4844 = vst.msk [vmem:[#allocation3 + $0xf0] sm:$0xff] %vm276, %v4807
    %4845 = vst.msk [vmem:[#allocation3 + $0x108] sm:$0xff] %vm276, %v4809
    %4846 = vst.msk [vmem:[#allocation3 + $0x120] sm:$0xff] %vm276, %v4811
    %4847 = vst.msk [vmem:[#allocation3 + $0x138] sm:$0xff] %vm276, %v4813
    %4848 = vst.msk [vmem:[#allocation3 + $0x150] sm:$0xff] %vm276, %v4815
    %4849 = vst.msk [vmem:[#allocation3 + $0x168] sm:$0xff] %vm276, %v4817
    %v4850 = vld [vmem:[#allocation2 + $0x2] sm:$0xff]
    %v4851 = vld [vmem:[#allocation2 + $0x12] sm:$0xff]
    %v4852 = vld [vmem:[#allocation2 + $0x22] sm:$0xff]
    %v4853 = vld [vmem:[#allocation2 + $0x32] sm:$0xff]
    %v4854 = vld [vmem:[#allocation2 + $0x42] sm:$0xff]
    %v4855 = vld [vmem:[#allocation2 + $0x52] sm:$0xff]
    %v4856 = vld [vmem:[#allocation2 + $0x62] sm:$0xff]
    %v4857 = vld [vmem:[#allocation2 + $0x72] sm:$0xff]
    %v4858 = vld [vmem:[#allocation2 + $0xa2] sm:$0xff]
    %v4859 = vld [vmem:[#allocation2 + $0xb2] sm:$0xff]
    %v4860 = vld [vmem:[#allocation2 + $0xc2] sm:$0xff]
    %v4861 = vld [vmem:[#allocation2 + $0xd2] sm:$0xff]
    %v4862 = vld [vmem:[#allocation2 + $0xe2] sm:$0xff]
    %v4863 = vld [vmem:[#allocation2 + $0xf2] sm:$0xff]
    %v4864 = vld [vmem:[#allocation2 + $0x102] sm:$0xff]
    %v4865 = vld [vmem:[#allocation2 + $0x112] sm:$0xff]
    %4882 = vrot.lane.b32.xlu0 %v4850, 64
    %v4883 = vpop.permute.xlu0 %4882
    %4884 = vrot.lane.b32.xlu0 %v4851, 64
    %v4885 = vpop.permute.xlu0 %4884
    %4886 = vrot.lane.b32.xlu0 %v4852, 64
    %v4887 = vpop.permute.xlu0 %4886
    %4888 = vrot.lane.b32.xlu0 %v4853, 64
    %v4889 = vpop.permute.xlu0 %4888
    %4890 = vrot.lane.b32.xlu0 %v4854, 64
    %v4891 = vpop.permute.xlu0 %4890
    %4892 = vrot.lane.b32.xlu0 %v4855, 64
    %v4893 = vpop.permute.xlu0 %4892
    %4894 = vrot.lane.b32.xlu0 %v4856, 64
    %v4895 = vpop.permute.xlu0 %4894
    %4896 = vrot.lane.b32.xlu0 %v4857, 64
    %v4897 = vpop.permute.xlu0 %4896
    %4898 = vrot.lane.b32.xlu0 %v4858, 64
    %v4899 = vpop.permute.xlu0 %4898
    %4900 = vrot.lane.b32.xlu0 %v4859, 64
    %v4901 = vpop.permute.xlu0 %4900
    %4902 = vrot.lane.b32.xlu0 %v4860, 64
    %v4903 = vpop.permute.xlu0 %4902
    %4904 = vrot.lane.b32.xlu0 %v4861, 64
    %v4905 = vpop.permute.xlu0 %4904
    %4906 = vrot.lane.b32.xlu0 %v4862, 64
    %v4907 = vpop.permute.xlu0 %4906
    %4908 = vrot.lane.b32.xlu0 %v4863, 64
    %v4909 = vpop.permute.xlu0 %4908
    %4910 = vrot.lane.b32.xlu0 %v4864, 64
    %v4911 = vpop.permute.xlu0 %4910
    %4912 = vrot.lane.b32.xlu0 %v4865, 64
    %v4913 = vpop.permute.xlu0 %4912
    %4930 = vst.msk [vmem:[#allocation3] sm:$0xff] %vm373, %v4883
    %4931 = vst.msk [vmem:[#allocation3 + $0x18] sm:$0xff] %vm373, %v4885
    %4932 = vst.msk [vmem:[#allocation3 + $0x30] sm:$0xff] %vm373, %v4887
    %4933 = vst.msk [vmem:[#allocation3 + $0x48] sm:$0xff] %vm373, %v4889
    %4934 = vst.msk [vmem:[#allocation3 + $0x60] sm:$0xff] %vm373, %v4891
    %4935 = vst.msk [vmem:[#allocation3 + $0x78] sm:$0xff] %vm373, %v4893
    %4936 = vst.msk [vmem:[#allocation3 + $0x90] sm:$0xff] %vm373, %v4895
    %4937 = vst.msk [vmem:[#allocation3 + $0xa8] sm:$0xff] %vm373, %v4897
    %4938 = vst.msk [vmem:[#allocation3 + $0xc0] sm:$0xff] %vm373, %v4899
    %4939 = vst.msk [vmem:[#allocation3 + $0xd8] sm:$0xff] %vm373, %v4901
    %4940 = vst.msk [vmem:[#allocation3 + $0xf0] sm:$0xff] %vm373, %v4903
    %4941 = vst.msk [vmem:[#allocation3 + $0x108] sm:$0xff] %vm373, %v4905
    %4942 = vst.msk [vmem:[#allocation3 + $0x120] sm:$0xff] %vm373, %v4907
    %4943 = vst.msk [vmem:[#allocation3 + $0x138] sm:$0xff] %vm373, %v4909
    %4944 = vst.msk [vmem:[#allocation3 + $0x150] sm:$0xff] %vm373, %v4911
    %4945 = vst.msk [vmem:[#allocation3 + $0x168] sm:$0xff] %vm373, %v4913
    %v4946 = vld [vmem:[%s110] sm:$0xff]
    %v4947 = vld [vmem:[%s110 + $0x10] sm:$0xff]
    %v4948 = vld [vmem:[%s110 + $0x20] sm:$0xff]
    %v4949 = vld [vmem:[%s110 + $0x30] sm:$0xff]
    %v4950 = vld [vmem:[%s110 + $0x40] sm:$0xff]
    %v4951 = vld [vmem:[%s110 + $0x50] sm:$0xff]
    %v4952 = vld [vmem:[%s110 + $0x60] sm:$0xff]
    %v4953 = vld [vmem:[%s110 + $0x70] sm:$0xff]
    %v4954 = vld [vmem:[%s110 + $0xa0] sm:$0xff]
    %v4955 = vld [vmem:[%s110 + $0xb0] sm:$0xff]
    %v4956 = vld [vmem:[%s110 + $0xc0] sm:$0xff]
    %v4957 = vld [vmem:[%s110 + $0xd0] sm:$0xff]
    %v4958 = vld [vmem:[%s110 + $0xe0] sm:$0xff]
    %v4959 = vld [vmem:[%s110 + $0xf0] sm:$0xff]
    %v4960 = vld [vmem:[%s110 + $0x100] sm:$0xff]
    %v4961 = vld [vmem:[%s110 + $0x110] sm:$0xff]
    %4978 = vrot.lane.b32.xlu0 %v4946, 96
    %v4979 = vpop.permute.xlu0 %4978
    %4980 = vrot.lane.b32.xlu0 %v4947, 96
    %v4981 = vpop.permute.xlu0 %4980
    %4982 = vrot.lane.b32.xlu0 %v4948, 96
    %v4983 = vpop.permute.xlu0 %4982
    %4984 = vrot.lane.b32.xlu0 %v4949, 96
    %v4985 = vpop.permute.xlu0 %4984
    %4986 = vrot.lane.b32.xlu0 %v4950, 96
    %v4987 = vpop.permute.xlu0 %4986
    %4988 = vrot.lane.b32.xlu0 %v4951, 96
    %v4989 = vpop.permute.xlu0 %4988
    %4990 = vrot.lane.b32.xlu0 %v4952, 96
    %v4991 = vpop.permute.xlu0 %4990
    %4992 = vrot.lane.b32.xlu0 %v4953, 96
    %v4993 = vpop.permute.xlu0 %4992
    %4994 = vrot.lane.b32.xlu0 %v4954, 96
    %v4995 = vpop.permute.xlu0 %4994
    %4996 = vrot.lane.b32.xlu0 %v4955, 96
    %v4997 = vpop.permute.xlu0 %4996
    %4998 = vrot.lane.b32.xlu0 %v4956, 96
    %v4999 = vpop.permute.xlu0 %4998
    %5000 = vrot.lane.b32.xlu0 %v4957, 96
    %v5001 = vpop.permute.xlu0 %5000
    %5002 = vrot.lane.b32.xlu0 %v4958, 96
    %v5003 = vpop.permute.xlu0 %5002
    %5004 = vrot.lane.b32.xlu0 %v4959, 96
    %v5005 = vpop.permute.xlu0 %5004
    %5006 = vrot.lane.b32.xlu0 %v4960, 96
    %v5007 = vpop.permute.xlu0 %5006
    %5008 = vrot.lane.b32.xlu0 %v4961, 96
    %v5009 = vpop.permute.xlu0 %5008
    %5026 = vst.msk [vmem:[#allocation3] sm:$0xff] %vm470, %v4979
    %5027 = vst.msk [vmem:[#allocation3 + $0x18] sm:$0xff] %vm470, %v4981
    %5028 = vst.msk [vmem:[#allocation3 + $0x30] sm:$0xff] %vm470, %v4983
    %5029 = vst.msk [vmem:[#allocation3 + $0x48] sm:$0xff] %vm470, %v4985
    %5030 = vst.msk [vmem:[#allocation3 + $0x60] sm:$0xff] %vm470, %v4987
    %5031 = vst.msk [vmem:[#allocation3 + $0x78] sm:$0xff] %vm470, %v4989
    %5032 = vst.msk [vmem:[#allocation3 + $0x90] sm:$0xff] %vm470, %v4991
    %5033 = vst.msk [vmem:[#allocation3 + $0xa8] sm:$0xff] %vm470, %v4993
    %5034 = vst.msk [vmem:[#allocation3 + $0xc0] sm:$0xff] %vm470, %v4995
    %5035 = vst.msk [vmem:[#allocation3 + $0xd8] sm:$0xff] %vm470, %v4997
    %5036 = vst.msk [vmem:[#allocation3 + $0xf0] sm:$0xff] %vm470, %v4999
    %5037 = vst.msk [vmem:[#allocation3 + $0x108] sm:$0xff] %vm470, %v5001
    %5038 = vst.msk [vmem:[#allocation3 + $0x120] sm:$0xff] %vm470, %v5003
    %5039 = vst.msk [vmem:[#allocation3 + $0x138] sm:$0xff] %vm470, %v5005
    %5040 = vst.msk [vmem:[#allocation3 + $0x150] sm:$0xff] %vm470, %v5007
    %5041 = vst.msk [vmem:[#allocation3 + $0x168] sm:$0xff] %vm470, %v5009
    %v5042 = vld [vmem:[%s110 + $0x1] sm:$0xff]
    %v5043 = vld [vmem:[%s110 + $0x11] sm:$0xff]
    %v5044 = vld [vmem:[%s110 + $0x21] sm:$0xff]
    %v5045 = vld [vmem:[%s110 + $0x31] sm:$0xff]
    %v5046 = vld [vmem:[%s110 + $0x41] sm:$0xff]
    %v5047 = vld [vmem:[%s110 + $0x51] sm:$0xff]
    %v5048 = vld [vmem:[%s110 + $0x61] sm:$0xff]
    %v5049 = vld [vmem:[%s110 + $0x71] sm:$0xff]
    %v5050 = vld [vmem:[%s110 + $0xa1] sm:$0xff]
    %v5051 = vld [vmem:[%s110 + $0xb1] sm:$0xff]
    %v5052 = vld [vmem:[%s110 + $0xc1] sm:$0xff]
    %v5053 = vld [vmem:[%s110 + $0xd1] sm:$0xff]
    %v5054 = vld [vmem:[%s110 + $0xe1] sm:$0xff]
    %v5055 = vld [vmem:[%s110 + $0xf1] sm:$0xff]
    %v5056 = vld [vmem:[%s110 + $0x101] sm:$0xff]
    %v5057 = vld [vmem:[%s110 + $0x111] sm:$0xff]
    %5058 = vst.msk [vmem:[#allocation3 + $0x8] sm:$0xff] %vm52, %v5042
    %5059 = vst.msk [vmem:[#allocation3 + $0x20] sm:$0xff] %vm52, %v5043
    %5060 = vst.msk [vmem:[#allocation3 + $0x38] sm:$0xff] %vm52, %v5044
    %5061 = vst.msk [vmem:[#allocation3 + $0x50] sm:$0xff] %vm52, %v5045
    %5062 = vst.msk [vmem:[#allocation3 + $0x68] sm:$0xff] %vm52, %v5046
    %5063 = vst.msk [vmem:[#allocation3 + $0x80] sm:$0xff] %vm52, %v5047
    %5064 = vst.msk [vmem:[#allocation3 + $0x98] sm:$0xff] %vm52, %v5048
    %5065 = vst.msk [vmem:[#allocation3 + $0xb0] sm:$0xff] %vm52, %v5049
    %5066 = vst.msk [vmem:[#allocation3 + $0xc8] sm:$0xff] %vm52, %v5050
    %5067 = vst.msk [vmem:[#allocation3 + $0xe0] sm:$0xff] %vm52, %v5051
    %5068 = vst.msk [vmem:[#allocation3 + $0xf8] sm:$0xff] %vm52, %v5052
    %5069 = vst.msk [vmem:[#allocation3 + $0x110] sm:$0xff] %vm52, %v5053
    %5070 = vst.msk [vmem:[#allocation3 + $0x128] sm:$0xff] %vm52, %v5054
    %5071 = vst.msk [vmem:[#allocation3 + $0x140] sm:$0xff] %vm52, %v5055
    %5072 = vst.msk [vmem:[#allocation3 + $0x158] sm:$0xff] %vm52, %v5056
    %5073 = vst.msk [vmem:[#allocation3 + $0x170] sm:$0xff] %vm52, %v5057
    %v5074 = vld [vmem:[%s110 + $0x2] sm:$0xff]
    %v5075 = vld [vmem:[%s110 + $0x12] sm:$0xff]
    %v5076 = vld [vmem:[%s110 + $0x22] sm:$0xff]
    %v5077 = vld [vmem:[%s110 + $0x32] sm:$0xff]
    %v5078 = vld [vmem:[%s110 + $0x42] sm:$0xff]
    %v5079 = vld [vmem:[%s110 + $0x52] sm:$0xff]
    %v5080 = vld [vmem:[%s110 + $0x62] sm:$0xff]
    %v5081 = vld [vmem:[%s110 + $0x72] sm:$0xff]
    %v5082 = vld [vmem:[%s110 + $0xa2] sm:$0xff]
    %v5083 = vld [vmem:[%s110 + $0xb2] sm:$0xff]
    %v5084 = vld [vmem:[%s110 + $0xc2] sm:$0xff]
    %v5085 = vld [vmem:[%s110 + $0xd2] sm:$0xff]
    %v5086 = vld [vmem:[%s110 + $0xe2] sm:$0xff]
    %v5087 = vld [vmem:[%s110 + $0xf2] sm:$0xff]
    %v5088 = vld [vmem:[%s110 + $0x102] sm:$0xff]
    %v5089 = vld [vmem:[%s110 + $0x112] sm:$0xff]
    %5106 = vrot.lane.b32.xlu0 %v5074, 32
    %v5107 = vpop.permute.xlu0 %5106
    %5108 = vrot.lane.b32.xlu0 %v5075, 32
    %v5109 = vpop.permute.xlu0 %5108
    %5110 = vrot.lane.b32.xlu0 %v5076, 32
    %v5111 = vpop.permute.xlu0 %5110
    %5112 = vrot.lane.b32.xlu0 %v5077, 32
    %v5113 = vpop.permute.xlu0 %5112
    %5114 = vrot.lane.b32.xlu0 %v5078, 32
    %v5115 = vpop.permute.xlu0 %5114
    %5116 = vrot.lane.b32.xlu0 %v5079, 32
    %v5117 = vpop.permute.xlu0 %5116
    %5118 = vrot.lane.b32.xlu0 %v5080, 32
    %v5119 = vpop.permute.xlu0 %5118
    %5120 = vrot.lane.b32.xlu0 %v5081, 32
    %v5121 = vpop.permute.xlu0 %5120
    %5122 = vrot.lane.b32.xlu0 %v5082, 32
    %v5123 = vpop.permute.xlu0 %5122
    %5124 = vrot.lane.b32.xlu0 %v5083, 32
    %v5125 = vpop.permute.xlu0 %5124
    %5126 = vrot.lane.b32.xlu0 %v5084, 32
    %v5127 = vpop.permute.xlu0 %5126
    %5128 = vrot.lane.b32.xlu0 %v5085, 32
    %v5129 = vpop.permute.xlu0 %5128
    %5130 = vrot.lane.b32.xlu0 %v5086, 32
    %v5131 = vpop.permute.xlu0 %5130
    %5132 = vrot.lane.b32.xlu0 %v5087, 32
    %v5133 = vpop.permute.xlu0 %5132
    %5134 = vrot.lane.b32.xlu0 %v5088, 32
    %v5135 = vpop.permute.xlu0 %5134
    %5136 = vrot.lane.b32.xlu0 %v5089, 32
    %v5137 = vpop.permute.xlu0 %5136
    %5154 = vst.msk [vmem:[#allocation3 + $0x8] sm:$0xff] %vm276, %v5107
    %5155 = vst.msk [vmem:[#allocation3 + $0x20] sm:$0xff] %vm276, %v5109
    %5156 = vst.msk [vmem:[#allocation3 + $0x38] sm:$0xff] %vm276, %v5111
    %5157 = vst.msk [vmem:[#allocation3 + $0x50] sm:$0xff] %vm276, %v5113
    %5158 = vst.msk [vmem:[#allocation3 + $0x68] sm:$0xff] %vm276, %v5115
    %5159 = vst.msk [vmem:[#allocation3 + $0x80] sm:$0xff] %vm276, %v5117
    %5160 = vst.msk [vmem:[#allocation3 + $0x98] sm:$0xff] %vm276, %v5119
    %5161 = vst.msk [vmem:[#allocation3 + $0xb0] sm:$0xff] %vm276, %v5121
    %5162 = vst.msk [vmem:[#allocation3 + $0xc8] sm:$0xff] %vm276, %v5123
    %5163 = vst.msk [vmem:[#allocation3 + $0xe0] sm:$0xff] %vm276, %v5125
    %5164 = vst.msk [vmem:[#allocation3 + $0xf8] sm:$0xff] %vm276, %v5127
    %5165 = vst.msk [vmem:[#allocation3 + $0x110] sm:$0xff] %vm276, %v5129
    %5166 = vst.msk [vmem:[#allocation3 + $0x128] sm:$0xff] %vm276, %v5131
    %5167 = vst.msk [vmem:[#allocation3 + $0x140] sm:$0xff] %vm276, %v5133
    %5168 = vst.msk [vmem:[#allocation3 + $0x158] sm:$0xff] %vm276, %v5135
    %5169 = vst.msk [vmem:[#allocation3 + $0x170] sm:$0xff] %vm276, %v5137
    %v5170 = vld [vmem:[%s615] sm:$0xff]
    %v5171 = vld [vmem:[%s615 + $0x10] sm:$0xff]
    %v5172 = vld [vmem:[%s615 + $0x20] sm:$0xff]
    %v5173 = vld [vmem:[%s615 + $0x30] sm:$0xff]
    %v5174 = vld [vmem:[%s615 + $0x40] sm:$0xff]
    %v5175 = vld [vmem:[%s615 + $0x50] sm:$0xff]
    %v5176 = vld [vmem:[%s615 + $0x60] sm:$0xff]
    %v5177 = vld [vmem:[%s615 + $0x70] sm:$0xff]
    %v5178 = vld [vmem:[%s615 + $0xa0] sm:$0xff]
    %v5179 = vld [vmem:[%s615 + $0xb0] sm:$0xff]
    %v5180 = vld [vmem:[%s615 + $0xc0] sm:$0xff]
    %v5181 = vld [vmem:[%s615 + $0xd0] sm:$0xff]
    %v5182 = vld [vmem:[%s615 + $0xe0] sm:$0xff]
    %v5183 = vld [vmem:[%s615 + $0xf0] sm:$0xff]
    %v5184 = vld [vmem:[%s615 + $0x100] sm:$0xff]
    %v5185 = vld [vmem:[%s615 + $0x110] sm:$0xff]
    %5202 = vrot.lane.b32.xlu0 %v5170, 64
    %v5203 = vpop.permute.xlu0 %5202
    %5204 = vrot.lane.b32.xlu0 %v5171, 64
    %v5205 = vpop.permute.xlu0 %5204
    %5206 = vrot.lane.b32.xlu0 %v5172, 64
    %v5207 = vpop.permute.xlu0 %5206
    %5208 = vrot.lane.b32.xlu0 %v5173, 64
    %v5209 = vpop.permute.xlu0 %5208
    %5210 = vrot.lane.b32.xlu0 %v5174, 64
    %v5211 = vpop.permute.xlu0 %5210
    %5212 = vrot.lane.b32.xlu0 %v5175, 64
    %v5213 = vpop.permute.xlu0 %5212
    %5214 = vrot.lane.b32.xlu0 %v5176, 64
    %v5215 = vpop.permute.xlu0 %5214
    %5216 = vrot.lane.b32.xlu0 %v5177, 64
    %v5217 = vpop.permute.xlu0 %5216
    %5218 = vrot.lane.b32.xlu0 %v5178, 64
    %v5219 = vpop.permute.xlu0 %5218
    %5220 = vrot.lane.b32.xlu0 %v5179, 64
    %v5221 = vpop.permute.xlu0 %5220
    %5222 = vrot.lane.b32.xlu0 %v5180, 64
    %v5223 = vpop.permute.xlu0 %5222
    %5224 = vrot.lane.b32.xlu0 %v5181, 64
    %v5225 = vpop.permute.xlu0 %5224
    %5226 = vrot.lane.b32.xlu0 %v5182, 64
    %v5227 = vpop.permute.xlu0 %5226
    %5228 = vrot.lane.b32.xlu0 %v5183, 64
    %v5229 = vpop.permute.xlu0 %5228
    %5230 = vrot.lane.b32.xlu0 %v5184, 64
    %v5231 = vpop.permute.xlu0 %5230
    %5232 = vrot.lane.b32.xlu0 %v5185, 64
    %v5233 = vpop.permute.xlu0 %5232
    %5250 = vst.msk [vmem:[#allocation3 + $0x8] sm:$0xff] %vm373, %v5203
    %5251 = vst.msk [vmem:[#allocation3 + $0x20] sm:$0xff] %vm373, %v5205
    %5252 = vst.msk [vmem:[#allocation3 + $0x38] sm:$0xff] %vm373, %v5207
    %5253 = vst.msk [vmem:[#allocation3 + $0x50] sm:$0xff] %vm373, %v5209
    %5254 = vst.msk [vmem:[#allocation3 + $0x68] sm:$0xff] %vm373, %v5211
    %5255 = vst.msk [vmem:[#allocation3 + $0x80] sm:$0xff] %vm373, %v5213
    %5256 = vst.msk [vmem:[#allocation3 + $0x98] sm:$0xff] %vm373, %v5215
    %5257 = vst.msk [vmem:[#allocation3 + $0xb0] sm:$0xff] %vm373, %v5217
    %5258 = vst.msk [vmem:[#allocation3 + $0xc8] sm:$0xff] %vm373, %v5219
    %5259 = vst.msk [vmem:[#allocation3 + $0xe0] sm:$0xff] %vm373, %v5221
    %5260 = vst.msk [vmem:[#allocation3 + $0xf8] sm:$0xff] %vm373, %v5223
    %5261 = vst.msk [vmem:[#allocation3 + $0x110] sm:$0xff] %vm373, %v5225
    %5262 = vst.msk [vmem:[#allocation3 + $0x128] sm:$0xff] %vm373, %v5227
    %5263 = vst.msk [vmem:[#allocation3 + $0x140] sm:$0xff] %vm373, %v5229
    %5264 = vst.msk [vmem:[#allocation3 + $0x158] sm:$0xff] %vm373, %v5231
    %5265 = vst.msk [vmem:[#allocation3 + $0x170] sm:$0xff] %vm373, %v5233
    %v5266 = vld [vmem:[%s615 + $0x1] sm:$0xff]
    %v5267 = vld [vmem:[%s615 + $0x11] sm:$0xff]
    %v5268 = vld [vmem:[%s615 + $0x21] sm:$0xff]
    %v5269 = vld [vmem:[%s615 + $0x31] sm:$0xff]
    %v5270 = vld [vmem:[%s615 + $0x41] sm:$0xff]
    %v5271 = vld [vmem:[%s615 + $0x51] sm:$0xff]
    %v5272 = vld [vmem:[%s615 + $0x61] sm:$0xff]
    %v5273 = vld [vmem:[%s615 + $0x71] sm:$0xff]
    %v5274 = vld [vmem:[%s615 + $0xa1] sm:$0xff]
    %v5275 = vld [vmem:[%s615 + $0xb1] sm:$0xff]
    %v5276 = vld [vmem:[%s615 + $0xc1] sm:$0xff]
    %v5277 = vld [vmem:[%s615 + $0xd1] sm:$0xff]
    %v5278 = vld [vmem:[%s615 + $0xe1] sm:$0xff]
    %v5279 = vld [vmem:[%s615 + $0xf1] sm:$0xff]
    %v5280 = vld [vmem:[%s615 + $0x101] sm:$0xff]
    %v5281 = vld [vmem:[%s615 + $0x111] sm:$0xff]
    %5298 = vrot.lane.b32.xlu0 %v5266, 96
    %v5299 = vpop.permute.xlu0 %5298
    %5300 = vrot.lane.b32.xlu0 %v5267, 96
    %v5301 = vpop.permute.xlu0 %5300
    %5302 = vrot.lane.b32.xlu0 %v5268, 96
    %v5303 = vpop.permute.xlu0 %5302
    %5304 = vrot.lane.b32.xlu0 %v5269, 96
    %v5305 = vpop.permute.xlu0 %5304
    %5306 = vrot.lane.b32.xlu0 %v5270, 96
    %v5307 = vpop.permute.xlu0 %5306
    %5308 = vrot.lane.b32.xlu0 %v5271, 96
    %v5309 = vpop.permute.xlu0 %5308
    %5310 = vrot.lane.b32.xlu0 %v5272, 96
    %v5311 = vpop.permute.xlu0 %5310
    %5312 = vrot.lane.b32.xlu0 %v5273, 96
    %v5313 = vpop.permute.xlu0 %5312
    %5314 = vrot.lane.b32.xlu0 %v5274, 96
    %v5315 = vpop.permute.xlu0 %5314
    %5316 = vrot.lane.b32.xlu0 %v5275, 96
    %v5317 = vpop.permute.xlu0 %5316
    %5318 = vrot.lane.b32.xlu0 %v5276, 96
    %v5319 = vpop.permute.xlu0 %5318
    %5320 = vrot.lane.b32.xlu0 %v5277, 96
    %v5321 = vpop.permute.xlu0 %5320
    %5322 = vrot.lane.b32.xlu0 %v5278, 96
    %v5323 = vpop.permute.xlu0 %5322
    %5324 = vrot.lane.b32.xlu0 %v5279, 96
    %v5325 = vpop.permute.xlu0 %5324
    %5326 = vrot.lane.b32.xlu0 %v5280, 96
    %v5327 = vpop.permute.xlu0 %5326
    %5328 = vrot.lane.b32.xlu0 %v5281, 96
    %v5329 = vpop.permute.xlu0 %5328
    %5346 = vst.msk [vmem:[#allocation3 + $0x8] sm:$0xff] %vm470, %v5299
    %5347 = vst.msk [vmem:[#allocation3 + $0x20] sm:$0xff] %vm470, %v5301
    %5348 = vst.msk [vmem:[#allocation3 + $0x38] sm:$0xff] %vm470, %v5303
    %5349 = vst.msk [vmem:[#allocation3 + $0x50] sm:$0xff] %vm470, %v5305
    %5350 = vst.msk [vmem:[#allocation3 + $0x68] sm:$0xff] %vm470, %v5307
    %5351 = vst.msk [vmem:[#allocation3 + $0x80] sm:$0xff] %vm470, %v5309
    %5352 = vst.msk [vmem:[#allocation3 + $0x98] sm:$0xff] %vm470, %v5311
    %5353 = vst.msk [vmem:[#allocation3 + $0xb0] sm:$0xff] %vm470, %v5313
    %5354 = vst.msk [vmem:[#allocation3 + $0xc8] sm:$0xff] %vm470, %v5315
    %5355 = vst.msk [vmem:[#allocation3 + $0xe0] sm:$0xff] %vm470, %v5317
    %5356 = vst.msk [vmem:[#allocation3 + $0xf8] sm:$0xff] %vm470, %v5319
    %5357 = vst.msk [vmem:[#allocation3 + $0x110] sm:$0xff] %vm470, %v5321
    %5358 = vst.msk [vmem:[#allocation3 + $0x128] sm:$0xff] %vm470, %v5323
    %5359 = vst.msk [vmem:[#allocation3 + $0x140] sm:$0xff] %vm470, %v5325
    %5360 = vst.msk [vmem:[#allocation3 + $0x158] sm:$0xff] %vm470, %v5327
    %5361 = vst.msk [vmem:[#allocation3 + $0x170] sm:$0xff] %vm470, %v5329
    %v5362 = vld [vmem:[%s615 + $0x2] sm:$0xff]
    %v5363 = vld [vmem:[%s615 + $0x12] sm:$0xff]
    %v5364 = vld [vmem:[%s615 + $0x22] sm:$0xff]
    %v5365 = vld [vmem:[%s615 + $0x32] sm:$0xff]
    %v5366 = vld [vmem:[%s615 + $0x42] sm:$0xff]
    %v5367 = vld [vmem:[%s615 + $0x52] sm:$0xff]
    %v5368 = vld [vmem:[%s615 + $0x62] sm:$0xff]
    %v5369 = vld [vmem:[%s615 + $0x72] sm:$0xff]
    %v5370 = vld [vmem:[%s615 + $0xa2] sm:$0xff]
    %v5371 = vld [vmem:[%s615 + $0xb2] sm:$0xff]
    %v5372 = vld [vmem:[%s615 + $0xc2] sm:$0xff]
    %v5373 = vld [vmem:[%s615 + $0xd2] sm:$0xff]
    %v5374 = vld [vmem:[%s615 + $0xe2] sm:$0xff]
    %v5375 = vld [vmem:[%s615 + $0xf2] sm:$0xff]
    %v5376 = vld [vmem:[%s615 + $0x102] sm:$0xff]
    %v5377 = vld [vmem:[%s615 + $0x112] sm:$0xff]
    %5378 = vst.msk [vmem:[#allocation3 + $0x10] sm:$0xff] %vm52, %v5362
    %5379 = vst.msk [vmem:[#allocation3 + $0x28] sm:$0xff] %vm52, %v5363
    %5380 = vst.msk [vmem:[#allocation3 + $0x40] sm:$0xff] %vm52, %v5364
    %5381 = vst.msk [vmem:[#allocation3 + $0x58] sm:$0xff] %vm52, %v5365
    %5382 = vst.msk [vmem:[#allocation3 + $0x70] sm:$0xff] %vm52, %v5366
    %5383 = vst.msk [vmem:[#allocation3 + $0x88] sm:$0xff] %vm52, %v5367
    %5384 = vst.msk [vmem:[#allocation3 + $0xa0] sm:$0xff] %vm52, %v5368
    %5385 = vst.msk [vmem:[#allocation3 + $0xb8] sm:$0xff] %vm52, %v5369
    %5386 = vst.msk [vmem:[#allocation3 + $0xd0] sm:$0xff] %vm52, %v5370
    %5387 = vst.msk [vmem:[#allocation3 + $0xe8] sm:$0xff] %vm52, %v5371
    %5388 = vst.msk [vmem:[#allocation3 + $0x100] sm:$0xff] %vm52, %v5372
    %5389 = vst.msk [vmem:[#allocation3 + $0x118] sm:$0xff] %vm52, %v5373
    %5390 = vst.msk [vmem:[#allocation3 + $0x130] sm:$0xff] %vm52, %v5374
    %5391 = vst.msk [vmem:[#allocation3 + $0x148] sm:$0xff] %vm52, %v5375
    %5392 = vst.msk [vmem:[#allocation3 + $0x160] sm:$0xff] %vm52, %v5376
    %5393 = vst.msk [vmem:[#allocation3 + $0x178] sm:$0xff] %vm52, %v5377
    %v5394 = vld [vmem:[#allocation3] sm:$0xff]
    %v5395 = vld [vmem:[#allocation3 + $0x8] sm:$0xff]
    %v5396 = vld [vmem:[#allocation3 + $0x10] sm:$0xff]
    %v5397 = vld [vmem:[#allocation3 + $0x18] sm:$0xff]
    %v5398 = vld [vmem:[#allocation3 + $0x20] sm:$0xff]
    %v5399 = vld [vmem:[#allocation3 + $0x28] sm:$0xff]
    %v5400 = vld [vmem:[#allocation3 + $0x30] sm:$0xff]
    %v5401 = vld [vmem:[#allocation3 + $0x38] sm:$0xff]
    %v5402 = vld [vmem:[#allocation3 + $0x40] sm:$0xff]
    %v5403 = vld [vmem:[#allocation3 + $0x48] sm:$0xff]
    %v5404 = vld [vmem:[#allocation3 + $0x50] sm:$0xff]
    %v5405 = vld [vmem:[#allocation3 + $0x58] sm:$0xff]
    %v5406 = vld [vmem:[#allocation3 + $0x60] sm:$0xff]
    %v5407 = vld [vmem:[#allocation3 + $0x68] sm:$0xff]
    %v5408 = vld [vmem:[#allocation3 + $0x70] sm:$0xff]
    %v5409 = vld [vmem:[#allocation3 + $0x78] sm:$0xff]
    %v5410 = vld [vmem:[#allocation3 + $0x80] sm:$0xff]
    %v5411 = vld [vmem:[#allocation3 + $0x88] sm:$0xff]
    %v5412 = vld [vmem:[#allocation3 + $0x90] sm:$0xff]
    %v5413 = vld [vmem:[#allocation3 + $0x98] sm:$0xff]
    %v5414 = vld [vmem:[#allocation3 + $0xa0] sm:$0xff]
    %v5415 = vld [vmem:[#allocation3 + $0xa8] sm:$0xff]
    %v5416 = vld [vmem:[#allocation3 + $0xb0] sm:$0xff]
    %v5417 = vld [vmem:[#allocation3 + $0xb8] sm:$0xff]
    %v5418 = vld [vmem:[#allocation3 + $0xc0] sm:$0xff]
    %v5419 = vld [vmem:[#allocation3 + $0xc8] sm:$0xff]
    %v5420 = vld [vmem:[#allocation3 + $0xd0] sm:$0xff]
    %v5421 = vld [vmem:[#allocation3 + $0xd8] sm:$0xff]
    %v5422 = vld [vmem:[#allocation3 + $0xe0] sm:$0xff]
    %v5423 = vld [vmem:[#allocation3 + $0xe8] sm:$0xff]
    %v5424 = vld [vmem:[#allocation3 + $0xf0] sm:$0xff]
    %v5425 = vld [vmem:[#allocation3 + $0xf8] sm:$0xff]
    %v5426 = vld [vmem:[#allocation3 + $0x100] sm:$0xff]
    %v5427 = vld [vmem:[#allocation3 + $0x108] sm:$0xff]
    %v5428 = vld [vmem:[#allocation3 + $0x110] sm:$0xff]
    %v5429 = vld [vmem:[#allocation3 + $0x118] sm:$0xff]
    %v5430 = vld [vmem:[#allocation3 + $0x120] sm:$0xff]
    %v5431 = vld [vmem:[#allocation3 + $0x128] sm:$0xff]
    %v5432 = vld [vmem:[#allocation3 + $0x130] sm:$0xff]
    %v5433 = vld [vmem:[#allocation3 + $0x138] sm:$0xff]
    %v5434 = vld [vmem:[#allocation3 + $0x140] sm:$0xff]
    %v5435 = vld [vmem:[#allocation3 + $0x148] sm:$0xff]
    %v5436 = vld [vmem:[#allocation3 + $0x150] sm:$0xff]
    %v5437 = vld [vmem:[#allocation3 + $0x158] sm:$0xff]
    %v5438 = vld [vmem:[#allocation3 + $0x160] sm:$0xff]
    %v5439 = vld [vmem:[#allocation3 + $0x168] sm:$0xff]
    %v5440 = vld [vmem:[#allocation3 + $0x170] sm:$0xff]
    %v5441 = vld [vmem:[#allocation3 + $0x178] sm:$0xff]
    %v5443 = vlaneseq
    %v5444 = vshrl.u32 %v5443, 7
    %v5445 = vsub.s32 0, %v5444
    %v5446 = vrot.slane %v4721, %v5445
    %v5449 = vsel %vm52, %v5396, 0
    %v5452 = vsel %vm52, %v5399, 0
    %v5455 = vsel %vm52, %v5402, 0
    %v5458 = vsel %vm52, %v5405, 0
    %v5461 = vsel %vm52, %v5408, 0
    %v5464 = vsel %vm52, %v5411, 0
    %v5467 = vsel %vm52, %v5414, 0
    %v5470 = vsel %vm52, %v5417, 0
    %v5473 = vsel %vm52, %v5420, 0
    %v5476 = vsel %vm52, %v5423, 0
    %v5479 = vsel %vm52, %v5426, 0
    %v5482 = vsel %vm52, %v5429, 0
    %v5485 = vsel %vm52, %v5432, 0
    %v5488 = vsel %vm52, %v5435, 0
    %v5491 = vsel %vm52, %v5438, 0
    %v5494 = vsel %vm52, %v5441, 0
    %5496 = vmatprep.subr.mxu0 0.0
    %5497 = vmatpush1.msra.mxu0 %v4684
    %5498 = vmatprep.subr.mxu0 0.0
    %5499 = vmatpush1.msra.mxu0 %v4685
    %5500 = vmatprep.subr.mxu0 0.0
    %5501 = vmatpush1.msra.mxu0 %v4686
    %5502 = vmatprep.subr.mxu0 0.0
    %5503 = vmatpush1.msra.mxu0 %v4687
    %5504 = vmatprep.subr.mxu0 0.0
    %5505 = vmatpush1.msra.mxu0 %v4688
    %5506 = vmatprep.subr.mxu0 0.0
    %5507 = vmatpush1.msra.mxu0 %v4689
    %5508 = vmatprep.subr.mxu0 0.0
    %5509 = vmatpush1.msra.mxu0 %v4690
    %5510 = vmatprep.subr.mxu0 0.0
    %5511 = vmatpush1.msra.mxu0 %v4691
    %5512 = vmatprep.subr.mxu0 0.0
    %5513 = vmatpush1.msra.mxu0 %v4692
    %5514 = vmatprep.subr.mxu0 0.0
    %5515 = vmatpush1.msra.mxu0 %v4693
    %5516 = vmatprep.subr.mxu0 0.0
    %5517 = vmatpush1.msra.mxu0 %v4694
    %5518 = vmatprep.subr.mxu0 0.0
    %5519 = vmatpush1.msra.mxu0 %v4695
    %5520 = vmatprep.subr.mxu0 0.0
    %5521 = vmatpush1.msra.mxu0 %v4696
    %5522 = vmatprep.subr.mxu0 0.0
    %5523 = vmatpush1.msra.mxu0 %v4697
    %5524 = vmatprep.subr.mxu0 0.0
    %5525 = vmatpush1.msra.mxu0 %v4698
    %5526 = vmatprep.subr.mxu0 0.0
    %5527 = vmatpush1.msra.mxu0 %v4699
    %5528 = vmatprep.subr.mxu0 0.0
    %5529 = vmatpush1.msra.mxu0 %v4700
    %5530 = vmatprep.subr.mxu0 0.0
    %5531 = vmatpush1.msra.mxu0 %v4701
    %5532 = vmatprep.subr.mxu0 0.0
    %5533 = vmatpush1.msra.mxu0 %v4702
    %5534 = vmatprep.subr.mxu0 0.0
    %5535 = vmatpush1.msra.mxu0 %v4703
    %5536 = vmatprep.subr.mxu0 0.0
    %5537 = vmatpush1.msra.mxu0 %v4704
    %5538 = vmatprep.subr.mxu0 0.0
    %5539 = vmatpush1.msra.mxu0 %v4705
    %5540 = vmatprep.subr.mxu0 0.0
    %5541 = vmatpush1.msra.mxu0 %v4706
    %5542 = vmatprep.subr.mxu0 0.0
    %5543 = vmatpush1.msra.mxu0 %v4707
    %5544 = vmatprep.subr.mxu0 0.0
    %5545 = vmatpush1.msra.mxu0 %v4708
    %5546 = vmatprep.subr.mxu0 0.0
    %5547 = vmatpush1.msra.mxu0 %v4709
    %5548 = vmatprep.subr.mxu0 0.0
    %5549 = vmatpush1.msra.mxu0 %v4710
    %5550 = vmatprep.subr.mxu0 0.0
    %5551 = vmatpush1.msra.mxu0 %v4711
    %5552 = vmatprep.subr.mxu0 0.0
    %5553 = vmatpush1.msra.mxu0 %v4712
    %5554 = vmatprep.subr.mxu0 0.0
    %5555 = vmatpush1.msra.mxu0 %v4713
    %5556 = vmatprep.subr.mxu0 0.0
    %5557 = vmatpush1.msra.mxu0 %v4714
    %5558 = vmatprep.subr.mxu0 0.0
    %5559 = vmatpush1.msra.mxu0 %v4715
    %5560 = vmatprep.mubr.f32.mxu0 %v5395
    %5561 = vmatmul.mubr.f32.gmra.mrb[0].mxu0 %v5394
    %v5562 = vpop.f32.mrb[0].mxu0
    %v5563 = vadd.f32 %v5446, %v5562
    %v5564 = vpop.f32.mrb[0].mxu0
    %5565 = vmatprep.mubr.f32.mxu0 %v5398
    %5566 = vmatmul.mubr.f32.gmra.mrb[0].mxu0 %v5397
    %v5567 = vpop.f32.mrb[0].mxu0
    %v5568 = vadd.f32 %v5446, %v5567
    %v5569 = vpop.f32.mrb[0].mxu0
    %5570 = vmatprep.mubr.f32.mxu0 %v5401
    %5571 = vmatmul.mubr.f32.gmra.mrb[0].mxu0 %v5400
    %v5572 = vpop.f32.mrb[0].mxu0
    %v5573 = vadd.f32 %v5446, %v5572
    %v5574 = vpop.f32.mrb[0].mxu0
    %5575 = vmatprep.mubr.f32.mxu0 %v5404
    %5576 = vmatmul.mubr.f32.gmra.mrb[0].mxu0 %v5403
    %v5577 = vpop.f32.mrb[0].mxu0
    %v5578 = vadd.f32 %v5446, %v5577
    %v5579 = vpop.f32.mrb[0].mxu0
    %5580 = vmatprep.mubr.f32.mxu0 %v5407
    %5581 = vmatmul.mubr.f32.gmra.mrb[0].mxu0 %v5406
    %v5582 = vpop.f32.mrb[0].mxu0
    %v5583 = vadd.f32 %v5446, %v5582
    %v5584 = vpop.f32.mrb[0].mxu0
    %5585 = vmatprep.mubr.f32.mxu0 %v5410
    %5586 = vmatmul.mubr.f32.gmra.mrb[0].mxu0 %v5409
    %v5587 = vpop.f32.mrb[0].mxu0
    %v5588 = vadd.f32 %v5446, %v5587
    %v5589 = vpop.f32.mrb[0].mxu0
    %5590 = vmatprep.mubr.f32.mxu0 %v5413
    %5591 = vmatmul.mubr.f32.gmra.mrb[0].mxu0 %v5412
    %v5592 = vpop.f32.mrb[0].mxu0
    %v5593 = vadd.f32 %v5446, %v5592
    %v5594 = vpop.f32.mrb[0].mxu0
    %5595 = vmatprep.mubr.f32.mxu0 %v5416
    %5596 = vmatmul.mubr.f32.gmra.mrb[0].mxu0 %v5415
    %v5597 = vpop.f32.mrb[0].mxu0
    %v5598 = vadd.f32 %v5446, %v5597
    %v5599 = vpop.f32.mrb[0].mxu0
    %5600 = vmatprep.mubr.f32.mxu0 %v5419
    %5601 = vmatmul.mubr.f32.gmra.mrb[0].mxu0 %v5418
    %v5602 = vpop.f32.mrb[0].mxu0
    %v5603 = vadd.f32 %v5446, %v5602
    %v5604 = vpop.f32.mrb[0].mxu0
    %5605 = vmatprep.mubr.f32.mxu0 %v5422
    %5606 = vmatmul.mubr.f32.gmra.mrb[0].mxu0 %v5421
    %v5607 = vpop.f32.mrb[0].mxu0
    %v5608 = vadd.f32 %v5446, %v5607
    %v5609 = vpop.f32.mrb[0].mxu0
    %5610 = vmatprep.mubr.f32.mxu0 %v5425
    %5611 = vmatmul.mubr.f32.gmra.mrb[0].mxu0 %v5424
    %v5612 = vpop.f32.mrb[0].mxu0
    %v5613 = vadd.f32 %v5446, %v5612
    %v5614 = vpop.f32.mrb[0].mxu0
    %5615 = vmatprep.mubr.f32.mxu0 %v5428
    %5616 = vmatmul.mubr.f32.gmra.mrb[0].mxu0 %v5427
    %v5617 = vpop.f32.mrb[0].mxu0
    %v5618 = vadd.f32 %v5446, %v5617
    %v5619 = vpop.f32.mrb[0].mxu0
    %5620 = vmatprep.mubr.f32.mxu0 %v5431
    %5621 = vmatmul.mubr.f32.gmra.mrb[0].mxu0 %v5430
    %v5622 = vpop.f32.mrb[0].mxu0
    %v5623 = vadd.f32 %v5446, %v5622
    %v5624 = vpop.f32.mrb[0].mxu0
    %5625 = vmatprep.mubr.f32.mxu0 %v5434
    %5626 = vmatmul.mubr.f32.gmra.mrb[0].mxu0 %v5433
    %v5627 = vpop.f32.mrb[0].mxu0
    %v5628 = vadd.f32 %v5446, %v5627
    %v5629 = vpop.f32.mrb[0].mxu0
    %5630 = vmatprep.mubr.f32.mxu0 %v5437
    %5631 = vmatmul.mubr.f32.gmra.mrb[0].mxu0 %v5436
    %v5632 = vpop.f32.mrb[0].mxu0
    %v5633 = vadd.f32 %v5446, %v5632
    %v5634 = vpop.f32.mrb[0].mxu0
    %5635 = vmatprep.mubr.f32.mxu0 %v5440
    %5636 = vmatmul.mubr.f32.gmra.mrb[0].mxu0 %v5439
    %v5637 = vpop.f32.mrb[0].mxu0
    %v5638 = vadd.f32 %v5446, %v5637
    %v5639 = vpop.f32.mrb[0].mxu0
    %5640 = vdwg.mxu0
    %5641 = vmatprep.subr.mxu0 0.0
    %5642 = vmatpush1.msra.mxu0 %v4716
    %5643 = vmatprep.subr.mxu0 0.0
    %5644 = vmatpush1.msra.mxu0 %v4717
    %5645 = vmatprep.subr.mxu0 0.0
    %5646 = vmatpush1.msra.mxu0 %v4718
    %5647 = vmatprep.subr.mxu0 0.0
    %5648 = vmatpush1.msra.mxu0 %v4719
    %5649 = vmatprep.subr.mxu0 0.0
    %5650 = vmatpush1.msra.mxu0 0.0
    %5651 = vmatprep.subr.mxu0 0.0
    %5652 = vmatpush1.msra.mxu0 0.0
    %5653 = vmatprep.subr.mxu0 0.0
    %5654 = vmatpush1.msra.mxu0 0.0
    %5655 = vmatprep.subr.mxu0 0.0
    %5656 = vmatpush1.msra.mxu0 0.0
    %5657 = vmatprep.subr.mxu0 0.0
    %5658 = vmatpush1.msra.mxu0 0.0
    %5659 = vmatprep.subr.mxu0 0.0
    %5660 = vmatpush1.msra.mxu0 0.0
    %5661 = vmatprep.subr.mxu0 0.0
    %5662 = vmatpush1.msra.mxu0 0.0
    %5663 = vmatprep.subr.mxu0 0.0
    %5664 = vmatpush1.msra.mxu0 0.0
    %5665 = vmatprep.subr.mxu0 0.0
    %5666 = vmatpush1.msra.mxu0 0.0
    %5667 = vmatprep.subr.mxu0 0.0
    %5668 = vmatpush1.msra.mxu0 0.0
    %5669 = vmatprep.subr.mxu0 0.0
    %5670 = vmatpush1.msra.mxu0 0.0
    %5671 = vmatprep.subr.mxu0 0.0
    %5672 = vmatpush1.msra.mxu0 0.0
    %5673 = vmatprep.subr.mxu0 0.0
    %5674 = vmatpush1.msra.mxu0 0.0
    %5675 = vmatprep.subr.mxu0 0.0
    %5676 = vmatpush1.msra.mxu0 0.0
    %5677 = vmatprep.subr.mxu0 0.0
    %5678 = vmatpush1.msra.mxu0 0.0
    %5679 = vmatprep.subr.mxu0 0.0
    %5680 = vmatpush1.msra.mxu0 0.0
    %5681 = vmatprep.subr.mxu0 0.0
    %5682 = vmatpush1.msra.mxu0 0.0
    %5683 = vmatprep.subr.mxu0 0.0
    %5684 = vmatpush1.msra.mxu0 0.0
    %5685 = vmatprep.subr.mxu0 0.0
    %5686 = vmatpush1.msra.mxu0 0.0
    %5687 = vmatprep.subr.mxu0 0.0
    %5688 = vmatpush1.msra.mxu0 0.0
    %5689 = vmatprep.subr.mxu0 0.0
    %5690 = vmatpush1.msra.mxu0 0.0
    %5691 = vmatprep.subr.mxu0 0.0
    %5692 = vmatpush1.msra.mxu0 0.0
    %5693 = vmatprep.subr.mxu0 0.0
    %5694 = vmatpush1.msra.mxu0 0.0
    %5695 = vmatprep.subr.mxu0 0.0
    %5696 = vmatpush1.msra.mxu0 0.0
    %5697 = vmatprep.subr.mxu0 0.0
    %5698 = vmatpush1.msra.mxu0 0.0
    %5699 = vmatprep.subr.mxu0 0.0
    %5700 = vmatpush1.msra.mxu0 0.0
    %5701 = vmatprep.subr.mxu0 0.0
    %5702 = vmatpush1.msra.mxu0 0.0
    %5703 = vmatprep.subr.mxu0 0.0
    %5704 = vmatpush1.msra.mxu0 0.0
    %5705 = vmatprep.mubr.f32.mxu0 0.0
    %5706 = vmatmul.mubr.f32.gmra.mrb[0].mxu0 %v5449
    %v5707 = vpop.f32.mrb[0].mxu0
    %v5708 = vadd.f32 %v5563, %v5707
    %v5709 = vpop.f32.mrb[0].mxu0
    %5710 = vmatprep.mubr.f32.mxu0 0.0
    %5711 = vmatmul.mubr.f32.gmra.mrb[0].mxu0 %v5452
    %v5712 = vpop.f32.mrb[0].mxu0
    %v5713 = vadd.f32 %v5568, %v5712
    %v5714 = vpop.f32.mrb[0].mxu0
    %5715 = vmatprep.mubr.f32.mxu0 0.0
    %5716 = vmatmul.mubr.f32.gmra.mrb[0].mxu0 %v5455
    %v5717 = vpop.f32.mrb[0].mxu0
    %v5718 = vadd.f32 %v5573, %v5717
    %v5719 = vpop.f32.mrb[0].mxu0
    %5720 = vmatprep.mubr.f32.mxu0 0.0
    %5721 = vmatmul.mubr.f32.gmra.mrb[0].mxu0 %v5458
    %v5722 = vpop.f32.mrb[0].mxu0
    %v5723 = vadd.f32 %v5578, %v5722
    %v5724 = vpop.f32.mrb[0].mxu0
    %5725 = vmatprep.mubr.f32.mxu0 0.0
    %5726 = vmatmul.mubr.f32.gmra.mrb[0].mxu0 %v5461
    %v5727 = vpop.f32.mrb[0].mxu0
    %v5728 = vadd.f32 %v5583, %v5727
    %v5729 = vpop.f32.mrb[0].mxu0
    %5730 = vmatprep.mubr.f32.mxu0 0.0
    %5731 = vmatmul.mubr.f32.gmra.mrb[0].mxu0 %v5464
    %v5732 = vpop.f32.mrb[0].mxu0
    %v5733 = vadd.f32 %v5588, %v5732
    %v5734 = vpop.f32.mrb[0].mxu0
    %5735 = vmatprep.mubr.f32.mxu0 0.0
    %5736 = vmatmul.mubr.f32.gmra.mrb[0].mxu0 %v5467
    %v5737 = vpop.f32.mrb[0].mxu0
    %v5738 = vadd.f32 %v5593, %v5737
    %v5739 = vpop.f32.mrb[0].mxu0
    %5740 = vmatprep.mubr.f32.mxu0 0.0
    %5741 = vmatmul.mubr.f32.gmra.mrb[0].mxu0 %v5470
    %v5742 = vpop.f32.mrb[0].mxu0
    %v5743 = vadd.f32 %v5598, %v5742
    %v5744 = vpop.f32.mrb[0].mxu0
    %5745 = vmatprep.mubr.f32.mxu0 0.0
    %5746 = vmatmul.mubr.f32.gmra.mrb[0].mxu0 %v5473
    %v5747 = vpop.f32.mrb[0].mxu0
    %v5748 = vadd.f32 %v5603, %v5747
    %v5749 = vpop.f32.mrb[0].mxu0
    %5750 = vmatprep.mubr.f32.mxu0 0.0
    %5751 = vmatmul.mubr.f32.gmra.mrb[0].mxu0 %v5476
    %v5752 = vpop.f32.mrb[0].mxu0
    %v5753 = vadd.f32 %v5608, %v5752
    %v5754 = vpop.f32.mrb[0].mxu0
    %5755 = vmatprep.mubr.f32.mxu0 0.0
    %5756 = vmatmul.mubr.f32.gmra.mrb[0].mxu0 %v5479
    %v5757 = vpop.f32.mrb[0].mxu0
    %v5758 = vadd.f32 %v5613, %v5757
    %v5759 = vpop.f32.mrb[0].mxu0
    %5760 = vmatprep.mubr.f32.mxu0 0.0
    %5761 = vmatmul.mubr.f32.gmra.mrb[0].mxu0 %v5482
    %v5762 = vpop.f32.mrb[0].mxu0
    %v5763 = vadd.f32 %v5618, %v5762
    %v5764 = vpop.f32.mrb[0].mxu0
    %5765 = vmatprep.mubr.f32.mxu0 0.0
    %5766 = vmatmul.mubr.f32.gmra.mrb[0].mxu0 %v5485
    %v5767 = vpop.f32.mrb[0].mxu0
    %v5768 = vadd.f32 %v5623, %v5767
    %v5769 = vpop.f32.mrb[0].mxu0
    %5770 = vmatprep.mubr.f32.mxu0 0.0
    %5771 = vmatmul.mubr.f32.gmra.mrb[0].mxu0 %v5488
    %v5772 = vpop.f32.mrb[0].mxu0
    %v5773 = vadd.f32 %v5628, %v5772
    %v5774 = vpop.f32.mrb[0].mxu0
    %5775 = vmatprep.mubr.f32.mxu0 0.0
    %5776 = vmatmul.mubr.f32.gmra.mrb[0].mxu0 %v5491
    %v5777 = vpop.f32.mrb[0].mxu0
    %v5778 = vadd.f32 %v5633, %v5777
    %v5779 = vpop.f32.mrb[0].mxu0
    %5780 = vmatprep.mubr.f32.mxu0 0.0
    %5781 = vmatmul.mubr.f32.gmra.mrb[0].mxu0 %v5494
    %v5782 = vpop.f32.mrb[0].mxu0
    %v5783 = vadd.f32 %v5638, %v5782
    %v5784 = vpop.f32.mrb[0].mxu0
    %5785 = vdwg.mxu0
    %v5786 = vadd.f32 %v5708, %v3516
    %v5787 = vadd.f32 %v5713, %v3517
    %v5788 = vadd.f32 %v5718, %v3518
    %v5789 = vadd.f32 %v5723, %v3519
    %v5790 = vadd.f32 %v5728, %v3520
    %v5791 = vadd.f32 %v5733, %v3521
    %v5792 = vadd.f32 %v5738, %v3522
    %v5793 = vadd.f32 %v5743, %v3523
    %v5794 = vadd.f32 %v5748, %v3524
    %v5795 = vadd.f32 %v5753, %v3525
    %v5796 = vadd.f32 %v5758, %v3526
    %v5797 = vadd.f32 %v5763, %v3527
    %v5798 = vadd.f32 %v5768, %v3528
    %v5799 = vadd.f32 %v5773, %v3529
    %v5800 = vadd.f32 %v5778, %v3530
    %v5801 = vadd.f32 %v5783, %v3531
    %v5802 = vmax.f32 %v5786, 0.0
    %v5803 = vmax.f32 %v5787, 0.0
    %v5804 = vmax.f32 %v5788, 0.0
    %v5805 = vmax.f32 %v5789, 0.0
    %v5806 = vmax.f32 %v5790, 0.0
    %v5807 = vmax.f32 %v5791, 0.0
    %v5808 = vmax.f32 %v5792, 0.0
    %v5809 = vmax.f32 %v5793, 0.0
    %v5810 = vmax.f32 %v5794, 0.0
    %v5811 = vmax.f32 %v5795, 0.0
    %v5812 = vmax.f32 %v5796, 0.0
    %v5813 = vmax.f32 %v5797, 0.0
    %v5814 = vmax.f32 %v5798, 0.0
    %v5815 = vmax.f32 %v5799, 0.0
    %v5816 = vmax.f32 %v5800, 0.0
    %v5817 = vmax.f32 %v5801, 0.0
    %v5818 = vld [vmem:[%s5] sm:$0x1]
    %v5819 = vld [vmem:[%s6] sm:$0x1]
    %v5820 = vlaneseq
    %v5821 = vshrl.u32 %v5820, 7
    %v5822 = vsub.s32 0, %v5821
    %v5823 = vrot.slane %v5818, %v5822
    %v5824 = vmul.f32 %v5802, %v5823
    %v5825 = vmul.f32 %v5803, %v5823
    %v5826 = vmul.f32 %v5804, %v5823
    %v5827 = vmul.f32 %v5805, %v5823
    %v5828 = vmul.f32 %v5806, %v5823
    %v5829 = vmul.f32 %v5807, %v5823
    %v5830 = vmul.f32 %v5808, %v5823
    %v5831 = vmul.f32 %v5809, %v5823
    %v5832 = vmul.f32 %v5810, %v5823
    %v5833 = vmul.f32 %v5811, %v5823
    %v5834 = vmul.f32 %v5812, %v5823
    %v5835 = vmul.f32 %v5813, %v5823
    %v5836 = vmul.f32 %v5814, %v5823
    %v5837 = vmul.f32 %v5815, %v5823
    %v5838 = vmul.f32 %v5816, %v5823
    %v5839 = vmul.f32 %v5817, %v5823
    %v5840 = vsel %vm52, %v5824, 0.0
    %5841 = vadd.xlane.f32.xlu0 %v5840
    %v5842 = vpop.xlane.xlu0 %5841
    %v5843 = vsel %vm52, %v5825, 0.0
    %5844 = vadd.xlane.f32.xlu0 %v5843
    %v5845 = vpop.xlane.xlu0 %5844
    %v5846 = vsel %vm52, %v5826, 0.0
    %5847 = vadd.xlane.f32.xlu0 %v5846
    %v5848 = vpop.xlane.xlu0 %5847
    %v5849 = vsel %vm52, %v5827, 0.0
    %5850 = vadd.xlane.f32.xlu0 %v5849
    %v5851 = vpop.xlane.xlu0 %5850
    %v5852 = vsel %vm52, %v5828, 0.0
    %5853 = vadd.xlane.f32.xlu0 %v5852
    %v5854 = vpop.xlane.xlu0 %5853
    %v5855 = vsel %vm52, %v5829, 0.0
    %5856 = vadd.xlane.f32.xlu0 %v5855
    %v5857 = vpop.xlane.xlu0 %5856
    %v5858 = vsel %vm52, %v5830, 0.0
    %5859 = vadd.xlane.f32.xlu0 %v5858
    %v5860 = vpop.xlane.xlu0 %5859
    %v5861 = vsel %vm52, %v5831, 0.0
    %5862 = vadd.xlane.f32.xlu0 %v5861
    %v5863 = vpop.xlane.xlu0 %5862
    %v5864 = vsel %vm52, %v5832, 0.0
    %5865 = vadd.xlane.f32.xlu0 %v5864
    %v5866 = vpop.xlane.xlu0 %5865
    %v5867 = vsel %vm52, %v5833, 0.0
    %5868 = vadd.xlane.f32.xlu0 %v5867
    %v5869 = vpop.xlane.xlu0 %5868
    %v5870 = vsel %vm52, %v5834, 0.0
    %5871 = vadd.xlane.f32.xlu0 %v5870
    %v5872 = vpop.xlane.xlu0 %5871
    %v5873 = vsel %vm52, %v5835, 0.0
    %5874 = vadd.xlane.f32.xlu0 %v5873
    %v5875 = vpop.xlane.xlu0 %5874
    %v5876 = vsel %vm52, %v5836, 0.0
    %5877 = vadd.xlane.f32.xlu0 %v5876
    %v5878 = vpop.xlane.xlu0 %5877
    %v5879 = vsel %vm52, %v5837, 0.0
    %5880 = vadd.xlane.f32.xlu0 %v5879
    %v5881 = vpop.xlane.xlu0 %5880
    %v5882 = vsel %vm52, %v5838, 0.0
    %5883 = vadd.xlane.f32.xlu0 %v5882
    %v5884 = vpop.xlane.xlu0 %5883
    %v5885 = vsel %vm52, %v5839, 0.0
    %5886 = vadd.xlane.f32.xlu0 %v5885
    %v5887 = vpop.xlane.xlu0 %5886
    %s5889 = vtos %v5819
    %v5890 = vstv %s5889
    %v5892 = vadd.f32 %v5842, %v5890
    %v5893 = vadd.f32 %v5845, %v5890
    %v5894 = vadd.f32 %v5848, %v5890
    %v5895 = vadd.f32 %v5851, %v5890
    %v5896 = vadd.f32 %v5854, %v5890
    %v5897 = vadd.f32 %v5857, %v5890
    %v5898 = vadd.f32 %v5860, %v5890
    %v5899 = vadd.f32 %v5863, %v5890
    %v5900 = vadd.f32 %v5866, %v5890
    %v5901 = vadd.f32 %v5869, %v5890
    %v5902 = vadd.f32 %v5872, %v5890
    %v5903 = vadd.f32 %v5875, %v5890
    %v5904 = vadd.f32 %v5878, %v5890
    %v5905 = vadd.f32 %v5881, %v5890
    %v5906 = vadd.f32 %v5884, %v5890
    %v5907 = vadd.f32 %v5887, %v5890
    %v5908 = vmax.f32 %v5892, 0.0
    %v5909 = vmax.f32 %v5893, 0.0
    %v5910 = vmax.f32 %v5894, 0.0
    %v5911 = vmax.f32 %v5895, 0.0
    %v5912 = vmax.f32 %v5896, 0.0
    %v5913 = vmax.f32 %v5897, 0.0
    %v5914 = vmax.f32 %v5898, 0.0
    %v5915 = vmax.f32 %v5899, 0.0
    %v5916 = vmax.f32 %v5900, 0.0
    %v5917 = vmax.f32 %v5901, 0.0
    %v5918 = vmax.f32 %v5902, 0.0
    %v5919 = vmax.f32 %v5903, 0.0
    %v5920 = vmax.f32 %v5904, 0.0
    %v5921 = vmax.f32 %v5905, 0.0
    %v5922 = vmax.f32 %v5906, 0.0
    %v5923 = vmax.f32 %v5907, 0.0
    %v5924 = vld [vmem:[%s5 + $0x1] sm:$0x1]
    %v5925 = vld [vmem:[%s6 + $0x1] sm:$0x1]
    %v5926 = vlaneseq
    %v5927 = vshrl.u32 %v5926, 7
    %v5928 = vsub.s32 0, %v5927
    %v5929 = vrot.slane %v5924, %v5928
    %v5930 = vmul.f32 %v5802, %v5929
    %v5931 = vmul.f32 %v5803, %v5929
    %v5932 = vmul.f32 %v5804, %v5929
    %v5933 = vmul.f32 %v5805, %v5929
    %v5934 = vmul.f32 %v5806, %v5929
    %v5935 = vmul.f32 %v5807, %v5929
    %v5936 = vmul.f32 %v5808, %v5929
    %v5937 = vmul.f32 %v5809, %v5929
    %v5938 = vmul.f32 %v5810, %v5929
    %v5939 = vmul.f32 %v5811, %v5929
    %v5940 = vmul.f32 %v5812, %v5929
    %v5941 = vmul.f32 %v5813, %v5929
    %v5942 = vmul.f32 %v5814, %v5929
    %v5943 = vmul.f32 %v5815, %v5929
    %v5944 = vmul.f32 %v5816, %v5929
    %v5945 = vmul.f32 %v5817, %v5929
    %v5946 = vsel %vm52, %v5930, 0.0
    %5947 = vadd.xlane.f32.xlu0 %v5946
    %v5948 = vpop.xlane.xlu0 %5947
    %v5949 = vsel %vm52, %v5931, 0.0
    %5950 = vadd.xlane.f32.xlu0 %v5949
    %v5951 = vpop.xlane.xlu0 %5950
    %v5952 = vsel %vm52, %v5932, 0.0
    %5953 = vadd.xlane.f32.xlu0 %v5952
    %v5954 = vpop.xlane.xlu0 %5953
    %v5955 = vsel %vm52, %v5933, 0.0
    %5956 = vadd.xlane.f32.xlu0 %v5955
    %v5957 = vpop.xlane.xlu0 %5956
    %v5958 = vsel %vm52, %v5934, 0.0
    %5959 = vadd.xlane.f32.xlu0 %v5958
    %v5960 = vpop.xlane.xlu0 %5959
    %v5961 = vsel %vm52, %v5935, 0.0
    %5962 = vadd.xlane.f32.xlu0 %v5961
    %v5963 = vpop.xlane.xlu0 %5962
    %v5964 = vsel %vm52, %v5936, 0.0
    %5965 = vadd.xlane.f32.xlu0 %v5964
    %v5966 = vpop.xlane.xlu0 %5965
    %v5967 = vsel %vm52, %v5937, 0.0
    %5968 = vadd.xlane.f32.xlu0 %v5967
    %v5969 = vpop.xlane.xlu0 %5968
    %v5970 = vsel %vm52, %v5938, 0.0
    %5971 = vadd.xlane.f32.xlu0 %v5970
    %v5972 = vpop.xlane.xlu0 %5971
    %v5973 = vsel %vm52, %v5939, 0.0
    %5974 = vadd.xlane.f32.xlu0 %v5973
    %v5975 = vpop.xlane.xlu0 %5974
    %v5976 = vsel %vm52, %v5940, 0.0
    %5977 = vadd.xlane.f32.xlu0 %v5976
    %v5978 = vpop.xlane.xlu0 %5977
    %v5979 = vsel %vm52, %v5941, 0.0
    %5980 = vadd.xlane.f32.xlu0 %v5979
    %v5981 = vpop.xlane.xlu0 %5980
    %v5982 = vsel %vm52, %v5942, 0.0
    %5983 = vadd.xlane.f32.xlu0 %v5982
    %v5984 = vpop.xlane.xlu0 %5983
    %v5985 = vsel %vm52, %v5943, 0.0
    %5986 = vadd.xlane.f32.xlu0 %v5985
    %v5987 = vpop.xlane.xlu0 %5986
    %v5988 = vsel %vm52, %v5944, 0.0
    %5989 = vadd.xlane.f32.xlu0 %v5988
    %v5990 = vpop.xlane.xlu0 %5989
    %v5991 = vsel %vm52, %v5945, 0.0
    %5992 = vadd.xlane.f32.xlu0 %v5991
    %v5993 = vpop.xlane.xlu0 %5992
    %s5995 = vtos %v5925
    %v5996 = vstv %s5995
    %v5998 = vadd.f32 %v5948, %v5996
    %v5999 = vadd.f32 %v5951, %v5996
    %v6000 = vadd.f32 %v5954, %v5996
    %v6001 = vadd.f32 %v5957, %v5996
    %v6002 = vadd.f32 %v5960, %v5996
    %v6003 = vadd.f32 %v5963, %v5996
    %v6004 = vadd.f32 %v5966, %v5996
    %v6005 = vadd.f32 %v5969, %v5996
    %v6006 = vadd.f32 %v5972, %v5996
    %v6007 = vadd.f32 %v5975, %v5996
    %v6008 = vadd.f32 %v5978, %v5996
    %v6009 = vadd.f32 %v5981, %v5996
    %v6010 = vadd.f32 %v5984, %v5996
    %v6011 = vadd.f32 %v5987, %v5996
    %v6012 = vadd.f32 %v5990, %v5996
    %v6013 = vadd.f32 %v5993, %v5996
    %v6014 = vmax.f32 %v5998, 0.0
    %v6015 = vmax.f32 %v5999, 0.0
    %v6016 = vmax.f32 %v6000, 0.0
    %v6017 = vmax.f32 %v6001, 0.0
    %v6018 = vmax.f32 %v6002, 0.0
    %v6019 = vmax.f32 %v6003, 0.0
    %v6020 = vmax.f32 %v6004, 0.0
    %v6021 = vmax.f32 %v6005, 0.0
    %v6022 = vmax.f32 %v6006, 0.0
    %v6023 = vmax.f32 %v6007, 0.0
    %v6024 = vmax.f32 %v6008, 0.0
    %v6025 = vmax.f32 %v6009, 0.0
    %v6026 = vmax.f32 %v6010, 0.0
    %v6027 = vmax.f32 %v6011, 0.0
    %v6028 = vmax.f32 %v6012, 0.0
    %v6029 = vmax.f32 %v6013, 0.0
    %v6030 = vld [vmem:[%s5 + $0x2] sm:$0x1]
    %v6031 = vld [vmem:[%s6 + $0x2] sm:$0x1]
    %v6032 = vlaneseq
    %v6033 = vshrl.u32 %v6032, 7
    %v6034 = vsub.s32 0, %v6033
    %v6035 = vrot.slane %v6030, %v6034
    %v6036 = vmul.f32 %v5802, %v6035
    %v6037 = vmul.f32 %v5803, %v6035
    %v6038 = vmul.f32 %v5804, %v6035
    %v6039 = vmul.f32 %v5805, %v6035
    %v6040 = vmul.f32 %v5806, %v6035
    %v6041 = vmul.f32 %v5807, %v6035
    %v6042 = vmul.f32 %v5808, %v6035
    %v6043 = vmul.f32 %v5809, %v6035
    %v6044 = vmul.f32 %v5810, %v6035
    %v6045 = vmul.f32 %v5811, %v6035
    %v6046 = vmul.f32 %v5812, %v6035
    %v6047 = vmul.f32 %v5813, %v6035
    %v6048 = vmul.f32 %v5814, %v6035
    %v6049 = vmul.f32 %v5815, %v6035
    %v6050 = vmul.f32 %v5816, %v6035
    %v6051 = vmul.f32 %v5817, %v6035
    %v6052 = vsel %vm52, %v6036, 0.0
    %6053 = vadd.xlane.f32.xlu0 %v6052
    %v6054 = vpop.xlane.xlu0 %6053
    %v6055 = vsel %vm52, %v6037, 0.0
    %6056 = vadd.xlane.f32.xlu0 %v6055
    %v6057 = vpop.xlane.xlu0 %6056
    %v6058 = vsel %vm52, %v6038, 0.0
    %6059 = vadd.xlane.f32.xlu0 %v6058
    %v6060 = vpop.xlane.xlu0 %6059
    %v6061 = vsel %vm52, %v6039, 0.0
    %6062 = vadd.xlane.f32.xlu0 %v6061
    %v6063 = vpop.xlane.xlu0 %6062
    %v6064 = vsel %vm52, %v6040, 0.0
    %6065 = vadd.xlane.f32.xlu0 %v6064
    %v6066 = vpop.xlane.xlu0 %6065
    %v6067 = vsel %vm52, %v6041, 0.0
    %6068 = vadd.xlane.f32.xlu0 %v6067
    %v6069 = vpop.xlane.xlu0 %6068
    %v6070 = vsel %vm52, %v6042, 0.0
    %6071 = vadd.xlane.f32.xlu0 %v6070
    %v6072 = vpop.xlane.xlu0 %6071
    %v6073 = vsel %vm52, %v6043, 0.0
    %6074 = vadd.xlane.f32.xlu0 %v6073
    %v6075 = vpop.xlane.xlu0 %6074
    %v6076 = vsel %vm52, %v6044, 0.0
    %6077 = vadd.xlane.f32.xlu0 %v6076
    %v6078 = vpop.xlane.xlu0 %6077
    %v6079 = vsel %vm52, %v6045, 0.0
    %6080 = vadd.xlane.f32.xlu0 %v6079
    %v6081 = vpop.xlane.xlu0 %6080
    %v6082 = vsel %vm52, %v6046, 0.0
    %6083 = vadd.xlane.f32.xlu0 %v6082
    %v6084 = vpop.xlane.xlu0 %6083
    %v6085 = vsel %vm52, %v6047, 0.0
    %6086 = vadd.xlane.f32.xlu0 %v6085
    %v6087 = vpop.xlane.xlu0 %6086
    %v6088 = vsel %vm52, %v6048, 0.0
    %6089 = vadd.xlane.f32.xlu0 %v6088
    %v6090 = vpop.xlane.xlu0 %6089
    %v6091 = vsel %vm52, %v6049, 0.0
    %6092 = vadd.xlane.f32.xlu0 %v6091
    %v6093 = vpop.xlane.xlu0 %6092
    %v6094 = vsel %vm52, %v6050, 0.0
    %6095 = vadd.xlane.f32.xlu0 %v6094
    %v6096 = vpop.xlane.xlu0 %6095
    %v6097 = vsel %vm52, %v6051, 0.0
    %6098 = vadd.xlane.f32.xlu0 %v6097
    %v6099 = vpop.xlane.xlu0 %6098
    %s6101 = vtos %v6031
    %v6102 = vstv %s6101
    %v6104 = vadd.f32 %v6054, %v6102
    %v6105 = vadd.f32 %v6057, %v6102
    %v6106 = vadd.f32 %v6060, %v6102
    %v6107 = vadd.f32 %v6063, %v6102
    %v6108 = vadd.f32 %v6066, %v6102
    %v6109 = vadd.f32 %v6069, %v6102
    %v6110 = vadd.f32 %v6072, %v6102
    %v6111 = vadd.f32 %v6075, %v6102
    %v6112 = vadd.f32 %v6078, %v6102
    %v6113 = vadd.f32 %v6081, %v6102
    %v6114 = vadd.f32 %v6084, %v6102
    %v6115 = vadd.f32 %v6087, %v6102
    %v6116 = vadd.f32 %v6090, %v6102
    %v6117 = vadd.f32 %v6093, %v6102
    %v6118 = vadd.f32 %v6096, %v6102
    %v6119 = vadd.f32 %v6099, %v6102
    %v6120 = vmax.f32 %v6104, 0.0
    %v6121 = vmax.f32 %v6105, 0.0
    %v6122 = vmax.f32 %v6106, 0.0
    %v6123 = vmax.f32 %v6107, 0.0
    %v6124 = vmax.f32 %v6108, 0.0
    %v6125 = vmax.f32 %v6109, 0.0
    %v6126 = vmax.f32 %v6110, 0.0
    %v6127 = vmax.f32 %v6111, 0.0
    %v6128 = vmax.f32 %v6112, 0.0
    %v6129 = vmax.f32 %v6113, 0.0
    %v6130 = vmax.f32 %v6114, 0.0
    %v6131 = vmax.f32 %v6115, 0.0
    %v6132 = vmax.f32 %v6116, 0.0
    %v6133 = vmax.f32 %v6117, 0.0
    %v6134 = vmax.f32 %v6118, 0.0
    %v6135 = vmax.f32 %v6119, 0.0
    %v6136 = vld [vmem:[%s7] sm:$0xff]
    %v6137 = vld [vmem:[%s7 + $0x8] sm:$0xff]
    %v6138 = vld [vmem:[%s7 + $0x10] sm:$0xff]
    %v6139 = vld [vmem:[%s7 + $0x18] sm:$0xff]
    %v6140 = vld [vmem:[%s7 + $0x20] sm:$0xff]
    %v6141 = vld [vmem:[%s7 + $0x28] sm:$0xff]
    %v6142 = vld [vmem:[%s7 + $0x30] sm:$0xff]
    %v6143 = vld [vmem:[%s7 + $0x38] sm:$0xff]
    %v6144 = vld [vmem:[%s8] sm:$0xff]
    %v6145 = vld [vmem:[%s8 + $0x8] sm:$0xff]
    %v6146 = vld [vmem:[%s8 + $0x10] sm:$0xff]
    %v6147 = vld [vmem:[%s8 + $0x18] sm:$0xff]
    %v6148 = vld [vmem:[%s8 + $0x20] sm:$0xff]
    %v6149 = vld [vmem:[%s8 + $0x28] sm:$0xff]
    %v6150 = vld [vmem:[%s8 + $0x30] sm:$0xff]
    %v6151 = vld [vmem:[%s8 + $0x38] sm:$0xff]
    %v6168 = vlaneseq
    %v6169 = vand.u32 %v6168, 127
    %v6170 = vlaneseq
    %v6171 = vshrl.u32 %v6170, 7
    %v6172 = vsub.s32 %v6169, %v6171
    %v6173 = vrot.slane %v6014, %v6172
    %v6174 = vadd.s32 %v6169, 4294967288
    %v6175 = vlaneseq
    %v6176 = vshrl.u32 %v6175, 7
    %v6177 = vsub.s32 %v6174, %v6176
    %v6178 = vrot.slane %v6015, %v6177
    %vm6179 = vcmask 130112
    %v6180 = vsel %vm6179, %v6178, %v6173
    %v6181 = vadd.s32 %v6169, 4294967280
    %v6182 = vlaneseq
    %v6183 = vshrl.u32 %v6182, 7
    %v6184 = vsub.s32 %v6181, %v6183
    %v6185 = vrot.slane %v6016, %v6184
    %vm6186 = vcmask 195712
    %v6187 = vsel %vm6186, %v6185, %v6180
    %v6188 = vadd.s32 %v6169, 4294967272
    %v6189 = vlaneseq
    %v6190 = vshrl.u32 %v6189, 7
    %v6191 = vsub.s32 %v6188, %v6190
    %v6192 = vrot.slane %v6017, %v6191
    %vm6193 = vcmask 261312
    %v6194 = vsel %vm6193, %v6192, %v6187
    %v6195 = vadd.s32 %v6169, 4294967264
    %v6196 = vlaneseq
    %v6197 = vshrl.u32 %v6196, 7
    %v6198 = vsub.s32 %v6195, %v6197
    %v6199 = vrot.slane %v6018, %v6198
    %vm6200 = vcmask 326912
    %v6201 = vsel %vm6200, %v6199, %v6194
    %v6202 = vadd.s32 %v6169, 4294967256
    %v6203 = vlaneseq
    %v6204 = vshrl.u32 %v6203, 7
    %v6205 = vsub.s32 %v6202, %v6204
    %v6206 = vrot.slane %v6019, %v6205
    %vm6207 = vcmask 392512
    %v6208 = vsel %vm6207, %v6206, %v6201
    %v6209 = vadd.s32 %v6169, 4294967248
    %v6210 = vlaneseq
    %v6211 = vshrl.u32 %v6210, 7
    %v6212 = vsub.s32 %v6209, %v6211
    %v6213 = vrot.slane %v6020, %v6212
    %vm6214 = vcmask 458112
    %v6215 = vsel %vm6214, %v6213, %v6208
    %v6216 = vadd.s32 %v6169, 4294967240
    %v6217 = vlaneseq
    %v6218 = vshrl.u32 %v6217, 7
    %v6219 = vsub.s32 %v6216, %v6218
    %v6220 = vrot.slane %v6021, %v6219
    %vm6221 = vcmask 523712
    %v6222 = vsel %vm6221, %v6220, %v6215
    %v6223 = vlaneseq
    %v6224 = vshrl.u32 %v6223, 7
    %v6225 = vsub.s32 %v6169, %v6224
    %v6226 = vrot.slane %v6022, %v6225
    %v6227 = vlaneseq
    %v6228 = vshrl.u32 %v6227, 7
    %v6229 = vsub.s32 %v6174, %v6228
    %v6230 = vrot.slane %v6023, %v6229
    %v6231 = vsel %vm6179, %v6230, %v6226
    %v6232 = vlaneseq
    %v6233 = vshrl.u32 %v6232, 7
    %v6234 = vsub.s32 %v6181, %v6233
    %v6235 = vrot.slane %v6024, %v6234
    %v6236 = vsel %vm6186, %v6235, %v6231
    %v6237 = vlaneseq
    %v6238 = vshrl.u32 %v6237, 7
    %v6239 = vsub.s32 %v6188, %v6238
    %v6240 = vrot.slane %v6025, %v6239
    %v6241 = vsel %vm6193, %v6240, %v6236
    %v6242 = vlaneseq
    %v6243 = vshrl.u32 %v6242, 7
    %v6244 = vsub.s32 %v6195, %v6243
    %v6245 = vrot.slane %v6026, %v6244
    %v6246 = vsel %vm6200, %v6245, %v6241
    %v6247 = vlaneseq
    %v6248 = vshrl.u32 %v6247, 7
    %v6249 = vsub.s32 %v6202, %v6248
    %v6250 = vrot.slane %v6027, %v6249
    %v6251 = vsel %vm6207, %v6250, %v6246
    %v6252 = vlaneseq
    %v6253 = vshrl.u32 %v6252, 7
    %v6254 = vsub.s32 %v6209, %v6253
    %v6255 = vrot.slane %v6028, %v6254
    %v6256 = vsel %vm6214, %v6255, %v6251
    %v6257 = vlaneseq
    %v6258 = vshrl.u32 %v6257, 7
    %v6259 = vsub.s32 %v6216, %v6258
    %v6260 = vrot.slane %v6029, %v6259
    %v6261 = vsel %vm6221, %v6260, %v6256
    %vm6262 = vcmask 1041409
    %v6263 = vsel %vm6262, %v6261, %v6222
    %vm6264 = vcmask 523264
    %v6265 = vsel %vm6264, %v6263, 0
    %6267 = vmatprep.subr.mxu0 0.0
    %6268 = vmatpush1.msra.mxu0 %v6144
    %6269 = vmatprep.subr.mxu0 0.0
    %6270 = vmatpush1.msra.mxu0 %v6145
    %6271 = vmatprep.subr.mxu0 0.0
    %6272 = vmatpush1.msra.mxu0 %v6146
    %6273 = vmatprep.subr.mxu0 0.0
    %6274 = vmatpush1.msra.mxu0 %v6147
    %6275 = vmatprep.subr.mxu0 0.0
    %6276 = vmatpush1.msra.mxu0 %v6148
    %6277 = vmatprep.subr.mxu0 0.0
    %6278 = vmatpush1.msra.mxu0 %v6149
    %6279 = vmatprep.subr.mxu0 0.0
    %6280 = vmatpush1.msra.mxu0 %v6150
    %6281 = vmatprep.subr.mxu0 0.0
    %6282 = vmatpush1.msra.mxu0 %v6151
    %6283 = vmatprep.subr.mxu0 0.0
    %6284 = vmatpush1.msra.mxu0 0.0
    %6285 = vmatprep.subr.mxu0 0.0
    %6286 = vmatpush1.msra.mxu0 0.0
    %6287 = vmatprep.subr.mxu0 0.0
    %6288 = vmatpush1.msra.mxu0 0.0
    %6289 = vmatprep.subr.mxu0 0.0
    %6290 = vmatpush1.msra.mxu0 0.0
    %6291 = vmatprep.subr.mxu0 0.0
    %6292 = vmatpush1.msra.mxu0 0.0
    %6293 = vmatprep.subr.mxu0 0.0
    %6294 = vmatpush1.msra.mxu0 0.0
    %6295 = vmatprep.subr.mxu0 0.0
    %6296 = vmatpush1.msra.mxu0 0.0
    %6297 = vmatprep.subr.mxu0 0.0
    %6298 = vmatpush1.msra.mxu0 0.0
    %6299 = vmatprep.subr.mxu0 0.0
    %6300 = vmatpush1.msra.mxu0 0.0
    %6301 = vmatprep.subr.mxu0 0.0
    %6302 = vmatpush1.msra.mxu0 0.0
    %6303 = vmatprep.subr.mxu0 0.0
    %6304 = vmatpush1.msra.mxu0 0.0
    %6305 = vmatprep.subr.mxu0 0.0
    %6306 = vmatpush1.msra.mxu0 0.0
    %6307 = vmatprep.subr.mxu0 0.0
    %6308 = vmatpush1.msra.mxu0 0.0
    %6309 = vmatprep.subr.mxu0 0.0
    %6310 = vmatpush1.msra.mxu0 0.0
    %6311 = vmatprep.subr.mxu0 0.0
    %6312 = vmatpush1.msra.mxu0 0.0
    %6313 = vmatprep.subr.mxu0 0.0
    %6314 = vmatpush1.msra.mxu0 0.0
    %6315 = vmatprep.subr.mxu0 0.0
    %6316 = vmatpush1.msra.mxu0 0.0
    %6317 = vmatprep.subr.mxu0 0.0
    %6318 = vmatpush1.msra.mxu0 0.0
    %6319 = vmatprep.subr.mxu0 0.0
    %6320 = vmatpush1.msra.mxu0 0.0
    %6321 = vmatprep.subr.mxu0 0.0
    %6322 = vmatpush1.msra.mxu0 0.0
    %6323 = vmatprep.subr.mxu0 0.0
    %6324 = vmatpush1.msra.mxu0 0.0
    %6325 = vmatprep.subr.mxu0 0.0
    %6326 = vmatpush1.msra.mxu0 0.0
    %6327 = vmatprep.subr.mxu0 0.0
    %6328 = vmatpush1.msra.mxu0 0.0
    %6329 = vmatprep.subr.mxu0 0.0
    %6330 = vmatpush1.msra.mxu0 0.0
    %6331 = vmatprep.mubr.f32.mxu0 0.0
    %6332 = vmatmul.mubr.f32.gmra.mrb[0].mxu0 %v6265
    %v6333 = vpop.f32.mrb[0].mxu0
    %v6334 = vadd.f32 0.0, %v6333
    %v6335 = vpop.f32.mrb[0].mxu0
    %6336 = vdwg.mxu0
    %v6353 = vlaneseq
    %v6354 = vshrl.u32 %v6353, 7
    %v6355 = vsub.s32 %v6169, %v6354
    %v6356 = vrot.slane %v5908, %v6355
    %v6357 = vlaneseq
    %v6358 = vshrl.u32 %v6357, 7
    %v6359 = vsub.s32 %v6174, %v6358
    %v6360 = vrot.slane %v5909, %v6359
    %v6361 = vsel %vm6179, %v6360, %v6356
    %v6362 = vlaneseq
    %v6363 = vshrl.u32 %v6362, 7
    %v6364 = vsub.s32 %v6181, %v6363
    %v6365 = vrot.slane %v5910, %v6364
    %v6366 = vsel %vm6186, %v6365, %v6361
    %v6367 = vlaneseq
    %v6368 = vshrl.u32 %v6367, 7
    %v6369 = vsub.s32 %v6188, %v6368
    %v6370 = vrot.slane %v5911, %v6369
    %v6371 = vsel %vm6193, %v6370, %v6366
    %v6372 = vlaneseq
    %v6373 = vshrl.u32 %v6372, 7
    %v6374 = vsub.s32 %v6195, %v6373
    %v6375 = vrot.slane %v5912, %v6374
    %v6376 = vsel %vm6200, %v6375, %v6371
    %v6377 = vlaneseq
    %v6378 = vshrl.u32 %v6377, 7
    %v6379 = vsub.s32 %v6202, %v6378
    %v6380 = vrot.slane %v5913, %v6379
    %v6381 = vsel %vm6207, %v6380, %v6376
    %v6382 = vlaneseq
    %v6383 = vshrl.u32 %v6382, 7
    %v6384 = vsub.s32 %v6209, %v6383
    %v6385 = vrot.slane %v5914, %v6384
    %v6386 = vsel %vm6214, %v6385, %v6381
    %v6387 = vlaneseq
    %v6388 = vshrl.u32 %v6387, 7
    %v6389 = vsub.s32 %v6216, %v6388
    %v6390 = vrot.slane %v5915, %v6389
    %v6391 = vsel %vm6221, %v6390, %v6386
    %v6392 = vlaneseq
    %v6393 = vshrl.u32 %v6392, 7
    %v6394 = vsub.s32 %v6169, %v6393
    %v6395 = vrot.slane %v5916, %v6394
    %v6396 = vlaneseq
    %v6397 = vshrl.u32 %v6396, 7
    %v6398 = vsub.s32 %v6174, %v6397
    %v6399 = vrot.slane %v5917, %v6398
    %v6400 = vsel %vm6179, %v6399, %v6395
    %v6401 = vlaneseq
    %v6402 = vshrl.u32 %v6401, 7
    %v6403 = vsub.s32 %v6181, %v6402
    %v6404 = vrot.slane %v5918, %v6403
    %v6405 = vsel %vm6186, %v6404, %v6400
    %v6406 = vlaneseq
    %v6407 = vshrl.u32 %v6406, 7
    %v6408 = vsub.s32 %v6188, %v6407
    %v6409 = vrot.slane %v5919, %v6408
    %v6410 = vsel %vm6193, %v6409, %v6405
    %v6411 = vlaneseq
    %v6412 = vshrl.u32 %v6411, 7
    %v6413 = vsub.s32 %v6195, %v6412
    %v6414 = vrot.slane %v5920, %v6413
    %v6415 = vsel %vm6200, %v6414, %v6410
    %v6416 = vlaneseq
    %v6417 = vshrl.u32 %v6416, 7
    %v6418 = vsub.s32 %v6202, %v6417
    %v6419 = vrot.slane %v5921, %v6418
    %v6420 = vsel %vm6207, %v6419, %v6415
    %v6421 = vlaneseq
    %v6422 = vshrl.u32 %v6421, 7
    %v6423 = vsub.s32 %v6209, %v6422
    %v6424 = vrot.slane %v5922, %v6423
    %v6425 = vsel %vm6214, %v6424, %v6420
    %v6426 = vlaneseq
    %v6427 = vshrl.u32 %v6426, 7
    %v6428 = vsub.s32 %v6216, %v6427
    %v6429 = vrot.slane %v5923, %v6428
    %v6430 = vsel %vm6221, %v6429, %v6425
    %v6431 = vsel %vm6262, %v6430, %v6391
    %v6432 = vsel %vm6264, %v6431, 0
    %6434 = vmatprep.subr.mxu0 0.0
    %6435 = vmatpush1.msra.mxu0 %v6136
    %6436 = vmatprep.subr.mxu0 0.0
    %6437 = vmatpush1.msra.mxu0 %v6137
    %6438 = vmatprep.subr.mxu0 0.0
    %6439 = vmatpush1.msra.mxu0 %v6138
    %6440 = vmatprep.subr.mxu0 0.0
    %6441 = vmatpush1.msra.mxu0 %v6139
    %6442 = vmatprep.subr.mxu0 0.0
    %6443 = vmatpush1.msra.mxu0 %v6140
    %6444 = vmatprep.subr.mxu0 0.0
    %6445 = vmatpush1.msra.mxu0 %v6141
    %6446 = vmatprep.subr.mxu0 0.0
    %6447 = vmatpush1.msra.mxu0 %v6142
    %6448 = vmatprep.subr.mxu0 0.0
    %6449 = vmatpush1.msra.mxu0 %v6143
    %6450 = vmatprep.subr.mxu0 0.0
    %6451 = vmatpush1.msra.mxu0 0.0
    %6452 = vmatprep.subr.mxu0 0.0
    %6453 = vmatpush1.msra.mxu0 0.0
    %6454 = vmatprep.subr.mxu0 0.0
    %6455 = vmatpush1.msra.mxu0 0.0
    %6456 = vmatprep.subr.mxu0 0.0
    %6457 = vmatpush1.msra.mxu0 0.0
    %6458 = vmatprep.subr.mxu0 0.0
    %6459 = vmatpush1.msra.mxu0 0.0
    %6460 = vmatprep.subr.mxu0 0.0
    %6461 = vmatpush1.msra.mxu0 0.0
    %6462 = vmatprep.subr.mxu0 0.0
    %6463 = vmatpush1.msra.mxu0 0.0
    %6464 = vmatprep.subr.mxu0 0.0
    %6465 = vmatpush1.msra.mxu0 0.0
    %6466 = vmatprep.subr.mxu0 0.0
    %6467 = vmatpush1.msra.mxu0 0.0
    %6468 = vmatprep.subr.mxu0 0.0
    %6469 = vmatpush1.msra.mxu0 0.0
    %6470 = vmatprep.subr.mxu0 0.0
    %6471 = vmatpush1.msra.mxu0 0.0
    %6472 = vmatprep.subr.mxu0 0.0
    %6473 = vmatpush1.msra.mxu0 0.0
    %6474 = vmatprep.subr.mxu0 0.0
    %6475 = vmatpush1.msra.mxu0 0.0
    %6476 = vmatprep.subr.mxu0 0.0
    %6477 = vmatpush1.msra.mxu0 0.0
    %6478 = vmatprep.subr.mxu0 0.0
    %6479 = vmatpush1.msra.mxu0 0.0
    %6480 = vmatprep.subr.mxu0 0.0
    %6481 = vmatpush1.msra.mxu0 0.0
    %6482 = vmatprep.subr.mxu0 0.0
    %6483 = vmatpush1.msra.mxu0 0.0
    %6484 = vmatprep.subr.mxu0 0.0
    %6485 = vmatpush1.msra.mxu0 0.0
    %6486 = vmatprep.subr.mxu0 0.0
    %6487 = vmatpush1.msra.mxu0 0.0
    %6488 = vmatprep.subr.mxu0 0.0
    %6489 = vmatpush1.msra.mxu0 0.0
    %6490 = vmatprep.subr.mxu0 0.0
    %6491 = vmatpush1.msra.mxu0 0.0
    %6492 = vmatprep.subr.mxu0 0.0
    %6493 = vmatpush1.msra.mxu0 0.0
    %6494 = vmatprep.subr.mxu0 0.0
    %6495 = vmatpush1.msra.mxu0 0.0
    %6496 = vmatprep.subr.mxu0 0.0
    %6497 = vmatpush1.msra.mxu0 0.0
    %6498 = vmatprep.mubr.f32.mxu0 0.0
    %6499 = vmatmul.mubr.f32.gmra.mrb[0].mxu0 %v6432
    %v6500 = vpop.f32.mrb[0].mxu0
    %v6501 = vadd.f32 %v6334, %v6500
    %v6502 = vpop.f32.mrb[0].mxu0
    %6503 = vdwg.mxu0
    %v6504 = vld [vmem:[%s9] sm:$0x1]
    %v6506 = vlaneseq
    %v6507 = vshrl.u32 %v6506, 7
    %v6508 = vsub.s32 0, %v6507
    %v6509 = vrot.slane %v6504, %v6508
    %v6511 = vadd.f32 %v6501, %v6509
    %v6512 = vsel %vm54, %v6511, -inf
    %6513 = vmax.xlane.f32.xlu0 %v6512
    %v6514 = vpop.xlane.xlu0 %6513
    %v6515 = vsub.f32 %v6511, %v6514
    %v6516 = vmul.f32 %v6515, 1.442695
    %v6517 = vpow.pop %v6516
    %v6518 = vsel %vm54, %v6517, 0.0
    %6519 = vadd.xlane.f32.xlu0 %v6518
    %v6520 = vpop.xlane.xlu0 %6519
    %v6521 = vrcp.pop %v6520
    %v6522 = vmul.f32 %v6517, %v6521
    %6523 = vst.msk [vmem:[#allocation5] sm:$0x3] %vm54, %v6522
    %v6524 = vld [vmem:[%s10] sm:$0xff]
    %v6525 = vld [vmem:[%s10 + $0x8] sm:$0xff]
    %v6526 = vld [vmem:[%s10 + $0x10] sm:$0xff]
    %v6527 = vld [vmem:[%s10 + $0x18] sm:$0xff]
    %v6528 = vld [vmem:[%s10 + $0x20] sm:$0xff]
    %v6529 = vld [vmem:[%s10 + $0x28] sm:$0xff]
    %v6530 = vld [vmem:[%s10 + $0x30] sm:$0xff]
    %v6531 = vld [vmem:[%s10 + $0x38] sm:$0xff]
    %v6532 = vld [vmem:[%s11] sm:$0x1]
    %v6534 = vlaneseq
    %v6535 = vshrl.u32 %v6534, 7
    %v6536 = vsub.s32 0, %v6535
    %v6537 = vrot.slane %v6532, %v6536
    %v6555 = vlaneseq
    %v6556 = vshrl.u32 %v6555, 7
    %v6557 = vsub.s32 %v6169, %v6556
    %v6558 = vrot.slane %v6120, %v6557
    %v6559 = vlaneseq
    %v6560 = vshrl.u32 %v6559, 7
    %v6561 = vsub.s32 %v6174, %v6560
    %v6562 = vrot.slane %v6121, %v6561
    %v6563 = vsel %vm6179, %v6562, %v6558
    %v6564 = vlaneseq
    %v6565 = vshrl.u32 %v6564, 7
    %v6566 = vsub.s32 %v6181, %v6565
    %v6567 = vrot.slane %v6122, %v6566
    %v6568 = vsel %vm6186, %v6567, %v6563
    %v6569 = vlaneseq
    %v6570 = vshrl.u32 %v6569, 7
    %v6571 = vsub.s32 %v6188, %v6570
    %v6572 = vrot.slane %v6123, %v6571
    %v6573 = vsel %vm6193, %v6572, %v6568
    %v6574 = vlaneseq
    %v6575 = vshrl.u32 %v6574, 7
    %v6576 = vsub.s32 %v6195, %v6575
    %v6577 = vrot.slane %v6124, %v6576
    %v6578 = vsel %vm6200, %v6577, %v6573
    %v6579 = vlaneseq
    %v6580 = vshrl.u32 %v6579, 7
    %v6581 = vsub.s32 %v6202, %v6580
    %v6582 = vrot.slane %v6125, %v6581
    %v6583 = vsel %vm6207, %v6582, %v6578
    %v6584 = vlaneseq
    %v6585 = vshrl.u32 %v6584, 7
    %v6586 = vsub.s32 %v6209, %v6585
    %v6587 = vrot.slane %v6126, %v6586
    %v6588 = vsel %vm6214, %v6587, %v6583
    %v6589 = vlaneseq
    %v6590 = vshrl.u32 %v6589, 7
    %v6591 = vsub.s32 %v6216, %v6590
    %v6592 = vrot.slane %v6127, %v6591
    %v6593 = vsel %vm6221, %v6592, %v6588
    %v6594 = vlaneseq
    %v6595 = vshrl.u32 %v6594, 7
    %v6596 = vsub.s32 %v6169, %v6595
    %v6597 = vrot.slane %v6128, %v6596
    %v6598 = vlaneseq
    %v6599 = vshrl.u32 %v6598, 7
    %v6600 = vsub.s32 %v6174, %v6599
    %v6601 = vrot.slane %v6129, %v6600
    %v6602 = vsel %vm6179, %v6601, %v6597
    %v6603 = vlaneseq
    %v6604 = vshrl.u32 %v6603, 7
    %v6605 = vsub.s32 %v6181, %v6604
    %v6606 = vrot.slane %v6130, %v6605
    %v6607 = vsel %vm6186, %v6606, %v6602
    %v6608 = vlaneseq
    %v6609 = vshrl.u32 %v6608, 7
    %v6610 = vsub.s32 %v6188, %v6609
    %v6611 = vrot.slane %v6131, %v6610
    %v6612 = vsel %vm6193, %v6611, %v6607
    %v6613 = vlaneseq
    %v6614 = vshrl.u32 %v6613, 7
    %v6615 = vsub.s32 %v6195, %v6614
    %v6616 = vrot.slane %v6132, %v6615
    %v6617 = vsel %vm6200, %v6616, %v6612
    %v6618 = vlaneseq
    %v6619 = vshrl.u32 %v6618, 7
    %v6620 = vsub.s32 %v6202, %v6619
    %v6621 = vrot.slane %v6133, %v6620
    %v6622 = vsel %vm6207, %v6621, %v6617
    %v6623 = vlaneseq
    %v6624 = vshrl.u32 %v6623, 7
    %v6625 = vsub.s32 %v6209, %v6624
    %v6626 = vrot.slane %v6134, %v6625
    %v6627 = vsel %vm6214, %v6626, %v6622
    %v6628 = vlaneseq
    %v6629 = vshrl.u32 %v6628, 7
    %v6630 = vsub.s32 %v6216, %v6629
    %v6631 = vrot.slane %v6135, %v6630
    %v6632 = vsel %vm6221, %v6631, %v6627
    %v6633 = vsel %vm6262, %v6632, %v6593
    %v6634 = vsel %vm6264, %v6633, 0
    %6636 = vmatprep.subr.mxu0 0.0
    %6637 = vmatpush1.msra.mxu0 %v6524
    %6638 = vmatprep.subr.mxu0 0.0
    %6639 = vmatpush1.msra.mxu0 %v6525
    %6640 = vmatprep.subr.mxu0 0.0
    %6641 = vmatpush1.msra.mxu0 %v6526
    %6642 = vmatprep.subr.mxu0 0.0
    %6643 = vmatpush1.msra.mxu0 %v6527
    %6644 = vmatprep.subr.mxu0 0.0
    %6645 = vmatpush1.msra.mxu0 %v6528
    %6646 = vmatprep.subr.mxu0 0.0
    %6647 = vmatpush1.msra.mxu0 %v6529
    %6648 = vmatprep.subr.mxu0 0.0
    %6649 = vmatpush1.msra.mxu0 %v6530
    %6650 = vmatprep.subr.mxu0 0.0
    %6651 = vmatpush1.msra.mxu0 %v6531
    %6652 = vmatprep.subr.mxu0 0.0
    %6653 = vmatpush1.msra.mxu0 0.0
    %6654 = vmatprep.subr.mxu0 0.0
    %6655 = vmatpush1.msra.mxu0 0.0
    %6656 = vmatprep.subr.mxu0 0.0
    %6657 = vmatpush1.msra.mxu0 0.0
    %6658 = vmatprep.subr.mxu0 0.0
    %6659 = vmatpush1.msra.mxu0 0.0
    %6660 = vmatprep.subr.mxu0 0.0
    %6661 = vmatpush1.msra.mxu0 0.0
    %6662 = vmatprep.subr.mxu0 0.0
    %6663 = vmatpush1.msra.mxu0 0.0
    %6664 = vmatprep.subr.mxu0 0.0
    %6665 = vmatpush1.msra.mxu0 0.0
    %6666 = vmatprep.subr.mxu0 0.0
    %6667 = vmatpush1.msra.mxu0 0.0
    %6668 = vmatprep.subr.mxu0 0.0
    %6669 = vmatpush1.msra.mxu0 0.0
    %6670 = vmatprep.subr.mxu0 0.0
    %6671 = vmatpush1.msra.mxu0 0.0
    %6672 = vmatprep.subr.mxu0 0.0
    %6673 = vmatpush1.msra.mxu0 0.0
    %6674 = vmatprep.subr.mxu0 0.0
    %6675 = vmatpush1.msra.mxu0 0.0
    %6676 = vmatprep.subr.mxu0 0.0
    %6677 = vmatpush1.msra.mxu0 0.0
    %6678 = vmatprep.subr.mxu0 0.0
    %6679 = vmatpush1.msra.mxu0 0.0
    %6680 = vmatprep.subr.mxu0 0.0
    %6681 = vmatpush1.msra.mxu0 0.0
    %6682 = vmatprep.subr.mxu0 0.0
    %6683 = vmatpush1.msra.mxu0 0.0
    %6684 = vmatprep.subr.mxu0 0.0
    %6685 = vmatpush1.msra.mxu0 0.0
    %6686 = vmatprep.subr.mxu0 0.0
    %6687 = vmatpush1.msra.mxu0 0.0
    %6688 = vmatprep.subr.mxu0 0.0
    %6689 = vmatpush1.msra.mxu0 0.0
    %6690 = vmatprep.subr.mxu0 0.0
    %6691 = vmatpush1.msra.mxu0 0.0
    %6692 = vmatprep.subr.mxu0 0.0
    %6693 = vmatpush1.msra.mxu0 0.0
    %6694 = vmatprep.subr.mxu0 0.0
    %6695 = vmatpush1.msra.mxu0 0.0
    %6696 = vmatprep.subr.mxu0 0.0
    %6697 = vmatpush1.msra.mxu0 0.0
    %6698 = vmatprep.subr.mxu0 0.0
    %6699 = vmatpush1.msra.mxu0 0.0
    %6700 = vmatprep.mubr.f32.mxu0 0.0
    %6701 = vmatmul.mubr.f32.gmra.mrb[0].mxu0 %v6634
    %v6702 = vpop.f32.mrb[0].mxu0
    %v6703 = vadd.f32 %v6537, %v6702
    %v6704 = vpop.f32.mrb[0].mxu0
    %6705 = vdwg.mxu0
    %v6706 = vmax.f32 %v6703, 0.0
    %v6707 = vld [vmem:[%s12] sm:$0xff]
    %v6708 = vld [vmem:[%s12 + $0x8] sm:$0xff]
    %v6709 = vld [vmem:[%s12 + $0x10] sm:$0xff]
    %v6710 = vld [vmem:[%s12 + $0x18] sm:$0xff]
    %v6711 = vld [vmem:[#allocation4] sm:$0x1]
    %v6713 = vlaneseq
    %v6714 = vshrl.u32 %v6713, 7
    %v6715 = vsub.s32 0, %v6714
    %v6716 = vrot.slane %v6711, %v6715
    %v6719 = vsel %vm52, %v6706, 0
    %6721 = vmatprep.subr.mxu0 0.0
    %6722 = vmatpush1.msra.mxu0 %v6707
    %6723 = vmatprep.subr.mxu0 0.0
    %6724 = vmatpush1.msra.mxu0 %v6708
    %6725 = vmatprep.subr.mxu0 0.0
    %6726 = vmatpush1.msra.mxu0 %v6709
    %6727 = vmatprep.subr.mxu0 0.0
    %6728 = vmatpush1.msra.mxu0 %v6710
    %6729 = vmatprep.subr.mxu0 0.0
    %6730 = vmatpush1.msra.mxu0 0.0
    %6731 = vmatprep.subr.mxu0 0.0
    %6732 = vmatpush1.msra.mxu0 0.0
    %6733 = vmatprep.subr.mxu0 0.0
    %6734 = vmatpush1.msra.mxu0 0.0
    %6735 = vmatprep.subr.mxu0 0.0
    %6736 = vmatpush1.msra.mxu0 0.0
    %6737 = vmatprep.subr.mxu0 0.0
    %6738 = vmatpush1.msra.mxu0 0.0
    %6739 = vmatprep.subr.mxu0 0.0
    %6740 = vmatpush1.msra.mxu0 0.0
    %6741 = vmatprep.subr.mxu0 0.0
    %6742 = vmatpush1.msra.mxu0 0.0
    %6743 = vmatprep.subr.mxu0 0.0
    %6744 = vmatpush1.msra.mxu0 0.0
    %6745 = vmatprep.subr.mxu0 0.0
    %6746 = vmatpush1.msra.mxu0 0.0
    %6747 = vmatprep.subr.mxu0 0.0
    %6748 = vmatpush1.msra.mxu0 0.0
    %6749 = vmatprep.subr.mxu0 0.0
    %6750 = vmatpush1.msra.mxu0 0.0
    %6751 = vmatprep.subr.mxu0 0.0
    %6752 = vmatpush1.msra.mxu0 0.0
    %6753 = vmatprep.subr.mxu0 0.0
    %6754 = vmatpush1.msra.mxu0 0.0
    %6755 = vmatprep.subr.mxu0 0.0
    %6756 = vmatpush1.msra.mxu0 0.0
    %6757 = vmatprep.subr.mxu0 0.0
    %6758 = vmatpush1.msra.mxu0 0.0
    %6759 = vmatprep.subr.mxu0 0.0
    %6760 = vmatpush1.msra.mxu0 0.0
    %6761 = vmatprep.subr.mxu0 0.0
    %6762 = vmatpush1.msra.mxu0 0.0
    %6763 = vmatprep.subr.mxu0 0.0
    %6764 = vmatpush1.msra.mxu0 0.0
    %6765 = vmatprep.subr.mxu0 0.0
    %6766 = vmatpush1.msra.mxu0 0.0
    %6767 = vmatprep.subr.mxu0 0.0
    %6768 = vmatpush1.msra.mxu0 0.0
    %6769 = vmatprep.subr.mxu0 0.0
    %6770 = vmatpush1.msra.mxu0 0.0
    %6771 = vmatprep.subr.mxu0 0.0
    %6772 = vmatpush1.msra.mxu0 0.0
    %6773 = vmatprep.subr.mxu0 0.0
    %6774 = vmatpush1.msra.mxu0 0.0
    %6775 = vmatprep.subr.mxu0 0.0
    %6776 = vmatpush1.msra.mxu0 0.0
    %6777 = vmatprep.subr.mxu0 0.0
    %6778 = vmatpush1.msra.mxu0 0.0
    %6779 = vmatprep.subr.mxu0 0.0
    %6780 = vmatpush1.msra.mxu0 0.0
    %6781 = vmatprep.subr.mxu0 0.0
    %6782 = vmatpush1.msra.mxu0 0.0
    %6783 = vmatprep.subr.mxu0 0.0
    %6784 = vmatpush1.msra.mxu0 0.0
    %6785 = vmatprep.mubr.f32.mxu0 0.0
    %6786 = vmatmul.mubr.f32.gmra.mrb[0].mxu0 %v6719
    %v6787 = vpop.f32.mrb[0].mxu0
    %v6788 = vadd.f32 %v6716, %v6787
    %v6789 = vpop.f32.mrb[0].mxu0
    %6790 = vdwg.mxu0
    %v6791 = vtanh.pop %v6788
    %vm6792 = vcmask 1024
    %6793 = vst.msk [vmem:[%s15] sm:$0x3] %vm6792, %v6791
    // Predicated region
    $region58: #{pv_model_forward.1} parent=1 // pred_check
      _
    $region59: #{pv_model_forward.1} parent=1 // pred_check_branch
      %6795 = sbr.rel (0) target = $region61
    $region60: #{pv_model_forward.1} parent=1 // pred_region
      %s6797 = ssub.s32 32, 32
      %6798 = vsyncadd [#allocation6], %s6797
      %s6800 = sshll.u32 [#allocation5], 4
      %s6801 = int_to_ptr.vmem [resolvable:$true] %s6800
      %6803 = dma.vmem_to_hbm [thread:$0]  %s6801, 32, %s14, [#allocation6]
    $region61: #{pv_model_forward.1} parent=1 // pred_fallthru
      _
    // Predicated region
    $region62: #{pv_model_forward.1} parent=1 // pred_check
      _
    $region63: #{pv_model_forward.1} parent=1 // pred_check_branch
      %6805 = sbr.rel (0) target = $region65
    $region64: #{pv_model_forward.1} parent=1 // pred_region
      _
    $region65: #{pv_model_forward.1} parent=1 // pred_fallthru
      _
    // Predicated region
    $region66: #{pv_model_forward.1} parent=1 // pred_check
      _
    $region67: #{pv_model_forward.1} parent=1 // pred_check_branch
      %6807 = sbr.rel (0) target = $region69
    $region68: #{pv_model_forward.1} parent=1 // pred_region
      %6808 = dma.done [#allocation6], 32
    $region69: #{pv_model_forward.1} parent=1 // pred_fallthru
      _
    // Predicated region
    $region70: #{pv_model_forward.1} parent=1 // pred_check
      _
    $region71: #{pv_model_forward.1} parent=1 // pred_check_branch
      %6810 = sbr.rel (0) target = $region73
    $region72: #{pv_model_forward.1} parent=1 // pred_region
      _
    $region73: #{pv_model_forward.1} parent=1 // pred_fallthru
      _
    %6811 = vsyncpa [#allocation6], 1

</llo_original>
